<compile_context>
chip_gen: v7x
topology: tpu7x:2x2x1
jax: 0.10.0
libtpu: 0.0.40
codegen_flags: <defaults>
</compile_context>

<pallas_src>
import functools

import jax
import jax.numpy as jnp
from jax.experimental import pallas as pl
from jax.experimental.pallas import tpu as pltpu

LANE = 128


def rnn_decoder_kernel(
    x_ref,         # (T_in, BN, Cp) f32   burn-in inputs only, lane-padded
    bg_row_ref,    # (BE, BN)  bf16       one-hot gather (edge source "row")
    bg_col_ref,    # (BE, BN)  bf16       one-hot gather (edge target "col")
    bg_col_t_ref,  # (BN, BE)  bf16       transpose of bg_col (scatter_add over col)
    w1_top_ref,    # (H, 3H)   bf16       msg_fc1 fused over experts, rows for h[row]
    w1_bot_ref,    # (H, 3H)   bf16       msg_fc1 fused over experts, rows for h[col]
    b1_ref,        # (1, 3H)   f32
    w2_ref,        # (3H, 3H)  bf16       msg_fc2, block-diag over experts
    b2_ref,        # (1, 3H)   f32
    w_in_ref,      # (Cp, 3H)  bf16       input_r | input_i | input_n fused (zero rows > Cin)
    b_in_ref,      # (1, 3H)   f32
    w_hid3_ref,    # (3H, 3H)  bf16       [w_hid_fused; w_hid_fused; w_hid_fused]
    w_out1_ref,    # (H, H)    bf16
    b_out1_ref,    # (1, H)    f32
    w_out2_ref,    # (H, H)    bf16
    b_out2_ref,    # (1, H)    f32
    w_out3_ref,    # (H, Cp)   bf16       zero cols > Cin
    b_out3_ref,    # (1, Cp)   f32        zero beyond Cin
    pred_ref,      # out: (T, BN, Cp) f32
    *,
    burn_in_steps: int,
):
    T, BN, Cp = pred_ref.shape
    H = w_out1_ref.shape[0]
    bf16 = jnp.bfloat16

    # Loop-invariant loads, hoisted once.
    bg_row = bg_row_ref[...]
    bg_col = bg_col_ref[...]
    bg_col_t = bg_col_t_ref[...]
    w1_top, w1_bot, b1 = w1_top_ref[...], w1_bot_ref[...], b1_ref[...]
    w2, b2 = w2_ref[...], b2_ref[...]
    w_in, b_in, w_hid3 = w_in_ref[...], b_in_ref[...], w_hid3_ref[...]
    w_out1, b_out1 = w_out1_ref[...], b_out1_ref[...]
    w_out2, b_out2 = w_out2_ref[...], b_out2_ref[...]
    w_out3, b_out3 = w_out3_ref[...], b_out3_ref[...]

    def mm(a, b):
        # single-pass bf16 MXU matmul, f32 accumulation
        # (.astype is a no-op when the operand is already bf16)
        return jnp.dot(a.astype(bf16), b.astype(bf16),
                       preferred_element_type=jnp.float32)

    hidden = jnp.zeros((BN, H), jnp.float32)   # recurrent state, kept f32
    prev = jnp.zeros((BN, Cp), jnp.float32)    # previous prediction (feedback)

    # T is small and static: the Python loop is the fully-unrolled form; the
    # burn-in vs. feedback choice resolves at compile time (no per-step select).
    for t in range(T):
        use_input = (t < burn_in_steps) or (t == 0)
        xb = x_ref[t] if use_input else prev                        # (BN, Cp) f32
        xb_bf = xb.astype(bf16)                                     # cast once/step

        # --- message MLP, 3 experts fused along lanes ----------------------
        h_bf = hidden.astype(bf16)            # single recurrent-state cast/step
        # gather-first: exact 0/1 selection in front of the bf16 layer-1
        # matmul -> only one rounding of `hidden` per step.
        h_row = mm(bg_row, h_bf)                                    # (BE, H)
        h_col = mm(bg_col, h_bf)                                    # (BE, H)
        msg = jnp.tanh(mm(h_row, w1_top) + mm(h_col, w1_bot) + b1)  # (BE, 3H)
        # TODO(synk): F.dropout is identity at inference (training=False).
        msg = jnp.tanh(mm(msg, w2) + b2)                            # (BE, 3H)

        # scatter_add over col; the 3-expert reduction is folded into w_hid3,
        # so no lane-slice sum on the dependent chain.
        gh = mm(mm(bg_col_t, msg), w_hid3)                          # (BN, 3H)

        # --- fused GRU gates ------------------------------------------------
        gx = mm(xb_bf, w_in) + b_in                                 # (BN, 3H)
        r = jax.nn.sigmoid(gx[:, :H] + gh[:, :H])
        i_g = jax.nn.sigmoid(gx[:, H:2 * H] + gh[:, H:2 * H])
        n_g = jnp.tanh(gx[:, 2 * H:] + r * gh[:, 2 * H:])
        hidden = (1.0 - i_g) * n_g + i_g * hidden                   # (BN, H)

        # --- output MLP (+ residual); out_fc3 keeps its ReLU per the spec ---
        hn_bf = hidden.astype(bf16)
        p = jax.nn.relu(mm(hn_bf, w_out1) + b_out1)
        p = jax.nn.relu(mm(p, w_out2) + b_out2)
        p = jax.nn.relu(mm(p, w_out3) + b_out3)                     # (BN, Cp)
        p = xb + p                                                  # padded lanes stay 0

        pred_ref[t] = p.astype(pred_ref.dtype)   # lane-dense VMEM store
        prev = p


def rnn_decoder_forward(inputs_btnc, edge_index, params, burn_in_steps):
    """inputs_btnc: [B, T, N, Cin] (PyTorch convention). Returns [B, T, N, Cin]."""
    B, T, N, Cin = inputs_btnc.shape
    H = params["w_hid"].shape[-1]
    row, col = edge_index
    E = row.shape[0]
    BN, BE = B * N, B * E
    Cp = ((Cin + LANE - 1) // LANE) * LANE          # lane-padded channel dim
    f32, bf16 = jnp.float32, jnp.bfloat16
    burn_in_steps = int(burn_in_steps)

    # ---- fuse weights once (glue, outside the kernel) ------------------------
    w1f = jnp.concatenate([params["w_msg1"][i] for i in range(3)], axis=-1)   # (2H,3H)
    w1_top = w1f[:H].astype(bf16)
    w1_bot = w1f[H:].astype(bf16)
    b1f = jnp.concatenate([params["b_msg1"][i] for i in range(3)], axis=-1).astype(f32)
    w2f = jax.scipy.linalg.block_diag(
        params["w_msg2"][0], params["w_msg2"][1], params["w_msg2"][2]).astype(bf16)
    b2f = jnp.concatenate([params["b_msg2"][i] for i in range(3)], axis=-1).astype(f32)
    w_inf = jnp.concatenate([params["w_in"][i] for i in range(3)], axis=-1)   # (Cin,3H)
    w_inf = jnp.pad(w_inf, ((0, Cp - Cin), (0, 0))).astype(bf16)              # (Cp,3H)
    b_inf = jnp.concatenate([params["b_in"][i] for i in range(3)], axis=-1).astype(f32)
    w_hidf = jnp.concatenate([params["w_hid"][i] for i in range(3)], axis=-1) # (H,3H)
    # expert-sum reduction [I;I;I] folded into the GRU hidden weight:
    w_hid3 = jnp.concatenate([w_hidf, w_hidf, w_hidf], axis=0).astype(bf16)   # (3H,3H)
    w_out3 = jnp.pad(params["w_out3"], ((0, 0), (0, Cp - Cin))).astype(bf16)  # (H,Cp)
    b_out3 = jnp.pad(params["b_out3"], ((0, 0), (0, Cp - Cin))).astype(f32)   # (1,Cp)

    # ---- batched one-hot gather / scatter matrices (block-diag over batch) ---
    # TODO(synk): for large B / graphs replace these O(B^2*E*N) one-hots with
    # per-batch (E,N) selectors or an SMEM-prefetched-index DMA gather.
    node_ids = jnp.arange(BN, dtype=jnp.int32)[None, :]
    row_g = (jnp.arange(B, dtype=jnp.int32)[:, None] * N + row[None, :]).reshape(BE, 1)
    col_g = (jnp.arange(B, dtype=jnp.int32)[:, None] * N + col[None, :]).reshape(BE, 1)
    bg_row = (row_g == node_ids).astype(bf16)     # (BE, BN)
    bg_col = (col_g == node_ids).astype(bf16)     # (BE, BN)
    bg_col_t = bg_col.T                           # (BN, BE)

    # only the burn-in time slices are ever read by the kernel
    T_in = min(T, max(burn_in_steps, 1))
    x_tbn = jnp.transpose(inputs_btnc[:, :T_in], (1, 0, 2, 3)).reshape(T_in, BN, Cin)
    x_tbn = jnp.pad(x_tbn, ((0, 0), (0, 0), (0, Cp - Cin))).astype(f32)       # (T_in,BN,Cp)

    operands = [
        x_tbn, bg_row, bg_col, bg_col_t,
        w1_top, w1_bot, b1f, w2f, b2f,
        w_inf, b_inf, w_hid3,
        params["w_out1"].astype(bf16), params["b_out1"].astype(f32),
        params["w_out2"].astype(bf16), params["b_out2"].astype(f32),
        w_out3, b_out3,
    ]

    def full_spec(shape):
        nd = len(shape)
        return pl.BlockSpec(shape, lambda i, _n=nd: (0,) * _n)

    kernel = functools.partial(rnn_decoder_kernel, burn_in_steps=burn_in_steps)

    preds_flat = pl.pallas_call(
        kernel,
        out_shape=jax.ShapeDtypeStruct((T, BN, Cp), f32),
        grid_spec=pltpu.PrefetchScalarGridSpec(
            num_scalar_prefetch=0,
            grid=(1,),                     # whole sequence in one grid step
            in_specs=[full_spec(op.shape) for op in operands],
            out_specs=full_spec((T, BN, Cp)),
        ),
        compiler_params=pltpu.CompilerParams(
            dimension_semantics=("arbitrary",),
            vmem_limit_bytes=32 * 1024 * 1024,
        ),
    )(*operands)

    preds = preds_flat[:, :, :Cin].reshape(T, B, N, Cin)   # drop lane padding
    return jnp.transpose(preds, (1, 0, 2, 3))


def rnn_decoder_reference(inputs_btnc, edge_index, params, burn_in_steps):
    """Pure-JAX f32 reference mirroring the PyTorch forward (training=False)."""
    B, T, N, Cin = inputs_btnc.shape
    H = params["w_hid"].shape[-1]
    row, col = edge_index
    hp = jax.lax.Precision.HIGHEST

    def lin(x, w, b=None):
        y = jnp.matmul(x, w, precision=hp)
        return y if b is None else y + b

    hidden = jnp.zeros((B, N, H), jnp.float32)
    preds = []
    prev = None
    for t in range(T):
        x = inputs_btnc[:, t] if (t < burn_in_steps or t == 0) else prev
        pre_msg = jnp.concatenate([hidden[:, row, :], hidden[:, col, :]], axis=-1)
        all_msgs = 0.0
        for i in range(3):
            msg = jnp.tanh(lin(pre_msg, params["w_msg1"][i], params["b_msg1"][i]))
            msg = jnp.tanh(lin(msg, params["w_msg2"][i], params["b_msg2"][i]))
            all_msgs = all_msgs + msg
        agg = jnp.zeros((B, N, H), jnp.float32).at[:, col, :].add(all_msgs)
        r = jax.nn.sigmoid(lin(x, params["w_in"][0], params["b_in"][0])
                           + lin(agg, params["w_hid"][0]))
        i_g = jax.nn.sigmoid(lin(x, params["w_in"][1], params["b_in"][1])
                             + lin(agg, params["w_hid"][1]))
        n_g = jnp.tanh(lin(x, params["w_in"][2], params["b_in"][2])
                       + r * lin(agg, params["w_hid"][2]))
        hidden = (1.0 - i_g) * n_g + i_g * hidden
        p = jax.nn.relu(lin(hidden, params["w_out1"], params["b_out1"]))
        p = jax.nn.relu(lin(p, params["w_out2"], params["b_out2"]))
        p = jax.nn.relu(lin(p, params["w_out3"], params["b_out3"]))
        p = x + p
        preds.append(p)
        prev = p
    return jnp.stack(preds, axis=1)


if __name__ == "__main__":
    # small, module-consistent shapes
    B, T, N, Cin, H = 2, 8, 5, 4, 32
    burn_in_steps = 4        # args.burn_in_steps != 0 -> steps = inputs.shape[1]

    key = jax.random.PRNGKey(0)
    ks = jax.random.split(key, 16)

    def init(k, shape, scale=0.1):
        return (scale * jax.random.normal(k, shape)).astype(jnp.float32)

    params = {
        "w_msg1": init(ks[0], (3, 2 * H, H)),
        "b_msg1": init(ks[1], (3, 1, H)),
        "w_msg2": init(ks[2], (3, H, H)),
        "b_msg2": init(ks[3], (3, 1, H)),
        "w_hid":  init(ks[4], (3, H, H)),        # hidden_r / hidden_i / hidden_h
        "w_in":   init(ks[5], (3, Cin, H)),      # input_r / input_i / input_n
        "b_in":   init(ks[6], (3, 1, H)),
        "w_out1": init(ks[7], (H, H)),
        "b_out1": init(ks[8], (1, H)),
        "w_out2": init(ks[9], (H, H)),
        "b_out2": init(ks[10], (1, H)),
        "w_out3": init(ks[11], (H, Cin)),
        "b_out3": init(ks[12], (1, Cin)),
    }

    inputs = 0.5 * jax.random.normal(ks[13], (B, T, N, Cin), jnp.float32)

    # fully-connected directed graph without self-loops
    pairs = [(i, j) for i in range(N) for j in range(N) if i != j]
    row = jnp.array([p[0] for p in pairs], dtype=jnp.int32)
    col = jnp.array([p[1] for p in pairs], dtype=jnp.int32)
    edge_index = (row, col)

    out = rnn_decoder_forward(inputs, edge_index, params, burn_in_steps)
    out = jax.block_until_ready(out)

    ref = rnn_decoder_reference(inputs, edge_index, params, burn_in_steps)
    max_diff = float(jnp.max(jnp.abs(out - ref)))
    assert out.shape == (B, T, N, Cin), out.shape
    # Kernel uses bf16 matmul operands (f32 accumulation); the recurrent
    # feedback over T steps accumulates bf16 rounding vs the f32 (HIGHEST)
    # reference, hence a looser-than-f32 tolerance. Real bugs show up as O(0.1+).
    assert max_diff < 5e-2, f"mismatch vs reference: {max_diff}"

    print("KERNEL_OK")
</pallas_src>

<mosaic_0001>
module attributes {stable_mosaic.version = 11 : i64} {
  func.func @rnn_decoder_kernel(%arg0: i32, %arg1: memref<4x10x128xf32, #tpu.memory_space<vmem>>, %arg2: memref<40x10xbf16, #tpu.memory_space<vmem>>, %arg3: memref<40x10xbf16, #tpu.memory_space<vmem>>, %arg4: memref<10x40xbf16, #tpu.memory_space<vmem>>, %arg5: memref<32x96xbf16, #tpu.memory_space<vmem>>, %arg6: memref<32x96xbf16, #tpu.memory_space<vmem>>, %arg7: memref<1x96xf32, #tpu.memory_space<vmem>>, %arg8: memref<96x96xbf16, #tpu.memory_space<vmem>>, %arg9: memref<1x96xf32, #tpu.memory_space<vmem>>, %arg10: memref<128x96xbf16, #tpu.memory_space<vmem>>, %arg11: memref<1x96xf32, #tpu.memory_space<vmem>>, %arg12: memref<96x96xbf16, #tpu.memory_space<vmem>>, %arg13: memref<32x32xbf16, #tpu.memory_space<vmem>>, %arg14: memref<1x32xf32, #tpu.memory_space<vmem>>, %arg15: memref<32x32xbf16, #tpu.memory_space<vmem>>, %arg16: memref<1x32xf32, #tpu.memory_space<vmem>>, %arg17: memref<32x128xbf16, #tpu.memory_space<vmem>>, %arg18: memref<1x128xf32, #tpu.memory_space<vmem>>, %arg19: memref<8x10x128xf32, #tpu.memory_space<vmem>>) attributes {dimension_semantics = [#tpu.dimension_semantics<arbitrary>], iteration_bounds = array<i64: 1>, scalar_prefetch = 0 : i64, scratch_operands = 0 : i64, tpu.core_type = #tpu.core_type<tc>, window_params = [{pipeline_mode = #tpu.pipeline_mode<synchronous>, transform_indices = @transform_0, window_bounds = array<i64: 4, 10, 128>}, {pipeline_mode = #tpu.pipeline_mode<synchronous>, transform_indices = @transform_1, window_bounds = array<i64: 40, 10>}, {pipeline_mode = #tpu.pipeline_mode<synchronous>, transform_indices = @transform_2, window_bounds = array<i64: 40, 10>}, {pipeline_mode = #tpu.pipeline_mode<synchronous>, transform_indices = @transform_3, window_bounds = array<i64: 10, 40>}, {pipeline_mode = #tpu.pipeline_mode<synchronous>, transform_indices = @transform_4, window_bounds = array<i64: 32, 96>}, {pipeline_mode = #tpu.pipeline_mode<synchronous>, transform_indices = @transform_5, window_bounds = array<i64: 32, 96>}, {pipeline_mode = #tpu.pipeline_mode<synchronous>, transform_indices = @transform_6, window_bounds = array<i64: 1, 96>}, {pipeline_mode = #tpu.pipeline_mode<synchronous>, transform_indices = @transform_7, window_bounds = array<i64: 96, 96>}, {pipeline_mode = #tpu.pipeline_mode<synchronous>, transform_indices = @transform_8, window_bounds = array<i64: 1, 96>}, {pipeline_mode = #tpu.pipeline_mode<synchronous>, transform_indices = @transform_9, window_bounds = array<i64: 128, 96>}, {pipeline_mode = #tpu.pipeline_mode<synchronous>, transform_indices = @transform_10, window_bounds = array<i64: 1, 96>}, {pipeline_mode = #tpu.pipeline_mode<synchronous>, transform_indices = @transform_11, window_bounds = array<i64: 96, 96>}, {pipeline_mode = #tpu.pipeline_mode<synchronous>, transform_indices = @transform_12, window_bounds = array<i64: 32, 32>}, {pipeline_mode = #tpu.pipeline_mode<synchronous>, transform_indices = @transform_13, window_bounds = array<i64: 1, 32>}, {pipeline_mode = #tpu.pipeline_mode<synchronous>, transform_indices = @transform_14, window_bounds = array<i64: 32, 32>}, {pipeline_mode = #tpu.pipeline_mode<synchronous>, transform_indices = @transform_15, window_bounds = array<i64: 1, 32>}, {pipeline_mode = #tpu.pipeline_mode<synchronous>, transform_indices = @transform_16, window_bounds = array<i64: 32, 128>}, {pipeline_mode = #tpu.pipeline_mode<synchronous>, transform_indices = @transform_17, window_bounds = array<i64: 1, 128>}, {pipeline_mode = #tpu.pipeline_mode<synchronous>, transform_indices = @transform_18, window_bounds = array<i64: 8, 10, 128>}]} {
    %c0 = arith.constant 0 : index
    %c0_0 = arith.constant 0 : index
    %0 = vector.load %arg2[%c0, %c0_0] : memref<40x10xbf16, #tpu.memory_space<vmem>>, vector<40x10xbf16>
    %c0_1 = arith.constant 0 : index
    %c0_2 = arith.constant 0 : index
    %1 = vector.load %arg3[%c0_1, %c0_2] : memref<40x10xbf16, #tpu.memory_space<vmem>>, vector<40x10xbf16>
    %c0_3 = arith.constant 0 : index
    %c0_4 = arith.constant 0 : index
    %2 = vector.load %arg4[%c0_3, %c0_4] : memref<10x40xbf16, #tpu.memory_space<vmem>>, vector<10x40xbf16>
    %c0_5 = arith.constant 0 : index
    %c0_6 = arith.constant 0 : index
    %3 = vector.load %arg5[%c0_5, %c0_6] : memref<32x96xbf16, #tpu.memory_space<vmem>>, vector<32x96xbf16>
    %c0_7 = arith.constant 0 : index
    %c0_8 = arith.constant 0 : index
    %4 = vector.load %arg6[%c0_7, %c0_8] : memref<32x96xbf16, #tpu.memory_space<vmem>>, vector<32x96xbf16>
    %c0_9 = arith.constant 0 : index
    %c0_10 = arith.constant 0 : index
    %5 = vector.load %arg7[%c0_9, %c0_10] : memref<1x96xf32, #tpu.memory_space<vmem>>, vector<1x96xf32>
    %c0_11 = arith.constant 0 : index
    %c0_12 = arith.constant 0 : index
    %6 = vector.load %arg8[%c0_11, %c0_12] : memref<96x96xbf16, #tpu.memory_space<vmem>>, vector<96x96xbf16>
    %c0_13 = arith.constant 0 : index
    %c0_14 = arith.constant 0 : index
    %7 = vector.load %arg9[%c0_13, %c0_14] : memref<1x96xf32, #tpu.memory_space<vmem>>, vector<1x96xf32>
    %c0_15 = arith.constant 0 : index
    %c0_16 = arith.constant 0 : index
    %8 = vector.load %arg10[%c0_15, %c0_16] : memref<128x96xbf16, #tpu.memory_space<vmem>>, vector<128x96xbf16>
    %c0_17 = arith.constant 0 : index
    %c0_18 = arith.constant 0 : index
    %9 = vector.load %arg11[%c0_17, %c0_18] : memref<1x96xf32, #tpu.memory_space<vmem>>, vector<1x96xf32>
    %c0_19 = arith.constant 0 : index
    %c0_20 = arith.constant 0 : index
    %10 = vector.load %arg12[%c0_19, %c0_20] : memref<96x96xbf16, #tpu.memory_space<vmem>>, vector<96x96xbf16>
    %c0_21 = arith.constant 0 : index
    %c0_22 = arith.constant 0 : index
    %11 = vector.load %arg13[%c0_21, %c0_22] : memref<32x32xbf16, #tpu.memory_space<vmem>>, vector<32x32xbf16>
    %c0_23 = arith.constant 0 : index
    %c0_24 = arith.constant 0 : index
    %12 = vector.load %arg14[%c0_23, %c0_24] : memref<1x32xf32, #tpu.memory_space<vmem>>, vector<1x32xf32>
    %c0_25 = arith.constant 0 : index
    %c0_26 = arith.constant 0 : index
    %13 = vector.load %arg15[%c0_25, %c0_26] : memref<32x32xbf16, #tpu.memory_space<vmem>>, vector<32x32xbf16>
    %c0_27 = arith.constant 0 : index
    %c0_28 = arith.constant 0 : index
    %14 = vector.load %arg16[%c0_27, %c0_28] : memref<1x32xf32, #tpu.memory_space<vmem>>, vector<1x32xf32>
    %c0_29 = arith.constant 0 : index
    %c0_30 = arith.constant 0 : index
    %15 = vector.load %arg17[%c0_29, %c0_30] : memref<32x128xbf16, #tpu.memory_space<vmem>>, vector<32x128xbf16>
    %c0_31 = arith.constant 0 : index
    %c0_32 = arith.constant 0 : index
    %16 = vector.load %arg18[%c0_31, %c0_32] : memref<1x128xf32, #tpu.memory_space<vmem>>, vector<1x128xf32>
    %cst = arith.constant 0.000000e+00 : f32
    %17 = vector.broadcast %cst : f32 to vector<10x32xf32>
    %c0_33 = arith.constant 0 : index
    %c0_34 = arith.constant 0 : index
    %c0_35 = arith.constant 0 : index
    %18 = vector.load %arg1[%c0_33, %c0_34, %c0_35] : memref<4x10x128xf32, #tpu.memory_space<vmem>>, vector<1x10x128xf32>
    %19 = vector.shape_cast %18 : vector<1x10x128xf32> to vector<10x128xf32>
    %20 = arith.truncf %19 : vector<10x128xf32> to vector<10x128xbf16>
    %21 = arith.truncf %17 : vector<10x32xf32> to vector<10x32xbf16>
    %cst_36 = arith.constant dense<0.000000e+00> : vector<40x32xf32>
    %22 = tpu.matmul %0, %21, %cst_36 {dimension_numbers = #tpu.dot_dimension_numbers<[1], [0], [0], [1], [0, 0, 1, 1], [], []>} : vector<40x10xbf16>, vector<10x32xbf16>, vector<40x32xf32> -> vector<40x32xf32>
    %cst_37 = arith.constant dense<0.000000e+00> : vector<40x32xf32>
    %23 = tpu.matmul %1, %21, %cst_37 {dimension_numbers = #tpu.dot_dimension_numbers<[1], [0], [0], [1], [0, 0, 1, 1], [], []>} : vector<40x10xbf16>, vector<10x32xbf16>, vector<40x32xf32> -> vector<40x32xf32>
    %24 = arith.truncf %22 : vector<40x32xf32> to vector<40x32xbf16>
    %cst_38 = arith.constant dense<0.000000e+00> : vector<40x96xf32>
    %25 = tpu.matmul %24, %3, %cst_38 {dimension_numbers = #tpu.dot_dimension_numbers<[1], [0], [0], [1], [0, 0, 1, 1], [], []>} : vector<40x32xbf16>, vector<32x96xbf16>, vector<40x96xf32> -> vector<40x96xf32>
    %26 = arith.truncf %23 : vector<40x32xf32> to vector<40x32xbf16>
    %cst_39 = arith.constant dense<0.000000e+00> : vector<40x96xf32>
    %27 = tpu.matmul %26, %4, %cst_39 {dimension_numbers = #tpu.dot_dimension_numbers<[1], [0], [0], [1], [0, 0, 1, 1], [], []>} : vector<40x32xbf16>, vector<32x96xbf16>, vector<40x96xf32> -> vector<40x96xf32>
    %28 = arith.addf %25, %27 : vector<40x96xf32>
    %29 = vector.broadcast %5 : vector<1x96xf32> to vector<40x96xf32>
    %30 = arith.addf %28, %29 : vector<40x96xf32>
    %31 = math.tanh %30 : vector<40x96xf32>
    %32 = arith.truncf %31 : vector<40x96xf32> to vector<40x96xbf16>
    %cst_40 = arith.constant dense<0.000000e+00> : vector<40x96xf32>
    %33 = tpu.matmul %32, %6, %cst_40 {dimension_numbers = #tpu.dot_dimension_numbers<[1], [0], [0], [1], [0, 0, 1, 1], [], []>} : vector<40x96xbf16>, vector<96x96xbf16>, vector<40x96xf32> -> vector<40x96xf32>
    %34 = vector.broadcast %7 : vector<1x96xf32> to vector<40x96xf32>
    %35 = arith.addf %33, %34 : vector<40x96xf32>
    %36 = math.tanh %35 : vector<40x96xf32>
    %37 = arith.truncf %36 : vector<40x96xf32> to vector<40x96xbf16>
    %cst_41 = arith.constant dense<0.000000e+00> : vector<10x96xf32>
    %38 = tpu.matmul %2, %37, %cst_41 {dimension_numbers = #tpu.dot_dimension_numbers<[1], [0], [0], [1], [0, 0, 1, 1], [], []>} : vector<10x40xbf16>, vector<40x96xbf16>, vector<10x96xf32> -> vector<10x96xf32>
    %39 = arith.truncf %38 : vector<10x96xf32> to vector<10x96xbf16>
    %cst_42 = arith.constant dense<0.000000e+00> : vector<10x96xf32>
    %40 = tpu.matmul %39, %10, %cst_42 {dimension_numbers = #tpu.dot_dimension_numbers<[1], [0], [0], [1], [0, 0, 1, 1], [], []>} : vector<10x96xbf16>, vector<96x96xbf16>, vector<10x96xf32> -> vector<10x96xf32>
    %cst_43 = arith.constant dense<0.000000e+00> : vector<10x96xf32>
    %41 = tpu.matmul %20, %8, %cst_43 {dimension_numbers = #tpu.dot_dimension_numbers<[1], [0], [0], [1], [0, 0, 1, 1], [], []>} : vector<10x128xbf16>, vector<128x96xbf16>, vector<10x96xf32> -> vector<10x96xf32>
    %42 = vector.broadcast %9 : vector<1x96xf32> to vector<10x96xf32>
    %43 = arith.addf %41, %42 : vector<10x96xf32>
    %44 = vector.extract_strided_slice %43 {offsets = [0, 0], sizes = [10, 32], strides = [1, 1]} : vector<10x96xf32> to vector<10x32xf32>
    %45 = vector.extract_strided_slice %40 {offsets = [0, 0], sizes = [10, 32], strides = [1, 1]} : vector<10x96xf32> to vector<10x32xf32>
    %46 = arith.addf %44, %45 : vector<10x32xf32>
    %47 = arith.negf %46 : vector<10x32xf32>
    %48 = math.exp %47 : vector<10x32xf32>
    %cst_44 = arith.constant 1.000000e+00 : f32
    %49 = vector.broadcast %cst_44 : f32 to vector<10x32xf32>
    %50 = arith.addf %49, %48 : vector<10x32xf32>
    %51 = arith.divf %49, %50 : vector<10x32xf32>
    %52 = vector.extract_strided_slice %43 {offsets = [0, 32], sizes = [10, 32], strides = [1, 1]} : vector<10x96xf32> to vector<10x32xf32>
    %53 = vector.extract_strided_slice %40 {offsets = [0, 32], sizes = [10, 32], strides = [1, 1]} : vector<10x96xf32> to vector<10x32xf32>
    %54 = arith.addf %52, %53 : vector<10x32xf32>
    %55 = arith.negf %54 : vector<10x32xf32>
    %56 = math.exp %55 : vector<10x32xf32>
    %cst_45 = arith.constant 1.000000e+00 : f32
    %57 = vector.broadcast %cst_45 : f32 to vector<10x32xf32>
    %58 = arith.addf %57, %56 : vector<10x32xf32>
    %59 = arith.divf %57, %58 : vector<10x32xf32>
    %60 = vector.extract_strided_slice %43 {offsets = [0, 64], sizes = [10, 32], strides = [1, 1]} : vector<10x96xf32> to vector<10x32xf32>
    %61 = vector.extract_strided_slice %40 {offsets = [0, 64], sizes = [10, 32], strides = [1, 1]} : vector<10x96xf32> to vector<10x32xf32>
    %62 = arith.mulf %51, %61 : vector<10x32xf32>
    %63 = arith.addf %60, %62 : vector<10x32xf32>
    %64 = math.tanh %63 : vector<10x32xf32>
    %cst_46 = arith.constant 1.000000e+00 : f32
    %65 = vector.broadcast %cst_46 : f32 to vector<10x32xf32>
    %66 = arith.subf %65, %59 : vector<10x32xf32>
    %67 = arith.mulf %66, %64 : vector<10x32xf32>
    %68 = arith.mulf %59, %17 : vector<10x32xf32>
    %69 = arith.addf %67, %68 : vector<10x32xf32>
    %70 = arith.truncf %69 : vector<10x32xf32> to vector<10x32xbf16>
    %cst_47 = arith.constant dense<0.000000e+00> : vector<10x32xf32>
    %71 = tpu.matmul %70, %11, %cst_47 {dimension_numbers = #tpu.dot_dimension_numbers<[1], [0], [0], [1], [0, 0, 1, 1], [], []>} : vector<10x32xbf16>, vector<32x32xbf16>, vector<10x32xf32> -> vector<10x32xf32>
    %72 = vector.broadcast %12 : vector<1x32xf32> to vector<10x32xf32>
    %73 = arith.addf %71, %72 : vector<10x32xf32>
    %cst_48 = arith.constant 0.000000e+00 : f32
    %74 = vector.broadcast %cst_48 : f32 to vector<10x32xf32>
    %75 = arith.maximumf %73, %74 : vector<10x32xf32>
    %76 = arith.truncf %75 : vector<10x32xf32> to vector<10x32xbf16>
    %cst_49 = arith.constant dense<0.000000e+00> : vector<10x32xf32>
    %77 = tpu.matmul %76, %13, %cst_49 {dimension_numbers = #tpu.dot_dimension_numbers<[1], [0], [0], [1], [0, 0, 1, 1], [], []>} : vector<10x32xbf16>, vector<32x32xbf16>, vector<10x32xf32> -> vector<10x32xf32>
    %78 = vector.broadcast %14 : vector<1x32xf32> to vector<10x32xf32>
    %79 = arith.addf %77, %78 : vector<10x32xf32>
    %cst_50 = arith.constant 0.000000e+00 : f32
    %80 = vector.broadcast %cst_50 : f32 to vector<10x32xf32>
    %81 = arith.maximumf %79, %80 : vector<10x32xf32>
    %82 = arith.truncf %81 : vector<10x32xf32> to vector<10x32xbf16>
    %cst_51 = arith.constant dense<0.000000e+00> : vector<10x128xf32>
    %83 = tpu.matmul %82, %15, %cst_51 {dimension_numbers = #tpu.dot_dimension_numbers<[1], [0], [0], [1], [0, 0, 1, 1], [], []>} : vector<10x32xbf16>, vector<32x128xbf16>, vector<10x128xf32> -> vector<10x128xf32>
    %84 = vector.broadcast %16 : vector<1x128xf32> to vector<10x128xf32>
    %85 = arith.addf %83, %84 : vector<10x128xf32>
    %cst_52 = arith.constant 0.000000e+00 : f32
    %86 = vector.broadcast %cst_52 : f32 to vector<10x128xf32>
    %87 = arith.maximumf %85, %86 : vector<10x128xf32>
    %88 = arith.addf %19, %87 : vector<10x128xf32>
    %c0_53 = arith.constant 0 : index
    %c0_54 = arith.constant 0 : index
    %c0_55 = arith.constant 0 : index
    %89 = vector.load %arg19[%c0_53, %c0_54, %c0_55] : memref<8x10x128xf32, #tpu.memory_space<vmem>>, vector<1x10x128xf32>
    %90 = vector.shape_cast %89 : vector<1x10x128xf32> to vector<10x128xf32>
    %91 = vector.shape_cast %88 : vector<10x128xf32> to vector<1x10x128xf32>
    tpu.vector_store %arg19[%c0_53, %c0_54, %c0_55], %91 {strides = array<i32>} : memref<8x10x128xf32, #tpu.memory_space<vmem>>, vector<1x10x128xf32>,
    %c1 = arith.constant 1 : index
    %c0_56 = arith.constant 0 : index
    %c0_57 = arith.constant 0 : index
    %92 = vector.load %arg1[%c1, %c0_56, %c0_57] : memref<4x10x128xf32, #tpu.memory_space<vmem>>, vector<1x10x128xf32>
    %93 = vector.shape_cast %92 : vector<1x10x128xf32> to vector<10x128xf32>
    %94 = arith.truncf %93 : vector<10x128xf32> to vector<10x128xbf16>
    %95 = arith.truncf %69 : vector<10x32xf32> to vector<10x32xbf16>
    %cst_58 = arith.constant dense<0.000000e+00> : vector<40x32xf32>
    %96 = tpu.matmul %0, %95, %cst_58 {dimension_numbers = #tpu.dot_dimension_numbers<[1], [0], [0], [1], [0, 0, 1, 1], [], []>} : vector<40x10xbf16>, vector<10x32xbf16>, vector<40x32xf32> -> vector<40x32xf32>
    %cst_59 = arith.constant dense<0.000000e+00> : vector<40x32xf32>
    %97 = tpu.matmul %1, %95, %cst_59 {dimension_numbers = #tpu.dot_dimension_numbers<[1], [0], [0], [1], [0, 0, 1, 1], [], []>} : vector<40x10xbf16>, vector<10x32xbf16>, vector<40x32xf32> -> vector<40x32xf32>
    %98 = arith.truncf %96 : vector<40x32xf32> to vector<40x32xbf16>
    %cst_60 = arith.constant dense<0.000000e+00> : vector<40x96xf32>
    %99 = tpu.matmul %98, %3, %cst_60 {dimension_numbers = #tpu.dot_dimension_numbers<[1], [0], [0], [1], [0, 0, 1, 1], [], []>} : vector<40x32xbf16>, vector<32x96xbf16>, vector<40x96xf32> -> vector<40x96xf32>
    %100 = arith.truncf %97 : vector<40x32xf32> to vector<40x32xbf16>
    %cst_61 = arith.constant dense<0.000000e+00> : vector<40x96xf32>
    %101 = tpu.matmul %100, %4, %cst_61 {dimension_numbers = #tpu.dot_dimension_numbers<[1], [0], [0], [1], [0, 0, 1, 1], [], []>} : vector<40x32xbf16>, vector<32x96xbf16>, vector<40x96xf32> -> vector<40x96xf32>
    %102 = arith.addf %99, %101 : vector<40x96xf32>
    %103 = vector.broadcast %5 : vector<1x96xf32> to vector<40x96xf32>
    %104 = arith.addf %102, %103 : vector<40x96xf32>
    %105 = math.tanh %104 : vector<40x96xf32>
    %106 = arith.truncf %105 : vector<40x96xf32> to vector<40x96xbf16>
    %cst_62 = arith.constant dense<0.000000e+00> : vector<40x96xf32>
    %107 = tpu.matmul %106, %6, %cst_62 {dimension_numbers = #tpu.dot_dimension_numbers<[1], [0], [0], [1], [0, 0, 1, 1], [], []>} : vector<40x96xbf16>, vector<96x96xbf16>, vector<40x96xf32> -> vector<40x96xf32>
    %108 = vector.broadcast %7 : vector<1x96xf32> to vector<40x96xf32>
    %109 = arith.addf %107, %108 : vector<40x96xf32>
    %110 = math.tanh %109 : vector<40x96xf32>
    %111 = arith.truncf %110 : vector<40x96xf32> to vector<40x96xbf16>
    %cst_63 = arith.constant dense<0.000000e+00> : vector<10x96xf32>
    %112 = tpu.matmul %2, %111, %cst_63 {dimension_numbers = #tpu.dot_dimension_numbers<[1], [0], [0], [1], [0, 0, 1, 1], [], []>} : vector<10x40xbf16>, vector<40x96xbf16>, vector<10x96xf32> -> vector<10x96xf32>
    %113 = arith.truncf %112 : vector<10x96xf32> to vector<10x96xbf16>
    %cst_64 = arith.constant dense<0.000000e+00> : vector<10x96xf32>
    %114 = tpu.matmul %113, %10, %cst_64 {dimension_numbers = #tpu.dot_dimension_numbers<[1], [0], [0], [1], [0, 0, 1, 1], [], []>} : vector<10x96xbf16>, vector<96x96xbf16>, vector<10x96xf32> -> vector<10x96xf32>
    %cst_65 = arith.constant dense<0.000000e+00> : vector<10x96xf32>
    %115 = tpu.matmul %94, %8, %cst_65 {dimension_numbers = #tpu.dot_dimension_numbers<[1], [0], [0], [1], [0, 0, 1, 1], [], []>} : vector<10x128xbf16>, vector<128x96xbf16>, vector<10x96xf32> -> vector<10x96xf32>
    %116 = vector.broadcast %9 : vector<1x96xf32> to vector<10x96xf32>
    %117 = arith.addf %115, %116 : vector<10x96xf32>
    %118 = vector.extract_strided_slice %117 {offsets = [0, 0], sizes = [10, 32], strides = [1, 1]} : vector<10x96xf32> to vector<10x32xf32>
    %119 = vector.extract_strided_slice %114 {offsets = [0, 0], sizes = [10, 32], strides = [1, 1]} : vector<10x96xf32> to vector<10x32xf32>
    %120 = arith.addf %118, %119 : vector<10x32xf32>
    %121 = arith.negf %120 : vector<10x32xf32>
    %122 = math.exp %121 : vector<10x32xf32>
    %cst_66 = arith.constant 1.000000e+00 : f32
    %123 = vector.broadcast %cst_66 : f32 to vector<10x32xf32>
    %124 = arith.addf %123, %122 : vector<10x32xf32>
    %125 = arith.divf %123, %124 : vector<10x32xf32>
    %126 = vector.extract_strided_slice %117 {offsets = [0, 32], sizes = [10, 32], strides = [1, 1]} : vector<10x96xf32> to vector<10x32xf32>
    %127 = vector.extract_strided_slice %114 {offsets = [0, 32], sizes = [10, 32], strides = [1, 1]} : vector<10x96xf32> to vector<10x32xf32>
    %128 = arith.addf %126, %127 : vector<10x32xf32>
    %129 = arith.negf %128 : vector<10x32xf32>
    %130 = math.exp %129 : vector<10x32xf32>
    %cst_67 = arith.constant 1.000000e+00 : f32
    %131 = vector.broadcast %cst_67 : f32 to vector<10x32xf32>
    %132 = arith.addf %131, %130 : vector<10x32xf32>
    %133 = arith.divf %131, %132 : vector<10x32xf32>
    %134 = vector.extract_strided_slice %117 {offsets = [0, 64], sizes = [10, 32], strides = [1, 1]} : vector<10x96xf32> to vector<10x32xf32>
    %135 = vector.extract_strided_slice %114 {offsets = [0, 64], sizes = [10, 32], strides = [1, 1]} : vector<10x96xf32> to vector<10x32xf32>
    %136 = arith.mulf %125, %135 : vector<10x32xf32>
    %137 = arith.addf %134, %136 : vector<10x32xf32>
    %138 = math.tanh %137 : vector<10x32xf32>
    %cst_68 = arith.constant 1.000000e+00 : f32
    %139 = vector.broadcast %cst_68 : f32 to vector<10x32xf32>
    %140 = arith.subf %139, %133 : vector<10x32xf32>
    %141 = arith.mulf %140, %138 : vector<10x32xf32>
    %142 = arith.mulf %133, %69 : vector<10x32xf32>
    %143 = arith.addf %141, %142 : vector<10x32xf32>
    %144 = arith.truncf %143 : vector<10x32xf32> to vector<10x32xbf16>
    %cst_69 = arith.constant dense<0.000000e+00> : vector<10x32xf32>
    %145 = tpu.matmul %144, %11, %cst_69 {dimension_numbers = #tpu.dot_dimension_numbers<[1], [0], [0], [1], [0, 0, 1, 1], [], []>} : vector<10x32xbf16>, vector<32x32xbf16>, vector<10x32xf32> -> vector<10x32xf32>
    %146 = vector.broadcast %12 : vector<1x32xf32> to vector<10x32xf32>
    %147 = arith.addf %145, %146 : vector<10x32xf32>
    %cst_70 = arith.constant 0.000000e+00 : f32
    %148 = vector.broadcast %cst_70 : f32 to vector<10x32xf32>
    %149 = arith.maximumf %147, %148 : vector<10x32xf32>
    %150 = arith.truncf %149 : vector<10x32xf32> to vector<10x32xbf16>
    %cst_71 = arith.constant dense<0.000000e+00> : vector<10x32xf32>
    %151 = tpu.matmul %150, %13, %cst_71 {dimension_numbers = #tpu.dot_dimension_numbers<[1], [0], [0], [1], [0, 0, 1, 1], [], []>} : vector<10x32xbf16>, vector<32x32xbf16>, vector<10x32xf32> -> vector<10x32xf32>
    %152 = vector.broadcast %14 : vector<1x32xf32> to vector<10x32xf32>
    %153 = arith.addf %151, %152 : vector<10x32xf32>
    %cst_72 = arith.constant 0.000000e+00 : f32
    %154 = vector.broadcast %cst_72 : f32 to vector<10x32xf32>
    %155 = arith.maximumf %153, %154 : vector<10x32xf32>
    %156 = arith.truncf %155 : vector<10x32xf32> to vector<10x32xbf16>
    %cst_73 = arith.constant dense<0.000000e+00> : vector<10x128xf32>
    %157 = tpu.matmul %156, %15, %cst_73 {dimension_numbers = #tpu.dot_dimension_numbers<[1], [0], [0], [1], [0, 0, 1, 1], [], []>} : vector<10x32xbf16>, vector<32x128xbf16>, vector<10x128xf32> -> vector<10x128xf32>
    %158 = vector.broadcast %16 : vector<1x128xf32> to vector<10x128xf32>
    %159 = arith.addf %157, %158 : vector<10x128xf32>
    %cst_74 = arith.constant 0.000000e+00 : f32
    %160 = vector.broadcast %cst_74 : f32 to vector<10x128xf32>
    %161 = arith.maximumf %159, %160 : vector<10x128xf32>
    %162 = arith.addf %93, %161 : vector<10x128xf32>
    %c1_75 = arith.constant 1 : index
    %c0_76 = arith.constant 0 : index
    %c0_77 = arith.constant 0 : index
    %163 = vector.load %arg19[%c1_75, %c0_76, %c0_77] : memref<8x10x128xf32, #tpu.memory_space<vmem>>, vector<1x10x128xf32>
    %164 = vector.shape_cast %163 : vector<1x10x128xf32> to vector<10x128xf32>
    %165 = vector.shape_cast %162 : vector<10x128xf32> to vector<1x10x128xf32>
    tpu.vector_store %arg19[%c1_75, %c0_76, %c0_77], %165 {strides = array<i32>} : memref<8x10x128xf32, #tpu.memory_space<vmem>>, vector<1x10x128xf32>,
    %c2 = arith.constant 2 : index
    %c0_78 = arith.constant 0 : index
    %c0_79 = arith.constant 0 : index
    %166 = vector.load %arg1[%c2, %c0_78, %c0_79] : memref<4x10x128xf32, #tpu.memory_space<vmem>>, vector<1x10x128xf32>
    %167 = vector.shape_cast %166 : vector<1x10x128xf32> to vector<10x128xf32>
    %168 = arith.truncf %167 : vector<10x128xf32> to vector<10x128xbf16>
    %169 = arith.truncf %143 : vector<10x32xf32> to vector<10x32xbf16>
    %cst_80 = arith.constant dense<0.000000e+00> : vector<40x32xf32>
    %170 = tpu.matmul %0, %169, %cst_80 {dimension_numbers = #tpu.dot_dimension_numbers<[1], [0], [0], [1], [0, 0, 1, 1], [], []>} : vector<40x10xbf16>, vector<10x32xbf16>, vector<40x32xf32> -> vector<40x32xf32>
    %cst_81 = arith.constant dense<0.000000e+00> : vector<40x32xf32>
    %171 = tpu.matmul %1, %169, %cst_81 {dimension_numbers = #tpu.dot_dimension_numbers<[1], [0], [0], [1], [0, 0, 1, 1], [], []>} : vector<40x10xbf16>, vector<10x32xbf16>, vector<40x32xf32> -> vector<40x32xf32>
    %172 = arith.truncf %170 : vector<40x32xf32> to vector<40x32xbf16>
    %cst_82 = arith.constant dense<0.000000e+00> : vector<40x96xf32>
    %173 = tpu.matmul %172, %3, %cst_82 {dimension_numbers = #tpu.dot_dimension_numbers<[1], [0], [0], [1], [0, 0, 1, 1], [], []>} : vector<40x32xbf16>, vector<32x96xbf16>, vector<40x96xf32> -> vector<40x96xf32>
    %174 = arith.truncf %171 : vector<40x32xf32> to vector<40x32xbf16>
    %cst_83 = arith.constant dense<0.000000e+00> : vector<40x96xf32>
    %175 = tpu.matmul %174, %4, %cst_83 {dimension_numbers = #tpu.dot_dimension_numbers<[1], [0], [0], [1], [0, 0, 1, 1], [], []>} : vector<40x32xbf16>, vector<32x96xbf16>, vector<40x96xf32> -> vector<40x96xf32>
    %176 = arith.addf %173, %175 : vector<40x96xf32>
    %177 = vector.broadcast %5 : vector<1x96xf32> to vector<40x96xf32>
    %178 = arith.addf %176, %177 : vector<40x96xf32>
    %179 = math.tanh %178 : vector<40x96xf32>
    %180 = arith.truncf %179 : vector<40x96xf32> to vector<40x96xbf16>
    %cst_84 = arith.constant dense<0.000000e+00> : vector<40x96xf32>
    %181 = tpu.matmul %180, %6, %cst_84 {dimension_numbers = #tpu.dot_dimension_numbers<[1], [0], [0], [1], [0, 0, 1, 1], [], []>} : vector<40x96xbf16>, vector<96x96xbf16>, vector<40x96xf32> -> vector<40x96xf32>
    %182 = vector.broadcast %7 : vector<1x96xf32> to vector<40x96xf32>
    %183 = arith.addf %181, %182 : vector<40x96xf32>
    %184 = math.tanh %183 : vector<40x96xf32>
    %185 = arith.truncf %184 : vector<40x96xf32> to vector<40x96xbf16>
    %cst_85 = arith.constant dense<0.000000e+00> : vector<10x96xf32>
    %186 = tpu.matmul %2, %185, %cst_85 {dimension_numbers = #tpu.dot_dimension_numbers<[1], [0], [0], [1], [0, 0, 1, 1], [], []>} : vector<10x40xbf16>, vector<40x96xbf16>, vector<10x96xf32> -> vector<10x96xf32>
    %187 = arith.truncf %186 : vector<10x96xf32> to vector<10x96xbf16>
    %cst_86 = arith.constant dense<0.000000e+00> : vector<10x96xf32>
    %188 = tpu.matmul %187, %10, %cst_86 {dimension_numbers = #tpu.dot_dimension_numbers<[1], [0], [0], [1], [0, 0, 1, 1], [], []>} : vector<10x96xbf16>, vector<96x96xbf16>, vector<10x96xf32> -> vector<10x96xf32>
    %cst_87 = arith.constant dense<0.000000e+00> : vector<10x96xf32>
    %189 = tpu.matmul %168, %8, %cst_87 {dimension_numbers = #tpu.dot_dimension_numbers<[1], [0], [0], [1], [0, 0, 1, 1], [], []>} : vector<10x128xbf16>, vector<128x96xbf16>, vector<10x96xf32> -> vector<10x96xf32>
    %190 = vector.broadcast %9 : vector<1x96xf32> to vector<10x96xf32>
    %191 = arith.addf %189, %190 : vector<10x96xf32>
    %192 = vector.extract_strided_slice %191 {offsets = [0, 0], sizes = [10, 32], strides = [1, 1]} : vector<10x96xf32> to vector<10x32xf32>
    %193 = vector.extract_strided_slice %188 {offsets = [0, 0], sizes = [10, 32], strides = [1, 1]} : vector<10x96xf32> to vector<10x32xf32>
    %194 = arith.addf %192, %193 : vector<10x32xf32>
    %195 = arith.negf %194 : vector<10x32xf32>
    %196 = math.exp %195 : vector<10x32xf32>
    %cst_88 = arith.constant 1.000000e+00 : f32
    %197 = vector.broadcast %cst_88 : f32 to vector<10x32xf32>
    %198 = arith.addf %197, %196 : vector<10x32xf32>
    %199 = arith.divf %197, %198 : vector<10x32xf32>
    %200 = vector.extract_strided_slice %191 {offsets = [0, 32], sizes = [10, 32], strides = [1, 1]} : vector<10x96xf32> to vector<10x32xf32>
    %201 = vector.extract_strided_slice %188 {offsets = [0, 32], sizes = [10, 32], strides = [1, 1]} : vector<10x96xf32> to vector<10x32xf32>
    %202 = arith.addf %200, %201 : vector<10x32xf32>
    %203 = arith.negf %202 : vector<10x32xf32>
    %204 = math.exp %203 : vector<10x32xf32>
    %cst_89 = arith.constant 1.000000e+00 : f32
    %205 = vector.broadcast %cst_89 : f32 to vector<10x32xf32>
    %206 = arith.addf %205, %204 : vector<10x32xf32>
    %207 = arith.divf %205, %206 : vector<10x32xf32>
    %208 = vector.extract_strided_slice %191 {offsets = [0, 64], sizes = [10, 32], strides = [1, 1]} : vector<10x96xf32> to vector<10x32xf32>
    %209 = vector.extract_strided_slice %188 {offsets = [0, 64], sizes = [10, 32], strides = [1, 1]} : vector<10x96xf32> to vector<10x32xf32>
    %210 = arith.mulf %199, %209 : vector<10x32xf32>
    %211 = arith.addf %208, %210 : vector<10x32xf32>
    %212 = math.tanh %211 : vector<10x32xf32>
    %cst_90 = arith.constant 1.000000e+00 : f32
    %213 = vector.broadcast %cst_90 : f32 to vector<10x32xf32>
    %214 = arith.subf %213, %207 : vector<10x32xf32>
    %215 = arith.mulf %214, %212 : vector<10x32xf32>
    %216 = arith.mulf %207, %143 : vector<10x32xf32>
    %217 = arith.addf %215, %216 : vector<10x32xf32>
    %218 = arith.truncf %217 : vector<10x32xf32> to vector<10x32xbf16>
    %cst_91 = arith.constant dense<0.000000e+00> : vector<10x32xf32>
    %219 = tpu.matmul %218, %11, %cst_91 {dimension_numbers = #tpu.dot_dimension_numbers<[1], [0], [0], [1], [0, 0, 1, 1], [], []>} : vector<10x32xbf16>, vector<32x32xbf16>, vector<10x32xf32> -> vector<10x32xf32>
    %220 = vector.broadcast %12 : vector<1x32xf32> to vector<10x32xf32>
    %221 = arith.addf %219, %220 : vector<10x32xf32>
    %cst_92 = arith.constant 0.000000e+00 : f32
    %222 = vector.broadcast %cst_92 : f32 to vector<10x32xf32>
    %223 = arith.maximumf %221, %222 : vector<10x32xf32>
    %224 = arith.truncf %223 : vector<10x32xf32> to vector<10x32xbf16>
    %cst_93 = arith.constant dense<0.000000e+00> : vector<10x32xf32>
    %225 = tpu.matmul %224, %13, %cst_93 {dimension_numbers = #tpu.dot_dimension_numbers<[1], [0], [0], [1], [0, 0, 1, 1], [], []>} : vector<10x32xbf16>, vector<32x32xbf16>, vector<10x32xf32> -> vector<10x32xf32>
    %226 = vector.broadcast %14 : vector<1x32xf32> to vector<10x32xf32>
    %227 = arith.addf %225, %226 : vector<10x32xf32>
    %cst_94 = arith.constant 0.000000e+00 : f32
    %228 = vector.broadcast %cst_94 : f32 to vector<10x32xf32>
    %229 = arith.maximumf %227, %228 : vector<10x32xf32>
    %230 = arith.truncf %229 : vector<10x32xf32> to vector<10x32xbf16>
    %cst_95 = arith.constant dense<0.000000e+00> : vector<10x128xf32>
    %231 = tpu.matmul %230, %15, %cst_95 {dimension_numbers = #tpu.dot_dimension_numbers<[1], [0], [0], [1], [0, 0, 1, 1], [], []>} : vector<10x32xbf16>, vector<32x128xbf16>, vector<10x128xf32> -> vector<10x128xf32>
    %232 = vector.broadcast %16 : vector<1x128xf32> to vector<10x128xf32>
    %233 = arith.addf %231, %232 : vector<10x128xf32>
    %cst_96 = arith.constant 0.000000e+00 : f32
    %234 = vector.broadcast %cst_96 : f32 to vector<10x128xf32>
    %235 = arith.maximumf %233, %234 : vector<10x128xf32>
    %236 = arith.addf %167, %235 : vector<10x128xf32>
    %c2_97 = arith.constant 2 : index
    %c0_98 = arith.constant 0 : index
    %c0_99 = arith.constant 0 : index
    %237 = vector.load %arg19[%c2_97, %c0_98, %c0_99] : memref<8x10x128xf32, #tpu.memory_space<vmem>>, vector<1x10x128xf32>
    %238 = vector.shape_cast %237 : vector<1x10x128xf32> to vector<10x128xf32>
    %239 = vector.shape_cast %236 : vector<10x128xf32> to vector<1x10x128xf32>
    tpu.vector_store %arg19[%c2_97, %c0_98, %c0_99], %239 {strides = array<i32>} : memref<8x10x128xf32, #tpu.memory_space<vmem>>, vector<1x10x128xf32>,
    %c3 = arith.constant 3 : index
    %c0_100 = arith.constant 0 : index
    %c0_101 = arith.constant 0 : index
    %240 = vector.load %arg1[%c3, %c0_100, %c0_101] : memref<4x10x128xf32, #tpu.memory_space<vmem>>, vector<1x10x128xf32>
    %241 = vector.shape_cast %240 : vector<1x10x128xf32> to vector<10x128xf32>
    %242 = arith.truncf %241 : vector<10x128xf32> to vector<10x128xbf16>
    %243 = arith.truncf %217 : vector<10x32xf32> to vector<10x32xbf16>
    %cst_102 = arith.constant dense<0.000000e+00> : vector<40x32xf32>
    %244 = tpu.matmul %0, %243, %cst_102 {dimension_numbers = #tpu.dot_dimension_numbers<[1], [0], [0], [1], [0, 0, 1, 1], [], []>} : vector<40x10xbf16>, vector<10x32xbf16>, vector<40x32xf32> -> vector<40x32xf32>
    %cst_103 = arith.constant dense<0.000000e+00> : vector<40x32xf32>
    %245 = tpu.matmul %1, %243, %cst_103 {dimension_numbers = #tpu.dot_dimension_numbers<[1], [0], [0], [1], [0, 0, 1, 1], [], []>} : vector<40x10xbf16>, vector<10x32xbf16>, vector<40x32xf32> -> vector<40x32xf32>
    %246 = arith.truncf %244 : vector<40x32xf32> to vector<40x32xbf16>
    %cst_104 = arith.constant dense<0.000000e+00> : vector<40x96xf32>
    %247 = tpu.matmul %246, %3, %cst_104 {dimension_numbers = #tpu.dot_dimension_numbers<[1], [0], [0], [1], [0, 0, 1, 1], [], []>} : vector<40x32xbf16>, vector<32x96xbf16>, vector<40x96xf32> -> vector<40x96xf32>
    %248 = arith.truncf %245 : vector<40x32xf32> to vector<40x32xbf16>
    %cst_105 = arith.constant dense<0.000000e+00> : vector<40x96xf32>
    %249 = tpu.matmul %248, %4, %cst_105 {dimension_numbers = #tpu.dot_dimension_numbers<[1], [0], [0], [1], [0, 0, 1, 1], [], []>} : vector<40x32xbf16>, vector<32x96xbf16>, vector<40x96xf32> -> vector<40x96xf32>
    %250 = arith.addf %247, %249 : vector<40x96xf32>
    %251 = vector.broadcast %5 : vector<1x96xf32> to vector<40x96xf32>
    %252 = arith.addf %250, %251 : vector<40x96xf32>
    %253 = math.tanh %252 : vector<40x96xf32>
    %254 = arith.truncf %253 : vector<40x96xf32> to vector<40x96xbf16>
    %cst_106 = arith.constant dense<0.000000e+00> : vector<40x96xf32>
    %255 = tpu.matmul %254, %6, %cst_106 {dimension_numbers = #tpu.dot_dimension_numbers<[1], [0], [0], [1], [0, 0, 1, 1], [], []>} : vector<40x96xbf16>, vector<96x96xbf16>, vector<40x96xf32> -> vector<40x96xf32>
    %256 = vector.broadcast %7 : vector<1x96xf32> to vector<40x96xf32>
    %257 = arith.addf %255, %256 : vector<40x96xf32>
    %258 = math.tanh %257 : vector<40x96xf32>
    %259 = arith.truncf %258 : vector<40x96xf32> to vector<40x96xbf16>
    %cst_107 = arith.constant dense<0.000000e+00> : vector<10x96xf32>
    %260 = tpu.matmul %2, %259, %cst_107 {dimension_numbers = #tpu.dot_dimension_numbers<[1], [0], [0], [1], [0, 0, 1, 1], [], []>} : vector<10x40xbf16>, vector<40x96xbf16>, vector<10x96xf32> -> vector<10x96xf32>
    %261 = arith.truncf %260 : vector<10x96xf32> to vector<10x96xbf16>
    %cst_108 = arith.constant dense<0.000000e+00> : vector<10x96xf32>
    %262 = tpu.matmul %261, %10, %cst_108 {dimension_numbers = #tpu.dot_dimension_numbers<[1], [0], [0], [1], [0, 0, 1, 1], [], []>} : vector<10x96xbf16>, vector<96x96xbf16>, vector<10x96xf32> -> vector<10x96xf32>
    %cst_109 = arith.constant dense<0.000000e+00> : vector<10x96xf32>
    %263 = tpu.matmul %242, %8, %cst_109 {dimension_numbers = #tpu.dot_dimension_numbers<[1], [0], [0], [1], [0, 0, 1, 1], [], []>} : vector<10x128xbf16>, vector<128x96xbf16>, vector<10x96xf32> -> vector<10x96xf32>
    %264 = vector.broadcast %9 : vector<1x96xf32> to vector<10x96xf32>
    %265 = arith.addf %263, %264 : vector<10x96xf32>
    %266 = vector.extract_strided_slice %265 {offsets = [0, 0], sizes = [10, 32], strides = [1, 1]} : vector<10x96xf32> to vector<10x32xf32>
    %267 = vector.extract_strided_slice %262 {offsets = [0, 0], sizes = [10, 32], strides = [1, 1]} : vector<10x96xf32> to vector<10x32xf32>
    %268 = arith.addf %266, %267 : vector<10x32xf32>
    %269 = arith.negf %268 : vector<10x32xf32>
    %270 = math.exp %269 : vector<10x32xf32>
    %cst_110 = arith.constant 1.000000e+00 : f32
    %271 = vector.broadcast %cst_110 : f32 to vector<10x32xf32>
    %272 = arith.addf %271, %270 : vector<10x32xf32>
    %273 = arith.divf %271, %272 : vector<10x32xf32>
    %274 = vector.extract_strided_slice %265 {offsets = [0, 32], sizes = [10, 32], strides = [1, 1]} : vector<10x96xf32> to vector<10x32xf32>
    %275 = vector.extract_strided_slice %262 {offsets = [0, 32], sizes = [10, 32], strides = [1, 1]} : vector<10x96xf32> to vector<10x32xf32>
    %276 = arith.addf %274, %275 : vector<10x32xf32>
    %277 = arith.negf %276 : vector<10x32xf32>
    %278 = math.exp %277 : vector<10x32xf32>
    %cst_111 = arith.constant 1.000000e+00 : f32
    %279 = vector.broadcast %cst_111 : f32 to vector<10x32xf32>
    %280 = arith.addf %279, %278 : vector<10x32xf32>
    %281 = arith.divf %279, %280 : vector<10x32xf32>
    %282 = vector.extract_strided_slice %265 {offsets = [0, 64], sizes = [10, 32], strides = [1, 1]} : vector<10x96xf32> to vector<10x32xf32>
    %283 = vector.extract_strided_slice %262 {offsets = [0, 64], sizes = [10, 32], strides = [1, 1]} : vector<10x96xf32> to vector<10x32xf32>
    %284 = arith.mulf %273, %283 : vector<10x32xf32>
    %285 = arith.addf %282, %284 : vector<10x32xf32>
    %286 = math.tanh %285 : vector<10x32xf32>
    %cst_112 = arith.constant 1.000000e+00 : f32
    %287 = vector.broadcast %cst_112 : f32 to vector<10x32xf32>
    %288 = arith.subf %287, %281 : vector<10x32xf32>
    %289 = arith.mulf %288, %286 : vector<10x32xf32>
    %290 = arith.mulf %281, %217 : vector<10x32xf32>
    %291 = arith.addf %289, %290 : vector<10x32xf32>
    %292 = arith.truncf %291 : vector<10x32xf32> to vector<10x32xbf16>
    %cst_113 = arith.constant dense<0.000000e+00> : vector<10x32xf32>
    %293 = tpu.matmul %292, %11, %cst_113 {dimension_numbers = #tpu.dot_dimension_numbers<[1], [0], [0], [1], [0, 0, 1, 1], [], []>} : vector<10x32xbf16>, vector<32x32xbf16>, vector<10x32xf32> -> vector<10x32xf32>
    %294 = vector.broadcast %12 : vector<1x32xf32> to vector<10x32xf32>
    %295 = arith.addf %293, %294 : vector<10x32xf32>
    %cst_114 = arith.constant 0.000000e+00 : f32
    %296 = vector.broadcast %cst_114 : f32 to vector<10x32xf32>
    %297 = arith.maximumf %295, %296 : vector<10x32xf32>
    %298 = arith.truncf %297 : vector<10x32xf32> to vector<10x32xbf16>
    %cst_115 = arith.constant dense<0.000000e+00> : vector<10x32xf32>
    %299 = tpu.matmul %298, %13, %cst_115 {dimension_numbers = #tpu.dot_dimension_numbers<[1], [0], [0], [1], [0, 0, 1, 1], [], []>} : vector<10x32xbf16>, vector<32x32xbf16>, vector<10x32xf32> -> vector<10x32xf32>
    %300 = vector.broadcast %14 : vector<1x32xf32> to vector<10x32xf32>
    %301 = arith.addf %299, %300 : vector<10x32xf32>
    %cst_116 = arith.constant 0.000000e+00 : f32
    %302 = vector.broadcast %cst_116 : f32 to vector<10x32xf32>
    %303 = arith.maximumf %301, %302 : vector<10x32xf32>
    %304 = arith.truncf %303 : vector<10x32xf32> to vector<10x32xbf16>
    %cst_117 = arith.constant dense<0.000000e+00> : vector<10x128xf32>
    %305 = tpu.matmul %304, %15, %cst_117 {dimension_numbers = #tpu.dot_dimension_numbers<[1], [0], [0], [1], [0, 0, 1, 1], [], []>} : vector<10x32xbf16>, vector<32x128xbf16>, vector<10x128xf32> -> vector<10x128xf32>
    %306 = vector.broadcast %16 : vector<1x128xf32> to vector<10x128xf32>
    %307 = arith.addf %305, %306 : vector<10x128xf32>
    %cst_118 = arith.constant 0.000000e+00 : f32
    %308 = vector.broadcast %cst_118 : f32 to vector<10x128xf32>
    %309 = arith.maximumf %307, %308 : vector<10x128xf32>
    %310 = arith.addf %241, %309 : vector<10x128xf32>
    %c3_119 = arith.constant 3 : index
    %c0_120 = arith.constant 0 : index
    %c0_121 = arith.constant 0 : index
    %311 = vector.load %arg19[%c3_119, %c0_120, %c0_121] : memref<8x10x128xf32, #tpu.memory_space<vmem>>, vector<1x10x128xf32>
    %312 = vector.shape_cast %311 : vector<1x10x128xf32> to vector<10x128xf32>
    %313 = vector.shape_cast %310 : vector<10x128xf32> to vector<1x10x128xf32>
    tpu.vector_store %arg19[%c3_119, %c0_120, %c0_121], %313 {strides = array<i32>} : memref<8x10x128xf32, #tpu.memory_space<vmem>>, vector<1x10x128xf32>,
    %314 = arith.truncf %310 : vector<10x128xf32> to vector<10x128xbf16>
    %315 = arith.truncf %291 : vector<10x32xf32> to vector<10x32xbf16>
    %cst_122 = arith.constant dense<0.000000e+00> : vector<40x32xf32>
    %316 = tpu.matmul %0, %315, %cst_122 {dimension_numbers = #tpu.dot_dimension_numbers<[1], [0], [0], [1], [0, 0, 1, 1], [], []>} : vector<40x10xbf16>, vector<10x32xbf16>, vector<40x32xf32> -> vector<40x32xf32>
    %cst_123 = arith.constant dense<0.000000e+00> : vector<40x32xf32>
    %317 = tpu.matmul %1, %315, %cst_123 {dimension_numbers = #tpu.dot_dimension_numbers<[1], [0], [0], [1], [0, 0, 1, 1], [], []>} : vector<40x10xbf16>, vector<10x32xbf16>, vector<40x32xf32> -> vector<40x32xf32>
    %318 = arith.truncf %316 : vector<40x32xf32> to vector<40x32xbf16>
    %cst_124 = arith.constant dense<0.000000e+00> : vector<40x96xf32>
    %319 = tpu.matmul %318, %3, %cst_124 {dimension_numbers = #tpu.dot_dimension_numbers<[1], [0], [0], [1], [0, 0, 1, 1], [], []>} : vector<40x32xbf16>, vector<32x96xbf16>, vector<40x96xf32> -> vector<40x96xf32>
    %320 = arith.truncf %317 : vector<40x32xf32> to vector<40x32xbf16>
    %cst_125 = arith.constant dense<0.000000e+00> : vector<40x96xf32>
    %321 = tpu.matmul %320, %4, %cst_125 {dimension_numbers = #tpu.dot_dimension_numbers<[1], [0], [0], [1], [0, 0, 1, 1], [], []>} : vector<40x32xbf16>, vector<32x96xbf16>, vector<40x96xf32> -> vector<40x96xf32>
    %322 = arith.addf %319, %321 : vector<40x96xf32>
    %323 = vector.broadcast %5 : vector<1x96xf32> to vector<40x96xf32>
    %324 = arith.addf %322, %323 : vector<40x96xf32>
    %325 = math.tanh %324 : vector<40x96xf32>
    %326 = arith.truncf %325 : vector<40x96xf32> to vector<40x96xbf16>
    %cst_126 = arith.constant dense<0.000000e+00> : vector<40x96xf32>
    %327 = tpu.matmul %326, %6, %cst_126 {dimension_numbers = #tpu.dot_dimension_numbers<[1], [0], [0], [1], [0, 0, 1, 1], [], []>} : vector<40x96xbf16>, vector<96x96xbf16>, vector<40x96xf32> -> vector<40x96xf32>
    %328 = vector.broadcast %7 : vector<1x96xf32> to vector<40x96xf32>
    %329 = arith.addf %327, %328 : vector<40x96xf32>
    %330 = math.tanh %329 : vector<40x96xf32>
    %331 = arith.truncf %330 : vector<40x96xf32> to vector<40x96xbf16>
    %cst_127 = arith.constant dense<0.000000e+00> : vector<10x96xf32>
    %332 = tpu.matmul %2, %331, %cst_127 {dimension_numbers = #tpu.dot_dimension_numbers<[1], [0], [0], [1], [0, 0, 1, 1], [], []>} : vector<10x40xbf16>, vector<40x96xbf16>, vector<10x96xf32> -> vector<10x96xf32>
    %333 = arith.truncf %332 : vector<10x96xf32> to vector<10x96xbf16>
    %cst_128 = arith.constant dense<0.000000e+00> : vector<10x96xf32>
    %334 = tpu.matmul %333, %10, %cst_128 {dimension_numbers = #tpu.dot_dimension_numbers<[1], [0], [0], [1], [0, 0, 1, 1], [], []>} : vector<10x96xbf16>, vector<96x96xbf16>, vector<10x96xf32> -> vector<10x96xf32>
    %cst_129 = arith.constant dense<0.000000e+00> : vector<10x96xf32>
    %335 = tpu.matmul %314, %8, %cst_129 {dimension_numbers = #tpu.dot_dimension_numbers<[1], [0], [0], [1], [0, 0, 1, 1], [], []>} : vector<10x128xbf16>, vector<128x96xbf16>, vector<10x96xf32> -> vector<10x96xf32>
    %336 = vector.broadcast %9 : vector<1x96xf32> to vector<10x96xf32>
    %337 = arith.addf %335, %336 : vector<10x96xf32>
    %338 = vector.extract_strided_slice %337 {offsets = [0, 0], sizes = [10, 32], strides = [1, 1]} : vector<10x96xf32> to vector<10x32xf32>
    %339 = vector.extract_strided_slice %334 {offsets = [0, 0], sizes = [10, 32], strides = [1, 1]} : vector<10x96xf32> to vector<10x32xf32>
    %340 = arith.addf %338, %339 : vector<10x32xf32>
    %341 = arith.negf %340 : vector<10x32xf32>
    %342 = math.exp %341 : vector<10x32xf32>
    %cst_130 = arith.constant 1.000000e+00 : f32
    %343 = vector.broadcast %cst_130 : f32 to vector<10x32xf32>
    %344 = arith.addf %343, %342 : vector<10x32xf32>
    %345 = arith.divf %343, %344 : vector<10x32xf32>
    %346 = vector.extract_strided_slice %337 {offsets = [0, 32], sizes = [10, 32], strides = [1, 1]} : vector<10x96xf32> to vector<10x32xf32>
    %347 = vector.extract_strided_slice %334 {offsets = [0, 32], sizes = [10, 32], strides = [1, 1]} : vector<10x96xf32> to vector<10x32xf32>
    %348 = arith.addf %346, %347 : vector<10x32xf32>
    %349 = arith.negf %348 : vector<10x32xf32>
    %350 = math.exp %349 : vector<10x32xf32>
    %cst_131 = arith.constant 1.000000e+00 : f32
    %351 = vector.broadcast %cst_131 : f32 to vector<10x32xf32>
    %352 = arith.addf %351, %350 : vector<10x32xf32>
    %353 = arith.divf %351, %352 : vector<10x32xf32>
    %354 = vector.extract_strided_slice %337 {offsets = [0, 64], sizes = [10, 32], strides = [1, 1]} : vector<10x96xf32> to vector<10x32xf32>
    %355 = vector.extract_strided_slice %334 {offsets = [0, 64], sizes = [10, 32], strides = [1, 1]} : vector<10x96xf32> to vector<10x32xf32>
    %356 = arith.mulf %345, %355 : vector<10x32xf32>
    %357 = arith.addf %354, %356 : vector<10x32xf32>
    %358 = math.tanh %357 : vector<10x32xf32>
    %cst_132 = arith.constant 1.000000e+00 : f32
    %359 = vector.broadcast %cst_132 : f32 to vector<10x32xf32>
    %360 = arith.subf %359, %353 : vector<10x32xf32>
    %361 = arith.mulf %360, %358 : vector<10x32xf32>
    %362 = arith.mulf %353, %291 : vector<10x32xf32>
    %363 = arith.addf %361, %362 : vector<10x32xf32>
    %364 = arith.truncf %363 : vector<10x32xf32> to vector<10x32xbf16>
    %cst_133 = arith.constant dense<0.000000e+00> : vector<10x32xf32>
    %365 = tpu.matmul %364, %11, %cst_133 {dimension_numbers = #tpu.dot_dimension_numbers<[1], [0], [0], [1], [0, 0, 1, 1], [], []>} : vector<10x32xbf16>, vector<32x32xbf16>, vector<10x32xf32> -> vector<10x32xf32>
    %366 = vector.broadcast %12 : vector<1x32xf32> to vector<10x32xf32>
    %367 = arith.addf %365, %366 : vector<10x32xf32>
    %cst_134 = arith.constant 0.000000e+00 : f32
    %368 = vector.broadcast %cst_134 : f32 to vector<10x32xf32>
    %369 = arith.maximumf %367, %368 : vector<10x32xf32>
    %370 = arith.truncf %369 : vector<10x32xf32> to vector<10x32xbf16>
    %cst_135 = arith.constant dense<0.000000e+00> : vector<10x32xf32>
    %371 = tpu.matmul %370, %13, %cst_135 {dimension_numbers = #tpu.dot_dimension_numbers<[1], [0], [0], [1], [0, 0, 1, 1], [], []>} : vector<10x32xbf16>, vector<32x32xbf16>, vector<10x32xf32> -> vector<10x32xf32>
    %372 = vector.broadcast %14 : vector<1x32xf32> to vector<10x32xf32>
    %373 = arith.addf %371, %372 : vector<10x32xf32>
    %cst_136 = arith.constant 0.000000e+00 : f32
    %374 = vector.broadcast %cst_136 : f32 to vector<10x32xf32>
    %375 = arith.maximumf %373, %374 : vector<10x32xf32>
    %376 = arith.truncf %375 : vector<10x32xf32> to vector<10x32xbf16>
    %cst_137 = arith.constant dense<0.000000e+00> : vector<10x128xf32>
    %377 = tpu.matmul %376, %15, %cst_137 {dimension_numbers = #tpu.dot_dimension_numbers<[1], [0], [0], [1], [0, 0, 1, 1], [], []>} : vector<10x32xbf16>, vector<32x128xbf16>, vector<10x128xf32> -> vector<10x128xf32>
    %378 = vector.broadcast %16 : vector<1x128xf32> to vector<10x128xf32>
    %379 = arith.addf %377, %378 : vector<10x128xf32>
    %cst_138 = arith.constant 0.000000e+00 : f32
    %380 = vector.broadcast %cst_138 : f32 to vector<10x128xf32>
    %381 = arith.maximumf %379, %380 : vector<10x128xf32>
    %382 = arith.addf %310, %381 : vector<10x128xf32>
    %c4 = arith.constant 4 : index
    %c0_139 = arith.constant 0 : index
    %c0_140 = arith.constant 0 : index
    %383 = vector.load %arg19[%c4, %c0_139, %c0_140] : memref<8x10x128xf32, #tpu.memory_space<vmem>>, vector<1x10x128xf32>
    %384 = vector.shape_cast %383 : vector<1x10x128xf32> to vector<10x128xf32>
    %385 = vector.shape_cast %382 : vector<10x128xf32> to vector<1x10x128xf32>
    tpu.vector_store %arg19[%c4, %c0_139, %c0_140], %385 {strides = array<i32>} : memref<8x10x128xf32, #tpu.memory_space<vmem>>, vector<1x10x128xf32>,
    %386 = arith.truncf %382 : vector<10x128xf32> to vector<10x128xbf16>
    %387 = arith.truncf %363 : vector<10x32xf32> to vector<10x32xbf16>
    %cst_141 = arith.constant dense<0.000000e+00> : vector<40x32xf32>
    %388 = tpu.matmul %0, %387, %cst_141 {dimension_numbers = #tpu.dot_dimension_numbers<[1], [0], [0], [1], [0, 0, 1, 1], [], []>} : vector<40x10xbf16>, vector<10x32xbf16>, vector<40x32xf32> -> vector<40x32xf32>
    %cst_142 = arith.constant dense<0.000000e+00> : vector<40x32xf32>
    %389 = tpu.matmul %1, %387, %cst_142 {dimension_numbers = #tpu.dot_dimension_numbers<[1], [0], [0], [1], [0, 0, 1, 1], [], []>} : vector<40x10xbf16>, vector<10x32xbf16>, vector<40x32xf32> -> vector<40x32xf32>
    %390 = arith.truncf %388 : vector<40x32xf32> to vector<40x32xbf16>
    %cst_143 = arith.constant dense<0.000000e+00> : vector<40x96xf32>
    %391 = tpu.matmul %390, %3, %cst_143 {dimension_numbers = #tpu.dot_dimension_numbers<[1], [0], [0], [1], [0, 0, 1, 1], [], []>} : vector<40x32xbf16>, vector<32x96xbf16>, vector<40x96xf32> -> vector<40x96xf32>
    %392 = arith.truncf %389 : vector<40x32xf32> to vector<40x32xbf16>
    %cst_144 = arith.constant dense<0.000000e+00> : vector<40x96xf32>
    %393 = tpu.matmul %392, %4, %cst_144 {dimension_numbers = #tpu.dot_dimension_numbers<[1], [0], [0], [1], [0, 0, 1, 1], [], []>} : vector<40x32xbf16>, vector<32x96xbf16>, vector<40x96xf32> -> vector<40x96xf32>
    %394 = arith.addf %391, %393 : vector<40x96xf32>
    %395 = vector.broadcast %5 : vector<1x96xf32> to vector<40x96xf32>
    %396 = arith.addf %394, %395 : vector<40x96xf32>
    %397 = math.tanh %396 : vector<40x96xf32>
    %398 = arith.truncf %397 : vector<40x96xf32> to vector<40x96xbf16>
    %cst_145 = arith.constant dense<0.000000e+00> : vector<40x96xf32>
    %399 = tpu.matmul %398, %6, %cst_145 {dimension_numbers = #tpu.dot_dimension_numbers<[1], [0], [0], [1], [0, 0, 1, 1], [], []>} : vector<40x96xbf16>, vector<96x96xbf16>, vector<40x96xf32> -> vector<40x96xf32>
    %400 = vector.broadcast %7 : vector<1x96xf32> to vector<40x96xf32>
    %401 = arith.addf %399, %400 : vector<40x96xf32>
    %402 = math.tanh %401 : vector<40x96xf32>
    %403 = arith.truncf %402 : vector<40x96xf32> to vector<40x96xbf16>
    %cst_146 = arith.constant dense<0.000000e+00> : vector<10x96xf32>
    %404 = tpu.matmul %2, %403, %cst_146 {dimension_numbers = #tpu.dot_dimension_numbers<[1], [0], [0], [1], [0, 0, 1, 1], [], []>} : vector<10x40xbf16>, vector<40x96xbf16>, vector<10x96xf32> -> vector<10x96xf32>
    %405 = arith.truncf %404 : vector<10x96xf32> to vector<10x96xbf16>
    %cst_147 = arith.constant dense<0.000000e+00> : vector<10x96xf32>
    %406 = tpu.matmul %405, %10, %cst_147 {dimension_numbers = #tpu.dot_dimension_numbers<[1], [0], [0], [1], [0, 0, 1, 1], [], []>} : vector<10x96xbf16>, vector<96x96xbf16>, vector<10x96xf32> -> vector<10x96xf32>
    %cst_148 = arith.constant dense<0.000000e+00> : vector<10x96xf32>
    %407 = tpu.matmul %386, %8, %cst_148 {dimension_numbers = #tpu.dot_dimension_numbers<[1], [0], [0], [1], [0, 0, 1, 1], [], []>} : vector<10x128xbf16>, vector<128x96xbf16>, vector<10x96xf32> -> vector<10x96xf32>
    %408 = vector.broadcast %9 : vector<1x96xf32> to vector<10x96xf32>
    %409 = arith.addf %407, %408 : vector<10x96xf32>
    %410 = vector.extract_strided_slice %409 {offsets = [0, 0], sizes = [10, 32], strides = [1, 1]} : vector<10x96xf32> to vector<10x32xf32>
    %411 = vector.extract_strided_slice %406 {offsets = [0, 0], sizes = [10, 32], strides = [1, 1]} : vector<10x96xf32> to vector<10x32xf32>
    %412 = arith.addf %410, %411 : vector<10x32xf32>
    %413 = arith.negf %412 : vector<10x32xf32>
    %414 = math.exp %413 : vector<10x32xf32>
    %cst_149 = arith.constant 1.000000e+00 : f32
    %415 = vector.broadcast %cst_149 : f32 to vector<10x32xf32>
    %416 = arith.addf %415, %414 : vector<10x32xf32>
    %417 = arith.divf %415, %416 : vector<10x32xf32>
    %418 = vector.extract_strided_slice %409 {offsets = [0, 32], sizes = [10, 32], strides = [1, 1]} : vector<10x96xf32> to vector<10x32xf32>
    %419 = vector.extract_strided_slice %406 {offsets = [0, 32], sizes = [10, 32], strides = [1, 1]} : vector<10x96xf32> to vector<10x32xf32>
    %420 = arith.addf %418, %419 : vector<10x32xf32>
    %421 = arith.negf %420 : vector<10x32xf32>
    %422 = math.exp %421 : vector<10x32xf32>
    %cst_150 = arith.constant 1.000000e+00 : f32
    %423 = vector.broadcast %cst_150 : f32 to vector<10x32xf32>
    %424 = arith.addf %423, %422 : vector<10x32xf32>
    %425 = arith.divf %423, %424 : vector<10x32xf32>
    %426 = vector.extract_strided_slice %409 {offsets = [0, 64], sizes = [10, 32], strides = [1, 1]} : vector<10x96xf32> to vector<10x32xf32>
    %427 = vector.extract_strided_slice %406 {offsets = [0, 64], sizes = [10, 32], strides = [1, 1]} : vector<10x96xf32> to vector<10x32xf32>
    %428 = arith.mulf %417, %427 : vector<10x32xf32>
    %429 = arith.addf %426, %428 : vector<10x32xf32>
    %430 = math.tanh %429 : vector<10x32xf32>
    %cst_151 = arith.constant 1.000000e+00 : f32
    %431 = vector.broadcast %cst_151 : f32 to vector<10x32xf32>
    %432 = arith.subf %431, %425 : vector<10x32xf32>
    %433 = arith.mulf %432, %430 : vector<10x32xf32>
    %434 = arith.mulf %425, %363 : vector<10x32xf32>
    %435 = arith.addf %433, %434 : vector<10x32xf32>
    %436 = arith.truncf %435 : vector<10x32xf32> to vector<10x32xbf16>
    %cst_152 = arith.constant dense<0.000000e+00> : vector<10x32xf32>
    %437 = tpu.matmul %436, %11, %cst_152 {dimension_numbers = #tpu.dot_dimension_numbers<[1], [0], [0], [1], [0, 0, 1, 1], [], []>} : vector<10x32xbf16>, vector<32x32xbf16>, vector<10x32xf32> -> vector<10x32xf32>
    %438 = vector.broadcast %12 : vector<1x32xf32> to vector<10x32xf32>
    %439 = arith.addf %437, %438 : vector<10x32xf32>
    %cst_153 = arith.constant 0.000000e+00 : f32
    %440 = vector.broadcast %cst_153 : f32 to vector<10x32xf32>
    %441 = arith.maximumf %439, %440 : vector<10x32xf32>
    %442 = arith.truncf %441 : vector<10x32xf32> to vector<10x32xbf16>
    %cst_154 = arith.constant dense<0.000000e+00> : vector<10x32xf32>
    %443 = tpu.matmul %442, %13, %cst_154 {dimension_numbers = #tpu.dot_dimension_numbers<[1], [0], [0], [1], [0, 0, 1, 1], [], []>} : vector<10x32xbf16>, vector<32x32xbf16>, vector<10x32xf32> -> vector<10x32xf32>
    %444 = vector.broadcast %14 : vector<1x32xf32> to vector<10x32xf32>
    %445 = arith.addf %443, %444 : vector<10x32xf32>
    %cst_155 = arith.constant 0.000000e+00 : f32
    %446 = vector.broadcast %cst_155 : f32 to vector<10x32xf32>
    %447 = arith.maximumf %445, %446 : vector<10x32xf32>
    %448 = arith.truncf %447 : vector<10x32xf32> to vector<10x32xbf16>
    %cst_156 = arith.constant dense<0.000000e+00> : vector<10x128xf32>
    %449 = tpu.matmul %448, %15, %cst_156 {dimension_numbers = #tpu.dot_dimension_numbers<[1], [0], [0], [1], [0, 0, 1, 1], [], []>} : vector<10x32xbf16>, vector<32x128xbf16>, vector<10x128xf32> -> vector<10x128xf32>
    %450 = vector.broadcast %16 : vector<1x128xf32> to vector<10x128xf32>
    %451 = arith.addf %449, %450 : vector<10x128xf32>
    %cst_157 = arith.constant 0.000000e+00 : f32
    %452 = vector.broadcast %cst_157 : f32 to vector<10x128xf32>
    %453 = arith.maximumf %451, %452 : vector<10x128xf32>
    %454 = arith.addf %382, %453 : vector<10x128xf32>
    %c5 = arith.constant 5 : index
    %c0_158 = arith.constant 0 : index
    %c0_159 = arith.constant 0 : index
    %455 = vector.load %arg19[%c5, %c0_158, %c0_159] : memref<8x10x128xf32, #tpu.memory_space<vmem>>, vector<1x10x128xf32>
    %456 = vector.shape_cast %455 : vector<1x10x128xf32> to vector<10x128xf32>
    %457 = vector.shape_cast %454 : vector<10x128xf32> to vector<1x10x128xf32>
    tpu.vector_store %arg19[%c5, %c0_158, %c0_159], %457 {strides = array<i32>} : memref<8x10x128xf32, #tpu.memory_space<vmem>>, vector<1x10x128xf32>,
    %458 = arith.truncf %454 : vector<10x128xf32> to vector<10x128xbf16>
    %459 = arith.truncf %435 : vector<10x32xf32> to vector<10x32xbf16>
    %cst_160 = arith.constant dense<0.000000e+00> : vector<40x32xf32>
    %460 = tpu.matmul %0, %459, %cst_160 {dimension_numbers = #tpu.dot_dimension_numbers<[1], [0], [0], [1], [0, 0, 1, 1], [], []>} : vector<40x10xbf16>, vector<10x32xbf16>, vector<40x32xf32> -> vector<40x32xf32>
    %cst_161 = arith.constant dense<0.000000e+00> : vector<40x32xf32>
    %461 = tpu.matmul %1, %459, %cst_161 {dimension_numbers = #tpu.dot_dimension_numbers<[1], [0], [0], [1], [0, 0, 1, 1], [], []>} : vector<40x10xbf16>, vector<10x32xbf16>, vector<40x32xf32> -> vector<40x32xf32>
    %462 = arith.truncf %460 : vector<40x32xf32> to vector<40x32xbf16>
    %cst_162 = arith.constant dense<0.000000e+00> : vector<40x96xf32>
    %463 = tpu.matmul %462, %3, %cst_162 {dimension_numbers = #tpu.dot_dimension_numbers<[1], [0], [0], [1], [0, 0, 1, 1], [], []>} : vector<40x32xbf16>, vector<32x96xbf16>, vector<40x96xf32> -> vector<40x96xf32>
    %464 = arith.truncf %461 : vector<40x32xf32> to vector<40x32xbf16>
    %cst_163 = arith.constant dense<0.000000e+00> : vector<40x96xf32>
    %465 = tpu.matmul %464, %4, %cst_163 {dimension_numbers = #tpu.dot_dimension_numbers<[1], [0], [0], [1], [0, 0, 1, 1], [], []>} : vector<40x32xbf16>, vector<32x96xbf16>, vector<40x96xf32> -> vector<40x96xf32>
    %466 = arith.addf %463, %465 : vector<40x96xf32>
    %467 = vector.broadcast %5 : vector<1x96xf32> to vector<40x96xf32>
    %468 = arith.addf %466, %467 : vector<40x96xf32>
    %469 = math.tanh %468 : vector<40x96xf32>
    %470 = arith.truncf %469 : vector<40x96xf32> to vector<40x96xbf16>
    %cst_164 = arith.constant dense<0.000000e+00> : vector<40x96xf32>
    %471 = tpu.matmul %470, %6, %cst_164 {dimension_numbers = #tpu.dot_dimension_numbers<[1], [0], [0], [1], [0, 0, 1, 1], [], []>} : vector<40x96xbf16>, vector<96x96xbf16>, vector<40x96xf32> -> vector<40x96xf32>
    %472 = vector.broadcast %7 : vector<1x96xf32> to vector<40x96xf32>
    %473 = arith.addf %471, %472 : vector<40x96xf32>
    %474 = math.tanh %473 : vector<40x96xf32>
    %475 = arith.truncf %474 : vector<40x96xf32> to vector<40x96xbf16>
    %cst_165 = arith.constant dense<0.000000e+00> : vector<10x96xf32>
    %476 = tpu.matmul %2, %475, %cst_165 {dimension_numbers = #tpu.dot_dimension_numbers<[1], [0], [0], [1], [0, 0, 1, 1], [], []>} : vector<10x40xbf16>, vector<40x96xbf16>, vector<10x96xf32> -> vector<10x96xf32>
    %477 = arith.truncf %476 : vector<10x96xf32> to vector<10x96xbf16>
    %cst_166 = arith.constant dense<0.000000e+00> : vector<10x96xf32>
    %478 = tpu.matmul %477, %10, %cst_166 {dimension_numbers = #tpu.dot_dimension_numbers<[1], [0], [0], [1], [0, 0, 1, 1], [], []>} : vector<10x96xbf16>, vector<96x96xbf16>, vector<10x96xf32> -> vector<10x96xf32>
    %cst_167 = arith.constant dense<0.000000e+00> : vector<10x96xf32>
    %479 = tpu.matmul %458, %8, %cst_167 {dimension_numbers = #tpu.dot_dimension_numbers<[1], [0], [0], [1], [0, 0, 1, 1], [], []>} : vector<10x128xbf16>, vector<128x96xbf16>, vector<10x96xf32> -> vector<10x96xf32>
    %480 = vector.broadcast %9 : vector<1x96xf32> to vector<10x96xf32>
    %481 = arith.addf %479, %480 : vector<10x96xf32>
    %482 = vector.extract_strided_slice %481 {offsets = [0, 0], sizes = [10, 32], strides = [1, 1]} : vector<10x96xf32> to vector<10x32xf32>
    %483 = vector.extract_strided_slice %478 {offsets = [0, 0], sizes = [10, 32], strides = [1, 1]} : vector<10x96xf32> to vector<10x32xf32>
    %484 = arith.addf %482, %483 : vector<10x32xf32>
    %485 = arith.negf %484 : vector<10x32xf32>
    %486 = math.exp %485 : vector<10x32xf32>
    %cst_168 = arith.constant 1.000000e+00 : f32
    %487 = vector.broadcast %cst_168 : f32 to vector<10x32xf32>
    %488 = arith.addf %487, %486 : vector<10x32xf32>
    %489 = arith.divf %487, %488 : vector<10x32xf32>
    %490 = vector.extract_strided_slice %481 {offsets = [0, 32], sizes = [10, 32], strides = [1, 1]} : vector<10x96xf32> to vector<10x32xf32>
    %491 = vector.extract_strided_slice %478 {offsets = [0, 32], sizes = [10, 32], strides = [1, 1]} : vector<10x96xf32> to vector<10x32xf32>
    %492 = arith.addf %490, %491 : vector<10x32xf32>
    %493 = arith.negf %492 : vector<10x32xf32>
    %494 = math.exp %493 : vector<10x32xf32>
    %cst_169 = arith.constant 1.000000e+00 : f32
    %495 = vector.broadcast %cst_169 : f32 to vector<10x32xf32>
    %496 = arith.addf %495, %494 : vector<10x32xf32>
    %497 = arith.divf %495, %496 : vector<10x32xf32>
    %498 = vector.extract_strided_slice %481 {offsets = [0, 64], sizes = [10, 32], strides = [1, 1]} : vector<10x96xf32> to vector<10x32xf32>
    %499 = vector.extract_strided_slice %478 {offsets = [0, 64], sizes = [10, 32], strides = [1, 1]} : vector<10x96xf32> to vector<10x32xf32>
    %500 = arith.mulf %489, %499 : vector<10x32xf32>
    %501 = arith.addf %498, %500 : vector<10x32xf32>
    %502 = math.tanh %501 : vector<10x32xf32>
    %cst_170 = arith.constant 1.000000e+00 : f32
    %503 = vector.broadcast %cst_170 : f32 to vector<10x32xf32>
    %504 = arith.subf %503, %497 : vector<10x32xf32>
    %505 = arith.mulf %504, %502 : vector<10x32xf32>
    %506 = arith.mulf %497, %435 : vector<10x32xf32>
    %507 = arith.addf %505, %506 : vector<10x32xf32>
    %508 = arith.truncf %507 : vector<10x32xf32> to vector<10x32xbf16>
    %cst_171 = arith.constant dense<0.000000e+00> : vector<10x32xf32>
    %509 = tpu.matmul %508, %11, %cst_171 {dimension_numbers = #tpu.dot_dimension_numbers<[1], [0], [0], [1], [0, 0, 1, 1], [], []>} : vector<10x32xbf16>, vector<32x32xbf16>, vector<10x32xf32> -> vector<10x32xf32>
    %510 = vector.broadcast %12 : vector<1x32xf32> to vector<10x32xf32>
    %511 = arith.addf %509, %510 : vector<10x32xf32>
    %cst_172 = arith.constant 0.000000e+00 : f32
    %512 = vector.broadcast %cst_172 : f32 to vector<10x32xf32>
    %513 = arith.maximumf %511, %512 : vector<10x32xf32>
    %514 = arith.truncf %513 : vector<10x32xf32> to vector<10x32xbf16>
    %cst_173 = arith.constant dense<0.000000e+00> : vector<10x32xf32>
    %515 = tpu.matmul %514, %13, %cst_173 {dimension_numbers = #tpu.dot_dimension_numbers<[1], [0], [0], [1], [0, 0, 1, 1], [], []>} : vector<10x32xbf16>, vector<32x32xbf16>, vector<10x32xf32> -> vector<10x32xf32>
    %516 = vector.broadcast %14 : vector<1x32xf32> to vector<10x32xf32>
    %517 = arith.addf %515, %516 : vector<10x32xf32>
    %cst_174 = arith.constant 0.000000e+00 : f32
    %518 = vector.broadcast %cst_174 : f32 to vector<10x32xf32>
    %519 = arith.maximumf %517, %518 : vector<10x32xf32>
    %520 = arith.truncf %519 : vector<10x32xf32> to vector<10x32xbf16>
    %cst_175 = arith.constant dense<0.000000e+00> : vector<10x128xf32>
    %521 = tpu.matmul %520, %15, %cst_175 {dimension_numbers = #tpu.dot_dimension_numbers<[1], [0], [0], [1], [0, 0, 1, 1], [], []>} : vector<10x32xbf16>, vector<32x128xbf16>, vector<10x128xf32> -> vector<10x128xf32>
    %522 = vector.broadcast %16 : vector<1x128xf32> to vector<10x128xf32>
    %523 = arith.addf %521, %522 : vector<10x128xf32>
    %cst_176 = arith.constant 0.000000e+00 : f32
    %524 = vector.broadcast %cst_176 : f32 to vector<10x128xf32>
    %525 = arith.maximumf %523, %524 : vector<10x128xf32>
    %526 = arith.addf %454, %525 : vector<10x128xf32>
    %c6 = arith.constant 6 : index
    %c0_177 = arith.constant 0 : index
    %c0_178 = arith.constant 0 : index
    %527 = vector.load %arg19[%c6, %c0_177, %c0_178] : memref<8x10x128xf32, #tpu.memory_space<vmem>>, vector<1x10x128xf32>
    %528 = vector.shape_cast %527 : vector<1x10x128xf32> to vector<10x128xf32>
    %529 = vector.shape_cast %526 : vector<10x128xf32> to vector<1x10x128xf32>
    tpu.vector_store %arg19[%c6, %c0_177, %c0_178], %529 {strides = array<i32>} : memref<8x10x128xf32, #tpu.memory_space<vmem>>, vector<1x10x128xf32>,
    %530 = arith.truncf %526 : vector<10x128xf32> to vector<10x128xbf16>
    %531 = arith.truncf %507 : vector<10x32xf32> to vector<10x32xbf16>
    %cst_179 = arith.constant dense<0.000000e+00> : vector<40x32xf32>
    %532 = tpu.matmul %0, %531, %cst_179 {dimension_numbers = #tpu.dot_dimension_numbers<[1], [0], [0], [1], [0, 0, 1, 1], [], []>} : vector<40x10xbf16>, vector<10x32xbf16>, vector<40x32xf32> -> vector<40x32xf32>
    %cst_180 = arith.constant dense<0.000000e+00> : vector<40x32xf32>
    %533 = tpu.matmul %1, %531, %cst_180 {dimension_numbers = #tpu.dot_dimension_numbers<[1], [0], [0], [1], [0, 0, 1, 1], [], []>} : vector<40x10xbf16>, vector<10x32xbf16>, vector<40x32xf32> -> vector<40x32xf32>
    %534 = arith.truncf %532 : vector<40x32xf32> to vector<40x32xbf16>
    %cst_181 = arith.constant dense<0.000000e+00> : vector<40x96xf32>
    %535 = tpu.matmul %534, %3, %cst_181 {dimension_numbers = #tpu.dot_dimension_numbers<[1], [0], [0], [1], [0, 0, 1, 1], [], []>} : vector<40x32xbf16>, vector<32x96xbf16>, vector<40x96xf32> -> vector<40x96xf32>
    %536 = arith.truncf %533 : vector<40x32xf32> to vector<40x32xbf16>
    %cst_182 = arith.constant dense<0.000000e+00> : vector<40x96xf32>
    %537 = tpu.matmul %536, %4, %cst_182 {dimension_numbers = #tpu.dot_dimension_numbers<[1], [0], [0], [1], [0, 0, 1, 1], [], []>} : vector<40x32xbf16>, vector<32x96xbf16>, vector<40x96xf32> -> vector<40x96xf32>
    %538 = arith.addf %535, %537 : vector<40x96xf32>
    %539 = vector.broadcast %5 : vector<1x96xf32> to vector<40x96xf32>
    %540 = arith.addf %538, %539 : vector<40x96xf32>
    %541 = math.tanh %540 : vector<40x96xf32>
    %542 = arith.truncf %541 : vector<40x96xf32> to vector<40x96xbf16>
    %cst_183 = arith.constant dense<0.000000e+00> : vector<40x96xf32>
    %543 = tpu.matmul %542, %6, %cst_183 {dimension_numbers = #tpu.dot_dimension_numbers<[1], [0], [0], [1], [0, 0, 1, 1], [], []>} : vector<40x96xbf16>, vector<96x96xbf16>, vector<40x96xf32> -> vector<40x96xf32>
    %544 = vector.broadcast %7 : vector<1x96xf32> to vector<40x96xf32>
    %545 = arith.addf %543, %544 : vector<40x96xf32>
    %546 = math.tanh %545 : vector<40x96xf32>
    %547 = arith.truncf %546 : vector<40x96xf32> to vector<40x96xbf16>
    %cst_184 = arith.constant dense<0.000000e+00> : vector<10x96xf32>
    %548 = tpu.matmul %2, %547, %cst_184 {dimension_numbers = #tpu.dot_dimension_numbers<[1], [0], [0], [1], [0, 0, 1, 1], [], []>} : vector<10x40xbf16>, vector<40x96xbf16>, vector<10x96xf32> -> vector<10x96xf32>
    %549 = arith.truncf %548 : vector<10x96xf32> to vector<10x96xbf16>
    %cst_185 = arith.constant dense<0.000000e+00> : vector<10x96xf32>
    %550 = tpu.matmul %549, %10, %cst_185 {dimension_numbers = #tpu.dot_dimension_numbers<[1], [0], [0], [1], [0, 0, 1, 1], [], []>} : vector<10x96xbf16>, vector<96x96xbf16>, vector<10x96xf32> -> vector<10x96xf32>
    %cst_186 = arith.constant dense<0.000000e+00> : vector<10x96xf32>
    %551 = tpu.matmul %530, %8, %cst_186 {dimension_numbers = #tpu.dot_dimension_numbers<[1], [0], [0], [1], [0, 0, 1, 1], [], []>} : vector<10x128xbf16>, vector<128x96xbf16>, vector<10x96xf32> -> vector<10x96xf32>
    %552 = vector.broadcast %9 : vector<1x96xf32> to vector<10x96xf32>
    %553 = arith.addf %551, %552 : vector<10x96xf32>
    %554 = vector.extract_strided_slice %553 {offsets = [0, 0], sizes = [10, 32], strides = [1, 1]} : vector<10x96xf32> to vector<10x32xf32>
    %555 = vector.extract_strided_slice %550 {offsets = [0, 0], sizes = [10, 32], strides = [1, 1]} : vector<10x96xf32> to vector<10x32xf32>
    %556 = arith.addf %554, %555 : vector<10x32xf32>
    %557 = arith.negf %556 : vector<10x32xf32>
    %558 = math.exp %557 : vector<10x32xf32>
    %cst_187 = arith.constant 1.000000e+00 : f32
    %559 = vector.broadcast %cst_187 : f32 to vector<10x32xf32>
    %560 = arith.addf %559, %558 : vector<10x32xf32>
    %561 = arith.divf %559, %560 : vector<10x32xf32>
    %562 = vector.extract_strided_slice %553 {offsets = [0, 32], sizes = [10, 32], strides = [1, 1]} : vector<10x96xf32> to vector<10x32xf32>
    %563 = vector.extract_strided_slice %550 {offsets = [0, 32], sizes = [10, 32], strides = [1, 1]} : vector<10x96xf32> to vector<10x32xf32>
    %564 = arith.addf %562, %563 : vector<10x32xf32>
    %565 = arith.negf %564 : vector<10x32xf32>
    %566 = math.exp %565 : vector<10x32xf32>
    %cst_188 = arith.constant 1.000000e+00 : f32
    %567 = vector.broadcast %cst_188 : f32 to vector<10x32xf32>
    %568 = arith.addf %567, %566 : vector<10x32xf32>
    %569 = arith.divf %567, %568 : vector<10x32xf32>
    %570 = vector.extract_strided_slice %553 {offsets = [0, 64], sizes = [10, 32], strides = [1, 1]} : vector<10x96xf32> to vector<10x32xf32>
    %571 = vector.extract_strided_slice %550 {offsets = [0, 64], sizes = [10, 32], strides = [1, 1]} : vector<10x96xf32> to vector<10x32xf32>
    %572 = arith.mulf %561, %571 : vector<10x32xf32>
    %573 = arith.addf %570, %572 : vector<10x32xf32>
    %574 = math.tanh %573 : vector<10x32xf32>
    %cst_189 = arith.constant 1.000000e+00 : f32
    %575 = vector.broadcast %cst_189 : f32 to vector<10x32xf32>
    %576 = arith.subf %575, %569 : vector<10x32xf32>
    %577 = arith.mulf %576, %574 : vector<10x32xf32>
    %578 = arith.mulf %569, %507 : vector<10x32xf32>
    %579 = arith.addf %577, %578 : vector<10x32xf32>
    %580 = arith.truncf %579 : vector<10x32xf32> to vector<10x32xbf16>
    %cst_190 = arith.constant dense<0.000000e+00> : vector<10x32xf32>
    %581 = tpu.matmul %580, %11, %cst_190 {dimension_numbers = #tpu.dot_dimension_numbers<[1], [0], [0], [1], [0, 0, 1, 1], [], []>} : vector<10x32xbf16>, vector<32x32xbf16>, vector<10x32xf32> -> vector<10x32xf32>
    %582 = vector.broadcast %12 : vector<1x32xf32> to vector<10x32xf32>
    %583 = arith.addf %581, %582 : vector<10x32xf32>
    %cst_191 = arith.constant 0.000000e+00 : f32
    %584 = vector.broadcast %cst_191 : f32 to vector<10x32xf32>
    %585 = arith.maximumf %583, %584 : vector<10x32xf32>
    %586 = arith.truncf %585 : vector<10x32xf32> to vector<10x32xbf16>
    %cst_192 = arith.constant dense<0.000000e+00> : vector<10x32xf32>
    %587 = tpu.matmul %586, %13, %cst_192 {dimension_numbers = #tpu.dot_dimension_numbers<[1], [0], [0], [1], [0, 0, 1, 1], [], []>} : vector<10x32xbf16>, vector<32x32xbf16>, vector<10x32xf32> -> vector<10x32xf32>
    %588 = vector.broadcast %14 : vector<1x32xf32> to vector<10x32xf32>
    %589 = arith.addf %587, %588 : vector<10x32xf32>
    %cst_193 = arith.constant 0.000000e+00 : f32
    %590 = vector.broadcast %cst_193 : f32 to vector<10x32xf32>
    %591 = arith.maximumf %589, %590 : vector<10x32xf32>
    %592 = arith.truncf %591 : vector<10x32xf32> to vector<10x32xbf16>
    %cst_194 = arith.constant dense<0.000000e+00> : vector<10x128xf32>
    %593 = tpu.matmul %592, %15, %cst_194 {dimension_numbers = #tpu.dot_dimension_numbers<[1], [0], [0], [1], [0, 0, 1, 1], [], []>} : vector<10x32xbf16>, vector<32x128xbf16>, vector<10x128xf32> -> vector<10x128xf32>
    %594 = vector.broadcast %16 : vector<1x128xf32> to vector<10x128xf32>
    %595 = arith.addf %593, %594 : vector<10x128xf32>
    %cst_195 = arith.constant 0.000000e+00 : f32
    %596 = vector.broadcast %cst_195 : f32 to vector<10x128xf32>
    %597 = arith.maximumf %595, %596 : vector<10x128xf32>
    %598 = arith.addf %526, %597 : vector<10x128xf32>
    %c7 = arith.constant 7 : index
    %c0_196 = arith.constant 0 : index
    %c0_197 = arith.constant 0 : index
    %599 = vector.load %arg19[%c7, %c0_196, %c0_197] : memref<8x10x128xf32, #tpu.memory_space<vmem>>, vector<1x10x128xf32>
    %600 = vector.shape_cast %599 : vector<1x10x128xf32> to vector<10x128xf32>
    %601 = vector.shape_cast %598 : vector<10x128xf32> to vector<1x10x128xf32>
    tpu.vector_store %arg19[%c7, %c0_196, %c0_197], %601 {strides = array<i32>} : memref<8x10x128xf32, #tpu.memory_space<vmem>>, vector<1x10x128xf32>,
    return
  }
  func.func @transform_0(%arg0: i32) -> (i32, i32, i32) {
    %c0_i32 = arith.constant 0 : i32
    %c0_i32_0 = arith.constant 0 : i32
    %c0_i32_1 = arith.constant 0 : i32
    %c0_i32_2 = arith.constant 0 : i32
    return %c0_i32, %c0_i32_0, %c0_i32_1 : i32, i32, i32
  }
  func.func @transform_1(%arg0: i32) -> (i32, i32) {
    %c0_i32 = arith.constant 0 : i32
    %c0_i32_0 = arith.constant 0 : i32
    %c0_i32_1 = arith.constant 0 : i32
    return %c0_i32, %c0_i32_0 : i32, i32
  }
  func.func @transform_2(%arg0: i32) -> (i32, i32) {
    %c0_i32 = arith.constant 0 : i32
    %c0_i32_0 = arith.constant 0 : i32
    %c0_i32_1 = arith.constant 0 : i32
    return %c0_i32, %c0_i32_0 : i32, i32
  }
  func.func @transform_3(%arg0: i32) -> (i32, i32) {
    %c0_i32 = arith.constant 0 : i32
    %c0_i32_0 = arith.constant 0 : i32
    %c0_i32_1 = arith.constant 0 : i32
    return %c0_i32, %c0_i32_0 : i32, i32
  }
  func.func @transform_4(%arg0: i32) -> (i32, i32) {
    %c0_i32 = arith.constant 0 : i32
    %c0_i32_0 = arith.constant 0 : i32
    %c0_i32_1 = arith.constant 0 : i32
    return %c0_i32, %c0_i32_0 : i32, i32
  }
  func.func @transform_5(%arg0: i32) -> (i32, i32) {
    %c0_i32 = arith.constant 0 : i32
    %c0_i32_0 = arith.constant 0 : i32
    %c0_i32_1 = arith.constant 0 : i32
    return %c0_i32, %c0_i32_0 : i32, i32
  }
  func.func @transform_6(%arg0: i32) -> (i32, i32) {
    %c0_i32 = arith.constant 0 : i32
    %c0_i32_0 = arith.constant 0 : i32
    %c0_i32_1 = arith.constant 0 : i32
    return %c0_i32, %c0_i32_0 : i32, i32
  }
  func.func @transform_7(%arg0: i32) -> (i32, i32) {
    %c0_i32 = arith.constant 0 : i32
    %c0_i32_0 = arith.constant 0 : i32
    %c0_i32_1 = arith.constant 0 : i32
    return %c0_i32, %c0_i32_0 : i32, i32
  }
  func.func @transform_8(%arg0: i32) -> (i32, i32) {
    %c0_i32 = arith.constant 0 : i32
    %c0_i32_0 = arith.constant 0 : i32
    %c0_i32_1 = arith.constant 0 : i32
    return %c0_i32, %c0_i32_0 : i32, i32
  }
  func.func @transform_9(%arg0: i32) -> (i32, i32) {
    %c0_i32 = arith.constant 0 : i32
    %c0_i32_0 = arith.constant 0 : i32
    %c0_i32_1 = arith.constant 0 : i32
    return %c0_i32, %c0_i32_0 : i32, i32
  }
  func.func @transform_10(%arg0: i32) -> (i32, i32) {
    %c0_i32 = arith.constant 0 : i32
    %c0_i32_0 = arith.constant 0 : i32
    %c0_i32_1 = arith.constant 0 : i32
    return %c0_i32, %c0_i32_0 : i32, i32
  }
  func.func @transform_11(%arg0: i32) -> (i32, i32) {
    %c0_i32 = arith.constant 0 : i32
    %c0_i32_0 = arith.constant 0 : i32
    %c0_i32_1 = arith.constant 0 : i32
    return %c0_i32, %c0_i32_0 : i32, i32
  }
  func.func @transform_12(%arg0: i32) -> (i32, i32) {
    %c0_i32 = arith.constant 0 : i32
    %c0_i32_0 = arith.constant 0 : i32
    %c0_i32_1 = arith.constant 0 : i32
    return %c0_i32, %c0_i32_0 : i32, i32
  }
  func.func @transform_13(%arg0: i32) -> (i32, i32) {
    %c0_i32 = arith.constant 0 : i32
    %c0_i32_0 = arith.constant 0 : i32
    %c0_i32_1 = arith.constant 0 : i32
    return %c0_i32, %c0_i32_0 : i32, i32
  }
  func.func @transform_14(%arg0: i32) -> (i32, i32) {
    %c0_i32 = arith.constant 0 : i32
    %c0_i32_0 = arith.constant 0 : i32
    %c0_i32_1 = arith.constant 0 : i32
    return %c0_i32, %c0_i32_0 : i32, i32
  }
  func.func @transform_15(%arg0: i32) -> (i32, i32) {
    %c0_i32 = arith.constant 0 : i32
    %c0_i32_0 = arith.constant 0 : i32
    %c0_i32_1 = arith.constant 0 : i32
    return %c0_i32, %c0_i32_0 : i32, i32
  }
  func.func @transform_16(%arg0: i32) -> (i32, i32) {
    %c0_i32 = arith.constant 0 : i32
    %c0_i32_0 = arith.constant 0 : i32
    %c0_i32_1 = arith.constant 0 : i32
    return %c0_i32, %c0_i32_0 : i32, i32
  }
  func.func @transform_17(%arg0: i32) -> (i32, i32) {
    %c0_i32 = arith.constant 0 : i32
    %c0_i32_0 = arith.constant 0 : i32
    %c0_i32_1 = arith.constant 0 : i32
    return %c0_i32, %c0_i32_0 : i32, i32
  }
  func.func @transform_18(%arg0: i32) -> (i32, i32, i32) {
    %c0_i32 = arith.constant 0 : i32
    %c0_i32_0 = arith.constant 0 : i32
    %c0_i32_1 = arith.constant 0 : i32
    %c0_i32_2 = arith.constant 0 : i32
    return %c0_i32, %c0_i32_0, %c0_i32_1 : i32, i32, i32
  }
}

</mosaic_0001>

<llo_original>
// kernel: tpu_custom_call.1
$region0: #{tpu_custom_call.1}
  #allocation0 [shape = 'u32[]', space=smem, size = 0x4, offset = 0x4, fixed_abs, tag = 'smem constant byte address 0x4 - core index']
  #allocation1 [shape = 'u32[144,128]{1,0:T(1,128)}', space=vmem, size = 0x12000, scoped, tag = 'internal scratch']
  %s0 = inlined_call_operand.vmem [shape: f32[4,10,128], index: 0, kind: input, shape index: {}]
  %s1 = inlined_call_operand.vmem [shape: bf16[40,10], index: 1, kind: input, shape index: {}]
  %s2 = inlined_call_operand.vmem [shape: bf16[40,10], index: 2, kind: input, shape index: {}]
  %s3 = inlined_call_operand.vmem [shape: bf16[10,40], index: 3, kind: input, shape index: {}]
  %s4 = inlined_call_operand.vmem [shape: bf16[32,96], index: 4, kind: input, shape index: {}]
  %s5 = inlined_call_operand.vmem [shape: bf16[32,96], index: 5, kind: input, shape index: {}]
  %s6 = inlined_call_operand.vmem [shape: f32[1,96], index: 6, kind: input, shape index: {}]
  %s7 = inlined_call_operand.vmem [shape: bf16[96,96], index: 7, kind: input, shape index: {}]
  %s8 = inlined_call_operand.vmem [shape: f32[1,96], index: 8, kind: input, shape index: {}]
  %s9 = inlined_call_operand.vmem [shape: bf16[128,96], index: 9, kind: input, shape index: {}]
  %s10 = inlined_call_operand.vmem [shape: f32[1,96], index: 10, kind: input, shape index: {}]
  %s11 = inlined_call_operand.vmem [shape: bf16[96,96], index: 11, kind: input, shape index: {}]
  %s12 = inlined_call_operand.vmem [shape: bf16[32,32], index: 12, kind: input, shape index: {}]
  %s13 = inlined_call_operand.vmem [shape: f32[1,32], index: 13, kind: input, shape index: {}]
  %s14 = inlined_call_operand.vmem [shape: bf16[32,32], index: 14, kind: input, shape index: {}]
  %s15 = inlined_call_operand.vmem [shape: f32[1,32], index: 15, kind: input, shape index: {}]
  %s16 = inlined_call_operand.vmem [shape: bf16[32,128], index: 16, kind: input, shape index: {}]
  %s17 = inlined_call_operand.vmem [shape: f32[1,128], index: 17, kind: input, shape index: {}]
  %s18 = inlined_call_operand.vmem [shape: f32[8,10,128], index: 18, kind: output, shape index: {}]
  %s19 = sld [smem:[#allocation0]]
  $region82: #{tpu_custom_call.1} parent=0
    _
  %s21 = ssub.s32 1, %s19
  %s22 = scalar_select 0, %s21, %s19
  // Predicated region
  $region2: #{tpu_custom_call.1} parent=0 // pred_check
    _
  $region3: #{tpu_custom_call.1} parent=0 // pred_check_branch
    %24 = sbr.rel (0) target = $region5
  $region4: #{tpu_custom_call.1} parent=0 // pred_region
    _
  $region5: #{tpu_custom_call.1} parent=0 // pred_fallthru
    _
  // Predicated region
  $region6: #{tpu_custom_call.1} parent=0 // pred_check
    _
  $region7: #{tpu_custom_call.1} parent=0 // pred_check_branch
    %26 = sbr.rel (0) target = $region9
  $region8: #{tpu_custom_call.1} parent=0 // pred_region
    _
  $region9: #{tpu_custom_call.1} parent=0 // pred_fallthru
    _
  // Predicated region
  $region10: #{tpu_custom_call.1} parent=0 // pred_check
    _
  $region11: #{tpu_custom_call.1} parent=0 // pred_check_branch
    %28 = sbr.rel (0) target = $region13
  $region12: #{tpu_custom_call.1} parent=0 // pred_region
    _
  $region13: #{tpu_custom_call.1} parent=0 // pred_fallthru
    _
  // Predicated region
  $region14: #{tpu_custom_call.1} parent=0 // pred_check
    _
  $region15: #{tpu_custom_call.1} parent=0 // pred_check_branch
    %30 = sbr.rel (0) target = $region17
  $region16: #{tpu_custom_call.1} parent=0 // pred_region
    _
  $region17: #{tpu_custom_call.1} parent=0 // pred_fallthru
    _
  // Predicated region
  $region18: #{tpu_custom_call.1} parent=0 // pred_check
    _
  $region19: #{tpu_custom_call.1} parent=0 // pred_check_branch
    %32 = sbr.rel (0) target = $region21
  $region20: #{tpu_custom_call.1} parent=0 // pred_region
    _
  $region21: #{tpu_custom_call.1} parent=0 // pred_fallthru
    _
  // Predicated region
  $region22: #{tpu_custom_call.1} parent=0 // pred_check
    _
  $region23: #{tpu_custom_call.1} parent=0 // pred_check_branch
    %34 = sbr.rel (0) target = $region25
  $region24: #{tpu_custom_call.1} parent=0 // pred_region
    _
  $region25: #{tpu_custom_call.1} parent=0 // pred_fallthru
    _
  // Predicated region
  $region26: #{tpu_custom_call.1} parent=0 // pred_check
    _
  $region27: #{tpu_custom_call.1} parent=0 // pred_check_branch
    %36 = sbr.rel (0) target = $region29
  $region28: #{tpu_custom_call.1} parent=0 // pred_region
    _
  $region29: #{tpu_custom_call.1} parent=0 // pred_fallthru
    _
  // Predicated region
  $region30: #{tpu_custom_call.1} parent=0 // pred_check
    _
  $region31: #{tpu_custom_call.1} parent=0 // pred_check_branch
    %38 = sbr.rel (0) target = $region33
  $region32: #{tpu_custom_call.1} parent=0 // pred_region
    _
  $region33: #{tpu_custom_call.1} parent=0 // pred_fallthru
    _
  // Predicated region
  $region34: #{tpu_custom_call.1} parent=0 // pred_check
    _
  $region35: #{tpu_custom_call.1} parent=0 // pred_check_branch
    %40 = sbr.rel (0) target = $region37
  $region36: #{tpu_custom_call.1} parent=0 // pred_region
    _
  $region37: #{tpu_custom_call.1} parent=0 // pred_fallthru
    _
  // Predicated region
  $region38: #{tpu_custom_call.1} parent=0 // pred_check
    _
  $region39: #{tpu_custom_call.1} parent=0 // pred_check_branch
    %42 = sbr.rel (0) target = $region41
  $region40: #{tpu_custom_call.1} parent=0 // pred_region
    _
  $region41: #{tpu_custom_call.1} parent=0 // pred_fallthru
    _
  // Predicated region
  $region42: #{tpu_custom_call.1} parent=0 // pred_check
    _
  $region43: #{tpu_custom_call.1} parent=0 // pred_check_branch
    %44 = sbr.rel (0) target = $region45
  $region44: #{tpu_custom_call.1} parent=0 // pred_region
    _
  $region45: #{tpu_custom_call.1} parent=0 // pred_fallthru
    _
  // Predicated region
  $region46: #{tpu_custom_call.1} parent=0 // pred_check
    _
  $region47: #{tpu_custom_call.1} parent=0 // pred_check_branch
    %46 = sbr.rel (0) target = $region49
  $region48: #{tpu_custom_call.1} parent=0 // pred_region
    _
  $region49: #{tpu_custom_call.1} parent=0 // pred_fallthru
    _
  // Predicated region
  $region50: #{tpu_custom_call.1} parent=0 // pred_check
    _
  $region51: #{tpu_custom_call.1} parent=0 // pred_check_branch
    %48 = sbr.rel (0) target = $region53
  $region52: #{tpu_custom_call.1} parent=0 // pred_region
    _
  $region53: #{tpu_custom_call.1} parent=0 // pred_fallthru
    _
  // Predicated region
  $region54: #{tpu_custom_call.1} parent=0 // pred_check
    _
  $region55: #{tpu_custom_call.1} parent=0 // pred_check_branch
    %50 = sbr.rel (0) target = $region57
  $region56: #{tpu_custom_call.1} parent=0 // pred_region
    _
  $region57: #{tpu_custom_call.1} parent=0 // pred_fallthru
    _
  // Predicated region
  $region58: #{tpu_custom_call.1} parent=0 // pred_check
    _
  $region59: #{tpu_custom_call.1} parent=0 // pred_check_branch
    %52 = sbr.rel (0) target = $region61
  $region60: #{tpu_custom_call.1} parent=0 // pred_region
    _
  $region61: #{tpu_custom_call.1} parent=0 // pred_fallthru
    _
  // Predicated region
  $region62: #{tpu_custom_call.1} parent=0 // pred_check
    _
  $region63: #{tpu_custom_call.1} parent=0 // pred_check_branch
    %54 = sbr.rel (0) target = $region65
  $region64: #{tpu_custom_call.1} parent=0 // pred_region
    _
  $region65: #{tpu_custom_call.1} parent=0 // pred_fallthru
    _
  // Predicated region
  $region66: #{tpu_custom_call.1} parent=0 // pred_check
    _
  $region67: #{tpu_custom_call.1} parent=0 // pred_check_branch
    %56 = sbr.rel (0) target = $region69
  $region68: #{tpu_custom_call.1} parent=0 // pred_region
    _
  $region69: #{tpu_custom_call.1} parent=0 // pred_fallthru
    _
  // Predicated region
  $region70: #{tpu_custom_call.1} parent=0 // pred_check
    _
  $region71: #{tpu_custom_call.1} parent=0 // pred_check_branch
    %58 = sbr.rel (0) target = $region73
  $region72: #{tpu_custom_call.1} parent=0 // pred_region
    _
  $region73: #{tpu_custom_call.1} parent=0 // pred_fallthru
    _
  %v60 = vld [vmem:[%s1] sm:$0xf]
  %v61 = vld [vmem:[%s1 + $0x4] sm:$0xf]
  %v62 = vld [vmem:[%s1 + $0x8] sm:$0xf]
  %v63 = vld [vmem:[%s1 + $0xc] sm:$0xf]
  %v64 = vld [vmem:[%s1 + $0x10] sm:$0xf]
  %v65 = vld [vmem:[%s2] sm:$0xf]
  %v66 = vld [vmem:[%s2 + $0x4] sm:$0xf]
  %v67 = vld [vmem:[%s2 + $0x8] sm:$0xf]
  %v68 = vld [vmem:[%s2 + $0xc] sm:$0xf]
  %v69 = vld [vmem:[%s2 + $0x10] sm:$0xf]
  %v70 = vld [vmem:[%s3] sm:$0xf]
  %v71 = vld [vmem:[%s3 + $0x4] sm:$0x1]
  %v72 = vld [vmem:[%s4] sm:$0xf]
  %v73 = vld [vmem:[%s4 + $0x4] sm:$0xf]
  %v74 = vld [vmem:[%s4 + $0x8] sm:$0xf]
  %v75 = vld [vmem:[%s4 + $0xc] sm:$0xf]
  %v76 = vld [vmem:[%s5] sm:$0xf]
  %v77 = vld [vmem:[%s5 + $0x4] sm:$0xf]
  %v78 = vld [vmem:[%s5 + $0x8] sm:$0xf]
  %v79 = vld [vmem:[%s5 + $0xc] sm:$0xf]
  %v80 = vld [vmem:[%s6] sm:$0x1]
  %v81 = vld [vmem:[%s7] sm:$0xf]
  %v82 = vld [vmem:[%s7 + $0x4] sm:$0xf]
  %v83 = vld [vmem:[%s7 + $0x8] sm:$0xf]
  %v84 = vld [vmem:[%s7 + $0xc] sm:$0xf]
  %v85 = vld [vmem:[%s7 + $0x10] sm:$0xf]
  %v86 = vld [vmem:[%s7 + $0x14] sm:$0xf]
  %v87 = vld [vmem:[%s7 + $0x18] sm:$0xf]
  %v88 = vld [vmem:[%s7 + $0x1c] sm:$0xf]
  %v89 = vld [vmem:[%s7 + $0x20] sm:$0xf]
  %v90 = vld [vmem:[%s7 + $0x24] sm:$0xf]
  %v91 = vld [vmem:[%s7 + $0x28] sm:$0xf]
  %v92 = vld [vmem:[%s7 + $0x2c] sm:$0xf]
  %v93 = vld [vmem:[%s8] sm:$0x1]
  %v94 = vld [vmem:[%s9] sm:$0xf]
  %v95 = vld [vmem:[%s9 + $0x4] sm:$0xf]
  %v96 = vld [vmem:[%s9 + $0x8] sm:$0xf]
  %v97 = vld [vmem:[%s9 + $0xc] sm:$0xf]
  %v98 = vld [vmem:[%s9 + $0x10] sm:$0xf]
  %v99 = vld [vmem:[%s9 + $0x14] sm:$0xf]
  %v100 = vld [vmem:[%s9 + $0x18] sm:$0xf]
  %v101 = vld [vmem:[%s9 + $0x1c] sm:$0xf]
  %v102 = vld [vmem:[%s9 + $0x20] sm:$0xf]
  %v103 = vld [vmem:[%s9 + $0x24] sm:$0xf]
  %v104 = vld [vmem:[%s9 + $0x28] sm:$0xf]
  %v105 = vld [vmem:[%s9 + $0x2c] sm:$0xf]
  %v106 = vld [vmem:[%s9 + $0x30] sm:$0xf]
  %v107 = vld [vmem:[%s9 + $0x34] sm:$0xf]
  %v108 = vld [vmem:[%s9 + $0x38] sm:$0xf]
  %v109 = vld [vmem:[%s9 + $0x3c] sm:$0xf]
  %v110 = vld [vmem:[%s10] sm:$0x1]
  %v111 = vld [vmem:[%s11] sm:$0xf]
  %v112 = vld [vmem:[%s11 + $0x4] sm:$0xf]
  %v113 = vld [vmem:[%s11 + $0x8] sm:$0xf]
  %v114 = vld [vmem:[%s11 + $0xc] sm:$0xf]
  %v115 = vld [vmem:[%s11 + $0x10] sm:$0xf]
  %v116 = vld [vmem:[%s11 + $0x14] sm:$0xf]
  %v117 = vld [vmem:[%s11 + $0x18] sm:$0xf]
  %v118 = vld [vmem:[%s11 + $0x1c] sm:$0xf]
  %v119 = vld [vmem:[%s11 + $0x20] sm:$0xf]
  %v120 = vld [vmem:[%s11 + $0x24] sm:$0xf]
  %v121 = vld [vmem:[%s11 + $0x28] sm:$0xf]
  %v122 = vld [vmem:[%s11 + $0x2c] sm:$0xf]
  %v123 = vld [vmem:[%s12] sm:$0xf]
  %v124 = vld [vmem:[%s12 + $0x4] sm:$0xf]
  %v125 = vld [vmem:[%s12 + $0x8] sm:$0xf]
  %v126 = vld [vmem:[%s12 + $0xc] sm:$0xf]
  %v127 = vld [vmem:[%s13] sm:$0x1]
  %v128 = vld [vmem:[%s14] sm:$0xf]
  %v129 = vld [vmem:[%s14 + $0x4] sm:$0xf]
  %v130 = vld [vmem:[%s14 + $0x8] sm:$0xf]
  %v131 = vld [vmem:[%s14 + $0xc] sm:$0xf]
  %v132 = vld [vmem:[%s15] sm:$0x1]
  %v133 = vld [vmem:[%s16] sm:$0xf]
  %v134 = vld [vmem:[%s16 + $0x4] sm:$0xf]
  %v135 = vld [vmem:[%s16 + $0x8] sm:$0xf]
  %v136 = vld [vmem:[%s16 + $0xc] sm:$0xf]
  %v137 = vld [vmem:[%s17] sm:$0x1]
  %v138 = vld [vmem:[%s0] sm:$0xff]
  %v139 = vld [vmem:[%s0 + $0x8] sm:$0x3]
  %v140 = vpack.c.bf16 %v139, %v138
  %v146 = vunpack.c.l.b16 %v60
  %v147 = vunpack.c.l.b16 %v61
  %v148 = vunpack.c.l.b16 %v62
  %v149 = vunpack.c.l.b16 %v63
  %v150 = vunpack.c.l.b16 %v64
  %v151 = vpack.c.b16 %v147, %v146
  %v152 = vpack.c.b16 %v149, %v148
  %v153 = vpack.c.b16 %v150, %v150
  %vm154 = vcmask 80896
  %v156 = vsel %vm154, %v151, 0
  %v159 = vsel %vm154, %v152, 0
  %v162 = vsel %vm154, %v153, 0
  %vm164 = vcmask 1044480
  %v166 = vsel %vm164, 0, 0
  %168 = vmatprep.subr.bf16.mxu0 0
  %169 = vmatpush1.bf16.msra.mxu0 %v166
  %170 = vmatprep.subr.bf16.mxu0 0
  %171 = vmatpush1.bf16.msra.mxu0 0
  %172 = vmatprep.subr.bf16.mxu0 0
  %173 = vmatpush1.bf16.msra.mxu0 0
  %174 = vmatprep.subr.bf16.mxu0 0
  %175 = vmatpush1.bf16.msra.mxu0 0
  %176 = vmatprep.subr.bf16.mxu0 0
  %177 = vmatpush1.bf16.msra.mxu0 0
  %178 = vmatprep.subr.bf16.mxu0 0
  %179 = vmatpush1.bf16.msra.mxu0 0
  %180 = vmatprep.subr.bf16.mxu0 0
  %181 = vmatpush1.bf16.msra.mxu0 0
  %182 = vmatprep.subr.bf16.mxu0 0
  %183 = vmatpush1.bf16.msra.mxu0 0
  %184 = vmatprep.subr.bf16.mxu0 0
  %185 = vmatpush1.bf16.msra.mxu0 0
  %186 = vmatprep.subr.bf16.mxu0 0
  %187 = vmatpush1.bf16.msra.mxu0 0
  %188 = vmatprep.subr.bf16.mxu0 0
  %189 = vmatpush1.bf16.msra.mxu0 0
  %190 = vmatprep.subr.bf16.mxu0 0
  %191 = vmatpush1.bf16.msra.mxu0 0
  %192 = vmatprep.subr.bf16.mxu0 0
  %193 = vmatpush1.bf16.msra.mxu0 0
  %194 = vmatprep.subr.bf16.mxu0 0
  %195 = vmatpush1.bf16.msra.mxu0 0
  %196 = vmatprep.subr.bf16.mxu0 0
  %197 = vmatpush1.bf16.msra.mxu0 0
  %198 = vmatprep.subr.bf16.mxu0 0
  %199 = vmatpush1.bf16.msra.mxu0 0
  %200 = vmatprep.mubr.bf16.mxu0 0
  %201 = vmatmul.mubr.bf16.gmra.mrb[0].mxu0 %v156
  %v202 = vpop.f32.mrb[0].mxu0
  %v203 = vadd.f32 0.0, %v202
  %v204 = vpop.f32.mrb[0].mxu0
  %v205 = vpop.f32.mrb[0].mxu0
  %v206 = vadd.f32 0.0, %v205
  %v207 = vpop.f32.mrb[0].mxu0
  %208 = vmatprep.mubr.bf16.mxu0 0
  %209 = vmatmul.mubr.bf16.gmra.mrb[0].mxu0 %v159
  %v210 = vpop.f32.mrb[0].mxu0
  %v211 = vadd.f32 0.0, %v210
  %v212 = vpop.f32.mrb[0].mxu0
  %v213 = vpop.f32.mrb[0].mxu0
  %v214 = vadd.f32 0.0, %v213
  %v215 = vpop.f32.mrb[0].mxu0
  %216 = vmatprep.mubr.bf16.mxu0 0
  %217 = vmatmul.mubr.bf16.gmra.mrb[0].mxu0 %v162
  %v218 = vpop.f32.mrb[0].mxu0
  %v219 = vadd.f32 0.0, %v218
  %v220 = vpop.f32.mrb[0].mxu0
  %v221 = vpop.f32.mrb[0].mxu0
  %v222 = vpop.f32.mrb[0].mxu0
  %223 = vdwg.mxu0
  %v229 = vunpack.c.l.b16 %v65
  %v230 = vunpack.c.l.b16 %v66
  %v231 = vunpack.c.l.b16 %v67
  %v232 = vunpack.c.l.b16 %v68
  %v233 = vunpack.c.l.b16 %v69
  %v234 = vpack.c.b16 %v230, %v229
  %v235 = vpack.c.b16 %v232, %v231
  %v236 = vpack.c.b16 %v233, %v233
  %v238 = vsel %vm154, %v234, 0
  %v241 = vsel %vm154, %v235, 0
  %v244 = vsel %vm154, %v236, 0
  %246 = vmatprep.subr.bf16.mxu0 0
  %247 = vmatpush1.bf16.msra.mxu0 %v166
  %248 = vmatprep.subr.bf16.mxu0 0
  %249 = vmatpush1.bf16.msra.mxu0 0
  %250 = vmatprep.subr.bf16.mxu0 0
  %251 = vmatpush1.bf16.msra.mxu0 0
  %252 = vmatprep.subr.bf16.mxu0 0
  %253 = vmatpush1.bf16.msra.mxu0 0
  %254 = vmatprep.subr.bf16.mxu0 0
  %255 = vmatpush1.bf16.msra.mxu0 0
  %256 = vmatprep.subr.bf16.mxu0 0
  %257 = vmatpush1.bf16.msra.mxu0 0
  %258 = vmatprep.subr.bf16.mxu0 0
  %259 = vmatpush1.bf16.msra.mxu0 0
  %260 = vmatprep.subr.bf16.mxu0 0
  %261 = vmatpush1.bf16.msra.mxu0 0
  %262 = vmatprep.subr.bf16.mxu0 0
  %263 = vmatpush1.bf16.msra.mxu0 0
  %264 = vmatprep.subr.bf16.mxu0 0
  %265 = vmatpush1.bf16.msra.mxu0 0
  %266 = vmatprep.subr.bf16.mxu0 0
  %267 = vmatpush1.bf16.msra.mxu0 0
  %268 = vmatprep.subr.bf16.mxu0 0
  %269 = vmatpush1.bf16.msra.mxu0 0
  %270 = vmatprep.subr.bf16.mxu0 0
  %271 = vmatpush1.bf16.msra.mxu0 0
  %272 = vmatprep.subr.bf16.mxu0 0
  %273 = vmatpush1.bf16.msra.mxu0 0
  %274 = vmatprep.subr.bf16.mxu0 0
  %275 = vmatpush1.bf16.msra.mxu0 0
  %276 = vmatprep.subr.bf16.mxu0 0
  %277 = vmatpush1.bf16.msra.mxu0 0
  %278 = vmatprep.mubr.bf16.mxu0 0
  %279 = vmatmul.mubr.bf16.gmra.mrb[0].mxu0 %v238
  %v280 = vpop.f32.mrb[0].mxu0
  %v281 = vadd.f32 0.0, %v280
  %v282 = vpop.f32.mrb[0].mxu0
  %v283 = vpop.f32.mrb[0].mxu0
  %v284 = vadd.f32 0.0, %v283
  %v285 = vpop.f32.mrb[0].mxu0
  %286 = vmatprep.mubr.bf16.mxu0 0
  %287 = vmatmul.mubr.bf16.gmra.mrb[0].mxu0 %v241
  %v288 = vpop.f32.mrb[0].mxu0
  %v289 = vadd.f32 0.0, %v288
  %v290 = vpop.f32.mrb[0].mxu0
  %v291 = vpop.f32.mrb[0].mxu0
  %v292 = vadd.f32 0.0, %v291
  %v293 = vpop.f32.mrb[0].mxu0
  %294 = vmatprep.mubr.bf16.mxu0 0
  %295 = vmatmul.mubr.bf16.gmra.mrb[0].mxu0 %v244
  %v296 = vpop.f32.mrb[0].mxu0
  %v297 = vadd.f32 0.0, %v296
  %v298 = vpop.f32.mrb[0].mxu0
  %v299 = vpop.f32.mrb[0].mxu0
  %v300 = vpop.f32.mrb[0].mxu0
  %301 = vdwg.mxu0
  %v302 = vpack.c.bf16 %v206, %v203
  %v303 = vpack.c.bf16 %v214, %v211
  %v304 = vpack.c.bf16 %v219, %v219
  %v305 = vpack.c.bf16 %v284, %v281
  %v306 = vpack.c.bf16 %v292, %v289
  %v307 = vpack.c.bf16 %v297, %v297
  %v312 = vunpack.c.l.b16 %v76
  %v313 = vunpack.c.l.b16 %v77
  %v314 = vunpack.c.l.b16 %v78
  %v315 = vunpack.c.l.b16 %v79
  %v316 = vpack.c.b16 %v313, %v312
  %v317 = vpack.c.b16 %v315, %v314
  %vm320 = vcmask 261120
  %v322 = vsel %vm320, %v305, 0
  %v325 = vsel %vm320, %v306, 0
  %v328 = vsel %vm320, %v307, 0
  %330 = vmatprep.subr.bf16.mxu0 0
  %331 = vmatpush1.bf16.msra.mxu0 %v316
  %332 = vmatprep.subr.bf16.mxu0 0
  %333 = vmatpush1.bf16.msra.mxu0 %v317
  %334 = vmatprep.subr.bf16.mxu0 0
  %335 = vmatpush1.bf16.msra.mxu0 0
  %336 = vmatprep.subr.bf16.mxu0 0
  %337 = vmatpush1.bf16.msra.mxu0 0
  %338 = vmatprep.subr.bf16.mxu0 0
  %339 = vmatpush1.bf16.msra.mxu0 0
  %340 = vmatprep.subr.bf16.mxu0 0
  %341 = vmatpush1.bf16.msra.mxu0 0
  %342 = vmatprep.subr.bf16.mxu0 0
  %343 = vmatpush1.bf16.msra.mxu0 0
  %344 = vmatprep.subr.bf16.mxu0 0
  %345 = vmatpush1.bf16.msra.mxu0 0
  %346 = vmatprep.subr.bf16.mxu0 0
  %347 = vmatpush1.bf16.msra.mxu0 0
  %348 = vmatprep.subr.bf16.mxu0 0
  %349 = vmatpush1.bf16.msra.mxu0 0
  %350 = vmatprep.subr.bf16.mxu0 0
  %351 = vmatpush1.bf16.msra.mxu0 0
  %352 = vmatprep.subr.bf16.mxu0 0
  %353 = vmatpush1.bf16.msra.mxu0 0
  %354 = vmatprep.subr.bf16.mxu0 0
  %355 = vmatpush1.bf16.msra.mxu0 0
  %356 = vmatprep.subr.bf16.mxu0 0
  %357 = vmatpush1.bf16.msra.mxu0 0
  %358 = vmatprep.subr.bf16.mxu0 0
  %359 = vmatpush1.bf16.msra.mxu0 0
  %360 = vmatprep.subr.bf16.mxu0 0
  %361 = vmatpush1.bf16.msra.mxu0 0
  %362 = vmatprep.mubr.bf16.mxu0 0
  %363 = vmatmul.mubr.bf16.gmra.mrb[0].mxu0 %v322
  %v364 = vpop.f32.mrb[0].mxu0
  %v365 = vadd.f32 0.0, %v364
  %v366 = vpop.f32.mrb[0].mxu0
  %v367 = vpop.f32.mrb[0].mxu0
  %v368 = vadd.f32 0.0, %v367
  %v369 = vpop.f32.mrb[0].mxu0
  %370 = vmatprep.mubr.bf16.mxu0 0
  %371 = vmatmul.mubr.bf16.gmra.mrb[0].mxu0 %v325
  %v372 = vpop.f32.mrb[0].mxu0
  %v373 = vadd.f32 0.0, %v372
  %v374 = vpop.f32.mrb[0].mxu0
  %v375 = vpop.f32.mrb[0].mxu0
  %v376 = vadd.f32 0.0, %v375
  %v377 = vpop.f32.mrb[0].mxu0
  %378 = vmatprep.mubr.bf16.mxu0 0
  %379 = vmatmul.mubr.bf16.gmra.mrb[0].mxu0 %v328
  %v380 = vpop.f32.mrb[0].mxu0
  %v381 = vadd.f32 0.0, %v380
  %v382 = vpop.f32.mrb[0].mxu0
  %v383 = vpop.f32.mrb[0].mxu0
  %v384 = vpop.f32.mrb[0].mxu0
  %385 = vdwg.mxu0
  %v390 = vunpack.c.l.b16 %v72
  %v391 = vunpack.c.l.b16 %v73
  %v392 = vunpack.c.l.b16 %v74
  %v393 = vunpack.c.l.b16 %v75
  %v394 = vpack.c.b16 %v391, %v390
  %v395 = vpack.c.b16 %v393, %v392
  %v399 = vsel %vm320, %v302, 0
  %v402 = vsel %vm320, %v303, 0
  %v405 = vsel %vm320, %v304, 0
  %407 = vmatprep.subr.bf16.mxu0 0
  %408 = vmatpush1.bf16.msra.mxu0 %v394
  %409 = vmatprep.subr.bf16.mxu0 0
  %410 = vmatpush1.bf16.msra.mxu0 %v395
  %411 = vmatprep.subr.bf16.mxu0 0
  %412 = vmatpush1.bf16.msra.mxu0 0
  %413 = vmatprep.subr.bf16.mxu0 0
  %414 = vmatpush1.bf16.msra.mxu0 0
  %415 = vmatprep.subr.bf16.mxu0 0
  %416 = vmatpush1.bf16.msra.mxu0 0
  %417 = vmatprep.subr.bf16.mxu0 0
  %418 = vmatpush1.bf16.msra.mxu0 0
  %419 = vmatprep.subr.bf16.mxu0 0
  %420 = vmatpush1.bf16.msra.mxu0 0
  %421 = vmatprep.subr.bf16.mxu0 0
  %422 = vmatpush1.bf16.msra.mxu0 0
  %423 = vmatprep.subr.bf16.mxu0 0
  %424 = vmatpush1.bf16.msra.mxu0 0
  %425 = vmatprep.subr.bf16.mxu0 0
  %426 = vmatpush1.bf16.msra.mxu0 0
  %427 = vmatprep.subr.bf16.mxu0 0
  %428 = vmatpush1.bf16.msra.mxu0 0
  %429 = vmatprep.subr.bf16.mxu0 0
  %430 = vmatpush1.bf16.msra.mxu0 0
  %431 = vmatprep.subr.bf16.mxu0 0
  %432 = vmatpush1.bf16.msra.mxu0 0
  %433 = vmatprep.subr.bf16.mxu0 0
  %434 = vmatpush1.bf16.msra.mxu0 0
  %435 = vmatprep.subr.bf16.mxu0 0
  %436 = vmatpush1.bf16.msra.mxu0 0
  %437 = vmatprep.subr.bf16.mxu0 0
  %438 = vmatpush1.bf16.msra.mxu0 0
  %439 = vmatprep.mubr.bf16.mxu0 0
  %440 = vmatmul.mubr.bf16.gmra.mrb[0].mxu0 %v399
  %v441 = vpop.f32.mrb[0].mxu0
  %v442 = vadd.f32 %v365, %v441
  %v443 = vpop.f32.mrb[0].mxu0
  %v444 = vpop.f32.mrb[0].mxu0
  %v445 = vadd.f32 %v368, %v444
  %v446 = vpop.f32.mrb[0].mxu0
  %447 = vmatprep.mubr.bf16.mxu0 0
  %448 = vmatmul.mubr.bf16.gmra.mrb[0].mxu0 %v402
  %v449 = vpop.f32.mrb[0].mxu0
  %v450 = vadd.f32 %v373, %v449
  %v451 = vpop.f32.mrb[0].mxu0
  %v452 = vpop.f32.mrb[0].mxu0
  %v453 = vadd.f32 %v376, %v452
  %v454 = vpop.f32.mrb[0].mxu0
  %455 = vmatprep.mubr.bf16.mxu0 0
  %456 = vmatmul.mubr.bf16.gmra.mrb[0].mxu0 %v405
  %v457 = vpop.f32.mrb[0].mxu0
  %v458 = vadd.f32 %v381, %v457
  %v459 = vpop.f32.mrb[0].mxu0
  %v460 = vpop.f32.mrb[0].mxu0
  %v461 = vpop.f32.mrb[0].mxu0
  %462 = vdwg.mxu0
  %v464 = vlaneseq
  %v465 = vshrl.u32 %v464, 7
  %v466 = vsub.s32 0, %v465
  %v467 = vrot.slane %v80, %v466
  %v469 = vadd.f32 %v442, %v467
  %v470 = vadd.f32 %v445, %v467
  %v471 = vadd.f32 %v450, %v467
  %v472 = vadd.f32 %v453, %v467
  %v473 = vadd.f32 %v458, %v467
  %v474 = vtanh.pop %v469
  %v475 = vtanh.pop %v470
  %v476 = vtanh.pop %v471
  %v477 = vtanh.pop %v472
  %v478 = vtanh.pop %v473
  %v479 = vpack.c.bf16 %v475, %v474
  %v480 = vpack.c.bf16 %v477, %v476
  %v481 = vpack.c.bf16 %v478, %v478
  %v483 = vlaneseq
  %v484 = vshrl.u32 %v483, 7
  %v485 = vsub.s32 0, %v484
  %v486 = vrot.slane %v93, %v485
  %v500 = vunpack.c.l.b16 %v81
  %v501 = vunpack.c.l.b16 %v82
  %v502 = vunpack.c.l.b16 %v83
  %v503 = vunpack.c.l.b16 %v84
  %v504 = vunpack.c.l.b16 %v85
  %v505 = vunpack.c.l.b16 %v86
  %v506 = vunpack.c.l.b16 %v87
  %v507 = vunpack.c.l.b16 %v88
  %v508 = vunpack.c.l.b16 %v89
  %v509 = vunpack.c.l.b16 %v90
  %v510 = vunpack.c.l.b16 %v91
  %v511 = vunpack.c.l.b16 %v92
  %v512 = vpack.c.b16 %v501, %v500
  %v513 = vpack.c.b16 %v503, %v502
  %v514 = vpack.c.b16 %v505, %v504
  %v515 = vpack.c.b16 %v507, %v506
  %v516 = vpack.c.b16 %v509, %v508
  %v517 = vpack.c.b16 %v511, %v510
  %vm524 = vcmask 785408
  %v526 = vsel %vm524, %v479, 0
  %v529 = vsel %vm524, %v480, 0
  %v532 = vsel %vm524, %v481, 0
  %534 = vmatprep.subr.bf16.mxu0 0
  %535 = vmatpush1.bf16.msra.mxu0 %v512
  %536 = vmatprep.subr.bf16.mxu0 0
  %537 = vmatpush1.bf16.msra.mxu0 %v513
  %538 = vmatprep.subr.bf16.mxu0 0
  %539 = vmatpush1.bf16.msra.mxu0 %v514
  %540 = vmatprep.subr.bf16.mxu0 0
  %541 = vmatpush1.bf16.msra.mxu0 %v515
  %542 = vmatprep.subr.bf16.mxu0 0
  %543 = vmatpush1.bf16.msra.mxu0 %v516
  %544 = vmatprep.subr.bf16.mxu0 0
  %545 = vmatpush1.bf16.msra.mxu0 %v517
  %546 = vmatprep.subr.bf16.mxu0 0
  %547 = vmatpush1.bf16.msra.mxu0 0
  %548 = vmatprep.subr.bf16.mxu0 0
  %549 = vmatpush1.bf16.msra.mxu0 0
  %550 = vmatprep.subr.bf16.mxu0 0
  %551 = vmatpush1.bf16.msra.mxu0 0
  %552 = vmatprep.subr.bf16.mxu0 0
  %553 = vmatpush1.bf16.msra.mxu0 0
  %554 = vmatprep.subr.bf16.mxu0 0
  %555 = vmatpush1.bf16.msra.mxu0 0
  %556 = vmatprep.subr.bf16.mxu0 0
  %557 = vmatpush1.bf16.msra.mxu0 0
  %558 = vmatprep.subr.bf16.mxu0 0
  %559 = vmatpush1.bf16.msra.mxu0 0
  %560 = vmatprep.subr.bf16.mxu0 0
  %561 = vmatpush1.bf16.msra.mxu0 0
  %562 = vmatprep.subr.bf16.mxu0 0
  %563 = vmatpush1.bf16.msra.mxu0 0
  %564 = vmatprep.subr.bf16.mxu0 0
  %565 = vmatpush1.bf16.msra.mxu0 0
  %566 = vmatprep.mubr.bf16.mxu0 0
  %567 = vmatmul.mubr.bf16.gmra.mrb[0].mxu0 %v526
  %v568 = vpop.f32.mrb[0].mxu0
  %v569 = vadd.f32 %v486, %v568
  %v570 = vpop.f32.mrb[0].mxu0
  %v571 = vpop.f32.mrb[0].mxu0
  %v572 = vadd.f32 %v486, %v571
  %v573 = vpop.f32.mrb[0].mxu0
  %574 = vmatprep.mubr.bf16.mxu0 0
  %575 = vmatmul.mubr.bf16.gmra.mrb[0].mxu0 %v529
  %v576 = vpop.f32.mrb[0].mxu0
  %v577 = vadd.f32 %v486, %v576
  %v578 = vpop.f32.mrb[0].mxu0
  %v579 = vpop.f32.mrb[0].mxu0
  %v580 = vadd.f32 %v486, %v579
  %v581 = vpop.f32.mrb[0].mxu0
  %582 = vmatprep.mubr.bf16.mxu0 0
  %583 = vmatmul.mubr.bf16.gmra.mrb[0].mxu0 %v532
  %v584 = vpop.f32.mrb[0].mxu0
  %v585 = vadd.f32 %v486, %v584
  %v586 = vpop.f32.mrb[0].mxu0
  %v587 = vpop.f32.mrb[0].mxu0
  %v588 = vpop.f32.mrb[0].mxu0
  %589 = vdwg.mxu0
  %v590 = vtanh.pop %v569
  %v591 = vtanh.pop %v572
  %v592 = vtanh.pop %v577
  %v593 = vtanh.pop %v580
  %v594 = vtanh.pop %v585
  %v595 = vpack.c.bf16 %v591, %v590
  %v596 = vpack.c.bf16 %v593, %v592
  %v597 = vpack.c.bf16 %v594, %v594
  %v600 = vunpack.c.l.b16 %v70
  %v601 = vunpack.c.l.b16 %v71
  %v602 = vpack.c.b16 %v601, %v600
  %vm603 = vcmask 326656
  %v605 = vsel %vm603, %v602, 0
  %vm607 = vcmask 1043456
  %v609 = vsel %vm607, %v597, 0
  %611 = vmatprep.subr.bf16.mxu0 0
  %612 = vmatpush1.bf16.msra.mxu0 %v595
  %613 = vmatprep.subr.bf16.mxu0 0
  %614 = vmatpush1.bf16.msra.mxu0 %v596
  %615 = vmatprep.subr.bf16.mxu0 0
  %616 = vmatpush1.bf16.msra.mxu0 %v609
  %617 = vmatprep.subr.bf16.mxu0 0
  %618 = vmatpush1.bf16.msra.mxu0 0
  %619 = vmatprep.subr.bf16.mxu0 0
  %620 = vmatpush1.bf16.msra.mxu0 0
  %621 = vmatprep.subr.bf16.mxu0 0
  %622 = vmatpush1.bf16.msra.mxu0 0
  %623 = vmatprep.subr.bf16.mxu0 0
  %624 = vmatpush1.bf16.msra.mxu0 0
  %625 = vmatprep.subr.bf16.mxu0 0
  %626 = vmatpush1.bf16.msra.mxu0 0
  %627 = vmatprep.subr.bf16.mxu0 0
  %628 = vmatpush1.bf16.msra.mxu0 0
  %629 = vmatprep.subr.bf16.mxu0 0
  %630 = vmatpush1.bf16.msra.mxu0 0
  %631 = vmatprep.subr.bf16.mxu0 0
  %632 = vmatpush1.bf16.msra.mxu0 0
  %633 = vmatprep.subr.bf16.mxu0 0
  %634 = vmatpush1.bf16.msra.mxu0 0
  %635 = vmatprep.subr.bf16.mxu0 0
  %636 = vmatpush1.bf16.msra.mxu0 0
  %637 = vmatprep.subr.bf16.mxu0 0
  %638 = vmatpush1.bf16.msra.mxu0 0
  %639 = vmatprep.subr.bf16.mxu0 0
  %640 = vmatpush1.bf16.msra.mxu0 0
  %641 = vmatprep.subr.bf16.mxu0 0
  %642 = vmatpush1.bf16.msra.mxu0 0
  %643 = vmatprep.mubr.bf16.mxu0 0
  %644 = vmatmul.mubr.bf16.gmra.mrb[0].mxu0 %v605
  %v645 = vpop.f32.mrb[0].mxu0
  %v646 = vadd.f32 0.0, %v645
  %v647 = vpop.f32.mrb[0].mxu0
  %v648 = vpop.f32.mrb[0].mxu0
  %v649 = vadd.f32 0.0, %v648
  %v650 = vpop.f32.mrb[0].mxu0
  %651 = vdwg.mxu0
  %v652 = vpack.c.bf16 %v649, %v646
  %v665 = vunpack.c.l.b16 %v111
  %v666 = vunpack.c.l.b16 %v112
  %v667 = vunpack.c.l.b16 %v113
  %v668 = vunpack.c.l.b16 %v114
  %v669 = vunpack.c.l.b16 %v115
  %v670 = vunpack.c.l.b16 %v116
  %v671 = vunpack.c.l.b16 %v117
  %v672 = vunpack.c.l.b16 %v118
  %v673 = vunpack.c.l.b16 %v119
  %v674 = vunpack.c.l.b16 %v120
  %v675 = vunpack.c.l.b16 %v121
  %v676 = vunpack.c.l.b16 %v122
  %v677 = vpack.c.b16 %v666, %v665
  %v678 = vpack.c.b16 %v668, %v667
  %v679 = vpack.c.b16 %v670, %v669
  %v680 = vpack.c.b16 %v672, %v671
  %v681 = vpack.c.b16 %v674, %v673
  %v682 = vpack.c.b16 %v676, %v675
  %v690 = vsel %vm524, %v652, 0
  %692 = vmatprep.subr.bf16.mxu0 0
  %693 = vmatpush1.bf16.msra.mxu0 %v677
  %694 = vmatprep.subr.bf16.mxu0 0
  %695 = vmatpush1.bf16.msra.mxu0 %v678
  %696 = vmatprep.subr.bf16.mxu0 0
  %697 = vmatpush1.bf16.msra.mxu0 %v679
  %698 = vmatprep.subr.bf16.mxu0 0
  %699 = vmatpush1.bf16.msra.mxu0 %v680
  %700 = vmatprep.subr.bf16.mxu0 0
  %701 = vmatpush1.bf16.msra.mxu0 %v681
  %702 = vmatprep.subr.bf16.mxu0 0
  %703 = vmatpush1.bf16.msra.mxu0 %v682
  %704 = vmatprep.subr.bf16.mxu0 0
  %705 = vmatpush1.bf16.msra.mxu0 0
  %706 = vmatprep.subr.bf16.mxu0 0
  %707 = vmatpush1.bf16.msra.mxu0 0
  %708 = vmatprep.subr.bf16.mxu0 0
  %709 = vmatpush1.bf16.msra.mxu0 0
  %710 = vmatprep.subr.bf16.mxu0 0
  %711 = vmatpush1.bf16.msra.mxu0 0
  %712 = vmatprep.subr.bf16.mxu0 0
  %713 = vmatpush1.bf16.msra.mxu0 0
  %714 = vmatprep.subr.bf16.mxu0 0
  %715 = vmatpush1.bf16.msra.mxu0 0
  %716 = vmatprep.subr.bf16.mxu0 0
  %717 = vmatpush1.bf16.msra.mxu0 0
  %718 = vmatprep.subr.bf16.mxu0 0
  %719 = vmatpush1.bf16.msra.mxu0 0
  %720 = vmatprep.subr.bf16.mxu0 0
  %721 = vmatpush1.bf16.msra.mxu0 0
  %722 = vmatprep.subr.bf16.mxu0 0
  %723 = vmatpush1.bf16.msra.mxu0 0
  %724 = vmatprep.mubr.bf16.mxu0 0
  %725 = vmatmul.mubr.bf16.gmra.mrb[0].mxu0 %v690
  %v726 = vpop.f32.mrb[0].mxu0
  %v727 = vadd.f32 0.0, %v726
  %v728 = vpop.f32.mrb[0].mxu0
  %v729 = vpop.f32.mrb[0].mxu0
  %v730 = vadd.f32 0.0, %v729
  %v731 = vpop.f32.mrb[0].mxu0
  %732 = vdwg.mxu0
  %v734 = vlaneseq
  %v735 = vshrl.u32 %v734, 7
  %v736 = vsub.s32 0, %v735
  %v737 = vrot.slane %v110, %v736
  %v755 = vunpack.c.l.b16 %v94
  %v756 = vunpack.c.l.b16 %v95
  %v757 = vunpack.c.l.b16 %v96
  %v758 = vunpack.c.l.b16 %v97
  %v759 = vunpack.c.l.b16 %v98
  %v760 = vunpack.c.l.b16 %v99
  %v761 = vunpack.c.l.b16 %v100
  %v762 = vunpack.c.l.b16 %v101
  %v763 = vunpack.c.l.b16 %v102
  %v764 = vunpack.c.l.b16 %v103
  %v765 = vunpack.c.l.b16 %v104
  %v766 = vunpack.c.l.b16 %v105
  %v767 = vunpack.c.l.b16 %v106
  %v768 = vunpack.c.l.b16 %v107
  %v769 = vunpack.c.l.b16 %v108
  %v770 = vunpack.c.l.b16 %v109
  %v771 = vpack.c.b16 %v756, %v755
  %v772 = vpack.c.b16 %v758, %v757
  %v773 = vpack.c.b16 %v760, %v759
  %v774 = vpack.c.b16 %v762, %v761
  %v775 = vpack.c.b16 %v764, %v763
  %v776 = vpack.c.b16 %v766, %v765
  %v777 = vpack.c.b16 %v768, %v767
  %v778 = vpack.c.b16 %v770, %v769
  %787 = vmatprep.subr.bf16.mxu0 0
  %788 = vmatpush1.bf16.msra.mxu0 %v771
  %789 = vmatprep.subr.bf16.mxu0 0
  %790 = vmatpush1.bf16.msra.mxu0 %v772
  %791 = vmatprep.subr.bf16.mxu0 0
  %792 = vmatpush1.bf16.msra.mxu0 %v773
  %793 = vmatprep.subr.bf16.mxu0 0
  %794 = vmatpush1.bf16.msra.mxu0 %v774
  %795 = vmatprep.subr.bf16.mxu0 0
  %796 = vmatpush1.bf16.msra.mxu0 %v775
  %797 = vmatprep.subr.bf16.mxu0 0
  %798 = vmatpush1.bf16.msra.mxu0 %v776
  %799 = vmatprep.subr.bf16.mxu0 0
  %800 = vmatpush1.bf16.msra.mxu0 %v777
  %801 = vmatprep.subr.bf16.mxu0 0
  %802 = vmatpush1.bf16.msra.mxu0 %v778
  %803 = vmatprep.subr.bf16.mxu0 0
  %804 = vmatpush1.bf16.msra.mxu0 0
  %805 = vmatprep.subr.bf16.mxu0 0
  %806 = vmatpush1.bf16.msra.mxu0 0
  %807 = vmatprep.subr.bf16.mxu0 0
  %808 = vmatpush1.bf16.msra.mxu0 0
  %809 = vmatprep.subr.bf16.mxu0 0
  %810 = vmatpush1.bf16.msra.mxu0 0
  %811 = vmatprep.subr.bf16.mxu0 0
  %812 = vmatpush1.bf16.msra.mxu0 0
  %813 = vmatprep.subr.bf16.mxu0 0
  %814 = vmatpush1.bf16.msra.mxu0 0
  %815 = vmatprep.subr.bf16.mxu0 0
  %816 = vmatpush1.bf16.msra.mxu0 0
  %817 = vmatprep.subr.bf16.mxu0 0
  %818 = vmatpush1.bf16.msra.mxu0 0
  %819 = vmatprep.mubr.bf16.mxu0 0
  %820 = vmatmul.mubr.bf16.gmra.mrb[0].mxu0 %v140
  %v821 = vpop.f32.mrb[0].mxu0
  %v822 = vadd.f32 %v737, %v821
  %v823 = vpop.f32.mrb[0].mxu0
  %v824 = vpop.f32.mrb[0].mxu0
  %v825 = vadd.f32 %v737, %v824
  %v826 = vpop.f32.mrb[0].mxu0
  %827 = vdwg.mxu0
  %v828 = vadd.f32 %v822, %v727
  %v829 = vadd.f32 %v825, %v730
  %v830 = vxor.u32 %v828, 2147483648
  %v831 = vxor.u32 %v829, 2147483648
  %v832 = vmul.f32 %v830, 1.442695
  %v833 = vpow.pop %v832
  %v834 = vmul.f32 %v831, 1.442695
  %v835 = vpow.pop %v834
  %v836 = vadd.f32 %v833, 1.0
  %v837 = vadd.f32 %v835, 1.0
  %v838 = vrcp.pop %v836
  %v839 = vmul.f32 1.0, %v838
  %v840 = vrcp.pop %v837
  %v841 = vmul.f32 1.0, %v840
  %844 = vrot.lane.b32.xlu0 %v727, 64
  %v845 = vpop.permute.xlu0 %844
  %846 = vrot.lane.b32.xlu0 %v730, 64
  %v847 = vpop.permute.xlu0 %846
  %v850 = vmul.f32 %v839, %v845
  %v851 = vmul.f32 %v841, %v847
  %854 = vrot.lane.b32.xlu0 %v850, 64
  %v855 = vpop.permute.xlu0 %854
  %856 = vrot.lane.b32.xlu0 %v851, 64
  %v857 = vpop.permute.xlu0 %856
  %v860 = vadd.f32 %v822, %v855
  %v861 = vadd.f32 %v825, %v857
  %v862 = vtanh.pop %v860
  %v863 = vtanh.pop %v861
  %v864 = vsub.f32 1.0, %v839
  %v865 = vsub.f32 1.0, %v841
  %868 = vrot.lane.b32.xlu0 %v862, 96
  %v869 = vpop.permute.xlu0 %868
  %870 = vrot.lane.b32.xlu0 %v863, 96
  %v871 = vpop.permute.xlu0 %870
  %v874 = vmul.f32 %v864, %v869
  %v875 = vmul.f32 %v865, %v871
  %v876 = vmul.f32 %v839, 0.0
  %v877 = vmul.f32 %v841, 0.0
  %v878 = vadd.f32 %v874, %v876
  %v879 = vadd.f32 %v875, %v877
  %v880 = vpack.c.bf16 %v879, %v878
  %v882 = vlaneseq
  %v883 = vshrl.u32 %v882, 7
  %v884 = vsub.s32 0, %v883
  %v885 = vrot.slane %v127, %v884
  %888 = vrot.lane.b32.xlu0 %v880, 96
  %v889 = vpop.permute.xlu0 %888
  %v894 = vunpack.c.l.b16 %v123
  %v895 = vunpack.c.l.b16 %v124
  %v896 = vunpack.c.l.b16 %v125
  %v897 = vunpack.c.l.b16 %v126
  %v898 = vpack.c.b16 %v895, %v894
  %v899 = vpack.c.b16 %v897, %v896
  %v903 = vsel %vm320, %v889, 0
  %905 = vmatprep.subr.bf16.mxu0 0
  %906 = vmatpush1.bf16.msra.mxu0 %v898
  %907 = vmatprep.subr.bf16.mxu0 0
  %908 = vmatpush1.bf16.msra.mxu0 %v899
  %909 = vmatprep.subr.bf16.mxu0 0
  %910 = vmatpush1.bf16.msra.mxu0 0
  %911 = vmatprep.subr.bf16.mxu0 0
  %912 = vmatpush1.bf16.msra.mxu0 0
  %913 = vmatprep.subr.bf16.mxu0 0
  %914 = vmatpush1.bf16.msra.mxu0 0
  %915 = vmatprep.subr.bf16.mxu0 0
  %916 = vmatpush1.bf16.msra.mxu0 0
  %917 = vmatprep.subr.bf16.mxu0 0
  %918 = vmatpush1.bf16.msra.mxu0 0
  %919 = vmatprep.subr.bf16.mxu0 0
  %920 = vmatpush1.bf16.msra.mxu0 0
  %921 = vmatprep.subr.bf16.mxu0 0
  %922 = vmatpush1.bf16.msra.mxu0 0
  %923 = vmatprep.subr.bf16.mxu0 0
  %924 = vmatpush1.bf16.msra.mxu0 0
  %925 = vmatprep.subr.bf16.mxu0 0
  %926 = vmatpush1.bf16.msra.mxu0 0
  %927 = vmatprep.subr.bf16.mxu0 0
  %928 = vmatpush1.bf16.msra.mxu0 0
  %929 = vmatprep.subr.bf16.mxu0 0
  %930 = vmatpush1.bf16.msra.mxu0 0
  %931 = vmatprep.subr.bf16.mxu0 0
  %932 = vmatpush1.bf16.msra.mxu0 0
  %933 = vmatprep.subr.bf16.mxu0 0
  %934 = vmatpush1.bf16.msra.mxu0 0
  %935 = vmatprep.subr.bf16.mxu0 0
  %936 = vmatpush1.bf16.msra.mxu0 0
  %937 = vmatprep.mubr.bf16.mxu0 0
  %938 = vmatmul.mubr.bf16.gmra.mrb[0].mxu0 %v903
  %v939 = vpop.f32.mrb[0].mxu0
  %v940 = vadd.f32 %v885, %v939
  %v941 = vpop.f32.mrb[0].mxu0
  %v942 = vpop.f32.mrb[0].mxu0
  %v943 = vadd.f32 %v885, %v942
  %v944 = vpop.f32.mrb[0].mxu0
  %945 = vdwg.mxu0
  %v946 = vmax.f32 %v940, 0.0
  %v947 = vmax.f32 %v943, 0.0
  %v948 = vpack.c.bf16 %v947, %v946
  %v950 = vlaneseq
  %v951 = vshrl.u32 %v950, 7
  %v952 = vsub.s32 0, %v951
  %v953 = vrot.slane %v132, %v952
  %v959 = vunpack.c.l.b16 %v128
  %v960 = vunpack.c.l.b16 %v129
  %v961 = vunpack.c.l.b16 %v130
  %v962 = vunpack.c.l.b16 %v131
  %v963 = vpack.c.b16 %v960, %v959
  %v964 = vpack.c.b16 %v962, %v961
  %v968 = vsel %vm320, %v948, 0
  %970 = vmatprep.subr.bf16.mxu0 0
  %971 = vmatpush1.bf16.msra.mxu0 %v963
  %972 = vmatprep.subr.bf16.mxu0 0
  %973 = vmatpush1.bf16.msra.mxu0 %v964
  %974 = vmatprep.subr.bf16.mxu0 0
  %975 = vmatpush1.bf16.msra.mxu0 0
  %976 = vmatprep.subr.bf16.mxu0 0
  %977 = vmatpush1.bf16.msra.mxu0 0
  %978 = vmatprep.subr.bf16.mxu0 0
  %979 = vmatpush1.bf16.msra.mxu0 0
  %980 = vmatprep.subr.bf16.mxu0 0
  %981 = vmatpush1.bf16.msra.mxu0 0
  %982 = vmatprep.subr.bf16.mxu0 0
  %983 = vmatpush1.bf16.msra.mxu0 0
  %984 = vmatprep.subr.bf16.mxu0 0
  %985 = vmatpush1.bf16.msra.mxu0 0
  %986 = vmatprep.subr.bf16.mxu0 0
  %987 = vmatpush1.bf16.msra.mxu0 0
  %988 = vmatprep.subr.bf16.mxu0 0
  %989 = vmatpush1.bf16.msra.mxu0 0
  %990 = vmatprep.subr.bf16.mxu0 0
  %991 = vmatpush1.bf16.msra.mxu0 0
  %992 = vmatprep.subr.bf16.mxu0 0
  %993 = vmatpush1.bf16.msra.mxu0 0
  %994 = vmatprep.subr.bf16.mxu0 0
  %995 = vmatpush1.bf16.msra.mxu0 0
  %996 = vmatprep.subr.bf16.mxu0 0
  %997 = vmatpush1.bf16.msra.mxu0 0
  %998 = vmatprep.subr.bf16.mxu0 0
  %999 = vmatpush1.bf16.msra.mxu0 0
  %1000 = vmatprep.subr.bf16.mxu0 0
  %1001 = vmatpush1.bf16.msra.mxu0 0
  %1002 = vmatprep.mubr.bf16.mxu0 0
  %1003 = vmatmul.mubr.bf16.gmra.mrb[0].mxu0 %v968
  %v1004 = vpop.f32.mrb[0].mxu0
  %v1005 = vadd.f32 %v953, %v1004
  %v1006 = vpop.f32.mrb[0].mxu0
  %v1007 = vpop.f32.mrb[0].mxu0
  %v1008 = vadd.f32 %v953, %v1007
  %v1009 = vpop.f32.mrb[0].mxu0
  %1010 = vdwg.mxu0
  %v1011 = vmax.f32 %v1005, 0.0
  %v1012 = vmax.f32 %v1008, 0.0
  %v1013 = vpack.c.bf16 %v1012, %v1011
  %v1015 = vlaneseq
  %v1016 = vshrl.u32 %v1015, 7
  %v1017 = vsub.s32 0, %v1016
  %v1018 = vrot.slane %v137, %v1017
  %v1024 = vunpack.c.l.b16 %v133
  %v1025 = vunpack.c.l.b16 %v134
  %v1026 = vunpack.c.l.b16 %v135
  %v1027 = vunpack.c.l.b16 %v136
  %v1028 = vpack.c.b16 %v1025, %v1024
  %v1029 = vpack.c.b16 %v1027, %v1026
  %v1033 = vsel %vm320, %v1013, 0
  %1035 = vmatprep.subr.bf16.mxu0 0
  %1036 = vmatpush1.bf16.msra.mxu0 %v1028
  %1037 = vmatprep.subr.bf16.mxu0 0
  %1038 = vmatpush1.bf16.msra.mxu0 %v1029
  %1039 = vmatprep.subr.bf16.mxu0 0
  %1040 = vmatpush1.bf16.msra.mxu0 0
  %1041 = vmatprep.subr.bf16.mxu0 0
  %1042 = vmatpush1.bf16.msra.mxu0 0
  %1043 = vmatprep.subr.bf16.mxu0 0
  %1044 = vmatpush1.bf16.msra.mxu0 0
  %1045 = vmatprep.subr.bf16.mxu0 0
  %1046 = vmatpush1.bf16.msra.mxu0 0
  %1047 = vmatprep.subr.bf16.mxu0 0
  %1048 = vmatpush1.bf16.msra.mxu0 0
  %1049 = vmatprep.subr.bf16.mxu0 0
  %1050 = vmatpush1.bf16.msra.mxu0 0
  %1051 = vmatprep.subr.bf16.mxu0 0
  %1052 = vmatpush1.bf16.msra.mxu0 0
  %1053 = vmatprep.subr.bf16.mxu0 0
  %1054 = vmatpush1.bf16.msra.mxu0 0
  %1055 = vmatprep.subr.bf16.mxu0 0
  %1056 = vmatpush1.bf16.msra.mxu0 0
  %1057 = vmatprep.subr.bf16.mxu0 0
  %1058 = vmatpush1.bf16.msra.mxu0 0
  %1059 = vmatprep.subr.bf16.mxu0 0
  %1060 = vmatpush1.bf16.msra.mxu0 0
  %1061 = vmatprep.subr.bf16.mxu0 0
  %1062 = vmatpush1.bf16.msra.mxu0 0
  %1063 = vmatprep.subr.bf16.mxu0 0
  %1064 = vmatpush1.bf16.msra.mxu0 0
  %1065 = vmatprep.subr.bf16.mxu0 0
  %1066 = vmatpush1.bf16.msra.mxu0 0
  %1067 = vmatprep.mubr.bf16.mxu0 0
  %1068 = vmatmul.mubr.bf16.gmra.mrb[0].mxu0 %v1033
  %v1069 = vpop.f32.mrb[0].mxu0
  %v1070 = vadd.f32 %v1018, %v1069
  %v1071 = vpop.f32.mrb[0].mxu0
  %v1072 = vpop.f32.mrb[0].mxu0
  %v1073 = vadd.f32 %v1018, %v1072
  %v1074 = vpop.f32.mrb[0].mxu0
  %1075 = vdwg.mxu0
  %v1076 = vmax.f32 %v1070, 0.0
  %v1077 = vmax.f32 %v1073, 0.0
  %v1078 = vadd.f32 %v138, %v1076
  %v1079 = vadd.f32 %v139, %v1077
  %1080 = vst [vmem:[%s18] sm:$0xff] %v1078
  %1081 = vst [vmem:[%s18 + $0x8] sm:$0x3] %v1079
  %s1082 = scalar_lea.vmem %s0, 16
  %v1083 = vld [vmem:[%s1082] sm:$0xff]
  %v1084 = vld [vmem:[%s1082 + $0x8] sm:$0x3]
  %v1085 = vpack.c.bf16 %v1084, %v1083
  %v1086 = vsel %vm164, %v889, 0
  %1088 = vmatprep.subr.bf16.mxu0 0
  %1089 = vmatpush1.bf16.msra.mxu0 %v1086
  %1090 = vmatprep.subr.bf16.mxu0 0
  %1091 = vmatpush1.bf16.msra.mxu0 0
  %1092 = vmatprep.subr.bf16.mxu0 0
  %1093 = vmatpush1.bf16.msra.mxu0 0
  %1094 = vmatprep.subr.bf16.mxu0 0
  %1095 = vmatpush1.bf16.msra.mxu0 0
  %1096 = vmatprep.subr.bf16.mxu0 0
  %1097 = vmatpush1.bf16.msra.mxu0 0
  %1098 = vmatprep.subr.bf16.mxu0 0
  %1099 = vmatpush1.bf16.msra.mxu0 0
  %1100 = vmatprep.subr.bf16.mxu0 0
  %1101 = vmatpush1.bf16.msra.mxu0 0
  %1102 = vmatprep.subr.bf16.mxu0 0
  %1103 = vmatpush1.bf16.msra.mxu0 0
  %1104 = vmatprep.subr.bf16.mxu0 0
  %1105 = vmatpush1.bf16.msra.mxu0 0
  %1106 = vmatprep.subr.bf16.mxu0 0
  %1107 = vmatpush1.bf16.msra.mxu0 0
  %1108 = vmatprep.subr.bf16.mxu0 0
  %1109 = vmatpush1.bf16.msra.mxu0 0
  %1110 = vmatprep.subr.bf16.mxu0 0
  %1111 = vmatpush1.bf16.msra.mxu0 0
  %1112 = vmatprep.subr.bf16.mxu0 0
  %1113 = vmatpush1.bf16.msra.mxu0 0
  %1114 = vmatprep.subr.bf16.mxu0 0
  %1115 = vmatpush1.bf16.msra.mxu0 0
  %1116 = vmatprep.subr.bf16.mxu0 0
  %1117 = vmatpush1.bf16.msra.mxu0 0
  %1118 = vmatprep.subr.bf16.mxu0 0
  %1119 = vmatpush1.bf16.msra.mxu0 0
  %1120 = vmatprep.mubr.bf16.mxu0 0
  %1121 = vmatmul.mubr.bf16.gmra.mrb[0].mxu0 %v156
  %v1122 = vpop.f32.mrb[0].mxu0
  %v1123 = vadd.f32 0.0, %v1122
  %v1124 = vpop.f32.mrb[0].mxu0
  %v1125 = vpop.f32.mrb[0].mxu0
  %v1126 = vadd.f32 0.0, %v1125
  %v1127 = vpop.f32.mrb[0].mxu0
  %1128 = vmatprep.mubr.bf16.mxu0 0
  %1129 = vmatmul.mubr.bf16.gmra.mrb[0].mxu0 %v159
  %v1130 = vpop.f32.mrb[0].mxu0
  %v1131 = vadd.f32 0.0, %v1130
  %v1132 = vpop.f32.mrb[0].mxu0
  %v1133 = vpop.f32.mrb[0].mxu0
  %v1134 = vadd.f32 0.0, %v1133
  %v1135 = vpop.f32.mrb[0].mxu0
  %1136 = vmatprep.mubr.bf16.mxu0 0
  %1137 = vmatmul.mubr.bf16.gmra.mrb[0].mxu0 %v162
  %v1138 = vpop.f32.mrb[0].mxu0
  %v1139 = vadd.f32 0.0, %v1138
  %v1140 = vpop.f32.mrb[0].mxu0
  %v1141 = vpop.f32.mrb[0].mxu0
  %v1142 = vpop.f32.mrb[0].mxu0
  %1143 = vdwg.mxu0
  %1144 = vmatprep.subr.bf16.mxu0 0
  %1145 = vmatpush1.bf16.msra.mxu0 %v1086
  %1146 = vmatprep.subr.bf16.mxu0 0
  %1147 = vmatpush1.bf16.msra.mxu0 0
  %1148 = vmatprep.subr.bf16.mxu0 0
  %1149 = vmatpush1.bf16.msra.mxu0 0
  %1150 = vmatprep.subr.bf16.mxu0 0
  %1151 = vmatpush1.bf16.msra.mxu0 0
  %1152 = vmatprep.subr.bf16.mxu0 0
  %1153 = vmatpush1.bf16.msra.mxu0 0
  %1154 = vmatprep.subr.bf16.mxu0 0
  %1155 = vmatpush1.bf16.msra.mxu0 0
  %1156 = vmatprep.subr.bf16.mxu0 0
  %1157 = vmatpush1.bf16.msra.mxu0 0
  %1158 = vmatprep.subr.bf16.mxu0 0
  %1159 = vmatpush1.bf16.msra.mxu0 0
  %1160 = vmatprep.subr.bf16.mxu0 0
  %1161 = vmatpush1.bf16.msra.mxu0 0
  %1162 = vmatprep.subr.bf16.mxu0 0
  %1163 = vmatpush1.bf16.msra.mxu0 0
  %1164 = vmatprep.subr.bf16.mxu0 0
  %1165 = vmatpush1.bf16.msra.mxu0 0
  %1166 = vmatprep.subr.bf16.mxu0 0
  %1167 = vmatpush1.bf16.msra.mxu0 0
  %1168 = vmatprep.subr.bf16.mxu0 0
  %1169 = vmatpush1.bf16.msra.mxu0 0
  %1170 = vmatprep.subr.bf16.mxu0 0
  %1171 = vmatpush1.bf16.msra.mxu0 0
  %1172 = vmatprep.subr.bf16.mxu0 0
  %1173 = vmatpush1.bf16.msra.mxu0 0
  %1174 = vmatprep.subr.bf16.mxu0 0
  %1175 = vmatpush1.bf16.msra.mxu0 0
  %1176 = vmatprep.mubr.bf16.mxu0 0
  %1177 = vmatmul.mubr.bf16.gmra.mrb[0].mxu0 %v238
  %v1178 = vpop.f32.mrb[0].mxu0
  %v1179 = vadd.f32 0.0, %v1178
  %v1180 = vpop.f32.mrb[0].mxu0
  %v1181 = vpop.f32.mrb[0].mxu0
  %v1182 = vadd.f32 0.0, %v1181
  %v1183 = vpop.f32.mrb[0].mxu0
  %1184 = vmatprep.mubr.bf16.mxu0 0
  %1185 = vmatmul.mubr.bf16.gmra.mrb[0].mxu0 %v241
  %v1186 = vpop.f32.mrb[0].mxu0
  %v1187 = vadd.f32 0.0, %v1186
  %v1188 = vpop.f32.mrb[0].mxu0
  %v1189 = vpop.f32.mrb[0].mxu0
  %v1190 = vadd.f32 0.0, %v1189
  %v1191 = vpop.f32.mrb[0].mxu0
  %1192 = vmatprep.mubr.bf16.mxu0 0
  %1193 = vmatmul.mubr.bf16.gmra.mrb[0].mxu0 %v244
  %v1194 = vpop.f32.mrb[0].mxu0
  %v1195 = vadd.f32 0.0, %v1194
  %v1196 = vpop.f32.mrb[0].mxu0
  %v1197 = vpop.f32.mrb[0].mxu0
  %v1198 = vpop.f32.mrb[0].mxu0
  %1199 = vdwg.mxu0
  %v1200 = vpack.c.bf16 %v1126, %v1123
  %v1201 = vpack.c.bf16 %v1134, %v1131
  %v1202 = vpack.c.bf16 %v1139, %v1139
  %v1203 = vpack.c.bf16 %v1182, %v1179
  %v1204 = vpack.c.bf16 %v1190, %v1187
  %v1205 = vpack.c.bf16 %v1195, %v1195
  %v1207 = vsel %vm320, %v1203, 0
  %v1210 = vsel %vm320, %v1204, 0
  %v1213 = vsel %vm320, %v1205, 0
  %1215 = vmatprep.subr.bf16.mxu0 0
  %1216 = vmatpush1.bf16.msra.mxu0 %v316
  %1217 = vmatprep.subr.bf16.mxu0 0
  %1218 = vmatpush1.bf16.msra.mxu0 %v317
  %1219 = vmatprep.subr.bf16.mxu0 0
  %1220 = vmatpush1.bf16.msra.mxu0 0
  %1221 = vmatprep.subr.bf16.mxu0 0
  %1222 = vmatpush1.bf16.msra.mxu0 0
  %1223 = vmatprep.subr.bf16.mxu0 0
  %1224 = vmatpush1.bf16.msra.mxu0 0
  %1225 = vmatprep.subr.bf16.mxu0 0
  %1226 = vmatpush1.bf16.msra.mxu0 0
  %1227 = vmatprep.subr.bf16.mxu0 0
  %1228 = vmatpush1.bf16.msra.mxu0 0
  %1229 = vmatprep.subr.bf16.mxu0 0
  %1230 = vmatpush1.bf16.msra.mxu0 0
  %1231 = vmatprep.subr.bf16.mxu0 0
  %1232 = vmatpush1.bf16.msra.mxu0 0
  %1233 = vmatprep.subr.bf16.mxu0 0
  %1234 = vmatpush1.bf16.msra.mxu0 0
  %1235 = vmatprep.subr.bf16.mxu0 0
  %1236 = vmatpush1.bf16.msra.mxu0 0
  %1237 = vmatprep.subr.bf16.mxu0 0
  %1238 = vmatpush1.bf16.msra.mxu0 0
  %1239 = vmatprep.subr.bf16.mxu0 0
  %1240 = vmatpush1.bf16.msra.mxu0 0
  %1241 = vmatprep.subr.bf16.mxu0 0
  %1242 = vmatpush1.bf16.msra.mxu0 0
  %1243 = vmatprep.subr.bf16.mxu0 0
  %1244 = vmatpush1.bf16.msra.mxu0 0
  %1245 = vmatprep.subr.bf16.mxu0 0
  %1246 = vmatpush1.bf16.msra.mxu0 0
  %1247 = vmatprep.mubr.bf16.mxu0 0
  %1248 = vmatmul.mubr.bf16.gmra.mrb[0].mxu0 %v1207
  %v1249 = vpop.f32.mrb[0].mxu0
  %v1250 = vadd.f32 0.0, %v1249
  %v1251 = vpop.f32.mrb[0].mxu0
  %v1252 = vpop.f32.mrb[0].mxu0
  %v1253 = vadd.f32 0.0, %v1252
  %v1254 = vpop.f32.mrb[0].mxu0
  %1255 = vmatprep.mubr.bf16.mxu0 0
  %1256 = vmatmul.mubr.bf16.gmra.mrb[0].mxu0 %v1210
  %v1257 = vpop.f32.mrb[0].mxu0
  %v1258 = vadd.f32 0.0, %v1257
  %v1259 = vpop.f32.mrb[0].mxu0
  %v1260 = vpop.f32.mrb[0].mxu0
  %v1261 = vadd.f32 0.0, %v1260
  %v1262 = vpop.f32.mrb[0].mxu0
  %1263 = vmatprep.mubr.bf16.mxu0 0
  %1264 = vmatmul.mubr.bf16.gmra.mrb[0].mxu0 %v1213
  %v1265 = vpop.f32.mrb[0].mxu0
  %v1266 = vadd.f32 0.0, %v1265
  %v1267 = vpop.f32.mrb[0].mxu0
  %v1268 = vpop.f32.mrb[0].mxu0
  %v1269 = vpop.f32.mrb[0].mxu0
  %1270 = vdwg.mxu0
  %v1272 = vsel %vm320, %v1200, 0
  %v1275 = vsel %vm320, %v1201, 0
  %v1278 = vsel %vm320, %v1202, 0
  %1280 = vmatprep.subr.bf16.mxu0 0
  %1281 = vmatpush1.bf16.msra.mxu0 %v394
  %1282 = vmatprep.subr.bf16.mxu0 0
  %1283 = vmatpush1.bf16.msra.mxu0 %v395
  %1284 = vmatprep.subr.bf16.mxu0 0
  %1285 = vmatpush1.bf16.msra.mxu0 0
  %1286 = vmatprep.subr.bf16.mxu0 0
  %1287 = vmatpush1.bf16.msra.mxu0 0
  %1288 = vmatprep.subr.bf16.mxu0 0
  %1289 = vmatpush1.bf16.msra.mxu0 0
  %1290 = vmatprep.subr.bf16.mxu0 0
  %1291 = vmatpush1.bf16.msra.mxu0 0
  %1292 = vmatprep.subr.bf16.mxu0 0
  %1293 = vmatpush1.bf16.msra.mxu0 0
  %1294 = vmatprep.subr.bf16.mxu0 0
  %1295 = vmatpush1.bf16.msra.mxu0 0
  %1296 = vmatprep.subr.bf16.mxu0 0
  %1297 = vmatpush1.bf16.msra.mxu0 0
  %1298 = vmatprep.subr.bf16.mxu0 0
  %1299 = vmatpush1.bf16.msra.mxu0 0
  %1300 = vmatprep.subr.bf16.mxu0 0
  %1301 = vmatpush1.bf16.msra.mxu0 0
  %1302 = vmatprep.subr.bf16.mxu0 0
  %1303 = vmatpush1.bf16.msra.mxu0 0
  %1304 = vmatprep.subr.bf16.mxu0 0
  %1305 = vmatpush1.bf16.msra.mxu0 0
  %1306 = vmatprep.subr.bf16.mxu0 0
  %1307 = vmatpush1.bf16.msra.mxu0 0
  %1308 = vmatprep.subr.bf16.mxu0 0
  %1309 = vmatpush1.bf16.msra.mxu0 0
  %1310 = vmatprep.subr.bf16.mxu0 0
  %1311 = vmatpush1.bf16.msra.mxu0 0
  %1312 = vmatprep.mubr.bf16.mxu0 0
  %1313 = vmatmul.mubr.bf16.gmra.mrb[0].mxu0 %v1272
  %v1314 = vpop.f32.mrb[0].mxu0
  %v1315 = vadd.f32 %v1250, %v1314
  %v1316 = vpop.f32.mrb[0].mxu0
  %v1317 = vpop.f32.mrb[0].mxu0
  %v1318 = vadd.f32 %v1253, %v1317
  %v1319 = vpop.f32.mrb[0].mxu0
  %1320 = vmatprep.mubr.bf16.mxu0 0
  %1321 = vmatmul.mubr.bf16.gmra.mrb[0].mxu0 %v1275
  %v1322 = vpop.f32.mrb[0].mxu0
  %v1323 = vadd.f32 %v1258, %v1322
  %v1324 = vpop.f32.mrb[0].mxu0
  %v1325 = vpop.f32.mrb[0].mxu0
  %v1326 = vadd.f32 %v1261, %v1325
  %v1327 = vpop.f32.mrb[0].mxu0
  %1328 = vmatprep.mubr.bf16.mxu0 0
  %1329 = vmatmul.mubr.bf16.gmra.mrb[0].mxu0 %v1278
  %v1330 = vpop.f32.mrb[0].mxu0
  %v1331 = vadd.f32 %v1266, %v1330
  %v1332 = vpop.f32.mrb[0].mxu0
  %v1333 = vpop.f32.mrb[0].mxu0
  %v1334 = vpop.f32.mrb[0].mxu0
  %1335 = vdwg.mxu0
  %v1336 = vadd.f32 %v1315, %v467
  %v1337 = vadd.f32 %v1318, %v467
  %v1338 = vadd.f32 %v1323, %v467
  %v1339 = vadd.f32 %v1326, %v467
  %v1340 = vadd.f32 %v1331, %v467
  %v1341 = vtanh.pop %v1336
  %v1342 = vtanh.pop %v1337
  %v1343 = vtanh.pop %v1338
  %v1344 = vtanh.pop %v1339
  %v1345 = vtanh.pop %v1340
  %v1346 = vpack.c.bf16 %v1342, %v1341
  %v1347 = vpack.c.bf16 %v1344, %v1343
  %v1348 = vpack.c.bf16 %v1345, %v1345
  %v1350 = vsel %vm524, %v1346, 0
  %v1353 = vsel %vm524, %v1347, 0
  %v1356 = vsel %vm524, %v1348, 0
  %1358 = vmatprep.subr.bf16.mxu0 0
  %1359 = vmatpush1.bf16.msra.mxu0 %v512
  %1360 = vmatprep.subr.bf16.mxu0 0
  %1361 = vmatpush1.bf16.msra.mxu0 %v513
  %1362 = vmatprep.subr.bf16.mxu0 0
  %1363 = vmatpush1.bf16.msra.mxu0 %v514
  %1364 = vmatprep.subr.bf16.mxu0 0
  %1365 = vmatpush1.bf16.msra.mxu0 %v515
  %1366 = vmatprep.subr.bf16.mxu0 0
  %1367 = vmatpush1.bf16.msra.mxu0 %v516
  %1368 = vmatprep.subr.bf16.mxu0 0
  %1369 = vmatpush1.bf16.msra.mxu0 %v517
  %1370 = vmatprep.subr.bf16.mxu0 0
  %1371 = vmatpush1.bf16.msra.mxu0 0
  %1372 = vmatprep.subr.bf16.mxu0 0
  %1373 = vmatpush1.bf16.msra.mxu0 0
  %1374 = vmatprep.subr.bf16.mxu0 0
  %1375 = vmatpush1.bf16.msra.mxu0 0
  %1376 = vmatprep.subr.bf16.mxu0 0
  %1377 = vmatpush1.bf16.msra.mxu0 0
  %1378 = vmatprep.subr.bf16.mxu0 0
  %1379 = vmatpush1.bf16.msra.mxu0 0
  %1380 = vmatprep.subr.bf16.mxu0 0
  %1381 = vmatpush1.bf16.msra.mxu0 0
  %1382 = vmatprep.subr.bf16.mxu0 0
  %1383 = vmatpush1.bf16.msra.mxu0 0
  %1384 = vmatprep.subr.bf16.mxu0 0
  %1385 = vmatpush1.bf16.msra.mxu0 0
  %1386 = vmatprep.subr.bf16.mxu0 0
  %1387 = vmatpush1.bf16.msra.mxu0 0
  %1388 = vmatprep.subr.bf16.mxu0 0
  %1389 = vmatpush1.bf16.msra.mxu0 0
  %1390 = vmatprep.mubr.bf16.mxu0 0
  %1391 = vmatmul.mubr.bf16.gmra.mrb[0].mxu0 %v1350
  %v1392 = vpop.f32.mrb[0].mxu0
  %v1393 = vadd.f32 %v486, %v1392
  %v1394 = vpop.f32.mrb[0].mxu0
  %v1395 = vpop.f32.mrb[0].mxu0
  %v1396 = vadd.f32 %v486, %v1395
  %v1397 = vpop.f32.mrb[0].mxu0
  %1398 = vmatprep.mubr.bf16.mxu0 0
  %1399 = vmatmul.mubr.bf16.gmra.mrb[0].mxu0 %v1353
  %v1400 = vpop.f32.mrb[0].mxu0
  %v1401 = vadd.f32 %v486, %v1400
  %v1402 = vpop.f32.mrb[0].mxu0
  %v1403 = vpop.f32.mrb[0].mxu0
  %v1404 = vadd.f32 %v486, %v1403
  %v1405 = vpop.f32.mrb[0].mxu0
  %1406 = vmatprep.mubr.bf16.mxu0 0
  %1407 = vmatmul.mubr.bf16.gmra.mrb[0].mxu0 %v1356
  %v1408 = vpop.f32.mrb[0].mxu0
  %v1409 = vadd.f32 %v486, %v1408
  %v1410 = vpop.f32.mrb[0].mxu0
  %v1411 = vpop.f32.mrb[0].mxu0
  %v1412 = vpop.f32.mrb[0].mxu0
  %1413 = vdwg.mxu0
  %v1414 = vtanh.pop %v1393
  %v1415 = vtanh.pop %v1396
  %v1416 = vtanh.pop %v1401
  %v1417 = vtanh.pop %v1404
  %v1418 = vtanh.pop %v1409
  %v1419 = vpack.c.bf16 %v1415, %v1414
  %v1420 = vpack.c.bf16 %v1417, %v1416
  %v1421 = vpack.c.bf16 %v1418, %v1418
  %v1423 = vsel %vm607, %v1421, 0
  %1425 = vmatprep.subr.bf16.mxu0 0
  %1426 = vmatpush1.bf16.msra.mxu0 %v1419
  %1427 = vmatprep.subr.bf16.mxu0 0
  %1428 = vmatpush1.bf16.msra.mxu0 %v1420
  %1429 = vmatprep.subr.bf16.mxu0 0
  %1430 = vmatpush1.bf16.msra.mxu0 %v1423
  %1431 = vmatprep.subr.bf16.mxu0 0
  %1432 = vmatpush1.bf16.msra.mxu0 0
  %1433 = vmatprep.subr.bf16.mxu0 0
  %1434 = vmatpush1.bf16.msra.mxu0 0
  %1435 = vmatprep.subr.bf16.mxu0 0
  %1436 = vmatpush1.bf16.msra.mxu0 0
  %1437 = vmatprep.subr.bf16.mxu0 0
  %1438 = vmatpush1.bf16.msra.mxu0 0
  %1439 = vmatprep.subr.bf16.mxu0 0
  %1440 = vmatpush1.bf16.msra.mxu0 0
  %1441 = vmatprep.subr.bf16.mxu0 0
  %1442 = vmatpush1.bf16.msra.mxu0 0
  %1443 = vmatprep.subr.bf16.mxu0 0
  %1444 = vmatpush1.bf16.msra.mxu0 0
  %1445 = vmatprep.subr.bf16.mxu0 0
  %1446 = vmatpush1.bf16.msra.mxu0 0
  %1447 = vmatprep.subr.bf16.mxu0 0
  %1448 = vmatpush1.bf16.msra.mxu0 0
  %1449 = vmatprep.subr.bf16.mxu0 0
  %1450 = vmatpush1.bf16.msra.mxu0 0
  %1451 = vmatprep.subr.bf16.mxu0 0
  %1452 = vmatpush1.bf16.msra.mxu0 0
  %1453 = vmatprep.subr.bf16.mxu0 0
  %1454 = vmatpush1.bf16.msra.mxu0 0
  %1455 = vmatprep.subr.bf16.mxu0 0
  %1456 = vmatpush1.bf16.msra.mxu0 0
  %1457 = vmatprep.mubr.bf16.mxu0 0
  %1458 = vmatmul.mubr.bf16.gmra.mrb[0].mxu0 %v605
  %v1459 = vpop.f32.mrb[0].mxu0
  %v1460 = vadd.f32 0.0, %v1459
  %v1461 = vpop.f32.mrb[0].mxu0
  %v1462 = vpop.f32.mrb[0].mxu0
  %v1463 = vadd.f32 0.0, %v1462
  %v1464 = vpop.f32.mrb[0].mxu0
  %1465 = vdwg.mxu0
  %v1466 = vpack.c.bf16 %v1463, %v1460
  %v1468 = vsel %vm524, %v1466, 0
  %1470 = vmatprep.subr.bf16.mxu0 0
  %1471 = vmatpush1.bf16.msra.mxu0 %v677
  %1472 = vmatprep.subr.bf16.mxu0 0
  %1473 = vmatpush1.bf16.msra.mxu0 %v678
  %1474 = vmatprep.subr.bf16.mxu0 0
  %1475 = vmatpush1.bf16.msra.mxu0 %v679
  %1476 = vmatprep.subr.bf16.mxu0 0
  %1477 = vmatpush1.bf16.msra.mxu0 %v680
  %1478 = vmatprep.subr.bf16.mxu0 0
  %1479 = vmatpush1.bf16.msra.mxu0 %v681
  %1480 = vmatprep.subr.bf16.mxu0 0
  %1481 = vmatpush1.bf16.msra.mxu0 %v682
  %1482 = vmatprep.subr.bf16.mxu0 0
  %1483 = vmatpush1.bf16.msra.mxu0 0
  %1484 = vmatprep.subr.bf16.mxu0 0
  %1485 = vmatpush1.bf16.msra.mxu0 0
  %1486 = vmatprep.subr.bf16.mxu0 0
  %1487 = vmatpush1.bf16.msra.mxu0 0
  %1488 = vmatprep.subr.bf16.mxu0 0
  %1489 = vmatpush1.bf16.msra.mxu0 0
  %1490 = vmatprep.subr.bf16.mxu0 0
  %1491 = vmatpush1.bf16.msra.mxu0 0
  %1492 = vmatprep.subr.bf16.mxu0 0
  %1493 = vmatpush1.bf16.msra.mxu0 0
  %1494 = vmatprep.subr.bf16.mxu0 0
  %1495 = vmatpush1.bf16.msra.mxu0 0
  %1496 = vmatprep.subr.bf16.mxu0 0
  %1497 = vmatpush1.bf16.msra.mxu0 0
  %1498 = vmatprep.subr.bf16.mxu0 0
  %1499 = vmatpush1.bf16.msra.mxu0 0
  %1500 = vmatprep.subr.bf16.mxu0 0
  %1501 = vmatpush1.bf16.msra.mxu0 0
  %1502 = vmatprep.mubr.bf16.mxu0 0
  %1503 = vmatmul.mubr.bf16.gmra.mrb[0].mxu0 %v1468
  %v1504 = vpop.f32.mrb[0].mxu0
  %v1505 = vadd.f32 0.0, %v1504
  %v1506 = vpop.f32.mrb[0].mxu0
  %v1507 = vpop.f32.mrb[0].mxu0
  %v1508 = vadd.f32 0.0, %v1507
  %v1509 = vpop.f32.mrb[0].mxu0
  %1510 = vdwg.mxu0
  %1511 = vmatprep.subr.bf16.mxu0 0
  %1512 = vmatpush1.bf16.msra.mxu0 %v771
  %1513 = vmatprep.subr.bf16.mxu0 0
  %1514 = vmatpush1.bf16.msra.mxu0 %v772
  %1515 = vmatprep.subr.bf16.mxu0 0
  %1516 = vmatpush1.bf16.msra.mxu0 %v773
  %1517 = vmatprep.subr.bf16.mxu0 0
  %1518 = vmatpush1.bf16.msra.mxu0 %v774
  %1519 = vmatprep.subr.bf16.mxu0 0
  %1520 = vmatpush1.bf16.msra.mxu0 %v775
  %1521 = vmatprep.subr.bf16.mxu0 0
  %1522 = vmatpush1.bf16.msra.mxu0 %v776
  %1523 = vmatprep.subr.bf16.mxu0 0
  %1524 = vmatpush1.bf16.msra.mxu0 %v777
  %1525 = vmatprep.subr.bf16.mxu0 0
  %1526 = vmatpush1.bf16.msra.mxu0 %v778
  %1527 = vmatprep.subr.bf16.mxu0 0
  %1528 = vmatpush1.bf16.msra.mxu0 0
  %1529 = vmatprep.subr.bf16.mxu0 0
  %1530 = vmatpush1.bf16.msra.mxu0 0
  %1531 = vmatprep.subr.bf16.mxu0 0
  %1532 = vmatpush1.bf16.msra.mxu0 0
  %1533 = vmatprep.subr.bf16.mxu0 0
  %1534 = vmatpush1.bf16.msra.mxu0 0
  %1535 = vmatprep.subr.bf16.mxu0 0
  %1536 = vmatpush1.bf16.msra.mxu0 0
  %1537 = vmatprep.subr.bf16.mxu0 0
  %1538 = vmatpush1.bf16.msra.mxu0 0
  %1539 = vmatprep.subr.bf16.mxu0 0
  %1540 = vmatpush1.bf16.msra.mxu0 0
  %1541 = vmatprep.subr.bf16.mxu0 0
  %1542 = vmatpush1.bf16.msra.mxu0 0
  %1543 = vmatprep.mubr.bf16.mxu0 0
  %1544 = vmatmul.mubr.bf16.gmra.mrb[0].mxu0 %v1085
  %v1545 = vpop.f32.mrb[0].mxu0
  %v1546 = vadd.f32 %v737, %v1545
  %v1547 = vpop.f32.mrb[0].mxu0
  %v1548 = vpop.f32.mrb[0].mxu0
  %v1549 = vadd.f32 %v737, %v1548
  %v1550 = vpop.f32.mrb[0].mxu0
  %1551 = vdwg.mxu0
  %v1552 = vadd.f32 %v1546, %v1505
  %v1553 = vadd.f32 %v1549, %v1508
  %v1554 = vxor.u32 %v1552, 2147483648
  %v1555 = vxor.u32 %v1553, 2147483648
  %v1556 = vmul.f32 %v1554, 1.442695
  %v1557 = vpow.pop %v1556
  %v1558 = vmul.f32 %v1555, 1.442695
  %v1559 = vpow.pop %v1558
  %v1560 = vadd.f32 %v1557, 1.0
  %v1561 = vadd.f32 %v1559, 1.0
  %v1562 = vrcp.pop %v1560
  %v1563 = vmul.f32 1.0, %v1562
  %v1564 = vrcp.pop %v1561
  %v1565 = vmul.f32 1.0, %v1564
  %1568 = vrot.lane.b32.xlu0 %v1505, 64
  %v1569 = vpop.permute.xlu0 %1568
  %1570 = vrot.lane.b32.xlu0 %v1508, 64
  %v1571 = vpop.permute.xlu0 %1570
  %v1574 = vmul.f32 %v1563, %v1569
  %v1575 = vmul.f32 %v1565, %v1571
  %1578 = vrot.lane.b32.xlu0 %v1574, 64
  %v1579 = vpop.permute.xlu0 %1578
  %1580 = vrot.lane.b32.xlu0 %v1575, 64
  %v1581 = vpop.permute.xlu0 %1580
  %v1584 = vadd.f32 %v1546, %v1579
  %v1585 = vadd.f32 %v1549, %v1581
  %v1586 = vtanh.pop %v1584
  %v1587 = vtanh.pop %v1585
  %v1588 = vsub.f32 1.0, %v1563
  %v1589 = vsub.f32 1.0, %v1565
  %1592 = vrot.lane.b32.xlu0 %v1586, 96
  %v1593 = vpop.permute.xlu0 %1592
  %1594 = vrot.lane.b32.xlu0 %v1587, 96
  %v1595 = vpop.permute.xlu0 %1594
  %v1598 = vmul.f32 %v1588, %v1593
  %v1599 = vmul.f32 %v1589, %v1595
  %v1600 = vmul.f32 %v1563, %v878
  %v1601 = vmul.f32 %v1565, %v879
  %v1602 = vadd.f32 %v1598, %v1600
  %v1603 = vadd.f32 %v1599, %v1601
  %v1604 = vpack.c.bf16 %v1603, %v1602
  %1606 = vrot.lane.b32.xlu0 %v1604, 96
  %v1607 = vpop.permute.xlu0 %1606
  %v1609 = vsel %vm320, %v1607, 0
  %1611 = vmatprep.subr.bf16.mxu0 0
  %1612 = vmatpush1.bf16.msra.mxu0 %v898
  %1613 = vmatprep.subr.bf16.mxu0 0
  %1614 = vmatpush1.bf16.msra.mxu0 %v899
  %1615 = vmatprep.subr.bf16.mxu0 0
  %1616 = vmatpush1.bf16.msra.mxu0 0
  %1617 = vmatprep.subr.bf16.mxu0 0
  %1618 = vmatpush1.bf16.msra.mxu0 0
  %1619 = vmatprep.subr.bf16.mxu0 0
  %1620 = vmatpush1.bf16.msra.mxu0 0
  %1621 = vmatprep.subr.bf16.mxu0 0
  %1622 = vmatpush1.bf16.msra.mxu0 0
  %1623 = vmatprep.subr.bf16.mxu0 0
  %1624 = vmatpush1.bf16.msra.mxu0 0
  %1625 = vmatprep.subr.bf16.mxu0 0
  %1626 = vmatpush1.bf16.msra.mxu0 0
  %1627 = vmatprep.subr.bf16.mxu0 0
  %1628 = vmatpush1.bf16.msra.mxu0 0
  %1629 = vmatprep.subr.bf16.mxu0 0
  %1630 = vmatpush1.bf16.msra.mxu0 0
  %1631 = vmatprep.subr.bf16.mxu0 0
  %1632 = vmatpush1.bf16.msra.mxu0 0
  %1633 = vmatprep.subr.bf16.mxu0 0
  %1634 = vmatpush1.bf16.msra.mxu0 0
  %1635 = vmatprep.subr.bf16.mxu0 0
  %1636 = vmatpush1.bf16.msra.mxu0 0
  %1637 = vmatprep.subr.bf16.mxu0 0
  %1638 = vmatpush1.bf16.msra.mxu0 0
  %1639 = vmatprep.subr.bf16.mxu0 0
  %1640 = vmatpush1.bf16.msra.mxu0 0
  %1641 = vmatprep.subr.bf16.mxu0 0
  %1642 = vmatpush1.bf16.msra.mxu0 0
  %1643 = vmatprep.mubr.bf16.mxu0 0
  %1644 = vmatmul.mubr.bf16.gmra.mrb[0].mxu0 %v1609
  %v1645 = vpop.f32.mrb[0].mxu0
  %v1646 = vadd.f32 %v885, %v1645
  %v1647 = vpop.f32.mrb[0].mxu0
  %v1648 = vpop.f32.mrb[0].mxu0
  %v1649 = vadd.f32 %v885, %v1648
  %v1650 = vpop.f32.mrb[0].mxu0
  %1651 = vdwg.mxu0
  %v1652 = vmax.f32 %v1646, 0.0
  %v1653 = vmax.f32 %v1649, 0.0
  %v1654 = vpack.c.bf16 %v1653, %v1652
  %v1656 = vsel %vm320, %v1654, 0
  %1658 = vmatprep.subr.bf16.mxu0 0
  %1659 = vmatpush1.bf16.msra.mxu0 %v963
  %1660 = vmatprep.subr.bf16.mxu0 0
  %1661 = vmatpush1.bf16.msra.mxu0 %v964
  %1662 = vmatprep.subr.bf16.mxu0 0
  %1663 = vmatpush1.bf16.msra.mxu0 0
  %1664 = vmatprep.subr.bf16.mxu0 0
  %1665 = vmatpush1.bf16.msra.mxu0 0
  %1666 = vmatprep.subr.bf16.mxu0 0
  %1667 = vmatpush1.bf16.msra.mxu0 0
  %1668 = vmatprep.subr.bf16.mxu0 0
  %1669 = vmatpush1.bf16.msra.mxu0 0
  %1670 = vmatprep.subr.bf16.mxu0 0
  %1671 = vmatpush1.bf16.msra.mxu0 0
  %1672 = vmatprep.subr.bf16.mxu0 0
  %1673 = vmatpush1.bf16.msra.mxu0 0
  %1674 = vmatprep.subr.bf16.mxu0 0
  %1675 = vmatpush1.bf16.msra.mxu0 0
  %1676 = vmatprep.subr.bf16.mxu0 0
  %1677 = vmatpush1.bf16.msra.mxu0 0
  %1678 = vmatprep.subr.bf16.mxu0 0
  %1679 = vmatpush1.bf16.msra.mxu0 0
  %1680 = vmatprep.subr.bf16.mxu0 0
  %1681 = vmatpush1.bf16.msra.mxu0 0
  %1682 = vmatprep.subr.bf16.mxu0 0
  %1683 = vmatpush1.bf16.msra.mxu0 0
  %1684 = vmatprep.subr.bf16.mxu0 0
  %1685 = vmatpush1.bf16.msra.mxu0 0
  %1686 = vmatprep.subr.bf16.mxu0 0
  %1687 = vmatpush1.bf16.msra.mxu0 0
  %1688 = vmatprep.subr.bf16.mxu0 0
  %1689 = vmatpush1.bf16.msra.mxu0 0
  %1690 = vmatprep.mubr.bf16.mxu0 0
  %1691 = vmatmul.mubr.bf16.gmra.mrb[0].mxu0 %v1656
  %v1692 = vpop.f32.mrb[0].mxu0
  %v1693 = vadd.f32 %v953, %v1692
  %v1694 = vpop.f32.mrb[0].mxu0
  %v1695 = vpop.f32.mrb[0].mxu0
  %v1696 = vadd.f32 %v953, %v1695
  %v1697 = vpop.f32.mrb[0].mxu0
  %1698 = vdwg.mxu0
  %v1699 = vmax.f32 %v1693, 0.0
  %v1700 = vmax.f32 %v1696, 0.0
  %v1701 = vpack.c.bf16 %v1700, %v1699
  %v1703 = vsel %vm320, %v1701, 0
  %1705 = vmatprep.subr.bf16.mxu0 0
  %1706 = vmatpush1.bf16.msra.mxu0 %v1028
  %1707 = vmatprep.subr.bf16.mxu0 0
  %1708 = vmatpush1.bf16.msra.mxu0 %v1029
  %1709 = vmatprep.subr.bf16.mxu0 0
  %1710 = vmatpush1.bf16.msra.mxu0 0
  %1711 = vmatprep.subr.bf16.mxu0 0
  %1712 = vmatpush1.bf16.msra.mxu0 0
  %1713 = vmatprep.subr.bf16.mxu0 0
  %1714 = vmatpush1.bf16.msra.mxu0 0
  %1715 = vmatprep.subr.bf16.mxu0 0
  %1716 = vmatpush1.bf16.msra.mxu0 0
  %1717 = vmatprep.subr.bf16.mxu0 0
  %1718 = vmatpush1.bf16.msra.mxu0 0
  %1719 = vmatprep.subr.bf16.mxu0 0
  %1720 = vmatpush1.bf16.msra.mxu0 0
  %1721 = vmatprep.subr.bf16.mxu0 0
  %1722 = vmatpush1.bf16.msra.mxu0 0
  %1723 = vmatprep.subr.bf16.mxu0 0
  %1724 = vmatpush1.bf16.msra.mxu0 0
  %1725 = vmatprep.subr.bf16.mxu0 0
  %1726 = vmatpush1.bf16.msra.mxu0 0
  %1727 = vmatprep.subr.bf16.mxu0 0
  %1728 = vmatpush1.bf16.msra.mxu0 0
  %1729 = vmatprep.subr.bf16.mxu0 0
  %1730 = vmatpush1.bf16.msra.mxu0 0
  %1731 = vmatprep.subr.bf16.mxu0 0
  %1732 = vmatpush1.bf16.msra.mxu0 0
  %1733 = vmatprep.subr.bf16.mxu0 0
  %1734 = vmatpush1.bf16.msra.mxu0 0
  %1735 = vmatprep.subr.bf16.mxu0 0
  %1736 = vmatpush1.bf16.msra.mxu0 0
  %1737 = vmatprep.mubr.bf16.mxu0 0
  %1738 = vmatmul.mubr.bf16.gmra.mrb[0].mxu0 %v1703
  %v1739 = vpop.f32.mrb[0].mxu0
  %v1740 = vadd.f32 %v1018, %v1739
  %v1741 = vpop.f32.mrb[0].mxu0
  %v1742 = vpop.f32.mrb[0].mxu0
  %v1743 = vadd.f32 %v1018, %v1742
  %v1744 = vpop.f32.mrb[0].mxu0
  %1745 = vdwg.mxu0
  %v1746 = vmax.f32 %v1740, 0.0
  %v1747 = vmax.f32 %v1743, 0.0
  %v1748 = vadd.f32 %v1083, %v1746
  %v1749 = vadd.f32 %v1084, %v1747
  %s1750 = scalar_lea.vmem %s18, 16
  %1751 = vst [vmem:[%s1750] sm:$0xff] %v1748
  %1752 = vst [vmem:[%s1750 + $0x8] sm:$0x3] %v1749
  %s1753 = scalar_lea.vmem %s0, 32
  %v1754 = vld [vmem:[%s1753] sm:$0xff]
  %v1755 = vld [vmem:[%s1753 + $0x8] sm:$0x3]
  %v1756 = vpack.c.bf16 %v1755, %v1754
  %v1757 = vsel %vm164, %v1607, 0
  %1759 = vmatprep.subr.bf16.mxu0 0
  %1760 = vmatpush1.bf16.msra.mxu0 %v1757
  %1761 = vmatprep.subr.bf16.mxu0 0
  %1762 = vmatpush1.bf16.msra.mxu0 0
  %1763 = vmatprep.subr.bf16.mxu0 0
  %1764 = vmatpush1.bf16.msra.mxu0 0
  %1765 = vmatprep.subr.bf16.mxu0 0
  %1766 = vmatpush1.bf16.msra.mxu0 0
  %1767 = vmatprep.subr.bf16.mxu0 0
  %1768 = vmatpush1.bf16.msra.mxu0 0
  %1769 = vmatprep.subr.bf16.mxu0 0
  %1770 = vmatpush1.bf16.msra.mxu0 0
  %1771 = vmatprep.subr.bf16.mxu0 0
  %1772 = vmatpush1.bf16.msra.mxu0 0
  %1773 = vmatprep.subr.bf16.mxu0 0
  %1774 = vmatpush1.bf16.msra.mxu0 0
  %1775 = vmatprep.subr.bf16.mxu0 0
  %1776 = vmatpush1.bf16.msra.mxu0 0
  %1777 = vmatprep.subr.bf16.mxu0 0
  %1778 = vmatpush1.bf16.msra.mxu0 0
  %1779 = vmatprep.subr.bf16.mxu0 0
  %1780 = vmatpush1.bf16.msra.mxu0 0
  %1781 = vmatprep.subr.bf16.mxu0 0
  %1782 = vmatpush1.bf16.msra.mxu0 0
  %1783 = vmatprep.subr.bf16.mxu0 0
  %1784 = vmatpush1.bf16.msra.mxu0 0
  %1785 = vmatprep.subr.bf16.mxu0 0
  %1786 = vmatpush1.bf16.msra.mxu0 0
  %1787 = vmatprep.subr.bf16.mxu0 0
  %1788 = vmatpush1.bf16.msra.mxu0 0
  %1789 = vmatprep.subr.bf16.mxu0 0
  %1790 = vmatpush1.bf16.msra.mxu0 0
  %1791 = vmatprep.mubr.bf16.mxu0 0
  %1792 = vmatmul.mubr.bf16.gmra.mrb[0].mxu0 %v156
  %v1793 = vpop.f32.mrb[0].mxu0
  %v1794 = vadd.f32 0.0, %v1793
  %v1795 = vpop.f32.mrb[0].mxu0
  %v1796 = vpop.f32.mrb[0].mxu0
  %v1797 = vadd.f32 0.0, %v1796
  %v1798 = vpop.f32.mrb[0].mxu0
  %1799 = vmatprep.mubr.bf16.mxu0 0
  %1800 = vmatmul.mubr.bf16.gmra.mrb[0].mxu0 %v159
  %v1801 = vpop.f32.mrb[0].mxu0
  %v1802 = vadd.f32 0.0, %v1801
  %v1803 = vpop.f32.mrb[0].mxu0
  %v1804 = vpop.f32.mrb[0].mxu0
  %v1805 = vadd.f32 0.0, %v1804
  %v1806 = vpop.f32.mrb[0].mxu0
  %1807 = vmatprep.mubr.bf16.mxu0 0
  %1808 = vmatmul.mubr.bf16.gmra.mrb[0].mxu0 %v162
  %v1809 = vpop.f32.mrb[0].mxu0
  %v1810 = vadd.f32 0.0, %v1809
  %v1811 = vpop.f32.mrb[0].mxu0
  %v1812 = vpop.f32.mrb[0].mxu0
  %v1813 = vpop.f32.mrb[0].mxu0
  %1814 = vdwg.mxu0
  %1815 = vmatprep.subr.bf16.mxu0 0
  %1816 = vmatpush1.bf16.msra.mxu0 %v1757
  %1817 = vmatprep.subr.bf16.mxu0 0
  %1818 = vmatpush1.bf16.msra.mxu0 0
  %1819 = vmatprep.subr.bf16.mxu0 0
  %1820 = vmatpush1.bf16.msra.mxu0 0
  %1821 = vmatprep.subr.bf16.mxu0 0
  %1822 = vmatpush1.bf16.msra.mxu0 0
  %1823 = vmatprep.subr.bf16.mxu0 0
  %1824 = vmatpush1.bf16.msra.mxu0 0
  %1825 = vmatprep.subr.bf16.mxu0 0
  %1826 = vmatpush1.bf16.msra.mxu0 0
  %1827 = vmatprep.subr.bf16.mxu0 0
  %1828 = vmatpush1.bf16.msra.mxu0 0
  %1829 = vmatprep.subr.bf16.mxu0 0
  %1830 = vmatpush1.bf16.msra.mxu0 0
  %1831 = vmatprep.subr.bf16.mxu0 0
  %1832 = vmatpush1.bf16.msra.mxu0 0
  %1833 = vmatprep.subr.bf16.mxu0 0
  %1834 = vmatpush1.bf16.msra.mxu0 0
  %1835 = vmatprep.subr.bf16.mxu0 0
  %1836 = vmatpush1.bf16.msra.mxu0 0
  %1837 = vmatprep.subr.bf16.mxu0 0
  %1838 = vmatpush1.bf16.msra.mxu0 0
  %1839 = vmatprep.subr.bf16.mxu0 0
  %1840 = vmatpush1.bf16.msra.mxu0 0
  %1841 = vmatprep.subr.bf16.mxu0 0
  %1842 = vmatpush1.bf16.msra.mxu0 0
  %1843 = vmatprep.subr.bf16.mxu0 0
  %1844 = vmatpush1.bf16.msra.mxu0 0
  %1845 = vmatprep.subr.bf16.mxu0 0
  %1846 = vmatpush1.bf16.msra.mxu0 0
  %1847 = vmatprep.mubr.bf16.mxu0 0
  %1848 = vmatmul.mubr.bf16.gmra.mrb[0].mxu0 %v238
  %v1849 = vpop.f32.mrb[0].mxu0
  %v1850 = vadd.f32 0.0, %v1849
  %v1851 = vpop.f32.mrb[0].mxu0
  %v1852 = vpop.f32.mrb[0].mxu0
  %v1853 = vadd.f32 0.0, %v1852
  %v1854 = vpop.f32.mrb[0].mxu0
  %1855 = vmatprep.mubr.bf16.mxu0 0
  %1856 = vmatmul.mubr.bf16.gmra.mrb[0].mxu0 %v241
  %v1857 = vpop.f32.mrb[0].mxu0
  %v1858 = vadd.f32 0.0, %v1857
  %v1859 = vpop.f32.mrb[0].mxu0
  %v1860 = vpop.f32.mrb[0].mxu0
  %v1861 = vadd.f32 0.0, %v1860
  %v1862 = vpop.f32.mrb[0].mxu0
  %1863 = vmatprep.mubr.bf16.mxu0 0
  %1864 = vmatmul.mubr.bf16.gmra.mrb[0].mxu0 %v244
  %v1865 = vpop.f32.mrb[0].mxu0
  %v1866 = vadd.f32 0.0, %v1865
  %v1867 = vpop.f32.mrb[0].mxu0
  %v1868 = vpop.f32.mrb[0].mxu0
  %v1869 = vpop.f32.mrb[0].mxu0
  %1870 = vdwg.mxu0
  %v1871 = vpack.c.bf16 %v1797, %v1794
  %v1872 = vpack.c.bf16 %v1805, %v1802
  %v1873 = vpack.c.bf16 %v1810, %v1810
  %v1874 = vpack.c.bf16 %v1853, %v1850
  %v1875 = vpack.c.bf16 %v1861, %v1858
  %v1876 = vpack.c.bf16 %v1866, %v1866
  %v1878 = vsel %vm320, %v1874, 0
  %v1881 = vsel %vm320, %v1875, 0
  %v1884 = vsel %vm320, %v1876, 0
  %1886 = vmatprep.subr.bf16.mxu0 0
  %1887 = vmatpush1.bf16.msra.mxu0 %v316
  %1888 = vmatprep.subr.bf16.mxu0 0
  %1889 = vmatpush1.bf16.msra.mxu0 %v317
  %1890 = vmatprep.subr.bf16.mxu0 0
  %1891 = vmatpush1.bf16.msra.mxu0 0
  %1892 = vmatprep.subr.bf16.mxu0 0
  %1893 = vmatpush1.bf16.msra.mxu0 0
  %1894 = vmatprep.subr.bf16.mxu0 0
  %1895 = vmatpush1.bf16.msra.mxu0 0
  %1896 = vmatprep.subr.bf16.mxu0 0
  %1897 = vmatpush1.bf16.msra.mxu0 0
  %1898 = vmatprep.subr.bf16.mxu0 0
  %1899 = vmatpush1.bf16.msra.mxu0 0
  %1900 = vmatprep.subr.bf16.mxu0 0
  %1901 = vmatpush1.bf16.msra.mxu0 0
  %1902 = vmatprep.subr.bf16.mxu0 0
  %1903 = vmatpush1.bf16.msra.mxu0 0
  %1904 = vmatprep.subr.bf16.mxu0 0
  %1905 = vmatpush1.bf16.msra.mxu0 0
  %1906 = vmatprep.subr.bf16.mxu0 0
  %1907 = vmatpush1.bf16.msra.mxu0 0
  %1908 = vmatprep.subr.bf16.mxu0 0
  %1909 = vmatpush1.bf16.msra.mxu0 0
  %1910 = vmatprep.subr.bf16.mxu0 0
  %1911 = vmatpush1.bf16.msra.mxu0 0
  %1912 = vmatprep.subr.bf16.mxu0 0
  %1913 = vmatpush1.bf16.msra.mxu0 0
  %1914 = vmatprep.subr.bf16.mxu0 0
  %1915 = vmatpush1.bf16.msra.mxu0 0
  %1916 = vmatprep.subr.bf16.mxu0 0
  %1917 = vmatpush1.bf16.msra.mxu0 0
  %1918 = vmatprep.mubr.bf16.mxu0 0
  %1919 = vmatmul.mubr.bf16.gmra.mrb[0].mxu0 %v1878
  %v1920 = vpop.f32.mrb[0].mxu0
  %v1921 = vadd.f32 0.0, %v1920
  %v1922 = vpop.f32.mrb[0].mxu0
  %v1923 = vpop.f32.mrb[0].mxu0
  %v1924 = vadd.f32 0.0, %v1923
  %v1925 = vpop.f32.mrb[0].mxu0
  %1926 = vmatprep.mubr.bf16.mxu0 0
  %1927 = vmatmul.mubr.bf16.gmra.mrb[0].mxu0 %v1881
  %v1928 = vpop.f32.mrb[0].mxu0
  %v1929 = vadd.f32 0.0, %v1928
  %v1930 = vpop.f32.mrb[0].mxu0
  %v1931 = vpop.f32.mrb[0].mxu0
  %v1932 = vadd.f32 0.0, %v1931
  %v1933 = vpop.f32.mrb[0].mxu0
  %1934 = vmatprep.mubr.bf16.mxu0 0
  %1935 = vmatmul.mubr.bf16.gmra.mrb[0].mxu0 %v1884
  %v1936 = vpop.f32.mrb[0].mxu0
  %v1937 = vadd.f32 0.0, %v1936
  %v1938 = vpop.f32.mrb[0].mxu0
  %v1939 = vpop.f32.mrb[0].mxu0
  %v1940 = vpop.f32.mrb[0].mxu0
  %1941 = vdwg.mxu0
  %v1943 = vsel %vm320, %v1871, 0
  %v1946 = vsel %vm320, %v1872, 0
  %v1949 = vsel %vm320, %v1873, 0
  %1951 = vmatprep.subr.bf16.mxu0 0
  %1952 = vmatpush1.bf16.msra.mxu0 %v394
  %1953 = vmatprep.subr.bf16.mxu0 0
  %1954 = vmatpush1.bf16.msra.mxu0 %v395
  %1955 = vmatprep.subr.bf16.mxu0 0
  %1956 = vmatpush1.bf16.msra.mxu0 0
  %1957 = vmatprep.subr.bf16.mxu0 0
  %1958 = vmatpush1.bf16.msra.mxu0 0
  %1959 = vmatprep.subr.bf16.mxu0 0
  %1960 = vmatpush1.bf16.msra.mxu0 0
  %1961 = vmatprep.subr.bf16.mxu0 0
  %1962 = vmatpush1.bf16.msra.mxu0 0
  %1963 = vmatprep.subr.bf16.mxu0 0
  %1964 = vmatpush1.bf16.msra.mxu0 0
  %1965 = vmatprep.subr.bf16.mxu0 0
  %1966 = vmatpush1.bf16.msra.mxu0 0
  %1967 = vmatprep.subr.bf16.mxu0 0
  %1968 = vmatpush1.bf16.msra.mxu0 0
  %1969 = vmatprep.subr.bf16.mxu0 0
  %1970 = vmatpush1.bf16.msra.mxu0 0
  %1971 = vmatprep.subr.bf16.mxu0 0
  %1972 = vmatpush1.bf16.msra.mxu0 0
  %1973 = vmatprep.subr.bf16.mxu0 0
  %1974 = vmatpush1.bf16.msra.mxu0 0
  %1975 = vmatprep.subr.bf16.mxu0 0
  %1976 = vmatpush1.bf16.msra.mxu0 0
  %1977 = vmatprep.subr.bf16.mxu0 0
  %1978 = vmatpush1.bf16.msra.mxu0 0
  %1979 = vmatprep.subr.bf16.mxu0 0
  %1980 = vmatpush1.bf16.msra.mxu0 0
  %1981 = vmatprep.subr.bf16.mxu0 0
  %1982 = vmatpush1.bf16.msra.mxu0 0
  %1983 = vmatprep.mubr.bf16.mxu0 0
  %1984 = vmatmul.mubr.bf16.gmra.mrb[0].mxu0 %v1943
  %v1985 = vpop.f32.mrb[0].mxu0
  %v1986 = vadd.f32 %v1921, %v1985
  %v1987 = vpop.f32.mrb[0].mxu0
  %v1988 = vpop.f32.mrb[0].mxu0
  %v1989 = vadd.f32 %v1924, %v1988
  %v1990 = vpop.f32.mrb[0].mxu0
  %1991 = vmatprep.mubr.bf16.mxu0 0
  %1992 = vmatmul.mubr.bf16.gmra.mrb[0].mxu0 %v1946
  %v1993 = vpop.f32.mrb[0].mxu0
  %v1994 = vadd.f32 %v1929, %v1993
  %v1995 = vpop.f32.mrb[0].mxu0
  %v1996 = vpop.f32.mrb[0].mxu0
  %v1997 = vadd.f32 %v1932, %v1996
  %v1998 = vpop.f32.mrb[0].mxu0
  %1999 = vmatprep.mubr.bf16.mxu0 0
  %2000 = vmatmul.mubr.bf16.gmra.mrb[0].mxu0 %v1949
  %v2001 = vpop.f32.mrb[0].mxu0
  %v2002 = vadd.f32 %v1937, %v2001
  %v2003 = vpop.f32.mrb[0].mxu0
  %v2004 = vpop.f32.mrb[0].mxu0
  %v2005 = vpop.f32.mrb[0].mxu0
  %2006 = vdwg.mxu0
  %v2007 = vadd.f32 %v1986, %v467
  %v2008 = vadd.f32 %v1989, %v467
  %v2009 = vadd.f32 %v1994, %v467
  %v2010 = vadd.f32 %v1997, %v467
  %v2011 = vadd.f32 %v2002, %v467
  %v2012 = vtanh.pop %v2007
  %v2013 = vtanh.pop %v2008
  %v2014 = vtanh.pop %v2009
  %v2015 = vtanh.pop %v2010
  %v2016 = vtanh.pop %v2011
  %v2017 = vpack.c.bf16 %v2013, %v2012
  %v2018 = vpack.c.bf16 %v2015, %v2014
  %v2019 = vpack.c.bf16 %v2016, %v2016
  %v2021 = vsel %vm524, %v2017, 0
  %v2024 = vsel %vm524, %v2018, 0
  %v2027 = vsel %vm524, %v2019, 0
  %2029 = vmatprep.subr.bf16.mxu0 0
  %2030 = vmatpush1.bf16.msra.mxu0 %v512
  %2031 = vmatprep.subr.bf16.mxu0 0
  %2032 = vmatpush1.bf16.msra.mxu0 %v513
  %2033 = vmatprep.subr.bf16.mxu0 0
  %2034 = vmatpush1.bf16.msra.mxu0 %v514
  %2035 = vmatprep.subr.bf16.mxu0 0
  %2036 = vmatpush1.bf16.msra.mxu0 %v515
  %2037 = vmatprep.subr.bf16.mxu0 0
  %2038 = vmatpush1.bf16.msra.mxu0 %v516
  %2039 = vmatprep.subr.bf16.mxu0 0
  %2040 = vmatpush1.bf16.msra.mxu0 %v517
  %2041 = vmatprep.subr.bf16.mxu0 0
  %2042 = vmatpush1.bf16.msra.mxu0 0
  %2043 = vmatprep.subr.bf16.mxu0 0
  %2044 = vmatpush1.bf16.msra.mxu0 0
  %2045 = vmatprep.subr.bf16.mxu0 0
  %2046 = vmatpush1.bf16.msra.mxu0 0
  %2047 = vmatprep.subr.bf16.mxu0 0
  %2048 = vmatpush1.bf16.msra.mxu0 0
  %2049 = vmatprep.subr.bf16.mxu0 0
  %2050 = vmatpush1.bf16.msra.mxu0 0
  %2051 = vmatprep.subr.bf16.mxu0 0
  %2052 = vmatpush1.bf16.msra.mxu0 0
  %2053 = vmatprep.subr.bf16.mxu0 0
  %2054 = vmatpush1.bf16.msra.mxu0 0
  %2055 = vmatprep.subr.bf16.mxu0 0
  %2056 = vmatpush1.bf16.msra.mxu0 0
  %2057 = vmatprep.subr.bf16.mxu0 0
  %2058 = vmatpush1.bf16.msra.mxu0 0
  %2059 = vmatprep.subr.bf16.mxu0 0
  %2060 = vmatpush1.bf16.msra.mxu0 0
  %2061 = vmatprep.mubr.bf16.mxu0 0
  %2062 = vmatmul.mubr.bf16.gmra.mrb[0].mxu0 %v2021
  %v2063 = vpop.f32.mrb[0].mxu0
  %v2064 = vadd.f32 %v486, %v2063
  %v2065 = vpop.f32.mrb[0].mxu0
  %v2066 = vpop.f32.mrb[0].mxu0
  %v2067 = vadd.f32 %v486, %v2066
  %v2068 = vpop.f32.mrb[0].mxu0
  %2069 = vmatprep.mubr.bf16.mxu0 0
  %2070 = vmatmul.mubr.bf16.gmra.mrb[0].mxu0 %v2024
  %v2071 = vpop.f32.mrb[0].mxu0
  %v2072 = vadd.f32 %v486, %v2071
  %v2073 = vpop.f32.mrb[0].mxu0
  %v2074 = vpop.f32.mrb[0].mxu0
  %v2075 = vadd.f32 %v486, %v2074
  %v2076 = vpop.f32.mrb[0].mxu0
  %2077 = vmatprep.mubr.bf16.mxu0 0
  %2078 = vmatmul.mubr.bf16.gmra.mrb[0].mxu0 %v2027
  %v2079 = vpop.f32.mrb[0].mxu0
  %v2080 = vadd.f32 %v486, %v2079
  %v2081 = vpop.f32.mrb[0].mxu0
  %v2082 = vpop.f32.mrb[0].mxu0
  %v2083 = vpop.f32.mrb[0].mxu0
  %2084 = vdwg.mxu0
  %v2085 = vtanh.pop %v2064
  %v2086 = vtanh.pop %v2067
  %v2087 = vtanh.pop %v2072
  %v2088 = vtanh.pop %v2075
  %v2089 = vtanh.pop %v2080
  %v2090 = vpack.c.bf16 %v2086, %v2085
  %v2091 = vpack.c.bf16 %v2088, %v2087
  %v2092 = vpack.c.bf16 %v2089, %v2089
  %v2094 = vsel %vm607, %v2092, 0
  %2096 = vmatprep.subr.bf16.mxu0 0
  %2097 = vmatpush1.bf16.msra.mxu0 %v2090
  %2098 = vmatprep.subr.bf16.mxu0 0
  %2099 = vmatpush1.bf16.msra.mxu0 %v2091
  %2100 = vmatprep.subr.bf16.mxu0 0
  %2101 = vmatpush1.bf16.msra.mxu0 %v2094
  %2102 = vmatprep.subr.bf16.mxu0 0
  %2103 = vmatpush1.bf16.msra.mxu0 0
  %2104 = vmatprep.subr.bf16.mxu0 0
  %2105 = vmatpush1.bf16.msra.mxu0 0
  %2106 = vmatprep.subr.bf16.mxu0 0
  %2107 = vmatpush1.bf16.msra.mxu0 0
  %2108 = vmatprep.subr.bf16.mxu0 0
  %2109 = vmatpush1.bf16.msra.mxu0 0
  %2110 = vmatprep.subr.bf16.mxu0 0
  %2111 = vmatpush1.bf16.msra.mxu0 0
  %2112 = vmatprep.subr.bf16.mxu0 0
  %2113 = vmatpush1.bf16.msra.mxu0 0
  %2114 = vmatprep.subr.bf16.mxu0 0
  %2115 = vmatpush1.bf16.msra.mxu0 0
  %2116 = vmatprep.subr.bf16.mxu0 0
  %2117 = vmatpush1.bf16.msra.mxu0 0
  %2118 = vmatprep.subr.bf16.mxu0 0
  %2119 = vmatpush1.bf16.msra.mxu0 0
  %2120 = vmatprep.subr.bf16.mxu0 0
  %2121 = vmatpush1.bf16.msra.mxu0 0
  %2122 = vmatprep.subr.bf16.mxu0 0
  %2123 = vmatpush1.bf16.msra.mxu0 0
  %2124 = vmatprep.subr.bf16.mxu0 0
  %2125 = vmatpush1.bf16.msra.mxu0 0
  %2126 = vmatprep.subr.bf16.mxu0 0
  %2127 = vmatpush1.bf16.msra.mxu0 0
  %2128 = vmatprep.mubr.bf16.mxu0 0
  %2129 = vmatmul.mubr.bf16.gmra.mrb[0].mxu0 %v605
  %v2130 = vpop.f32.mrb[0].mxu0
  %v2131 = vadd.f32 0.0, %v2130
  %v2132 = vpop.f32.mrb[0].mxu0
  %v2133 = vpop.f32.mrb[0].mxu0
  %v2134 = vadd.f32 0.0, %v2133
  %v2135 = vpop.f32.mrb[0].mxu0
  %2136 = vdwg.mxu0
  %v2137 = vpack.c.bf16 %v2134, %v2131
  %v2139 = vsel %vm524, %v2137, 0
  %2141 = vmatprep.subr.bf16.mxu0 0
  %2142 = vmatpush1.bf16.msra.mxu0 %v677
  %2143 = vmatprep.subr.bf16.mxu0 0
  %2144 = vmatpush1.bf16.msra.mxu0 %v678
  %2145 = vmatprep.subr.bf16.mxu0 0
  %2146 = vmatpush1.bf16.msra.mxu0 %v679
  %2147 = vmatprep.subr.bf16.mxu0 0
  %2148 = vmatpush1.bf16.msra.mxu0 %v680
  %2149 = vmatprep.subr.bf16.mxu0 0
  %2150 = vmatpush1.bf16.msra.mxu0 %v681
  %2151 = vmatprep.subr.bf16.mxu0 0
  %2152 = vmatpush1.bf16.msra.mxu0 %v682
  %2153 = vmatprep.subr.bf16.mxu0 0
  %2154 = vmatpush1.bf16.msra.mxu0 0
  %2155 = vmatprep.subr.bf16.mxu0 0
  %2156 = vmatpush1.bf16.msra.mxu0 0
  %2157 = vmatprep.subr.bf16.mxu0 0
  %2158 = vmatpush1.bf16.msra.mxu0 0
  %2159 = vmatprep.subr.bf16.mxu0 0
  %2160 = vmatpush1.bf16.msra.mxu0 0
  %2161 = vmatprep.subr.bf16.mxu0 0
  %2162 = vmatpush1.bf16.msra.mxu0 0
  %2163 = vmatprep.subr.bf16.mxu0 0
  %2164 = vmatpush1.bf16.msra.mxu0 0
  %2165 = vmatprep.subr.bf16.mxu0 0
  %2166 = vmatpush1.bf16.msra.mxu0 0
  %2167 = vmatprep.subr.bf16.mxu0 0
  %2168 = vmatpush1.bf16.msra.mxu0 0
  %2169 = vmatprep.subr.bf16.mxu0 0
  %2170 = vmatpush1.bf16.msra.mxu0 0
  %2171 = vmatprep.subr.bf16.mxu0 0
  %2172 = vmatpush1.bf16.msra.mxu0 0
  %2173 = vmatprep.mubr.bf16.mxu0 0
  %2174 = vmatmul.mubr.bf16.gmra.mrb[0].mxu0 %v2139
  %v2175 = vpop.f32.mrb[0].mxu0
  %v2176 = vadd.f32 0.0, %v2175
  %v2177 = vpop.f32.mrb[0].mxu0
  %v2178 = vpop.f32.mrb[0].mxu0
  %v2179 = vadd.f32 0.0, %v2178
  %v2180 = vpop.f32.mrb[0].mxu0
  %2181 = vdwg.mxu0
  %2182 = vmatprep.subr.bf16.mxu0 0
  %2183 = vmatpush1.bf16.msra.mxu0 %v771
  %2184 = vmatprep.subr.bf16.mxu0 0
  %2185 = vmatpush1.bf16.msra.mxu0 %v772
  %2186 = vmatprep.subr.bf16.mxu0 0
  %2187 = vmatpush1.bf16.msra.mxu0 %v773
  %2188 = vmatprep.subr.bf16.mxu0 0
  %2189 = vmatpush1.bf16.msra.mxu0 %v774
  %2190 = vmatprep.subr.bf16.mxu0 0
  %2191 = vmatpush1.bf16.msra.mxu0 %v775
  %2192 = vmatprep.subr.bf16.mxu0 0
  %2193 = vmatpush1.bf16.msra.mxu0 %v776
  %2194 = vmatprep.subr.bf16.mxu0 0
  %2195 = vmatpush1.bf16.msra.mxu0 %v777
  %2196 = vmatprep.subr.bf16.mxu0 0
  %2197 = vmatpush1.bf16.msra.mxu0 %v778
  %2198 = vmatprep.subr.bf16.mxu0 0
  %2199 = vmatpush1.bf16.msra.mxu0 0
  %2200 = vmatprep.subr.bf16.mxu0 0
  %2201 = vmatpush1.bf16.msra.mxu0 0
  %2202 = vmatprep.subr.bf16.mxu0 0
  %2203 = vmatpush1.bf16.msra.mxu0 0
  %2204 = vmatprep.subr.bf16.mxu0 0
  %2205 = vmatpush1.bf16.msra.mxu0 0
  %2206 = vmatprep.subr.bf16.mxu0 0
  %2207 = vmatpush1.bf16.msra.mxu0 0
  %2208 = vmatprep.subr.bf16.mxu0 0
  %2209 = vmatpush1.bf16.msra.mxu0 0
  %2210 = vmatprep.subr.bf16.mxu0 0
  %2211 = vmatpush1.bf16.msra.mxu0 0
  %2212 = vmatprep.subr.bf16.mxu0 0
  %2213 = vmatpush1.bf16.msra.mxu0 0
  %2214 = vmatprep.mubr.bf16.mxu0 0
  %2215 = vmatmul.mubr.bf16.gmra.mrb[0].mxu0 %v1756
  %v2216 = vpop.f32.mrb[0].mxu0
  %v2217 = vadd.f32 %v737, %v2216
  %v2218 = vpop.f32.mrb[0].mxu0
  %v2219 = vpop.f32.mrb[0].mxu0
  %v2220 = vadd.f32 %v737, %v2219
  %v2221 = vpop.f32.mrb[0].mxu0
  %2222 = vdwg.mxu0
  %v2223 = vadd.f32 %v2217, %v2176
  %v2224 = vadd.f32 %v2220, %v2179
  %v2225 = vxor.u32 %v2223, 2147483648
  %v2226 = vxor.u32 %v2224, 2147483648
  %v2227 = vmul.f32 %v2225, 1.442695
  %v2228 = vpow.pop %v2227
  %v2229 = vmul.f32 %v2226, 1.442695
  %v2230 = vpow.pop %v2229
  %v2231 = vadd.f32 %v2228, 1.0
  %v2232 = vadd.f32 %v2230, 1.0
  %v2233 = vrcp.pop %v2231
  %v2234 = vmul.f32 1.0, %v2233
  %v2235 = vrcp.pop %v2232
  %v2236 = vmul.f32 1.0, %v2235
  %2239 = vrot.lane.b32.xlu0 %v2176, 64
  %v2240 = vpop.permute.xlu0 %2239
  %2241 = vrot.lane.b32.xlu0 %v2179, 64
  %v2242 = vpop.permute.xlu0 %2241
  %v2245 = vmul.f32 %v2234, %v2240
  %v2246 = vmul.f32 %v2236, %v2242
  %2249 = vrot.lane.b32.xlu0 %v2245, 64
  %v2250 = vpop.permute.xlu0 %2249
  %2251 = vrot.lane.b32.xlu0 %v2246, 64
  %v2252 = vpop.permute.xlu0 %2251
  %v2255 = vadd.f32 %v2217, %v2250
  %v2256 = vadd.f32 %v2220, %v2252
  %v2257 = vtanh.pop %v2255
  %v2258 = vtanh.pop %v2256
  %v2259 = vsub.f32 1.0, %v2234
  %v2260 = vsub.f32 1.0, %v2236
  %2263 = vrot.lane.b32.xlu0 %v2257, 96
  %v2264 = vpop.permute.xlu0 %2263
  %2265 = vrot.lane.b32.xlu0 %v2258, 96
  %v2266 = vpop.permute.xlu0 %2265
  %v2269 = vmul.f32 %v2259, %v2264
  %v2270 = vmul.f32 %v2260, %v2266
  %v2271 = vmul.f32 %v2234, %v1602
  %v2272 = vmul.f32 %v2236, %v1603
  %v2273 = vadd.f32 %v2269, %v2271
  %v2274 = vadd.f32 %v2270, %v2272
  %v2275 = vpack.c.bf16 %v2274, %v2273
  %2277 = vrot.lane.b32.xlu0 %v2275, 96
  %v2278 = vpop.permute.xlu0 %2277
  %v2280 = vsel %vm320, %v2278, 0
  %2282 = vmatprep.subr.bf16.mxu0 0
  %2283 = vmatpush1.bf16.msra.mxu0 %v898
  %2284 = vmatprep.subr.bf16.mxu0 0
  %2285 = vmatpush1.bf16.msra.mxu0 %v899
  %2286 = vmatprep.subr.bf16.mxu0 0
  %2287 = vmatpush1.bf16.msra.mxu0 0
  %2288 = vmatprep.subr.bf16.mxu0 0
  %2289 = vmatpush1.bf16.msra.mxu0 0
  %2290 = vmatprep.subr.bf16.mxu0 0
  %2291 = vmatpush1.bf16.msra.mxu0 0
  %2292 = vmatprep.subr.bf16.mxu0 0
  %2293 = vmatpush1.bf16.msra.mxu0 0
  %2294 = vmatprep.subr.bf16.mxu0 0
  %2295 = vmatpush1.bf16.msra.mxu0 0
  %2296 = vmatprep.subr.bf16.mxu0 0
  %2297 = vmatpush1.bf16.msra.mxu0 0
  %2298 = vmatprep.subr.bf16.mxu0 0
  %2299 = vmatpush1.bf16.msra.mxu0 0
  %2300 = vmatprep.subr.bf16.mxu0 0
  %2301 = vmatpush1.bf16.msra.mxu0 0
  %2302 = vmatprep.subr.bf16.mxu0 0
  %2303 = vmatpush1.bf16.msra.mxu0 0
  %2304 = vmatprep.subr.bf16.mxu0 0
  %2305 = vmatpush1.bf16.msra.mxu0 0
  %2306 = vmatprep.subr.bf16.mxu0 0
  %2307 = vmatpush1.bf16.msra.mxu0 0
  %2308 = vmatprep.subr.bf16.mxu0 0
  %2309 = vmatpush1.bf16.msra.mxu0 0
  %2310 = vmatprep.subr.bf16.mxu0 0
  %2311 = vmatpush1.bf16.msra.mxu0 0
  %2312 = vmatprep.subr.bf16.mxu0 0
  %2313 = vmatpush1.bf16.msra.mxu0 0
  %2314 = vmatprep.mubr.bf16.mxu0 0
  %2315 = vmatmul.mubr.bf16.gmra.mrb[0].mxu0 %v2280
  %v2316 = vpop.f32.mrb[0].mxu0
  %v2317 = vadd.f32 %v885, %v2316
  %v2318 = vpop.f32.mrb[0].mxu0
  %v2319 = vpop.f32.mrb[0].mxu0
  %v2320 = vadd.f32 %v885, %v2319
  %v2321 = vpop.f32.mrb[0].mxu0
  %2322 = vdwg.mxu0
  %v2323 = vmax.f32 %v2317, 0.0
  %v2324 = vmax.f32 %v2320, 0.0
  %v2325 = vpack.c.bf16 %v2324, %v2323
  %v2327 = vsel %vm320, %v2325, 0
  %2329 = vmatprep.subr.bf16.mxu0 0
  %2330 = vmatpush1.bf16.msra.mxu0 %v963
  %2331 = vmatprep.subr.bf16.mxu0 0
  %2332 = vmatpush1.bf16.msra.mxu0 %v964
  %2333 = vmatprep.subr.bf16.mxu0 0
  %2334 = vmatpush1.bf16.msra.mxu0 0
  %2335 = vmatprep.subr.bf16.mxu0 0
  %2336 = vmatpush1.bf16.msra.mxu0 0
  %2337 = vmatprep.subr.bf16.mxu0 0
  %2338 = vmatpush1.bf16.msra.mxu0 0
  %2339 = vmatprep.subr.bf16.mxu0 0
  %2340 = vmatpush1.bf16.msra.mxu0 0
  %2341 = vmatprep.subr.bf16.mxu0 0
  %2342 = vmatpush1.bf16.msra.mxu0 0
  %2343 = vmatprep.subr.bf16.mxu0 0
  %2344 = vmatpush1.bf16.msra.mxu0 0
  %2345 = vmatprep.subr.bf16.mxu0 0
  %2346 = vmatpush1.bf16.msra.mxu0 0
  %2347 = vmatprep.subr.bf16.mxu0 0
  %2348 = vmatpush1.bf16.msra.mxu0 0
  %2349 = vmatprep.subr.bf16.mxu0 0
  %2350 = vmatpush1.bf16.msra.mxu0 0
  %2351 = vmatprep.subr.bf16.mxu0 0
  %2352 = vmatpush1.bf16.msra.mxu0 0
  %2353 = vmatprep.subr.bf16.mxu0 0
  %2354 = vmatpush1.bf16.msra.mxu0 0
  %2355 = vmatprep.subr.bf16.mxu0 0
  %2356 = vmatpush1.bf16.msra.mxu0 0
  %2357 = vmatprep.subr.bf16.mxu0 0
  %2358 = vmatpush1.bf16.msra.mxu0 0
  %2359 = vmatprep.subr.bf16.mxu0 0
  %2360 = vmatpush1.bf16.msra.mxu0 0
  %2361 = vmatprep.mubr.bf16.mxu0 0
  %2362 = vmatmul.mubr.bf16.gmra.mrb[0].mxu0 %v2327
  %v2363 = vpop.f32.mrb[0].mxu0
  %v2364 = vadd.f32 %v953, %v2363
  %v2365 = vpop.f32.mrb[0].mxu0
  %v2366 = vpop.f32.mrb[0].mxu0
  %v2367 = vadd.f32 %v953, %v2366
  %v2368 = vpop.f32.mrb[0].mxu0
  %2369 = vdwg.mxu0
  %v2370 = vmax.f32 %v2364, 0.0
  %v2371 = vmax.f32 %v2367, 0.0
  %v2372 = vpack.c.bf16 %v2371, %v2370
  %v2374 = vsel %vm320, %v2372, 0
  %2376 = vmatprep.subr.bf16.mxu0 0
  %2377 = vmatpush1.bf16.msra.mxu0 %v1028
  %2378 = vmatprep.subr.bf16.mxu0 0
  %2379 = vmatpush1.bf16.msra.mxu0 %v1029
  %2380 = vmatprep.subr.bf16.mxu0 0
  %2381 = vmatpush1.bf16.msra.mxu0 0
  %2382 = vmatprep.subr.bf16.mxu0 0
  %2383 = vmatpush1.bf16.msra.mxu0 0
  %2384 = vmatprep.subr.bf16.mxu0 0
  %2385 = vmatpush1.bf16.msra.mxu0 0
  %2386 = vmatprep.subr.bf16.mxu0 0
  %2387 = vmatpush1.bf16.msra.mxu0 0
  %2388 = vmatprep.subr.bf16.mxu0 0
  %2389 = vmatpush1.bf16.msra.mxu0 0
  %2390 = vmatprep.subr.bf16.mxu0 0
  %2391 = vmatpush1.bf16.msra.mxu0 0
  %2392 = vmatprep.subr.bf16.mxu0 0
  %2393 = vmatpush1.bf16.msra.mxu0 0
  %2394 = vmatprep.subr.bf16.mxu0 0
  %2395 = vmatpush1.bf16.msra.mxu0 0
  %2396 = vmatprep.subr.bf16.mxu0 0
  %2397 = vmatpush1.bf16.msra.mxu0 0
  %2398 = vmatprep.subr.bf16.mxu0 0
  %2399 = vmatpush1.bf16.msra.mxu0 0
  %2400 = vmatprep.subr.bf16.mxu0 0
  %2401 = vmatpush1.bf16.msra.mxu0 0
  %2402 = vmatprep.subr.bf16.mxu0 0
  %2403 = vmatpush1.bf16.msra.mxu0 0
  %2404 = vmatprep.subr.bf16.mxu0 0
  %2405 = vmatpush1.bf16.msra.mxu0 0
  %2406 = vmatprep.subr.bf16.mxu0 0
  %2407 = vmatpush1.bf16.msra.mxu0 0
  %2408 = vmatprep.mubr.bf16.mxu0 0
  %2409 = vmatmul.mubr.bf16.gmra.mrb[0].mxu0 %v2374
  %v2410 = vpop.f32.mrb[0].mxu0
  %v2411 = vadd.f32 %v1018, %v2410
  %v2412 = vpop.f32.mrb[0].mxu0
  %v2413 = vpop.f32.mrb[0].mxu0
  %v2414 = vadd.f32 %v1018, %v2413
  %v2415 = vpop.f32.mrb[0].mxu0
  %2416 = vdwg.mxu0
  %v2417 = vmax.f32 %v2411, 0.0
  %v2418 = vmax.f32 %v2414, 0.0
  %v2419 = vadd.f32 %v1754, %v2417
  %v2420 = vadd.f32 %v1755, %v2418
  %s2421 = scalar_lea.vmem %s18, 32
  %2422 = vst [vmem:[%s2421] sm:$0xff] %v2419
  %2423 = vst [vmem:[%s2421 + $0x8] sm:$0x3] %v2420
  %s2424 = scalar_lea.vmem %s0, 48
  %v2425 = vld [vmem:[%s2424] sm:$0xff]
  %v2426 = vld [vmem:[%s2424 + $0x8] sm:$0x3]
  %v2427 = vpack.c.bf16 %v2426, %v2425
  %v2428 = vsel %vm164, %v2278, 0
  %2430 = vmatprep.subr.bf16.mxu0 0
  %2431 = vmatpush1.bf16.msra.mxu0 %v2428
  %2432 = vmatprep.subr.bf16.mxu0 0
  %2433 = vmatpush1.bf16.msra.mxu0 0
  %2434 = vmatprep.subr.bf16.mxu0 0
  %2435 = vmatpush1.bf16.msra.mxu0 0
  %2436 = vmatprep.subr.bf16.mxu0 0
  %2437 = vmatpush1.bf16.msra.mxu0 0
  %2438 = vmatprep.subr.bf16.mxu0 0
  %2439 = vmatpush1.bf16.msra.mxu0 0
  %2440 = vmatprep.subr.bf16.mxu0 0
  %2441 = vmatpush1.bf16.msra.mxu0 0
  %2442 = vmatprep.subr.bf16.mxu0 0
  %2443 = vmatpush1.bf16.msra.mxu0 0
  %2444 = vmatprep.subr.bf16.mxu0 0
  %2445 = vmatpush1.bf16.msra.mxu0 0
  %2446 = vmatprep.subr.bf16.mxu0 0
  %2447 = vmatpush1.bf16.msra.mxu0 0
  %2448 = vmatprep.subr.bf16.mxu0 0
  %2449 = vmatpush1.bf16.msra.mxu0 0
  %2450 = vmatprep.subr.bf16.mxu0 0
  %2451 = vmatpush1.bf16.msra.mxu0 0
  %2452 = vmatprep.subr.bf16.mxu0 0
  %2453 = vmatpush1.bf16.msra.mxu0 0
  %2454 = vmatprep.subr.bf16.mxu0 0
  %2455 = vmatpush1.bf16.msra.mxu0 0
  %2456 = vmatprep.subr.bf16.mxu0 0
  %2457 = vmatpush1.bf16.msra.mxu0 0
  %2458 = vmatprep.subr.bf16.mxu0 0
  %2459 = vmatpush1.bf16.msra.mxu0 0
  %2460 = vmatprep.subr.bf16.mxu0 0
  %2461 = vmatpush1.bf16.msra.mxu0 0
  %2462 = vmatprep.mubr.bf16.mxu0 0
  %2463 = vmatmul.mubr.bf16.gmra.mrb[0].mxu0 %v156
  %v2464 = vpop.f32.mrb[0].mxu0
  %v2465 = vadd.f32 0.0, %v2464
  %v2466 = vpop.f32.mrb[0].mxu0
  %v2467 = vpop.f32.mrb[0].mxu0
  %v2468 = vadd.f32 0.0, %v2467
  %v2469 = vpop.f32.mrb[0].mxu0
  %2470 = vmatprep.mubr.bf16.mxu0 0
  %2471 = vmatmul.mubr.bf16.gmra.mrb[0].mxu0 %v159
  %v2472 = vpop.f32.mrb[0].mxu0
  %v2473 = vadd.f32 0.0, %v2472
  %v2474 = vpop.f32.mrb[0].mxu0
  %v2475 = vpop.f32.mrb[0].mxu0
  %v2476 = vadd.f32 0.0, %v2475
  %v2477 = vpop.f32.mrb[0].mxu0
  %2478 = vmatprep.mubr.bf16.mxu0 0
  %2479 = vmatmul.mubr.bf16.gmra.mrb[0].mxu0 %v162
  %v2480 = vpop.f32.mrb[0].mxu0
  %v2481 = vadd.f32 0.0, %v2480
  %v2482 = vpop.f32.mrb[0].mxu0
  %v2483 = vpop.f32.mrb[0].mxu0
  %v2484 = vpop.f32.mrb[0].mxu0
  %2485 = vdwg.mxu0
  %2486 = vmatprep.subr.bf16.mxu0 0
  %2487 = vmatpush1.bf16.msra.mxu0 %v2428
  %2488 = vmatprep.subr.bf16.mxu0 0
  %2489 = vmatpush1.bf16.msra.mxu0 0
  %2490 = vmatprep.subr.bf16.mxu0 0
  %2491 = vmatpush1.bf16.msra.mxu0 0
  %2492 = vmatprep.subr.bf16.mxu0 0
  %2493 = vmatpush1.bf16.msra.mxu0 0
  %2494 = vmatprep.subr.bf16.mxu0 0
  %2495 = vmatpush1.bf16.msra.mxu0 0
  %2496 = vmatprep.subr.bf16.mxu0 0
  %2497 = vmatpush1.bf16.msra.mxu0 0
  %2498 = vmatprep.subr.bf16.mxu0 0
  %2499 = vmatpush1.bf16.msra.mxu0 0
  %2500 = vmatprep.subr.bf16.mxu0 0
  %2501 = vmatpush1.bf16.msra.mxu0 0
  %2502 = vmatprep.subr.bf16.mxu0 0
  %2503 = vmatpush1.bf16.msra.mxu0 0
  %2504 = vmatprep.subr.bf16.mxu0 0
  %2505 = vmatpush1.bf16.msra.mxu0 0
  %2506 = vmatprep.subr.bf16.mxu0 0
  %2507 = vmatpush1.bf16.msra.mxu0 0
  %2508 = vmatprep.subr.bf16.mxu0 0
  %2509 = vmatpush1.bf16.msra.mxu0 0
  %2510 = vmatprep.subr.bf16.mxu0 0
  %2511 = vmatpush1.bf16.msra.mxu0 0
  %2512 = vmatprep.subr.bf16.mxu0 0
  %2513 = vmatpush1.bf16.msra.mxu0 0
  %2514 = vmatprep.subr.bf16.mxu0 0
  %2515 = vmatpush1.bf16.msra.mxu0 0
  %2516 = vmatprep.subr.bf16.mxu0 0
  %2517 = vmatpush1.bf16.msra.mxu0 0
  %2518 = vmatprep.mubr.bf16.mxu0 0
  %2519 = vmatmul.mubr.bf16.gmra.mrb[0].mxu0 %v238
  %v2520 = vpop.f32.mrb[0].mxu0
  %v2521 = vadd.f32 0.0, %v2520
  %v2522 = vpop.f32.mrb[0].mxu0
  %v2523 = vpop.f32.mrb[0].mxu0
  %v2524 = vadd.f32 0.0, %v2523
  %v2525 = vpop.f32.mrb[0].mxu0
  %2526 = vmatprep.mubr.bf16.mxu0 0
  %2527 = vmatmul.mubr.bf16.gmra.mrb[0].mxu0 %v241
  %v2528 = vpop.f32.mrb[0].mxu0
  %v2529 = vadd.f32 0.0, %v2528
  %v2530 = vpop.f32.mrb[0].mxu0
  %v2531 = vpop.f32.mrb[0].mxu0
  %v2532 = vadd.f32 0.0, %v2531
  %v2533 = vpop.f32.mrb[0].mxu0
  %2534 = vmatprep.mubr.bf16.mxu0 0
  %2535 = vmatmul.mubr.bf16.gmra.mrb[0].mxu0 %v244
  %v2536 = vpop.f32.mrb[0].mxu0
  %v2537 = vadd.f32 0.0, %v2536
  %v2538 = vpop.f32.mrb[0].mxu0
  %v2539 = vpop.f32.mrb[0].mxu0
  %v2540 = vpop.f32.mrb[0].mxu0
  %2541 = vdwg.mxu0
  %v2542 = vpack.c.bf16 %v2468, %v2465
  %v2543 = vpack.c.bf16 %v2476, %v2473
  %v2544 = vpack.c.bf16 %v2481, %v2481
  %v2545 = vpack.c.bf16 %v2524, %v2521
  %v2546 = vpack.c.bf16 %v2532, %v2529
  %v2547 = vpack.c.bf16 %v2537, %v2537
  %v2549 = vsel %vm320, %v2545, 0
  %v2552 = vsel %vm320, %v2546, 0
  %v2555 = vsel %vm320, %v2547, 0
  %2557 = vmatprep.subr.bf16.mxu0 0
  %2558 = vmatpush1.bf16.msra.mxu0 %v316
  %2559 = vmatprep.subr.bf16.mxu0 0
  %2560 = vmatpush1.bf16.msra.mxu0 %v317
  %2561 = vmatprep.subr.bf16.mxu0 0
  %2562 = vmatpush1.bf16.msra.mxu0 0
  %2563 = vmatprep.subr.bf16.mxu0 0
  %2564 = vmatpush1.bf16.msra.mxu0 0
  %2565 = vmatprep.subr.bf16.mxu0 0
  %2566 = vmatpush1.bf16.msra.mxu0 0
  %2567 = vmatprep.subr.bf16.mxu0 0
  %2568 = vmatpush1.bf16.msra.mxu0 0
  %2569 = vmatprep.subr.bf16.mxu0 0
  %2570 = vmatpush1.bf16.msra.mxu0 0
  %2571 = vmatprep.subr.bf16.mxu0 0
  %2572 = vmatpush1.bf16.msra.mxu0 0
  %2573 = vmatprep.subr.bf16.mxu0 0
  %2574 = vmatpush1.bf16.msra.mxu0 0
  %2575 = vmatprep.subr.bf16.mxu0 0
  %2576 = vmatpush1.bf16.msra.mxu0 0
  %2577 = vmatprep.subr.bf16.mxu0 0
  %2578 = vmatpush1.bf16.msra.mxu0 0
  %2579 = vmatprep.subr.bf16.mxu0 0
  %2580 = vmatpush1.bf16.msra.mxu0 0
  %2581 = vmatprep.subr.bf16.mxu0 0
  %2582 = vmatpush1.bf16.msra.mxu0 0
  %2583 = vmatprep.subr.bf16.mxu0 0
  %2584 = vmatpush1.bf16.msra.mxu0 0
  %2585 = vmatprep.subr.bf16.mxu0 0
  %2586 = vmatpush1.bf16.msra.mxu0 0
  %2587 = vmatprep.subr.bf16.mxu0 0
  %2588 = vmatpush1.bf16.msra.mxu0 0
  %2589 = vmatprep.mubr.bf16.mxu0 0
  %2590 = vmatmul.mubr.bf16.gmra.mrb[0].mxu0 %v2549
  %v2591 = vpop.f32.mrb[0].mxu0
  %v2592 = vadd.f32 0.0, %v2591
  %v2593 = vpop.f32.mrb[0].mxu0
  %v2594 = vpop.f32.mrb[0].mxu0
  %v2595 = vadd.f32 0.0, %v2594
  %v2596 = vpop.f32.mrb[0].mxu0
  %2597 = vmatprep.mubr.bf16.mxu0 0
  %2598 = vmatmul.mubr.bf16.gmra.mrb[0].mxu0 %v2552
  %v2599 = vpop.f32.mrb[0].mxu0
  %v2600 = vadd.f32 0.0, %v2599
  %v2601 = vpop.f32.mrb[0].mxu0
  %v2602 = vpop.f32.mrb[0].mxu0
  %v2603 = vadd.f32 0.0, %v2602
  %v2604 = vpop.f32.mrb[0].mxu0
  %2605 = vmatprep.mubr.bf16.mxu0 0
  %2606 = vmatmul.mubr.bf16.gmra.mrb[0].mxu0 %v2555
  %v2607 = vpop.f32.mrb[0].mxu0
  %v2608 = vadd.f32 0.0, %v2607
  %v2609 = vpop.f32.mrb[0].mxu0
  %v2610 = vpop.f32.mrb[0].mxu0
  %v2611 = vpop.f32.mrb[0].mxu0
  %2612 = vdwg.mxu0
  %v2614 = vsel %vm320, %v2542, 0
  %v2617 = vsel %vm320, %v2543, 0
  %v2620 = vsel %vm320, %v2544, 0
  %2622 = vmatprep.subr.bf16.mxu0 0
  %2623 = vmatpush1.bf16.msra.mxu0 %v394
  %2624 = vmatprep.subr.bf16.mxu0 0
  %2625 = vmatpush1.bf16.msra.mxu0 %v395
  %2626 = vmatprep.subr.bf16.mxu0 0
  %2627 = vmatpush1.bf16.msra.mxu0 0
  %2628 = vmatprep.subr.bf16.mxu0 0
  %2629 = vmatpush1.bf16.msra.mxu0 0
  %2630 = vmatprep.subr.bf16.mxu0 0
  %2631 = vmatpush1.bf16.msra.mxu0 0
  %2632 = vmatprep.subr.bf16.mxu0 0
  %2633 = vmatpush1.bf16.msra.mxu0 0
  %2634 = vmatprep.subr.bf16.mxu0 0
  %2635 = vmatpush1.bf16.msra.mxu0 0
  %2636 = vmatprep.subr.bf16.mxu0 0
  %2637 = vmatpush1.bf16.msra.mxu0 0
  %2638 = vmatprep.subr.bf16.mxu0 0
  %2639 = vmatpush1.bf16.msra.mxu0 0
  %2640 = vmatprep.subr.bf16.mxu0 0
  %2641 = vmatpush1.bf16.msra.mxu0 0
  %2642 = vmatprep.subr.bf16.mxu0 0
  %2643 = vmatpush1.bf16.msra.mxu0 0
  %2644 = vmatprep.subr.bf16.mxu0 0
  %2645 = vmatpush1.bf16.msra.mxu0 0
  %2646 = vmatprep.subr.bf16.mxu0 0
  %2647 = vmatpush1.bf16.msra.mxu0 0
  %2648 = vmatprep.subr.bf16.mxu0 0
  %2649 = vmatpush1.bf16.msra.mxu0 0
  %2650 = vmatprep.subr.bf16.mxu0 0
  %2651 = vmatpush1.bf16.msra.mxu0 0
  %2652 = vmatprep.subr.bf16.mxu0 0
  %2653 = vmatpush1.bf16.msra.mxu0 0
  %2654 = vmatprep.mubr.bf16.mxu0 0
  %2655 = vmatmul.mubr.bf16.gmra.mrb[0].mxu0 %v2614
  %v2656 = vpop.f32.mrb[0].mxu0
  %v2657 = vadd.f32 %v2592, %v2656
  %v2658 = vpop.f32.mrb[0].mxu0
  %v2659 = vpop.f32.mrb[0].mxu0
  %v2660 = vadd.f32 %v2595, %v2659
  %v2661 = vpop.f32.mrb[0].mxu0
  %2662 = vmatprep.mubr.bf16.mxu0 0
  %2663 = vmatmul.mubr.bf16.gmra.mrb[0].mxu0 %v2617
  %v2664 = vpop.f32.mrb[0].mxu0
  %v2665 = vadd.f32 %v2600, %v2664
  %v2666 = vpop.f32.mrb[0].mxu0
  %v2667 = vpop.f32.mrb[0].mxu0
  %v2668 = vadd.f32 %v2603, %v2667
  %v2669 = vpop.f32.mrb[0].mxu0
  %2670 = vmatprep.mubr.bf16.mxu0 0
  %2671 = vmatmul.mubr.bf16.gmra.mrb[0].mxu0 %v2620
  %v2672 = vpop.f32.mrb[0].mxu0
  %v2673 = vadd.f32 %v2608, %v2672
  %v2674 = vpop.f32.mrb[0].mxu0
  %v2675 = vpop.f32.mrb[0].mxu0
  %v2676 = vpop.f32.mrb[0].mxu0
  %2677 = vdwg.mxu0
  %v2678 = vadd.f32 %v2657, %v467
  %v2679 = vadd.f32 %v2660, %v467
  %v2680 = vadd.f32 %v2665, %v467
  %v2681 = vadd.f32 %v2668, %v467
  %v2682 = vadd.f32 %v2673, %v467
  %v2683 = vtanh.pop %v2678
  %v2684 = vtanh.pop %v2679
  %v2685 = vtanh.pop %v2680
  %v2686 = vtanh.pop %v2681
  %v2687 = vtanh.pop %v2682
  %v2688 = vpack.c.bf16 %v2684, %v2683
  %v2689 = vpack.c.bf16 %v2686, %v2685
  %v2690 = vpack.c.bf16 %v2687, %v2687
  %v2692 = vsel %vm524, %v2688, 0
  %v2695 = vsel %vm524, %v2689, 0
  %v2698 = vsel %vm524, %v2690, 0
  %2700 = vmatprep.subr.bf16.mxu0 0
  %2701 = vmatpush1.bf16.msra.mxu0 %v512
  %2702 = vmatprep.subr.bf16.mxu0 0
  %2703 = vmatpush1.bf16.msra.mxu0 %v513
  %2704 = vmatprep.subr.bf16.mxu0 0
  %2705 = vmatpush1.bf16.msra.mxu0 %v514
  %2706 = vmatprep.subr.bf16.mxu0 0
  %2707 = vmatpush1.bf16.msra.mxu0 %v515
  %2708 = vmatprep.subr.bf16.mxu0 0
  %2709 = vmatpush1.bf16.msra.mxu0 %v516
  %2710 = vmatprep.subr.bf16.mxu0 0
  %2711 = vmatpush1.bf16.msra.mxu0 %v517
  %2712 = vmatprep.subr.bf16.mxu0 0
  %2713 = vmatpush1.bf16.msra.mxu0 0
  %2714 = vmatprep.subr.bf16.mxu0 0
  %2715 = vmatpush1.bf16.msra.mxu0 0
  %2716 = vmatprep.subr.bf16.mxu0 0
  %2717 = vmatpush1.bf16.msra.mxu0 0
  %2718 = vmatprep.subr.bf16.mxu0 0
  %2719 = vmatpush1.bf16.msra.mxu0 0
  %2720 = vmatprep.subr.bf16.mxu0 0
  %2721 = vmatpush1.bf16.msra.mxu0 0
  %2722 = vmatprep.subr.bf16.mxu0 0
  %2723 = vmatpush1.bf16.msra.mxu0 0
  %2724 = vmatprep.subr.bf16.mxu0 0
  %2725 = vmatpush1.bf16.msra.mxu0 0
  %2726 = vmatprep.subr.bf16.mxu0 0
  %2727 = vmatpush1.bf16.msra.mxu0 0
  %2728 = vmatprep.subr.bf16.mxu0 0
  %2729 = vmatpush1.bf16.msra.mxu0 0
  %2730 = vmatprep.subr.bf16.mxu0 0
  %2731 = vmatpush1.bf16.msra.mxu0 0
  %2732 = vmatprep.mubr.bf16.mxu0 0
  %2733 = vmatmul.mubr.bf16.gmra.mrb[0].mxu0 %v2692
  %v2734 = vpop.f32.mrb[0].mxu0
  %v2735 = vadd.f32 %v486, %v2734
  %v2736 = vpop.f32.mrb[0].mxu0
  %v2737 = vpop.f32.mrb[0].mxu0
  %v2738 = vadd.f32 %v486, %v2737
  %v2739 = vpop.f32.mrb[0].mxu0
  %2740 = vmatprep.mubr.bf16.mxu0 0
  %2741 = vmatmul.mubr.bf16.gmra.mrb[0].mxu0 %v2695
  %v2742 = vpop.f32.mrb[0].mxu0
  %v2743 = vadd.f32 %v486, %v2742
  %v2744 = vpop.f32.mrb[0].mxu0
  %v2745 = vpop.f32.mrb[0].mxu0
  %v2746 = vadd.f32 %v486, %v2745
  %v2747 = vpop.f32.mrb[0].mxu0
  %2748 = vmatprep.mubr.bf16.mxu0 0
  %2749 = vmatmul.mubr.bf16.gmra.mrb[0].mxu0 %v2698
  %v2750 = vpop.f32.mrb[0].mxu0
  %v2751 = vadd.f32 %v486, %v2750
  %v2752 = vpop.f32.mrb[0].mxu0
  %v2753 = vpop.f32.mrb[0].mxu0
  %v2754 = vpop.f32.mrb[0].mxu0
  %2755 = vdwg.mxu0
  %v2756 = vtanh.pop %v2735
  %v2757 = vtanh.pop %v2738
  %v2758 = vtanh.pop %v2743
  %v2759 = vtanh.pop %v2746
  %v2760 = vtanh.pop %v2751
  %v2761 = vpack.c.bf16 %v2757, %v2756
  %v2762 = vpack.c.bf16 %v2759, %v2758
  %v2763 = vpack.c.bf16 %v2760, %v2760
  %v2765 = vsel %vm607, %v2763, 0
  %2767 = vmatprep.subr.bf16.mxu0 0
  %2768 = vmatpush1.bf16.msra.mxu0 %v2761
  %2769 = vmatprep.subr.bf16.mxu0 0
  %2770 = vmatpush1.bf16.msra.mxu0 %v2762
  %2771 = vmatprep.subr.bf16.mxu0 0
  %2772 = vmatpush1.bf16.msra.mxu0 %v2765
  %2773 = vmatprep.subr.bf16.mxu0 0
  %2774 = vmatpush1.bf16.msra.mxu0 0
  %2775 = vmatprep.subr.bf16.mxu0 0
  %2776 = vmatpush1.bf16.msra.mxu0 0
  %2777 = vmatprep.subr.bf16.mxu0 0
  %2778 = vmatpush1.bf16.msra.mxu0 0
  %2779 = vmatprep.subr.bf16.mxu0 0
  %2780 = vmatpush1.bf16.msra.mxu0 0
  %2781 = vmatprep.subr.bf16.mxu0 0
  %2782 = vmatpush1.bf16.msra.mxu0 0
  %2783 = vmatprep.subr.bf16.mxu0 0
  %2784 = vmatpush1.bf16.msra.mxu0 0
  %2785 = vmatprep.subr.bf16.mxu0 0
  %2786 = vmatpush1.bf16.msra.mxu0 0
  %2787 = vmatprep.subr.bf16.mxu0 0
  %2788 = vmatpush1.bf16.msra.mxu0 0
  %2789 = vmatprep.subr.bf16.mxu0 0
  %2790 = vmatpush1.bf16.msra.mxu0 0
  %2791 = vmatprep.subr.bf16.mxu0 0
  %2792 = vmatpush1.bf16.msra.mxu0 0
  %2793 = vmatprep.subr.bf16.mxu0 0
  %2794 = vmatpush1.bf16.msra.mxu0 0
  %2795 = vmatprep.subr.bf16.mxu0 0
  %2796 = vmatpush1.bf16.msra.mxu0 0
  %2797 = vmatprep.subr.bf16.mxu0 0
  %2798 = vmatpush1.bf16.msra.mxu0 0
  %2799 = vmatprep.mubr.bf16.mxu0 0
  %2800 = vmatmul.mubr.bf16.gmra.mrb[0].mxu0 %v605
  %v2801 = vpop.f32.mrb[0].mxu0
  %v2802 = vadd.f32 0.0, %v2801
  %v2803 = vpop.f32.mrb[0].mxu0
  %v2804 = vpop.f32.mrb[0].mxu0
  %v2805 = vadd.f32 0.0, %v2804
  %v2806 = vpop.f32.mrb[0].mxu0
  %2807 = vdwg.mxu0
  %v2808 = vpack.c.bf16 %v2805, %v2802
  %v2810 = vsel %vm524, %v2808, 0
  %2812 = vmatprep.subr.bf16.mxu0 0
  %2813 = vmatpush1.bf16.msra.mxu0 %v677
  %2814 = vmatprep.subr.bf16.mxu0 0
  %2815 = vmatpush1.bf16.msra.mxu0 %v678
  %2816 = vmatprep.subr.bf16.mxu0 0
  %2817 = vmatpush1.bf16.msra.mxu0 %v679
  %2818 = vmatprep.subr.bf16.mxu0 0
  %2819 = vmatpush1.bf16.msra.mxu0 %v680
  %2820 = vmatprep.subr.bf16.mxu0 0
  %2821 = vmatpush1.bf16.msra.mxu0 %v681
  %2822 = vmatprep.subr.bf16.mxu0 0
  %2823 = vmatpush1.bf16.msra.mxu0 %v682
  %2824 = vmatprep.subr.bf16.mxu0 0
  %2825 = vmatpush1.bf16.msra.mxu0 0
  %2826 = vmatprep.subr.bf16.mxu0 0
  %2827 = vmatpush1.bf16.msra.mxu0 0
  %2828 = vmatprep.subr.bf16.mxu0 0
  %2829 = vmatpush1.bf16.msra.mxu0 0
  %2830 = vmatprep.subr.bf16.mxu0 0
  %2831 = vmatpush1.bf16.msra.mxu0 0
  %2832 = vmatprep.subr.bf16.mxu0 0
  %2833 = vmatpush1.bf16.msra.mxu0 0
  %2834 = vmatprep.subr.bf16.mxu0 0
  %2835 = vmatpush1.bf16.msra.mxu0 0
  %2836 = vmatprep.subr.bf16.mxu0 0
  %2837 = vmatpush1.bf16.msra.mxu0 0
  %2838 = vmatprep.subr.bf16.mxu0 0
  %2839 = vmatpush1.bf16.msra.mxu0 0
  %2840 = vmatprep.subr.bf16.mxu0 0
  %2841 = vmatpush1.bf16.msra.mxu0 0
  %2842 = vmatprep.subr.bf16.mxu0 0
  %2843 = vmatpush1.bf16.msra.mxu0 0
  %2844 = vmatprep.mubr.bf16.mxu0 0
  %2845 = vmatmul.mubr.bf16.gmra.mrb[0].mxu0 %v2810
  %v2846 = vpop.f32.mrb[0].mxu0
  %v2847 = vadd.f32 0.0, %v2846
  %v2848 = vpop.f32.mrb[0].mxu0
  %v2849 = vpop.f32.mrb[0].mxu0
  %v2850 = vadd.f32 0.0, %v2849
  %v2851 = vpop.f32.mrb[0].mxu0
  %2852 = vdwg.mxu0
  %2853 = vmatprep.subr.bf16.mxu0 0
  %2854 = vmatpush1.bf16.msra.mxu0 %v771
  %2855 = vmatprep.subr.bf16.mxu0 0
  %2856 = vmatpush1.bf16.msra.mxu0 %v772
  %2857 = vmatprep.subr.bf16.mxu0 0
  %2858 = vmatpush1.bf16.msra.mxu0 %v773
  %2859 = vmatprep.subr.bf16.mxu0 0
  %2860 = vmatpush1.bf16.msra.mxu0 %v774
  %2861 = vmatprep.subr.bf16.mxu0 0
  %2862 = vmatpush1.bf16.msra.mxu0 %v775
  %2863 = vmatprep.subr.bf16.mxu0 0
  %2864 = vmatpush1.bf16.msra.mxu0 %v776
  %2865 = vmatprep.subr.bf16.mxu0 0
  %2866 = vmatpush1.bf16.msra.mxu0 %v777
  %2867 = vmatprep.subr.bf16.mxu0 0
  %2868 = vmatpush1.bf16.msra.mxu0 %v778
  %2869 = vmatprep.subr.bf16.mxu0 0
  %2870 = vmatpush1.bf16.msra.mxu0 0
  %2871 = vmatprep.subr.bf16.mxu0 0
  %2872 = vmatpush1.bf16.msra.mxu0 0
  %2873 = vmatprep.subr.bf16.mxu0 0
  %2874 = vmatpush1.bf16.msra.mxu0 0
  %2875 = vmatprep.subr.bf16.mxu0 0
  %2876 = vmatpush1.bf16.msra.mxu0 0
  %2877 = vmatprep.subr.bf16.mxu0 0
  %2878 = vmatpush1.bf16.msra.mxu0 0
  %2879 = vmatprep.subr.bf16.mxu0 0
  %2880 = vmatpush1.bf16.msra.mxu0 0
  %2881 = vmatprep.subr.bf16.mxu0 0
  %2882 = vmatpush1.bf16.msra.mxu0 0
  %2883 = vmatprep.subr.bf16.mxu0 0
  %2884 = vmatpush1.bf16.msra.mxu0 0
  %2885 = vmatprep.mubr.bf16.mxu0 0
  %2886 = vmatmul.mubr.bf16.gmra.mrb[0].mxu0 %v2427
  %v2887 = vpop.f32.mrb[0].mxu0
  %v2888 = vadd.f32 %v737, %v2887
  %v2889 = vpop.f32.mrb[0].mxu0
  %v2890 = vpop.f32.mrb[0].mxu0
  %v2891 = vadd.f32 %v737, %v2890
  %v2892 = vpop.f32.mrb[0].mxu0
  %2893 = vdwg.mxu0
  %v2894 = vadd.f32 %v2888, %v2847
  %v2895 = vadd.f32 %v2891, %v2850
  %v2896 = vxor.u32 %v2894, 2147483648
  %v2897 = vxor.u32 %v2895, 2147483648
  %v2898 = vmul.f32 %v2896, 1.442695
  %v2899 = vpow.pop %v2898
  %v2900 = vmul.f32 %v2897, 1.442695
  %v2901 = vpow.pop %v2900
  %v2902 = vadd.f32 %v2899, 1.0
  %v2903 = vadd.f32 %v2901, 1.0
  %v2904 = vrcp.pop %v2902
  %v2905 = vmul.f32 1.0, %v2904
  %v2906 = vrcp.pop %v2903
  %v2907 = vmul.f32 1.0, %v2906
  %2910 = vrot.lane.b32.xlu0 %v2847, 64
  %v2911 = vpop.permute.xlu0 %2910
  %2912 = vrot.lane.b32.xlu0 %v2850, 64
  %v2913 = vpop.permute.xlu0 %2912
  %v2916 = vmul.f32 %v2905, %v2911
  %v2917 = vmul.f32 %v2907, %v2913
  %2920 = vrot.lane.b32.xlu0 %v2916, 64
  %v2921 = vpop.permute.xlu0 %2920
  %2922 = vrot.lane.b32.xlu0 %v2917, 64
  %v2923 = vpop.permute.xlu0 %2922
  %v2926 = vadd.f32 %v2888, %v2921
  %v2927 = vadd.f32 %v2891, %v2923
  %v2928 = vtanh.pop %v2926
  %v2929 = vtanh.pop %v2927
  %v2930 = vsub.f32 1.0, %v2905
  %v2931 = vsub.f32 1.0, %v2907
  %2934 = vrot.lane.b32.xlu0 %v2928, 96
  %v2935 = vpop.permute.xlu0 %2934
  %2936 = vrot.lane.b32.xlu0 %v2929, 96
  %v2937 = vpop.permute.xlu0 %2936
  %v2940 = vmul.f32 %v2930, %v2935
  %v2941 = vmul.f32 %v2931, %v2937
  %v2942 = vmul.f32 %v2905, %v2273
  %v2943 = vmul.f32 %v2907, %v2274
  %v2944 = vadd.f32 %v2940, %v2942
  %v2945 = vadd.f32 %v2941, %v2943
  %v2946 = vpack.c.bf16 %v2945, %v2944
  %2948 = vrot.lane.b32.xlu0 %v2946, 96
  %v2949 = vpop.permute.xlu0 %2948
  %v2951 = vsel %vm320, %v2949, 0
  %2953 = vmatprep.subr.bf16.mxu0 0
  %2954 = vmatpush1.bf16.msra.mxu0 %v898
  %2955 = vmatprep.subr.bf16.mxu0 0
  %2956 = vmatpush1.bf16.msra.mxu0 %v899
  %2957 = vmatprep.subr.bf16.mxu0 0
  %2958 = vmatpush1.bf16.msra.mxu0 0
  %2959 = vmatprep.subr.bf16.mxu0 0
  %2960 = vmatpush1.bf16.msra.mxu0 0
  %2961 = vmatprep.subr.bf16.mxu0 0
  %2962 = vmatpush1.bf16.msra.mxu0 0
  %2963 = vmatprep.subr.bf16.mxu0 0
  %2964 = vmatpush1.bf16.msra.mxu0 0
  %2965 = vmatprep.subr.bf16.mxu0 0
  %2966 = vmatpush1.bf16.msra.mxu0 0
  %2967 = vmatprep.subr.bf16.mxu0 0
  %2968 = vmatpush1.bf16.msra.mxu0 0
  %2969 = vmatprep.subr.bf16.mxu0 0
  %2970 = vmatpush1.bf16.msra.mxu0 0
  %2971 = vmatprep.subr.bf16.mxu0 0
  %2972 = vmatpush1.bf16.msra.mxu0 0
  %2973 = vmatprep.subr.bf16.mxu0 0
  %2974 = vmatpush1.bf16.msra.mxu0 0
  %2975 = vmatprep.subr.bf16.mxu0 0
  %2976 = vmatpush1.bf16.msra.mxu0 0
  %2977 = vmatprep.subr.bf16.mxu0 0
  %2978 = vmatpush1.bf16.msra.mxu0 0
  %2979 = vmatprep.subr.bf16.mxu0 0
  %2980 = vmatpush1.bf16.msra.mxu0 0
  %2981 = vmatprep.subr.bf16.mxu0 0
  %2982 = vmatpush1.bf16.msra.mxu0 0
  %2983 = vmatprep.subr.bf16.mxu0 0
  %2984 = vmatpush1.bf16.msra.mxu0 0
  %2985 = vmatprep.mubr.bf16.mxu0 0
  %2986 = vmatmul.mubr.bf16.gmra.mrb[0].mxu0 %v2951
  %v2987 = vpop.f32.mrb[0].mxu0
  %v2988 = vadd.f32 %v885, %v2987
  %v2989 = vpop.f32.mrb[0].mxu0
  %v2990 = vpop.f32.mrb[0].mxu0
  %v2991 = vadd.f32 %v885, %v2990
  %v2992 = vpop.f32.mrb[0].mxu0
  %2993 = vdwg.mxu0
  %v2994 = vmax.f32 %v2988, 0.0
  %v2995 = vmax.f32 %v2991, 0.0
  %v2996 = vpack.c.bf16 %v2995, %v2994
  %v2998 = vsel %vm320, %v2996, 0
  %3000 = vmatprep.subr.bf16.mxu0 0
  %3001 = vmatpush1.bf16.msra.mxu0 %v963
  %3002 = vmatprep.subr.bf16.mxu0 0
  %3003 = vmatpush1.bf16.msra.mxu0 %v964
  %3004 = vmatprep.subr.bf16.mxu0 0
  %3005 = vmatpush1.bf16.msra.mxu0 0
  %3006 = vmatprep.subr.bf16.mxu0 0
  %3007 = vmatpush1.bf16.msra.mxu0 0
  %3008 = vmatprep.subr.bf16.mxu0 0
  %3009 = vmatpush1.bf16.msra.mxu0 0
  %3010 = vmatprep.subr.bf16.mxu0 0
  %3011 = vmatpush1.bf16.msra.mxu0 0
  %3012 = vmatprep.subr.bf16.mxu0 0
  %3013 = vmatpush1.bf16.msra.mxu0 0
  %3014 = vmatprep.subr.bf16.mxu0 0
  %3015 = vmatpush1.bf16.msra.mxu0 0
  %3016 = vmatprep.subr.bf16.mxu0 0
  %3017 = vmatpush1.bf16.msra.mxu0 0
  %3018 = vmatprep.subr.bf16.mxu0 0
  %3019 = vmatpush1.bf16.msra.mxu0 0
  %3020 = vmatprep.subr.bf16.mxu0 0
  %3021 = vmatpush1.bf16.msra.mxu0 0
  %3022 = vmatprep.subr.bf16.mxu0 0
  %3023 = vmatpush1.bf16.msra.mxu0 0
  %3024 = vmatprep.subr.bf16.mxu0 0
  %3025 = vmatpush1.bf16.msra.mxu0 0
  %3026 = vmatprep.subr.bf16.mxu0 0
  %3027 = vmatpush1.bf16.msra.mxu0 0
  %3028 = vmatprep.subr.bf16.mxu0 0
  %3029 = vmatpush1.bf16.msra.mxu0 0
  %3030 = vmatprep.subr.bf16.mxu0 0
  %3031 = vmatpush1.bf16.msra.mxu0 0
  %3032 = vmatprep.mubr.bf16.mxu0 0
  %3033 = vmatmul.mubr.bf16.gmra.mrb[0].mxu0 %v2998
  %v3034 = vpop.f32.mrb[0].mxu0
  %v3035 = vadd.f32 %v953, %v3034
  %v3036 = vpop.f32.mrb[0].mxu0
  %v3037 = vpop.f32.mrb[0].mxu0
  %v3038 = vadd.f32 %v953, %v3037
  %v3039 = vpop.f32.mrb[0].mxu0
  %3040 = vdwg.mxu0
  %v3041 = vmax.f32 %v3035, 0.0
  %v3042 = vmax.f32 %v3038, 0.0
  %v3043 = vpack.c.bf16 %v3042, %v3041
  %v3045 = vsel %vm320, %v3043, 0
  %3047 = vmatprep.subr.bf16.mxu0 0
  %3048 = vmatpush1.bf16.msra.mxu0 %v1028
  %3049 = vmatprep.subr.bf16.mxu0 0
  %3050 = vmatpush1.bf16.msra.mxu0 %v1029
  %3051 = vmatprep.subr.bf16.mxu0 0
  %3052 = vmatpush1.bf16.msra.mxu0 0
  %3053 = vmatprep.subr.bf16.mxu0 0
  %3054 = vmatpush1.bf16.msra.mxu0 0
  %3055 = vmatprep.subr.bf16.mxu0 0
  %3056 = vmatpush1.bf16.msra.mxu0 0
  %3057 = vmatprep.subr.bf16.mxu0 0
  %3058 = vmatpush1.bf16.msra.mxu0 0
  %3059 = vmatprep.subr.bf16.mxu0 0
  %3060 = vmatpush1.bf16.msra.mxu0 0
  %3061 = vmatprep.subr.bf16.mxu0 0
  %3062 = vmatpush1.bf16.msra.mxu0 0
  %3063 = vmatprep.subr.bf16.mxu0 0
  %3064 = vmatpush1.bf16.msra.mxu0 0
  %3065 = vmatprep.subr.bf16.mxu0 0
  %3066 = vmatpush1.bf16.msra.mxu0 0
  %3067 = vmatprep.subr.bf16.mxu0 0
  %3068 = vmatpush1.bf16.msra.mxu0 0
  %3069 = vmatprep.subr.bf16.mxu0 0
  %3070 = vmatpush1.bf16.msra.mxu0 0
  %3071 = vmatprep.subr.bf16.mxu0 0
  %3072 = vmatpush1.bf16.msra.mxu0 0
  %3073 = vmatprep.subr.bf16.mxu0 0
  %3074 = vmatpush1.bf16.msra.mxu0 0
  %3075 = vmatprep.subr.bf16.mxu0 0
  %3076 = vmatpush1.bf16.msra.mxu0 0
  %3077 = vmatprep.subr.bf16.mxu0 0
  %3078 = vmatpush1.bf16.msra.mxu0 0
  %3079 = vmatprep.mubr.bf16.mxu0 0
  %3080 = vmatmul.mubr.bf16.gmra.mrb[0].mxu0 %v3045
  %v3081 = vpop.f32.mrb[0].mxu0
  %v3082 = vadd.f32 %v1018, %v3081
  %v3083 = vpop.f32.mrb[0].mxu0
  %v3084 = vpop.f32.mrb[0].mxu0
  %v3085 = vadd.f32 %v1018, %v3084
  %v3086 = vpop.f32.mrb[0].mxu0
  %3087 = vdwg.mxu0
  %v3088 = vmax.f32 %v3082, 0.0
  %v3089 = vmax.f32 %v3085, 0.0
  %v3090 = vadd.f32 %v2425, %v3088
  %v3091 = vadd.f32 %v2426, %v3089
  %s3092 = scalar_lea.vmem %s18, 48
  %3093 = vst [vmem:[%s3092] sm:$0xff] %v3090
  %3094 = vst [vmem:[%s3092 + $0x8] sm:$0x3] %v3091
  %v3095 = vpack.c.bf16 %v3091, %v3090
  %v3096 = vsel %vm164, %v2949, 0
  %3098 = vmatprep.subr.bf16.mxu0 0
  %3099 = vmatpush1.bf16.msra.mxu0 %v3096
  %3100 = vmatprep.subr.bf16.mxu0 0
  %3101 = vmatpush1.bf16.msra.mxu0 0
  %3102 = vmatprep.subr.bf16.mxu0 0
  %3103 = vmatpush1.bf16.msra.mxu0 0
  %3104 = vmatprep.subr.bf16.mxu0 0
  %3105 = vmatpush1.bf16.msra.mxu0 0
  %3106 = vmatprep.subr.bf16.mxu0 0
  %3107 = vmatpush1.bf16.msra.mxu0 0
  %3108 = vmatprep.subr.bf16.mxu0 0
  %3109 = vmatpush1.bf16.msra.mxu0 0
  %3110 = vmatprep.subr.bf16.mxu0 0
  %3111 = vmatpush1.bf16.msra.mxu0 0
  %3112 = vmatprep.subr.bf16.mxu0 0
  %3113 = vmatpush1.bf16.msra.mxu0 0
  %3114 = vmatprep.subr.bf16.mxu0 0
  %3115 = vmatpush1.bf16.msra.mxu0 0
  %3116 = vmatprep.subr.bf16.mxu0 0
  %3117 = vmatpush1.bf16.msra.mxu0 0
  %3118 = vmatprep.subr.bf16.mxu0 0
  %3119 = vmatpush1.bf16.msra.mxu0 0
  %3120 = vmatprep.subr.bf16.mxu0 0
  %3121 = vmatpush1.bf16.msra.mxu0 0
  %3122 = vmatprep.subr.bf16.mxu0 0
  %3123 = vmatpush1.bf16.msra.mxu0 0
  %3124 = vmatprep.subr.bf16.mxu0 0
  %3125 = vmatpush1.bf16.msra.mxu0 0
  %3126 = vmatprep.subr.bf16.mxu0 0
  %3127 = vmatpush1.bf16.msra.mxu0 0
  %3128 = vmatprep.subr.bf16.mxu0 0
  %3129 = vmatpush1.bf16.msra.mxu0 0
  %3130 = vmatprep.mubr.bf16.mxu0 0
  %3131 = vmatmul.mubr.bf16.gmra.mrb[0].mxu0 %v156
  %v3132 = vpop.f32.mrb[0].mxu0
  %v3133 = vadd.f32 0.0, %v3132
  %v3134 = vpop.f32.mrb[0].mxu0
  %v3135 = vpop.f32.mrb[0].mxu0
  %v3136 = vadd.f32 0.0, %v3135
  %v3137 = vpop.f32.mrb[0].mxu0
  %3138 = vmatprep.mubr.bf16.mxu0 0
  %3139 = vmatmul.mubr.bf16.gmra.mrb[0].mxu0 %v159
  %v3140 = vpop.f32.mrb[0].mxu0
  %v3141 = vadd.f32 0.0, %v3140
  %v3142 = vpop.f32.mrb[0].mxu0
  %v3143 = vpop.f32.mrb[0].mxu0
  %v3144 = vadd.f32 0.0, %v3143
  %v3145 = vpop.f32.mrb[0].mxu0
  %3146 = vmatprep.mubr.bf16.mxu0 0
  %3147 = vmatmul.mubr.bf16.gmra.mrb[0].mxu0 %v162
  %v3148 = vpop.f32.mrb[0].mxu0
  %v3149 = vadd.f32 0.0, %v3148
  %v3150 = vpop.f32.mrb[0].mxu0
  %v3151 = vpop.f32.mrb[0].mxu0
  %v3152 = vpop.f32.mrb[0].mxu0
  %3153 = vdwg.mxu0
  %3154 = vmatprep.subr.bf16.mxu0 0
  %3155 = vmatpush1.bf16.msra.mxu0 %v3096
  %3156 = vmatprep.subr.bf16.mxu0 0
  %3157 = vmatpush1.bf16.msra.mxu0 0
  %3158 = vmatprep.subr.bf16.mxu0 0
  %3159 = vmatpush1.bf16.msra.mxu0 0
  %3160 = vmatprep.subr.bf16.mxu0 0
  %3161 = vmatpush1.bf16.msra.mxu0 0
  %3162 = vmatprep.subr.bf16.mxu0 0
  %3163 = vmatpush1.bf16.msra.mxu0 0
  %3164 = vmatprep.subr.bf16.mxu0 0
  %3165 = vmatpush1.bf16.msra.mxu0 0
  %3166 = vmatprep.subr.bf16.mxu0 0
  %3167 = vmatpush1.bf16.msra.mxu0 0
  %3168 = vmatprep.subr.bf16.mxu0 0
  %3169 = vmatpush1.bf16.msra.mxu0 0
  %3170 = vmatprep.subr.bf16.mxu0 0
  %3171 = vmatpush1.bf16.msra.mxu0 0
  %3172 = vmatprep.subr.bf16.mxu0 0
  %3173 = vmatpush1.bf16.msra.mxu0 0
  %3174 = vmatprep.subr.bf16.mxu0 0
  %3175 = vmatpush1.bf16.msra.mxu0 0
  %3176 = vmatprep.subr.bf16.mxu0 0
  %3177 = vmatpush1.bf16.msra.mxu0 0
  %3178 = vmatprep.subr.bf16.mxu0 0
  %3179 = vmatpush1.bf16.msra.mxu0 0
  %3180 = vmatprep.subr.bf16.mxu0 0
  %3181 = vmatpush1.bf16.msra.mxu0 0
  %3182 = vmatprep.subr.bf16.mxu0 0
  %3183 = vmatpush1.bf16.msra.mxu0 0
  %3184 = vmatprep.subr.bf16.mxu0 0
  %3185 = vmatpush1.bf16.msra.mxu0 0
  %3186 = vmatprep.mubr.bf16.mxu0 0
  %3187 = vmatmul.mubr.bf16.gmra.mrb[0].mxu0 %v238
  %v3188 = vpop.f32.mrb[0].mxu0
  %v3189 = vadd.f32 0.0, %v3188
  %v3190 = vpop.f32.mrb[0].mxu0
  %v3191 = vpop.f32.mrb[0].mxu0
  %v3192 = vadd.f32 0.0, %v3191
  %v3193 = vpop.f32.mrb[0].mxu0
  %3194 = vmatprep.mubr.bf16.mxu0 0
  %3195 = vmatmul.mubr.bf16.gmra.mrb[0].mxu0 %v241
  %v3196 = vpop.f32.mrb[0].mxu0
  %v3197 = vadd.f32 0.0, %v3196
  %v3198 = vpop.f32.mrb[0].mxu0
  %v3199 = vpop.f32.mrb[0].mxu0
  %v3200 = vadd.f32 0.0, %v3199
  %v3201 = vpop.f32.mrb[0].mxu0
  %3202 = vmatprep.mubr.bf16.mxu0 0
  %3203 = vmatmul.mubr.bf16.gmra.mrb[0].mxu0 %v244
  %v3204 = vpop.f32.mrb[0].mxu0
  %v3205 = vadd.f32 0.0, %v3204
  %v3206 = vpop.f32.mrb[0].mxu0
  %v3207 = vpop.f32.mrb[0].mxu0
  %v3208 = vpop.f32.mrb[0].mxu0
  %3209 = vdwg.mxu0
  %v3210 = vpack.c.bf16 %v3136, %v3133
  %v3211 = vpack.c.bf16 %v3144, %v3141
  %v3212 = vpack.c.bf16 %v3149, %v3149
  %v3213 = vpack.c.bf16 %v3192, %v3189
  %v3214 = vpack.c.bf16 %v3200, %v3197
  %v3215 = vpack.c.bf16 %v3205, %v3205
  %v3217 = vsel %vm320, %v3213, 0
  %v3220 = vsel %vm320, %v3214, 0
  %v3223 = vsel %vm320, %v3215, 0
  %3225 = vmatprep.subr.bf16.mxu0 0
  %3226 = vmatpush1.bf16.msra.mxu0 %v316
  %3227 = vmatprep.subr.bf16.mxu0 0
  %3228 = vmatpush1.bf16.msra.mxu0 %v317
  %3229 = vmatprep.subr.bf16.mxu0 0
  %3230 = vmatpush1.bf16.msra.mxu0 0
  %3231 = vmatprep.subr.bf16.mxu0 0
  %3232 = vmatpush1.bf16.msra.mxu0 0
  %3233 = vmatprep.subr.bf16.mxu0 0
  %3234 = vmatpush1.bf16.msra.mxu0 0
  %3235 = vmatprep.subr.bf16.mxu0 0
  %3236 = vmatpush1.bf16.msra.mxu0 0
  %3237 = vmatprep.subr.bf16.mxu0 0
  %3238 = vmatpush1.bf16.msra.mxu0 0
  %3239 = vmatprep.subr.bf16.mxu0 0
  %3240 = vmatpush1.bf16.msra.mxu0 0
  %3241 = vmatprep.subr.bf16.mxu0 0
  %3242 = vmatpush1.bf16.msra.mxu0 0
  %3243 = vmatprep.subr.bf16.mxu0 0
  %3244 = vmatpush1.bf16.msra.mxu0 0
  %3245 = vmatprep.subr.bf16.mxu0 0
  %3246 = vmatpush1.bf16.msra.mxu0 0
  %3247 = vmatprep.subr.bf16.mxu0 0
  %3248 = vmatpush1.bf16.msra.mxu0 0
  %3249 = vmatprep.subr.bf16.mxu0 0
  %3250 = vmatpush1.bf16.msra.mxu0 0
  %3251 = vmatprep.subr.bf16.mxu0 0
  %3252 = vmatpush1.bf16.msra.mxu0 0
  %3253 = vmatprep.subr.bf16.mxu0 0
  %3254 = vmatpush1.bf16.msra.mxu0 0
  %3255 = vmatprep.subr.bf16.mxu0 0
  %3256 = vmatpush1.bf16.msra.mxu0 0
  %3257 = vmatprep.mubr.bf16.mxu0 0
  %3258 = vmatmul.mubr.bf16.gmra.mrb[0].mxu0 %v3217
  %v3259 = vpop.f32.mrb[0].mxu0
  %v3260 = vadd.f32 0.0, %v3259
  %v3261 = vpop.f32.mrb[0].mxu0
  %v3262 = vpop.f32.mrb[0].mxu0
  %v3263 = vadd.f32 0.0, %v3262
  %v3264 = vpop.f32.mrb[0].mxu0
  %3265 = vmatprep.mubr.bf16.mxu0 0
  %3266 = vmatmul.mubr.bf16.gmra.mrb[0].mxu0 %v3220
  %v3267 = vpop.f32.mrb[0].mxu0
  %v3268 = vadd.f32 0.0, %v3267
  %v3269 = vpop.f32.mrb[0].mxu0
  %v3270 = vpop.f32.mrb[0].mxu0
  %v3271 = vadd.f32 0.0, %v3270
  %v3272 = vpop.f32.mrb[0].mxu0
  %3273 = vmatprep.mubr.bf16.mxu0 0
  %3274 = vmatmul.mubr.bf16.gmra.mrb[0].mxu0 %v3223
  %v3275 = vpop.f32.mrb[0].mxu0
  %v3276 = vadd.f32 0.0, %v3275
  %v3277 = vpop.f32.mrb[0].mxu0
  %v3278 = vpop.f32.mrb[0].mxu0
  %v3279 = vpop.f32.mrb[0].mxu0
  %3280 = vdwg.mxu0
  %v3282 = vsel %vm320, %v3210, 0
  %v3285 = vsel %vm320, %v3211, 0
  %v3288 = vsel %vm320, %v3212, 0
  %3290 = vmatprep.subr.bf16.mxu0 0
  %3291 = vmatpush1.bf16.msra.mxu0 %v394
  %3292 = vmatprep.subr.bf16.mxu0 0
  %3293 = vmatpush1.bf16.msra.mxu0 %v395
  %3294 = vmatprep.subr.bf16.mxu0 0
  %3295 = vmatpush1.bf16.msra.mxu0 0
  %3296 = vmatprep.subr.bf16.mxu0 0
  %3297 = vmatpush1.bf16.msra.mxu0 0
  %3298 = vmatprep.subr.bf16.mxu0 0
  %3299 = vmatpush1.bf16.msra.mxu0 0
  %3300 = vmatprep.subr.bf16.mxu0 0
  %3301 = vmatpush1.bf16.msra.mxu0 0
  %3302 = vmatprep.subr.bf16.mxu0 0
  %3303 = vmatpush1.bf16.msra.mxu0 0
  %3304 = vmatprep.subr.bf16.mxu0 0
  %3305 = vmatpush1.bf16.msra.mxu0 0
  %3306 = vmatprep.subr.bf16.mxu0 0
  %3307 = vmatpush1.bf16.msra.mxu0 0
  %3308 = vmatprep.subr.bf16.mxu0 0
  %3309 = vmatpush1.bf16.msra.mxu0 0
  %3310 = vmatprep.subr.bf16.mxu0 0
  %3311 = vmatpush1.bf16.msra.mxu0 0
  %3312 = vmatprep.subr.bf16.mxu0 0
  %3313 = vmatpush1.bf16.msra.mxu0 0
  %3314 = vmatprep.subr.bf16.mxu0 0
  %3315 = vmatpush1.bf16.msra.mxu0 0
  %3316 = vmatprep.subr.bf16.mxu0 0
  %3317 = vmatpush1.bf16.msra.mxu0 0
  %3318 = vmatprep.subr.bf16.mxu0 0
  %3319 = vmatpush1.bf16.msra.mxu0 0
  %3320 = vmatprep.subr.bf16.mxu0 0
  %3321 = vmatpush1.bf16.msra.mxu0 0
  %3322 = vmatprep.mubr.bf16.mxu0 0
  %3323 = vmatmul.mubr.bf16.gmra.mrb[0].mxu0 %v3282
  %v3324 = vpop.f32.mrb[0].mxu0
  %v3325 = vadd.f32 %v3260, %v3324
  %v3326 = vpop.f32.mrb[0].mxu0
  %v3327 = vpop.f32.mrb[0].mxu0
  %v3328 = vadd.f32 %v3263, %v3327
  %v3329 = vpop.f32.mrb[0].mxu0
  %3330 = vmatprep.mubr.bf16.mxu0 0
  %3331 = vmatmul.mubr.bf16.gmra.mrb[0].mxu0 %v3285
  %v3332 = vpop.f32.mrb[0].mxu0
  %v3333 = vadd.f32 %v3268, %v3332
  %v3334 = vpop.f32.mrb[0].mxu0
  %v3335 = vpop.f32.mrb[0].mxu0
  %v3336 = vadd.f32 %v3271, %v3335
  %v3337 = vpop.f32.mrb[0].mxu0
  %3338 = vmatprep.mubr.bf16.mxu0 0
  %3339 = vmatmul.mubr.bf16.gmra.mrb[0].mxu0 %v3288
  %v3340 = vpop.f32.mrb[0].mxu0
  %v3341 = vadd.f32 %v3276, %v3340
  %v3342 = vpop.f32.mrb[0].mxu0
  %v3343 = vpop.f32.mrb[0].mxu0
  %v3344 = vpop.f32.mrb[0].mxu0
  %3345 = vdwg.mxu0
  %v3346 = vadd.f32 %v3325, %v467
  %v3347 = vadd.f32 %v3328, %v467
  %v3348 = vadd.f32 %v3333, %v467
  %v3349 = vadd.f32 %v3336, %v467
  %v3350 = vadd.f32 %v3341, %v467
  %v3351 = vtanh.pop %v3346
  %v3352 = vtanh.pop %v3347
  %v3353 = vtanh.pop %v3348
  %v3354 = vtanh.pop %v3349
  %v3355 = vtanh.pop %v3350
  %v3356 = vpack.c.bf16 %v3352, %v3351
  %v3357 = vpack.c.bf16 %v3354, %v3353
  %v3358 = vpack.c.bf16 %v3355, %v3355
  %v3360 = vsel %vm524, %v3356, 0
  %v3363 = vsel %vm524, %v3357, 0
  %v3366 = vsel %vm524, %v3358, 0
  %3368 = vmatprep.subr.bf16.mxu0 0
  %3369 = vmatpush1.bf16.msra.mxu0 %v512
  %3370 = vmatprep.subr.bf16.mxu0 0
  %3371 = vmatpush1.bf16.msra.mxu0 %v513
  %3372 = vmatprep.subr.bf16.mxu0 0
  %3373 = vmatpush1.bf16.msra.mxu0 %v514
  %3374 = vmatprep.subr.bf16.mxu0 0
  %3375 = vmatpush1.bf16.msra.mxu0 %v515
  %3376 = vmatprep.subr.bf16.mxu0 0
  %3377 = vmatpush1.bf16.msra.mxu0 %v516
  %3378 = vmatprep.subr.bf16.mxu0 0
  %3379 = vmatpush1.bf16.msra.mxu0 %v517
  %3380 = vmatprep.subr.bf16.mxu0 0
  %3381 = vmatpush1.bf16.msra.mxu0 0
  %3382 = vmatprep.subr.bf16.mxu0 0
  %3383 = vmatpush1.bf16.msra.mxu0 0
  %3384 = vmatprep.subr.bf16.mxu0 0
  %3385 = vmatpush1.bf16.msra.mxu0 0
  %3386 = vmatprep.subr.bf16.mxu0 0
  %3387 = vmatpush1.bf16.msra.mxu0 0
  %3388 = vmatprep.subr.bf16.mxu0 0
  %3389 = vmatpush1.bf16.msra.mxu0 0
  %3390 = vmatprep.subr.bf16.mxu0 0
  %3391 = vmatpush1.bf16.msra.mxu0 0
  %3392 = vmatprep.subr.bf16.mxu0 0
  %3393 = vmatpush1.bf16.msra.mxu0 0
  %3394 = vmatprep.subr.bf16.mxu0 0
  %3395 = vmatpush1.bf16.msra.mxu0 0
  %3396 = vmatprep.subr.bf16.mxu0 0
  %3397 = vmatpush1.bf16.msra.mxu0 0
  %3398 = vmatprep.subr.bf16.mxu0 0
  %3399 = vmatpush1.bf16.msra.mxu0 0
  %3400 = vmatprep.mubr.bf16.mxu0 0
  %3401 = vmatmul.mubr.bf16.gmra.mrb[0].mxu0 %v3360
  %v3402 = vpop.f32.mrb[0].mxu0
  %v3403 = vadd.f32 %v486, %v3402
  %v3404 = vpop.f32.mrb[0].mxu0
  %v3405 = vpop.f32.mrb[0].mxu0
  %v3406 = vadd.f32 %v486, %v3405
  %v3407 = vpop.f32.mrb[0].mxu0
  %3408 = vmatprep.mubr.bf16.mxu0 0
  %3409 = vmatmul.mubr.bf16.gmra.mrb[0].mxu0 %v3363
  %v3410 = vpop.f32.mrb[0].mxu0
  %v3411 = vadd.f32 %v486, %v3410
  %v3412 = vpop.f32.mrb[0].mxu0
  %v3413 = vpop.f32.mrb[0].mxu0
  %v3414 = vadd.f32 %v486, %v3413
  %v3415 = vpop.f32.mrb[0].mxu0
  %3416 = vmatprep.mubr.bf16.mxu0 0
  %3417 = vmatmul.mubr.bf16.gmra.mrb[0].mxu0 %v3366
  %v3418 = vpop.f32.mrb[0].mxu0
  %v3419 = vadd.f32 %v486, %v3418
  %v3420 = vpop.f32.mrb[0].mxu0
  %v3421 = vpop.f32.mrb[0].mxu0
  %v3422 = vpop.f32.mrb[0].mxu0
  %3423 = vdwg.mxu0
  %v3424 = vtanh.pop %v3403
  %v3425 = vtanh.pop %v3406
  %v3426 = vtanh.pop %v3411
  %v3427 = vtanh.pop %v3414
  %v3428 = vtanh.pop %v3419
  %v3429 = vpack.c.bf16 %v3425, %v3424
  %v3430 = vpack.c.bf16 %v3427, %v3426
  %v3431 = vpack.c.bf16 %v3428, %v3428
  %v3433 = vsel %vm607, %v3431, 0
  %3435 = vmatprep.subr.bf16.mxu0 0
  %3436 = vmatpush1.bf16.msra.mxu0 %v3429
  %3437 = vmatprep.subr.bf16.mxu0 0
  %3438 = vmatpush1.bf16.msra.mxu0 %v3430
  %3439 = vmatprep.subr.bf16.mxu0 0
  %3440 = vmatpush1.bf16.msra.mxu0 %v3433
  %3441 = vmatprep.subr.bf16.mxu0 0
  %3442 = vmatpush1.bf16.msra.mxu0 0
  %3443 = vmatprep.subr.bf16.mxu0 0
  %3444 = vmatpush1.bf16.msra.mxu0 0
  %3445 = vmatprep.subr.bf16.mxu0 0
  %3446 = vmatpush1.bf16.msra.mxu0 0
  %3447 = vmatprep.subr.bf16.mxu0 0
  %3448 = vmatpush1.bf16.msra.mxu0 0
  %3449 = vmatprep.subr.bf16.mxu0 0
  %3450 = vmatpush1.bf16.msra.mxu0 0
  %3451 = vmatprep.subr.bf16.mxu0 0
  %3452 = vmatpush1.bf16.msra.mxu0 0
  %3453 = vmatprep.subr.bf16.mxu0 0
  %3454 = vmatpush1.bf16.msra.mxu0 0
  %3455 = vmatprep.subr.bf16.mxu0 0
  %3456 = vmatpush1.bf16.msra.mxu0 0
  %3457 = vmatprep.subr.bf16.mxu0 0
  %3458 = vmatpush1.bf16.msra.mxu0 0
  %3459 = vmatprep.subr.bf16.mxu0 0
  %3460 = vmatpush1.bf16.msra.mxu0 0
  %3461 = vmatprep.subr.bf16.mxu0 0
  %3462 = vmatpush1.bf16.msra.mxu0 0
  %3463 = vmatprep.subr.bf16.mxu0 0
  %3464 = vmatpush1.bf16.msra.mxu0 0
  %3465 = vmatprep.subr.bf16.mxu0 0
  %3466 = vmatpush1.bf16.msra.mxu0 0
  %3467 = vmatprep.mubr.bf16.mxu0 0
  %3468 = vmatmul.mubr.bf16.gmra.mrb[0].mxu0 %v605
  %v3469 = vpop.f32.mrb[0].mxu0
  %v3470 = vadd.f32 0.0, %v3469
  %v3471 = vpop.f32.mrb[0].mxu0
  %v3472 = vpop.f32.mrb[0].mxu0
  %v3473 = vadd.f32 0.0, %v3472
  %v3474 = vpop.f32.mrb[0].mxu0
  %3475 = vdwg.mxu0
  %v3476 = vpack.c.bf16 %v3473, %v3470
  %v3478 = vsel %vm524, %v3476, 0
  %3480 = vmatprep.subr.bf16.mxu0 0
  %3481 = vmatpush1.bf16.msra.mxu0 %v677
  %3482 = vmatprep.subr.bf16.mxu0 0
  %3483 = vmatpush1.bf16.msra.mxu0 %v678
  %3484 = vmatprep.subr.bf16.mxu0 0
  %3485 = vmatpush1.bf16.msra.mxu0 %v679
  %3486 = vmatprep.subr.bf16.mxu0 0
  %3487 = vmatpush1.bf16.msra.mxu0 %v680
  %3488 = vmatprep.subr.bf16.mxu0 0
  %3489 = vmatpush1.bf16.msra.mxu0 %v681
  %3490 = vmatprep.subr.bf16.mxu0 0
  %3491 = vmatpush1.bf16.msra.mxu0 %v682
  %3492 = vmatprep.subr.bf16.mxu0 0
  %3493 = vmatpush1.bf16.msra.mxu0 0
  %3494 = vmatprep.subr.bf16.mxu0 0
  %3495 = vmatpush1.bf16.msra.mxu0 0
  %3496 = vmatprep.subr.bf16.mxu0 0
  %3497 = vmatpush1.bf16.msra.mxu0 0
  %3498 = vmatprep.subr.bf16.mxu0 0
  %3499 = vmatpush1.bf16.msra.mxu0 0
  %3500 = vmatprep.subr.bf16.mxu0 0
  %3501 = vmatpush1.bf16.msra.mxu0 0
  %3502 = vmatprep.subr.bf16.mxu0 0
  %3503 = vmatpush1.bf16.msra.mxu0 0
  %3504 = vmatprep.subr.bf16.mxu0 0
  %3505 = vmatpush1.bf16.msra.mxu0 0
  %3506 = vmatprep.subr.bf16.mxu0 0
  %3507 = vmatpush1.bf16.msra.mxu0 0
  %3508 = vmatprep.subr.bf16.mxu0 0
  %3509 = vmatpush1.bf16.msra.mxu0 0
  %3510 = vmatprep.subr.bf16.mxu0 0
  %3511 = vmatpush1.bf16.msra.mxu0 0
  %3512 = vmatprep.mubr.bf16.mxu0 0
  %3513 = vmatmul.mubr.bf16.gmra.mrb[0].mxu0 %v3478
  %v3514 = vpop.f32.mrb[0].mxu0
  %v3515 = vadd.f32 0.0, %v3514
  %v3516 = vpop.f32.mrb[0].mxu0
  %v3517 = vpop.f32.mrb[0].mxu0
  %v3518 = vadd.f32 0.0, %v3517
  %v3519 = vpop.f32.mrb[0].mxu0
  %3520 = vdwg.mxu0
  %3521 = vmatprep.subr.bf16.mxu0 0
  %3522 = vmatpush1.bf16.msra.mxu0 %v771
  %3523 = vmatprep.subr.bf16.mxu0 0
  %3524 = vmatpush1.bf16.msra.mxu0 %v772
  %3525 = vmatprep.subr.bf16.mxu0 0
  %3526 = vmatpush1.bf16.msra.mxu0 %v773
  %3527 = vmatprep.subr.bf16.mxu0 0
  %3528 = vmatpush1.bf16.msra.mxu0 %v774
  %3529 = vmatprep.subr.bf16.mxu0 0
  %3530 = vmatpush1.bf16.msra.mxu0 %v775
  %3531 = vmatprep.subr.bf16.mxu0 0
  %3532 = vmatpush1.bf16.msra.mxu0 %v776
  %3533 = vmatprep.subr.bf16.mxu0 0
  %3534 = vmatpush1.bf16.msra.mxu0 %v777
  %3535 = vmatprep.subr.bf16.mxu0 0
  %3536 = vmatpush1.bf16.msra.mxu0 %v778
  %3537 = vmatprep.subr.bf16.mxu0 0
  %3538 = vmatpush1.bf16.msra.mxu0 0
  %3539 = vmatprep.subr.bf16.mxu0 0
  %3540 = vmatpush1.bf16.msra.mxu0 0
  %3541 = vmatprep.subr.bf16.mxu0 0
  %3542 = vmatpush1.bf16.msra.mxu0 0
  %3543 = vmatprep.subr.bf16.mxu0 0
  %3544 = vmatpush1.bf16.msra.mxu0 0
  %3545 = vmatprep.subr.bf16.mxu0 0
  %3546 = vmatpush1.bf16.msra.mxu0 0
  %3547 = vmatprep.subr.bf16.mxu0 0
  %3548 = vmatpush1.bf16.msra.mxu0 0
  %3549 = vmatprep.subr.bf16.mxu0 0
  %3550 = vmatpush1.bf16.msra.mxu0 0
  %3551 = vmatprep.subr.bf16.mxu0 0
  %3552 = vmatpush1.bf16.msra.mxu0 0
  %3553 = vmatprep.mubr.bf16.mxu0 0
  %3554 = vmatmul.mubr.bf16.gmra.mrb[0].mxu0 %v3095
  %v3555 = vpop.f32.mrb[0].mxu0
  %v3556 = vadd.f32 %v737, %v3555
  %v3557 = vpop.f32.mrb[0].mxu0
  %v3558 = vpop.f32.mrb[0].mxu0
  %v3559 = vadd.f32 %v737, %v3558
  %v3560 = vpop.f32.mrb[0].mxu0
  %3561 = vdwg.mxu0
  %v3562 = vadd.f32 %v3556, %v3515
  %v3563 = vadd.f32 %v3559, %v3518
  %v3564 = vxor.u32 %v3562, 2147483648
  %v3565 = vxor.u32 %v3563, 2147483648
  %v3566 = vmul.f32 %v3564, 1.442695
  %v3567 = vpow.pop %v3566
  %v3568 = vmul.f32 %v3565, 1.442695
  %v3569 = vpow.pop %v3568
  %v3570 = vadd.f32 %v3567, 1.0
  %v3571 = vadd.f32 %v3569, 1.0
  %v3572 = vrcp.pop %v3570
  %v3573 = vmul.f32 1.0, %v3572
  %v3574 = vrcp.pop %v3571
  %v3575 = vmul.f32 1.0, %v3574
  %3578 = vrot.lane.b32.xlu0 %v3515, 64
  %v3579 = vpop.permute.xlu0 %3578
  %3580 = vrot.lane.b32.xlu0 %v3518, 64
  %v3581 = vpop.permute.xlu0 %3580
  %v3584 = vmul.f32 %v3573, %v3579
  %v3585 = vmul.f32 %v3575, %v3581
  %3588 = vrot.lane.b32.xlu0 %v3584, 64
  %v3589 = vpop.permute.xlu0 %3588
  %3590 = vrot.lane.b32.xlu0 %v3585, 64
  %v3591 = vpop.permute.xlu0 %3590
  %v3594 = vadd.f32 %v3556, %v3589
  %v3595 = vadd.f32 %v3559, %v3591
  %v3596 = vtanh.pop %v3594
  %v3597 = vtanh.pop %v3595
  %v3598 = vsub.f32 1.0, %v3573
  %v3599 = vsub.f32 1.0, %v3575
  %3602 = vrot.lane.b32.xlu0 %v3596, 96
  %v3603 = vpop.permute.xlu0 %3602
  %3604 = vrot.lane.b32.xlu0 %v3597, 96
  %v3605 = vpop.permute.xlu0 %3604
  %v3608 = vmul.f32 %v3598, %v3603
  %v3609 = vmul.f32 %v3599, %v3605
  %v3610 = vmul.f32 %v3573, %v2944
  %v3611 = vmul.f32 %v3575, %v2945
  %v3612 = vadd.f32 %v3608, %v3610
  %v3613 = vadd.f32 %v3609, %v3611
  %v3614 = vpack.c.bf16 %v3613, %v3612
  %3616 = vrot.lane.b32.xlu0 %v3614, 96
  %v3617 = vpop.permute.xlu0 %3616
  %v3619 = vsel %vm320, %v3617, 0
  %3621 = vmatprep.subr.bf16.mxu0 0
  %3622 = vmatpush1.bf16.msra.mxu0 %v898
  %3623 = vmatprep.subr.bf16.mxu0 0
  %3624 = vmatpush1.bf16.msra.mxu0 %v899
  %3625 = vmatprep.subr.bf16.mxu0 0
  %3626 = vmatpush1.bf16.msra.mxu0 0
  %3627 = vmatprep.subr.bf16.mxu0 0
  %3628 = vmatpush1.bf16.msra.mxu0 0
  %3629 = vmatprep.subr.bf16.mxu0 0
  %3630 = vmatpush1.bf16.msra.mxu0 0
  %3631 = vmatprep.subr.bf16.mxu0 0
  %3632 = vmatpush1.bf16.msra.mxu0 0
  %3633 = vmatprep.subr.bf16.mxu0 0
  %3634 = vmatpush1.bf16.msra.mxu0 0
  %3635 = vmatprep.subr.bf16.mxu0 0
  %3636 = vmatpush1.bf16.msra.mxu0 0
  %3637 = vmatprep.subr.bf16.mxu0 0
  %3638 = vmatpush1.bf16.msra.mxu0 0
  %3639 = vmatprep.subr.bf16.mxu0 0
  %3640 = vmatpush1.bf16.msra.mxu0 0
  %3641 = vmatprep.subr.bf16.mxu0 0
  %3642 = vmatpush1.bf16.msra.mxu0 0
  %3643 = vmatprep.subr.bf16.mxu0 0
  %3644 = vmatpush1.bf16.msra.mxu0 0
  %3645 = vmatprep.subr.bf16.mxu0 0
  %3646 = vmatpush1.bf16.msra.mxu0 0
  %3647 = vmatprep.subr.bf16.mxu0 0
  %3648 = vmatpush1.bf16.msra.mxu0 0
  %3649 = vmatprep.subr.bf16.mxu0 0
  %3650 = vmatpush1.bf16.msra.mxu0 0
  %3651 = vmatprep.subr.bf16.mxu0 0
  %3652 = vmatpush1.bf16.msra.mxu0 0
  %3653 = vmatprep.mubr.bf16.mxu0 0
  %3654 = vmatmul.mubr.bf16.gmra.mrb[0].mxu0 %v3619
  %v3655 = vpop.f32.mrb[0].mxu0
  %v3656 = vadd.f32 %v885, %v3655
  %v3657 = vpop.f32.mrb[0].mxu0
  %v3658 = vpop.f32.mrb[0].mxu0
  %v3659 = vadd.f32 %v885, %v3658
  %v3660 = vpop.f32.mrb[0].mxu0
  %3661 = vdwg.mxu0
  %v3662 = vmax.f32 %v3656, 0.0
  %v3663 = vmax.f32 %v3659, 0.0
  %v3664 = vpack.c.bf16 %v3663, %v3662
  %v3666 = vsel %vm320, %v3664, 0
  %3668 = vmatprep.subr.bf16.mxu0 0
  %3669 = vmatpush1.bf16.msra.mxu0 %v963
  %3670 = vmatprep.subr.bf16.mxu0 0
  %3671 = vmatpush1.bf16.msra.mxu0 %v964
  %3672 = vmatprep.subr.bf16.mxu0 0
  %3673 = vmatpush1.bf16.msra.mxu0 0
  %3674 = vmatprep.subr.bf16.mxu0 0
  %3675 = vmatpush1.bf16.msra.mxu0 0
  %3676 = vmatprep.subr.bf16.mxu0 0
  %3677 = vmatpush1.bf16.msra.mxu0 0
  %3678 = vmatprep.subr.bf16.mxu0 0
  %3679 = vmatpush1.bf16.msra.mxu0 0
  %3680 = vmatprep.subr.bf16.mxu0 0
  %3681 = vmatpush1.bf16.msra.mxu0 0
  %3682 = vmatprep.subr.bf16.mxu0 0
  %3683 = vmatpush1.bf16.msra.mxu0 0
  %3684 = vmatprep.subr.bf16.mxu0 0
  %3685 = vmatpush1.bf16.msra.mxu0 0
  %3686 = vmatprep.subr.bf16.mxu0 0
  %3687 = vmatpush1.bf16.msra.mxu0 0
  %3688 = vmatprep.subr.bf16.mxu0 0
  %3689 = vmatpush1.bf16.msra.mxu0 0
  %3690 = vmatprep.subr.bf16.mxu0 0
  %3691 = vmatpush1.bf16.msra.mxu0 0
  %3692 = vmatprep.subr.bf16.mxu0 0
  %3693 = vmatpush1.bf16.msra.mxu0 0
  %3694 = vmatprep.subr.bf16.mxu0 0
  %3695 = vmatpush1.bf16.msra.mxu0 0
  %3696 = vmatprep.subr.bf16.mxu0 0
  %3697 = vmatpush1.bf16.msra.mxu0 0
  %3698 = vmatprep.subr.bf16.mxu0 0
  %3699 = vmatpush1.bf16.msra.mxu0 0
  %3700 = vmatprep.mubr.bf16.mxu0 0
  %3701 = vmatmul.mubr.bf16.gmra.mrb[0].mxu0 %v3666
  %v3702 = vpop.f32.mrb[0].mxu0
  %v3703 = vadd.f32 %v953, %v3702
  %v3704 = vpop.f32.mrb[0].mxu0
  %v3705 = vpop.f32.mrb[0].mxu0
  %v3706 = vadd.f32 %v953, %v3705
  %v3707 = vpop.f32.mrb[0].mxu0
  %3708 = vdwg.mxu0
  %v3709 = vmax.f32 %v3703, 0.0
  %v3710 = vmax.f32 %v3706, 0.0
  %v3711 = vpack.c.bf16 %v3710, %v3709
  %v3713 = vsel %vm320, %v3711, 0
  %3715 = vmatprep.subr.bf16.mxu0 0
  %3716 = vmatpush1.bf16.msra.mxu0 %v1028
  %3717 = vmatprep.subr.bf16.mxu0 0
  %3718 = vmatpush1.bf16.msra.mxu0 %v1029
  %3719 = vmatprep.subr.bf16.mxu0 0
  %3720 = vmatpush1.bf16.msra.mxu0 0
  %3721 = vmatprep.subr.bf16.mxu0 0
  %3722 = vmatpush1.bf16.msra.mxu0 0
  %3723 = vmatprep.subr.bf16.mxu0 0
  %3724 = vmatpush1.bf16.msra.mxu0 0
  %3725 = vmatprep.subr.bf16.mxu0 0
  %3726 = vmatpush1.bf16.msra.mxu0 0
  %3727 = vmatprep.subr.bf16.mxu0 0
  %3728 = vmatpush1.bf16.msra.mxu0 0
  %3729 = vmatprep.subr.bf16.mxu0 0
  %3730 = vmatpush1.bf16.msra.mxu0 0
  %3731 = vmatprep.subr.bf16.mxu0 0
  %3732 = vmatpush1.bf16.msra.mxu0 0
  %3733 = vmatprep.subr.bf16.mxu0 0
  %3734 = vmatpush1.bf16.msra.mxu0 0
  %3735 = vmatprep.subr.bf16.mxu0 0
  %3736 = vmatpush1.bf16.msra.mxu0 0
  %3737 = vmatprep.subr.bf16.mxu0 0
  %3738 = vmatpush1.bf16.msra.mxu0 0
  %3739 = vmatprep.subr.bf16.mxu0 0
  %3740 = vmatpush1.bf16.msra.mxu0 0
  %3741 = vmatprep.subr.bf16.mxu0 0
  %3742 = vmatpush1.bf16.msra.mxu0 0
  %3743 = vmatprep.subr.bf16.mxu0 0
  %3744 = vmatpush1.bf16.msra.mxu0 0
  %3745 = vmatprep.subr.bf16.mxu0 0
  %3746 = vmatpush1.bf16.msra.mxu0 0
  %3747 = vmatprep.mubr.bf16.mxu0 0
  %3748 = vmatmul.mubr.bf16.gmra.mrb[0].mxu0 %v3713
  %v3749 = vpop.f32.mrb[0].mxu0
  %v3750 = vadd.f32 %v1018, %v3749
  %v3751 = vpop.f32.mrb[0].mxu0
  %v3752 = vpop.f32.mrb[0].mxu0
  %v3753 = vadd.f32 %v1018, %v3752
  %v3754 = vpop.f32.mrb[0].mxu0
  %3755 = vdwg.mxu0
  %v3756 = vmax.f32 %v3750, 0.0
  %v3757 = vmax.f32 %v3753, 0.0
  %v3758 = vadd.f32 %v3090, %v3756
  %v3759 = vadd.f32 %v3091, %v3757
  %s3760 = scalar_lea.vmem %s18, 64
  %3761 = vst [vmem:[%s3760] sm:$0xff] %v3758
  %3762 = vst [vmem:[%s3760 + $0x8] sm:$0x3] %v3759
  %v3763 = vpack.c.bf16 %v3759, %v3758
  %v3764 = vsel %vm164, %v3617, 0
  %3766 = vmatprep.subr.bf16.mxu0 0
  %3767 = vmatpush1.bf16.msra.mxu0 %v3764
  %3768 = vmatprep.subr.bf16.mxu0 0
  %3769 = vmatpush1.bf16.msra.mxu0 0
  %3770 = vmatprep.subr.bf16.mxu0 0
  %3771 = vmatpush1.bf16.msra.mxu0 0
  %3772 = vmatprep.subr.bf16.mxu0 0
  %3773 = vmatpush1.bf16.msra.mxu0 0
  %3774 = vmatprep.subr.bf16.mxu0 0
  %3775 = vmatpush1.bf16.msra.mxu0 0
  %3776 = vmatprep.subr.bf16.mxu0 0
  %3777 = vmatpush1.bf16.msra.mxu0 0
  %3778 = vmatprep.subr.bf16.mxu0 0
  %3779 = vmatpush1.bf16.msra.mxu0 0
  %3780 = vmatprep.subr.bf16.mxu0 0
  %3781 = vmatpush1.bf16.msra.mxu0 0
  %3782 = vmatprep.subr.bf16.mxu0 0
  %3783 = vmatpush1.bf16.msra.mxu0 0
  %3784 = vmatprep.subr.bf16.mxu0 0
  %3785 = vmatpush1.bf16.msra.mxu0 0
  %3786 = vmatprep.subr.bf16.mxu0 0
  %3787 = vmatpush1.bf16.msra.mxu0 0
  %3788 = vmatprep.subr.bf16.mxu0 0
  %3789 = vmatpush1.bf16.msra.mxu0 0
  %3790 = vmatprep.subr.bf16.mxu0 0
  %3791 = vmatpush1.bf16.msra.mxu0 0
  %3792 = vmatprep.subr.bf16.mxu0 0
  %3793 = vmatpush1.bf16.msra.mxu0 0
  %3794 = vmatprep.subr.bf16.mxu0 0
  %3795 = vmatpush1.bf16.msra.mxu0 0
  %3796 = vmatprep.subr.bf16.mxu0 0
  %3797 = vmatpush1.bf16.msra.mxu0 0
  %3798 = vmatprep.mubr.bf16.mxu0 0
  %3799 = vmatmul.mubr.bf16.gmra.mrb[0].mxu0 %v156
  %v3800 = vpop.f32.mrb[0].mxu0
  %v3801 = vadd.f32 0.0, %v3800
  %v3802 = vpop.f32.mrb[0].mxu0
  %v3803 = vpop.f32.mrb[0].mxu0
  %v3804 = vadd.f32 0.0, %v3803
  %v3805 = vpop.f32.mrb[0].mxu0
  %3806 = vmatprep.mubr.bf16.mxu0 0
  %3807 = vmatmul.mubr.bf16.gmra.mrb[0].mxu0 %v159
  %v3808 = vpop.f32.mrb[0].mxu0
  %v3809 = vadd.f32 0.0, %v3808
  %v3810 = vpop.f32.mrb[0].mxu0
  %v3811 = vpop.f32.mrb[0].mxu0
  %v3812 = vadd.f32 0.0, %v3811
  %v3813 = vpop.f32.mrb[0].mxu0
  %3814 = vmatprep.mubr.bf16.mxu0 0
  %3815 = vmatmul.mubr.bf16.gmra.mrb[0].mxu0 %v162
  %v3816 = vpop.f32.mrb[0].mxu0
  %v3817 = vadd.f32 0.0, %v3816
  %v3818 = vpop.f32.mrb[0].mxu0
  %v3819 = vpop.f32.mrb[0].mxu0
  %v3820 = vpop.f32.mrb[0].mxu0
  %3821 = vdwg.mxu0
  %3822 = vmatprep.subr.bf16.mxu0 0
  %3823 = vmatpush1.bf16.msra.mxu0 %v3764
  %3824 = vmatprep.subr.bf16.mxu0 0
  %3825 = vmatpush1.bf16.msra.mxu0 0
  %3826 = vmatprep.subr.bf16.mxu0 0
  %3827 = vmatpush1.bf16.msra.mxu0 0
  %3828 = vmatprep.subr.bf16.mxu0 0
  %3829 = vmatpush1.bf16.msra.mxu0 0
  %3830 = vmatprep.subr.bf16.mxu0 0
  %3831 = vmatpush1.bf16.msra.mxu0 0
  %3832 = vmatprep.subr.bf16.mxu0 0
  %3833 = vmatpush1.bf16.msra.mxu0 0
  %3834 = vmatprep.subr.bf16.mxu0 0
  %3835 = vmatpush1.bf16.msra.mxu0 0
  %3836 = vmatprep.subr.bf16.mxu0 0
  %3837 = vmatpush1.bf16.msra.mxu0 0
  %3838 = vmatprep.subr.bf16.mxu0 0
  %3839 = vmatpush1.bf16.msra.mxu0 0
  %3840 = vmatprep.subr.bf16.mxu0 0
  %3841 = vmatpush1.bf16.msra.mxu0 0
  %3842 = vmatprep.subr.bf16.mxu0 0
  %3843 = vmatpush1.bf16.msra.mxu0 0
  %3844 = vmatprep.subr.bf16.mxu0 0
  %3845 = vmatpush1.bf16.msra.mxu0 0
  %3846 = vmatprep.subr.bf16.mxu0 0
  %3847 = vmatpush1.bf16.msra.mxu0 0
  %3848 = vmatprep.subr.bf16.mxu0 0
  %3849 = vmatpush1.bf16.msra.mxu0 0
  %3850 = vmatprep.subr.bf16.mxu0 0
  %3851 = vmatpush1.bf16.msra.mxu0 0
  %3852 = vmatprep.subr.bf16.mxu0 0
  %3853 = vmatpush1.bf16.msra.mxu0 0
  %3854 = vmatprep.mubr.bf16.mxu0 0
  %3855 = vmatmul.mubr.bf16.gmra.mrb[0].mxu0 %v238
  %v3856 = vpop.f32.mrb[0].mxu0
  %v3857 = vadd.f32 0.0, %v3856
  %v3858 = vpop.f32.mrb[0].mxu0
  %v3859 = vpop.f32.mrb[0].mxu0
  %v3860 = vadd.f32 0.0, %v3859
  %v3861 = vpop.f32.mrb[0].mxu0
  %3862 = vmatprep.mubr.bf16.mxu0 0
  %3863 = vmatmul.mubr.bf16.gmra.mrb[0].mxu0 %v241
  %v3864 = vpop.f32.mrb[0].mxu0
  %v3865 = vadd.f32 0.0, %v3864
  %v3866 = vpop.f32.mrb[0].mxu0
  %v3867 = vpop.f32.mrb[0].mxu0
  %v3868 = vadd.f32 0.0, %v3867
  %v3869 = vpop.f32.mrb[0].mxu0
  %3870 = vmatprep.mubr.bf16.mxu0 0
  %3871 = vmatmul.mubr.bf16.gmra.mrb[0].mxu0 %v244
  %v3872 = vpop.f32.mrb[0].mxu0
  %v3873 = vadd.f32 0.0, %v3872
  %v3874 = vpop.f32.mrb[0].mxu0
  %v3875 = vpop.f32.mrb[0].mxu0
  %v3876 = vpop.f32.mrb[0].mxu0
  %3877 = vdwg.mxu0
  %v3878 = vpack.c.bf16 %v3804, %v3801
  %v3879 = vpack.c.bf16 %v3812, %v3809
  %v3880 = vpack.c.bf16 %v3817, %v3817
  %v3881 = vpack.c.bf16 %v3860, %v3857
  %v3882 = vpack.c.bf16 %v3868, %v3865
  %v3883 = vpack.c.bf16 %v3873, %v3873
  %v3885 = vsel %vm320, %v3881, 0
  %v3888 = vsel %vm320, %v3882, 0
  %v3891 = vsel %vm320, %v3883, 0
  %3893 = vmatprep.subr.bf16.mxu0 0
  %3894 = vmatpush1.bf16.msra.mxu0 %v316
  %3895 = vmatprep.subr.bf16.mxu0 0
  %3896 = vmatpush1.bf16.msra.mxu0 %v317
  %3897 = vmatprep.subr.bf16.mxu0 0
  %3898 = vmatpush1.bf16.msra.mxu0 0
  %3899 = vmatprep.subr.bf16.mxu0 0
  %3900 = vmatpush1.bf16.msra.mxu0 0
  %3901 = vmatprep.subr.bf16.mxu0 0
  %3902 = vmatpush1.bf16.msra.mxu0 0
  %3903 = vmatprep.subr.bf16.mxu0 0
  %3904 = vmatpush1.bf16.msra.mxu0 0
  %3905 = vmatprep.subr.bf16.mxu0 0
  %3906 = vmatpush1.bf16.msra.mxu0 0
  %3907 = vmatprep.subr.bf16.mxu0 0
  %3908 = vmatpush1.bf16.msra.mxu0 0
  %3909 = vmatprep.subr.bf16.mxu0 0
  %3910 = vmatpush1.bf16.msra.mxu0 0
  %3911 = vmatprep.subr.bf16.mxu0 0
  %3912 = vmatpush1.bf16.msra.mxu0 0
  %3913 = vmatprep.subr.bf16.mxu0 0
  %3914 = vmatpush1.bf16.msra.mxu0 0
  %3915 = vmatprep.subr.bf16.mxu0 0
  %3916 = vmatpush1.bf16.msra.mxu0 0
  %3917 = vmatprep.subr.bf16.mxu0 0
  %3918 = vmatpush1.bf16.msra.mxu0 0
  %3919 = vmatprep.subr.bf16.mxu0 0
  %3920 = vmatpush1.bf16.msra.mxu0 0
  %3921 = vmatprep.subr.bf16.mxu0 0
  %3922 = vmatpush1.bf16.msra.mxu0 0
  %3923 = vmatprep.subr.bf16.mxu0 0
  %3924 = vmatpush1.bf16.msra.mxu0 0
  %3925 = vmatprep.mubr.bf16.mxu0 0
  %3926 = vmatmul.mubr.bf16.gmra.mrb[0].mxu0 %v3885
  %v3927 = vpop.f32.mrb[0].mxu0
  %v3928 = vadd.f32 0.0, %v3927
  %v3929 = vpop.f32.mrb[0].mxu0
  %v3930 = vpop.f32.mrb[0].mxu0
  %v3931 = vadd.f32 0.0, %v3930
  %v3932 = vpop.f32.mrb[0].mxu0
  %3933 = vmatprep.mubr.bf16.mxu0 0
  %3934 = vmatmul.mubr.bf16.gmra.mrb[0].mxu0 %v3888
  %v3935 = vpop.f32.mrb[0].mxu0
  %v3936 = vadd.f32 0.0, %v3935
  %v3937 = vpop.f32.mrb[0].mxu0
  %v3938 = vpop.f32.mrb[0].mxu0
  %v3939 = vadd.f32 0.0, %v3938
  %v3940 = vpop.f32.mrb[0].mxu0
  %3941 = vmatprep.mubr.bf16.mxu0 0
  %3942 = vmatmul.mubr.bf16.gmra.mrb[0].mxu0 %v3891
  %v3943 = vpop.f32.mrb[0].mxu0
  %v3944 = vadd.f32 0.0, %v3943
  %v3945 = vpop.f32.mrb[0].mxu0
  %v3946 = vpop.f32.mrb[0].mxu0
  %v3947 = vpop.f32.mrb[0].mxu0
  %3948 = vdwg.mxu0
  %v3950 = vsel %vm320, %v3878, 0
  %v3953 = vsel %vm320, %v3879, 0
  %v3956 = vsel %vm320, %v3880, 0
  %3958 = vmatprep.subr.bf16.mxu0 0
  %3959 = vmatpush1.bf16.msra.mxu0 %v394
  %3960 = vmatprep.subr.bf16.mxu0 0
  %3961 = vmatpush1.bf16.msra.mxu0 %v395
  %3962 = vmatprep.subr.bf16.mxu0 0
  %3963 = vmatpush1.bf16.msra.mxu0 0
  %3964 = vmatprep.subr.bf16.mxu0 0
  %3965 = vmatpush1.bf16.msra.mxu0 0
  %3966 = vmatprep.subr.bf16.mxu0 0
  %3967 = vmatpush1.bf16.msra.mxu0 0
  %3968 = vmatprep.subr.bf16.mxu0 0
  %3969 = vmatpush1.bf16.msra.mxu0 0
  %3970 = vmatprep.subr.bf16.mxu0 0
  %3971 = vmatpush1.bf16.msra.mxu0 0
  %3972 = vmatprep.subr.bf16.mxu0 0
  %3973 = vmatpush1.bf16.msra.mxu0 0
  %3974 = vmatprep.subr.bf16.mxu0 0
  %3975 = vmatpush1.bf16.msra.mxu0 0
  %3976 = vmatprep.subr.bf16.mxu0 0
  %3977 = vmatpush1.bf16.msra.mxu0 0
  %3978 = vmatprep.subr.bf16.mxu0 0
  %3979 = vmatpush1.bf16.msra.mxu0 0
  %3980 = vmatprep.subr.bf16.mxu0 0
  %3981 = vmatpush1.bf16.msra.mxu0 0
  %3982 = vmatprep.subr.bf16.mxu0 0
  %3983 = vmatpush1.bf16.msra.mxu0 0
  %3984 = vmatprep.subr.bf16.mxu0 0
  %3985 = vmatpush1.bf16.msra.mxu0 0
  %3986 = vmatprep.subr.bf16.mxu0 0
  %3987 = vmatpush1.bf16.msra.mxu0 0
  %3988 = vmatprep.subr.bf16.mxu0 0
  %3989 = vmatpush1.bf16.msra.mxu0 0
  %3990 = vmatprep.mubr.bf16.mxu0 0
  %3991 = vmatmul.mubr.bf16.gmra.mrb[0].mxu0 %v3950
  %v3992 = vpop.f32.mrb[0].mxu0
  %v3993 = vadd.f32 %v3928, %v3992
  %v3994 = vpop.f32.mrb[0].mxu0
  %v3995 = vpop.f32.mrb[0].mxu0
  %v3996 = vadd.f32 %v3931, %v3995
  %v3997 = vpop.f32.mrb[0].mxu0
  %3998 = vmatprep.mubr.bf16.mxu0 0
  %3999 = vmatmul.mubr.bf16.gmra.mrb[0].mxu0 %v3953
  %v4000 = vpop.f32.mrb[0].mxu0
  %v4001 = vadd.f32 %v3936, %v4000
  %v4002 = vpop.f32.mrb[0].mxu0
  %v4003 = vpop.f32.mrb[0].mxu0
  %v4004 = vadd.f32 %v3939, %v4003
  %v4005 = vpop.f32.mrb[0].mxu0
  %4006 = vmatprep.mubr.bf16.mxu0 0
  %4007 = vmatmul.mubr.bf16.gmra.mrb[0].mxu0 %v3956
  %v4008 = vpop.f32.mrb[0].mxu0
  %v4009 = vadd.f32 %v3944, %v4008
  %v4010 = vpop.f32.mrb[0].mxu0
  %v4011 = vpop.f32.mrb[0].mxu0
  %v4012 = vpop.f32.mrb[0].mxu0
  %4013 = vdwg.mxu0
  %v4014 = vadd.f32 %v3993, %v467
  %v4015 = vadd.f32 %v3996, %v467
  %v4016 = vadd.f32 %v4001, %v467
  %v4017 = vadd.f32 %v4004, %v467
  %v4018 = vadd.f32 %v4009, %v467
  %v4019 = vtanh.pop %v4014
  %v4020 = vtanh.pop %v4015
  %v4021 = vtanh.pop %v4016
  %v4022 = vtanh.pop %v4017
  %v4023 = vtanh.pop %v4018
  %v4024 = vpack.c.bf16 %v4020, %v4019
  %v4025 = vpack.c.bf16 %v4022, %v4021
  %v4026 = vpack.c.bf16 %v4023, %v4023
  %v4028 = vsel %vm524, %v4024, 0
  %v4031 = vsel %vm524, %v4025, 0
  %v4034 = vsel %vm524, %v4026, 0
  %4036 = vmatprep.subr.bf16.mxu0 0
  %4037 = vmatpush1.bf16.msra.mxu0 %v512
  %4038 = vmatprep.subr.bf16.mxu0 0
  %4039 = vmatpush1.bf16.msra.mxu0 %v513
  %4040 = vmatprep.subr.bf16.mxu0 0
  %4041 = vmatpush1.bf16.msra.mxu0 %v514
  %4042 = vmatprep.subr.bf16.mxu0 0
  %4043 = vmatpush1.bf16.msra.mxu0 %v515
  %4044 = vmatprep.subr.bf16.mxu0 0
  %4045 = vmatpush1.bf16.msra.mxu0 %v516
  %4046 = vmatprep.subr.bf16.mxu0 0
  %4047 = vmatpush1.bf16.msra.mxu0 %v517
  %4048 = vmatprep.subr.bf16.mxu0 0
  %4049 = vmatpush1.bf16.msra.mxu0 0
  %4050 = vmatprep.subr.bf16.mxu0 0
  %4051 = vmatpush1.bf16.msra.mxu0 0
  %4052 = vmatprep.subr.bf16.mxu0 0
  %4053 = vmatpush1.bf16.msra.mxu0 0
  %4054 = vmatprep.subr.bf16.mxu0 0
  %4055 = vmatpush1.bf16.msra.mxu0 0
  %4056 = vmatprep.subr.bf16.mxu0 0
  %4057 = vmatpush1.bf16.msra.mxu0 0
  %4058 = vmatprep.subr.bf16.mxu0 0
  %4059 = vmatpush1.bf16.msra.mxu0 0
  %4060 = vmatprep.subr.bf16.mxu0 0
  %4061 = vmatpush1.bf16.msra.mxu0 0
  %4062 = vmatprep.subr.bf16.mxu0 0
  %4063 = vmatpush1.bf16.msra.mxu0 0
  %4064 = vmatprep.subr.bf16.mxu0 0
  %4065 = vmatpush1.bf16.msra.mxu0 0
  %4066 = vmatprep.subr.bf16.mxu0 0
  %4067 = vmatpush1.bf16.msra.mxu0 0
  %4068 = vmatprep.mubr.bf16.mxu0 0
  %4069 = vmatmul.mubr.bf16.gmra.mrb[0].mxu0 %v4028
  %v4070 = vpop.f32.mrb[0].mxu0
  %v4071 = vadd.f32 %v486, %v4070
  %v4072 = vpop.f32.mrb[0].mxu0
  %v4073 = vpop.f32.mrb[0].mxu0
  %v4074 = vadd.f32 %v486, %v4073
  %v4075 = vpop.f32.mrb[0].mxu0
  %4076 = vmatprep.mubr.bf16.mxu0 0
  %4077 = vmatmul.mubr.bf16.gmra.mrb[0].mxu0 %v4031
  %v4078 = vpop.f32.mrb[0].mxu0
  %v4079 = vadd.f32 %v486, %v4078
  %v4080 = vpop.f32.mrb[0].mxu0
  %v4081 = vpop.f32.mrb[0].mxu0
  %v4082 = vadd.f32 %v486, %v4081
  %v4083 = vpop.f32.mrb[0].mxu0
  %4084 = vmatprep.mubr.bf16.mxu0 0
  %4085 = vmatmul.mubr.bf16.gmra.mrb[0].mxu0 %v4034
  %v4086 = vpop.f32.mrb[0].mxu0
  %v4087 = vadd.f32 %v486, %v4086
  %v4088 = vpop.f32.mrb[0].mxu0
  %v4089 = vpop.f32.mrb[0].mxu0
  %v4090 = vpop.f32.mrb[0].mxu0
  %4091 = vdwg.mxu0
  %v4092 = vtanh.pop %v4071
  %v4093 = vtanh.pop %v4074
  %v4094 = vtanh.pop %v4079
  %v4095 = vtanh.pop %v4082
  %v4096 = vtanh.pop %v4087
  %v4097 = vpack.c.bf16 %v4093, %v4092
  %v4098 = vpack.c.bf16 %v4095, %v4094
  %v4099 = vpack.c.bf16 %v4096, %v4096
  %v4101 = vsel %vm607, %v4099, 0
  %4103 = vmatprep.subr.bf16.mxu0 0
  %4104 = vmatpush1.bf16.msra.mxu0 %v4097
  %4105 = vmatprep.subr.bf16.mxu0 0
  %4106 = vmatpush1.bf16.msra.mxu0 %v4098
  %4107 = vmatprep.subr.bf16.mxu0 0
  %4108 = vmatpush1.bf16.msra.mxu0 %v4101
  %4109 = vmatprep.subr.bf16.mxu0 0
  %4110 = vmatpush1.bf16.msra.mxu0 0
  %4111 = vmatprep.subr.bf16.mxu0 0
  %4112 = vmatpush1.bf16.msra.mxu0 0
  %4113 = vmatprep.subr.bf16.mxu0 0
  %4114 = vmatpush1.bf16.msra.mxu0 0
  %4115 = vmatprep.subr.bf16.mxu0 0
  %4116 = vmatpush1.bf16.msra.mxu0 0
  %4117 = vmatprep.subr.bf16.mxu0 0
  %4118 = vmatpush1.bf16.msra.mxu0 0
  %4119 = vmatprep.subr.bf16.mxu0 0
  %4120 = vmatpush1.bf16.msra.mxu0 0
  %4121 = vmatprep.subr.bf16.mxu0 0
  %4122 = vmatpush1.bf16.msra.mxu0 0
  %4123 = vmatprep.subr.bf16.mxu0 0
  %4124 = vmatpush1.bf16.msra.mxu0 0
  %4125 = vmatprep.subr.bf16.mxu0 0
  %4126 = vmatpush1.bf16.msra.mxu0 0
  %4127 = vmatprep.subr.bf16.mxu0 0
  %4128 = vmatpush1.bf16.msra.mxu0 0
  %4129 = vmatprep.subr.bf16.mxu0 0
  %4130 = vmatpush1.bf16.msra.mxu0 0
  %4131 = vmatprep.subr.bf16.mxu0 0
  %4132 = vmatpush1.bf16.msra.mxu0 0
  %4133 = vmatprep.subr.bf16.mxu0 0
  %4134 = vmatpush1.bf16.msra.mxu0 0
  %4135 = vmatprep.mubr.bf16.mxu0 0
  %4136 = vmatmul.mubr.bf16.gmra.mrb[0].mxu0 %v605
  %v4137 = vpop.f32.mrb[0].mxu0
  %v4138 = vadd.f32 0.0, %v4137
  %v4139 = vpop.f32.mrb[0].mxu0
  %v4140 = vpop.f32.mrb[0].mxu0
  %v4141 = vadd.f32 0.0, %v4140
  %v4142 = vpop.f32.mrb[0].mxu0
  %4143 = vdwg.mxu0
  %v4144 = vpack.c.bf16 %v4141, %v4138
  %v4146 = vsel %vm524, %v4144, 0
  %4148 = vmatprep.subr.bf16.mxu0 0
  %4149 = vmatpush1.bf16.msra.mxu0 %v677
  %4150 = vmatprep.subr.bf16.mxu0 0
  %4151 = vmatpush1.bf16.msra.mxu0 %v678
  %4152 = vmatprep.subr.bf16.mxu0 0
  %4153 = vmatpush1.bf16.msra.mxu0 %v679
  %4154 = vmatprep.subr.bf16.mxu0 0
  %4155 = vmatpush1.bf16.msra.mxu0 %v680
  %4156 = vmatprep.subr.bf16.mxu0 0
  %4157 = vmatpush1.bf16.msra.mxu0 %v681
  %4158 = vmatprep.subr.bf16.mxu0 0
  %4159 = vmatpush1.bf16.msra.mxu0 %v682
  %4160 = vmatprep.subr.bf16.mxu0 0
  %4161 = vmatpush1.bf16.msra.mxu0 0
  %4162 = vmatprep.subr.bf16.mxu0 0
  %4163 = vmatpush1.bf16.msra.mxu0 0
  %4164 = vmatprep.subr.bf16.mxu0 0
  %4165 = vmatpush1.bf16.msra.mxu0 0
  %4166 = vmatprep.subr.bf16.mxu0 0
  %4167 = vmatpush1.bf16.msra.mxu0 0
  %4168 = vmatprep.subr.bf16.mxu0 0
  %4169 = vmatpush1.bf16.msra.mxu0 0
  %4170 = vmatprep.subr.bf16.mxu0 0
  %4171 = vmatpush1.bf16.msra.mxu0 0
  %4172 = vmatprep.subr.bf16.mxu0 0
  %4173 = vmatpush1.bf16.msra.mxu0 0
  %4174 = vmatprep.subr.bf16.mxu0 0
  %4175 = vmatpush1.bf16.msra.mxu0 0
  %4176 = vmatprep.subr.bf16.mxu0 0
  %4177 = vmatpush1.bf16.msra.mxu0 0
  %4178 = vmatprep.subr.bf16.mxu0 0
  %4179 = vmatpush1.bf16.msra.mxu0 0
  %4180 = vmatprep.mubr.bf16.mxu0 0
  %4181 = vmatmul.mubr.bf16.gmra.mrb[0].mxu0 %v4146
  %v4182 = vpop.f32.mrb[0].mxu0
  %v4183 = vadd.f32 0.0, %v4182
  %v4184 = vpop.f32.mrb[0].mxu0
  %v4185 = vpop.f32.mrb[0].mxu0
  %v4186 = vadd.f32 0.0, %v4185
  %v4187 = vpop.f32.mrb[0].mxu0
  %4188 = vdwg.mxu0
  %4189 = vmatprep.subr.bf16.mxu0 0
  %4190 = vmatpush1.bf16.msra.mxu0 %v771
  %4191 = vmatprep.subr.bf16.mxu0 0
  %4192 = vmatpush1.bf16.msra.mxu0 %v772
  %4193 = vmatprep.subr.bf16.mxu0 0
  %4194 = vmatpush1.bf16.msra.mxu0 %v773
  %4195 = vmatprep.subr.bf16.mxu0 0
  %4196 = vmatpush1.bf16.msra.mxu0 %v774
  %4197 = vmatprep.subr.bf16.mxu0 0
  %4198 = vmatpush1.bf16.msra.mxu0 %v775
  %4199 = vmatprep.subr.bf16.mxu0 0
  %4200 = vmatpush1.bf16.msra.mxu0 %v776
  %4201 = vmatprep.subr.bf16.mxu0 0
  %4202 = vmatpush1.bf16.msra.mxu0 %v777
  %4203 = vmatprep.subr.bf16.mxu0 0
  %4204 = vmatpush1.bf16.msra.mxu0 %v778
  %4205 = vmatprep.subr.bf16.mxu0 0
  %4206 = vmatpush1.bf16.msra.mxu0 0
  %4207 = vmatprep.subr.bf16.mxu0 0
  %4208 = vmatpush1.bf16.msra.mxu0 0
  %4209 = vmatprep.subr.bf16.mxu0 0
  %4210 = vmatpush1.bf16.msra.mxu0 0
  %4211 = vmatprep.subr.bf16.mxu0 0
  %4212 = vmatpush1.bf16.msra.mxu0 0
  %4213 = vmatprep.subr.bf16.mxu0 0
  %4214 = vmatpush1.bf16.msra.mxu0 0
  %4215 = vmatprep.subr.bf16.mxu0 0
  %4216 = vmatpush1.bf16.msra.mxu0 0
  %4217 = vmatprep.subr.bf16.mxu0 0
  %4218 = vmatpush1.bf16.msra.mxu0 0
  %4219 = vmatprep.subr.bf16.mxu0 0
  %4220 = vmatpush1.bf16.msra.mxu0 0
  %4221 = vmatprep.mubr.bf16.mxu0 0
  %4222 = vmatmul.mubr.bf16.gmra.mrb[0].mxu0 %v3763
  %v4223 = vpop.f32.mrb[0].mxu0
  %v4224 = vadd.f32 %v737, %v4223
  %v4225 = vpop.f32.mrb[0].mxu0
  %v4226 = vpop.f32.mrb[0].mxu0
  %v4227 = vadd.f32 %v737, %v4226
  %v4228 = vpop.f32.mrb[0].mxu0
  %4229 = vdwg.mxu0
  %v4230 = vadd.f32 %v4224, %v4183
  %v4231 = vadd.f32 %v4227, %v4186
  %v4232 = vxor.u32 %v4230, 2147483648
  %v4233 = vxor.u32 %v4231, 2147483648
  %v4234 = vmul.f32 %v4232, 1.442695
  %v4235 = vpow.pop %v4234
  %v4236 = vmul.f32 %v4233, 1.442695
  %v4237 = vpow.pop %v4236
  %v4238 = vadd.f32 %v4235, 1.0
  %v4239 = vadd.f32 %v4237, 1.0
  %v4240 = vrcp.pop %v4238
  %v4241 = vmul.f32 1.0, %v4240
  %v4242 = vrcp.pop %v4239
  %v4243 = vmul.f32 1.0, %v4242
  %4246 = vrot.lane.b32.xlu0 %v4183, 64
  %v4247 = vpop.permute.xlu0 %4246
  %4248 = vrot.lane.b32.xlu0 %v4186, 64
  %v4249 = vpop.permute.xlu0 %4248
  %v4252 = vmul.f32 %v4241, %v4247
  %v4253 = vmul.f32 %v4243, %v4249
  %4256 = vrot.lane.b32.xlu0 %v4252, 64
  %v4257 = vpop.permute.xlu0 %4256
  %4258 = vrot.lane.b32.xlu0 %v4253, 64
  %v4259 = vpop.permute.xlu0 %4258
  %v4262 = vadd.f32 %v4224, %v4257
  %v4263 = vadd.f32 %v4227, %v4259
  %v4264 = vtanh.pop %v4262
  %v4265 = vtanh.pop %v4263
  %v4266 = vsub.f32 1.0, %v4241
  %v4267 = vsub.f32 1.0, %v4243
  %4270 = vrot.lane.b32.xlu0 %v4264, 96
  %v4271 = vpop.permute.xlu0 %4270
  %4272 = vrot.lane.b32.xlu0 %v4265, 96
  %v4273 = vpop.permute.xlu0 %4272
  %v4276 = vmul.f32 %v4266, %v4271
  %v4277 = vmul.f32 %v4267, %v4273
  %v4278 = vmul.f32 %v4241, %v3612
  %v4279 = vmul.f32 %v4243, %v3613
  %v4280 = vadd.f32 %v4276, %v4278
  %v4281 = vadd.f32 %v4277, %v4279
  %v4282 = vpack.c.bf16 %v4281, %v4280
  %4284 = vrot.lane.b32.xlu0 %v4282, 96
  %v4285 = vpop.permute.xlu0 %4284
  %v4287 = vsel %vm320, %v4285, 0
  %4289 = vmatprep.subr.bf16.mxu0 0
  %4290 = vmatpush1.bf16.msra.mxu0 %v898
  %4291 = vmatprep.subr.bf16.mxu0 0
  %4292 = vmatpush1.bf16.msra.mxu0 %v899
  %4293 = vmatprep.subr.bf16.mxu0 0
  %4294 = vmatpush1.bf16.msra.mxu0 0
  %4295 = vmatprep.subr.bf16.mxu0 0
  %4296 = vmatpush1.bf16.msra.mxu0 0
  %4297 = vmatprep.subr.bf16.mxu0 0
  %4298 = vmatpush1.bf16.msra.mxu0 0
  %4299 = vmatprep.subr.bf16.mxu0 0
  %4300 = vmatpush1.bf16.msra.mxu0 0
  %4301 = vmatprep.subr.bf16.mxu0 0
  %4302 = vmatpush1.bf16.msra.mxu0 0
  %4303 = vmatprep.subr.bf16.mxu0 0
  %4304 = vmatpush1.bf16.msra.mxu0 0
  %4305 = vmatprep.subr.bf16.mxu0 0
  %4306 = vmatpush1.bf16.msra.mxu0 0
  %4307 = vmatprep.subr.bf16.mxu0 0
  %4308 = vmatpush1.bf16.msra.mxu0 0
  %4309 = vmatprep.subr.bf16.mxu0 0
  %4310 = vmatpush1.bf16.msra.mxu0 0
  %4311 = vmatprep.subr.bf16.mxu0 0
  %4312 = vmatpush1.bf16.msra.mxu0 0
  %4313 = vmatprep.subr.bf16.mxu0 0
  %4314 = vmatpush1.bf16.msra.mxu0 0
  %4315 = vmatprep.subr.bf16.mxu0 0
  %4316 = vmatpush1.bf16.msra.mxu0 0
  %4317 = vmatprep.subr.bf16.mxu0 0
  %4318 = vmatpush1.bf16.msra.mxu0 0
  %4319 = vmatprep.subr.bf16.mxu0 0
  %4320 = vmatpush1.bf16.msra.mxu0 0
  %4321 = vmatprep.mubr.bf16.mxu0 0
  %4322 = vmatmul.mubr.bf16.gmra.mrb[0].mxu0 %v4287
  %v4323 = vpop.f32.mrb[0].mxu0
  %v4324 = vadd.f32 %v885, %v4323
  %v4325 = vpop.f32.mrb[0].mxu0
  %v4326 = vpop.f32.mrb[0].mxu0
  %v4327 = vadd.f32 %v885, %v4326
  %v4328 = vpop.f32.mrb[0].mxu0
  %4329 = vdwg.mxu0
  %v4330 = vmax.f32 %v4324, 0.0
  %v4331 = vmax.f32 %v4327, 0.0
  %v4332 = vpack.c.bf16 %v4331, %v4330
  %v4334 = vsel %vm320, %v4332, 0
  %4336 = vmatprep.subr.bf16.mxu0 0
  %4337 = vmatpush1.bf16.msra.mxu0 %v963
  %4338 = vmatprep.subr.bf16.mxu0 0
  %4339 = vmatpush1.bf16.msra.mxu0 %v964
  %4340 = vmatprep.subr.bf16.mxu0 0
  %4341 = vmatpush1.bf16.msra.mxu0 0
  %4342 = vmatprep.subr.bf16.mxu0 0
  %4343 = vmatpush1.bf16.msra.mxu0 0
  %4344 = vmatprep.subr.bf16.mxu0 0
  %4345 = vmatpush1.bf16.msra.mxu0 0
  %4346 = vmatprep.subr.bf16.mxu0 0
  %4347 = vmatpush1.bf16.msra.mxu0 0
  %4348 = vmatprep.subr.bf16.mxu0 0
  %4349 = vmatpush1.bf16.msra.mxu0 0
  %4350 = vmatprep.subr.bf16.mxu0 0
  %4351 = vmatpush1.bf16.msra.mxu0 0
  %4352 = vmatprep.subr.bf16.mxu0 0
  %4353 = vmatpush1.bf16.msra.mxu0 0
  %4354 = vmatprep.subr.bf16.mxu0 0
  %4355 = vmatpush1.bf16.msra.mxu0 0
  %4356 = vmatprep.subr.bf16.mxu0 0
  %4357 = vmatpush1.bf16.msra.mxu0 0
  %4358 = vmatprep.subr.bf16.mxu0 0
  %4359 = vmatpush1.bf16.msra.mxu0 0
  %4360 = vmatprep.subr.bf16.mxu0 0
  %4361 = vmatpush1.bf16.msra.mxu0 0
  %4362 = vmatprep.subr.bf16.mxu0 0
  %4363 = vmatpush1.bf16.msra.mxu0 0
  %4364 = vmatprep.subr.bf16.mxu0 0
  %4365 = vmatpush1.bf16.msra.mxu0 0
  %4366 = vmatprep.subr.bf16.mxu0 0
  %4367 = vmatpush1.bf16.msra.mxu0 0
  %4368 = vmatprep.mubr.bf16.mxu0 0
  %4369 = vmatmul.mubr.bf16.gmra.mrb[0].mxu0 %v4334
  %v4370 = vpop.f32.mrb[0].mxu0
  %v4371 = vadd.f32 %v953, %v4370
  %v4372 = vpop.f32.mrb[0].mxu0
  %v4373 = vpop.f32.mrb[0].mxu0
  %v4374 = vadd.f32 %v953, %v4373
  %v4375 = vpop.f32.mrb[0].mxu0
  %4376 = vdwg.mxu0
  %v4377 = vmax.f32 %v4371, 0.0
  %v4378 = vmax.f32 %v4374, 0.0
  %v4379 = vpack.c.bf16 %v4378, %v4377
  %v4381 = vsel %vm320, %v4379, 0
  %4383 = vmatprep.subr.bf16.mxu0 0
  %4384 = vmatpush1.bf16.msra.mxu0 %v1028
  %4385 = vmatprep.subr.bf16.mxu0 0
  %4386 = vmatpush1.bf16.msra.mxu0 %v1029
  %4387 = vmatprep.subr.bf16.mxu0 0
  %4388 = vmatpush1.bf16.msra.mxu0 0
  %4389 = vmatprep.subr.bf16.mxu0 0
  %4390 = vmatpush1.bf16.msra.mxu0 0
  %4391 = vmatprep.subr.bf16.mxu0 0
  %4392 = vmatpush1.bf16.msra.mxu0 0
  %4393 = vmatprep.subr.bf16.mxu0 0
  %4394 = vmatpush1.bf16.msra.mxu0 0
  %4395 = vmatprep.subr.bf16.mxu0 0
  %4396 = vmatpush1.bf16.msra.mxu0 0
  %4397 = vmatprep.subr.bf16.mxu0 0
  %4398 = vmatpush1.bf16.msra.mxu0 0
  %4399 = vmatprep.subr.bf16.mxu0 0
  %4400 = vmatpush1.bf16.msra.mxu0 0
  %4401 = vmatprep.subr.bf16.mxu0 0
  %4402 = vmatpush1.bf16.msra.mxu0 0
  %4403 = vmatprep.subr.bf16.mxu0 0
  %4404 = vmatpush1.bf16.msra.mxu0 0
  %4405 = vmatprep.subr.bf16.mxu0 0
  %4406 = vmatpush1.bf16.msra.mxu0 0
  %4407 = vmatprep.subr.bf16.mxu0 0
  %4408 = vmatpush1.bf16.msra.mxu0 0
  %4409 = vmatprep.subr.bf16.mxu0 0
  %4410 = vmatpush1.bf16.msra.mxu0 0
  %4411 = vmatprep.subr.bf16.mxu0 0
  %4412 = vmatpush1.bf16.msra.mxu0 0
  %4413 = vmatprep.subr.bf16.mxu0 0
  %4414 = vmatpush1.bf16.msra.mxu0 0
  %4415 = vmatprep.mubr.bf16.mxu0 0
  %4416 = vmatmul.mubr.bf16.gmra.mrb[0].mxu0 %v4381
  %v4417 = vpop.f32.mrb[0].mxu0
  %v4418 = vadd.f32 %v1018, %v4417
  %v4419 = vpop.f32.mrb[0].mxu0
  %v4420 = vpop.f32.mrb[0].mxu0
  %v4421 = vadd.f32 %v1018, %v4420
  %v4422 = vpop.f32.mrb[0].mxu0
  %4423 = vdwg.mxu0
  %v4424 = vmax.f32 %v4418, 0.0
  %v4425 = vmax.f32 %v4421, 0.0
  %v4426 = vadd.f32 %v3758, %v4424
  %v4427 = vadd.f32 %v3759, %v4425
  %s4428 = scalar_lea.vmem %s18, 80
  %4429 = vst [vmem:[%s4428] sm:$0xff] %v4426
  %4430 = vst [vmem:[%s4428 + $0x8] sm:$0x3] %v4427
  %v4431 = vpack.c.bf16 %v4427, %v4426
  %v4432 = vsel %vm164, %v4285, 0
  %4434 = vmatprep.subr.bf16.mxu0 0
  %4435 = vmatpush1.bf16.msra.mxu0 %v4432
  %4436 = vmatprep.subr.bf16.mxu0 0
  %4437 = vmatpush1.bf16.msra.mxu0 0
  %4438 = vmatprep.subr.bf16.mxu0 0
  %4439 = vmatpush1.bf16.msra.mxu0 0
  %4440 = vmatprep.subr.bf16.mxu0 0
  %4441 = vmatpush1.bf16.msra.mxu0 0
  %4442 = vmatprep.subr.bf16.mxu0 0
  %4443 = vmatpush1.bf16.msra.mxu0 0
  %4444 = vmatprep.subr.bf16.mxu0 0
  %4445 = vmatpush1.bf16.msra.mxu0 0
  %4446 = vmatprep.subr.bf16.mxu0 0
  %4447 = vmatpush1.bf16.msra.mxu0 0
  %4448 = vmatprep.subr.bf16.mxu0 0
  %4449 = vmatpush1.bf16.msra.mxu0 0
  %4450 = vmatprep.subr.bf16.mxu0 0
  %4451 = vmatpush1.bf16.msra.mxu0 0
  %4452 = vmatprep.subr.bf16.mxu0 0
  %4453 = vmatpush1.bf16.msra.mxu0 0
  %4454 = vmatprep.subr.bf16.mxu0 0
  %4455 = vmatpush1.bf16.msra.mxu0 0
  %4456 = vmatprep.subr.bf16.mxu0 0
  %4457 = vmatpush1.bf16.msra.mxu0 0
  %4458 = vmatprep.subr.bf16.mxu0 0
  %4459 = vmatpush1.bf16.msra.mxu0 0
  %4460 = vmatprep.subr.bf16.mxu0 0
  %4461 = vmatpush1.bf16.msra.mxu0 0
  %4462 = vmatprep.subr.bf16.mxu0 0
  %4463 = vmatpush1.bf16.msra.mxu0 0
  %4464 = vmatprep.subr.bf16.mxu0 0
  %4465 = vmatpush1.bf16.msra.mxu0 0
  %4466 = vmatprep.mubr.bf16.mxu0 0
  %4467 = vmatmul.mubr.bf16.gmra.mrb[0].mxu0 %v156
  %v4468 = vpop.f32.mrb[0].mxu0
  %v4469 = vadd.f32 0.0, %v4468
  %v4470 = vpop.f32.mrb[0].mxu0
  %v4471 = vpop.f32.mrb[0].mxu0
  %v4472 = vadd.f32 0.0, %v4471
  %v4473 = vpop.f32.mrb[0].mxu0
  %4474 = vmatprep.mubr.bf16.mxu0 0
  %4475 = vmatmul.mubr.bf16.gmra.mrb[0].mxu0 %v159
  %v4476 = vpop.f32.mrb[0].mxu0
  %v4477 = vadd.f32 0.0, %v4476
  %v4478 = vpop.f32.mrb[0].mxu0
  %v4479 = vpop.f32.mrb[0].mxu0
  %v4480 = vadd.f32 0.0, %v4479
  %v4481 = vpop.f32.mrb[0].mxu0
  %4482 = vmatprep.mubr.bf16.mxu0 0
  %4483 = vmatmul.mubr.bf16.gmra.mrb[0].mxu0 %v162
  %v4484 = vpop.f32.mrb[0].mxu0
  %v4485 = vadd.f32 0.0, %v4484
  %v4486 = vpop.f32.mrb[0].mxu0
  %v4487 = vpop.f32.mrb[0].mxu0
  %v4488 = vpop.f32.mrb[0].mxu0
  %4489 = vdwg.mxu0
  %4490 = vmatprep.subr.bf16.mxu0 0
  %4491 = vmatpush1.bf16.msra.mxu0 %v4432
  %4492 = vmatprep.subr.bf16.mxu0 0
  %4493 = vmatpush1.bf16.msra.mxu0 0
  %4494 = vmatprep.subr.bf16.mxu0 0
  %4495 = vmatpush1.bf16.msra.mxu0 0
  %4496 = vmatprep.subr.bf16.mxu0 0
  %4497 = vmatpush1.bf16.msra.mxu0 0
  %4498 = vmatprep.subr.bf16.mxu0 0
  %4499 = vmatpush1.bf16.msra.mxu0 0
  %4500 = vmatprep.subr.bf16.mxu0 0
  %4501 = vmatpush1.bf16.msra.mxu0 0
  %4502 = vmatprep.subr.bf16.mxu0 0
  %4503 = vmatpush1.bf16.msra.mxu0 0
  %4504 = vmatprep.subr.bf16.mxu0 0
  %4505 = vmatpush1.bf16.msra.mxu0 0
  %4506 = vmatprep.subr.bf16.mxu0 0
  %4507 = vmatpush1.bf16.msra.mxu0 0
  %4508 = vmatprep.subr.bf16.mxu0 0
  %4509 = vmatpush1.bf16.msra.mxu0 0
  %4510 = vmatprep.subr.bf16.mxu0 0
  %4511 = vmatpush1.bf16.msra.mxu0 0
  %4512 = vmatprep.subr.bf16.mxu0 0
  %4513 = vmatpush1.bf16.msra.mxu0 0
  %4514 = vmatprep.subr.bf16.mxu0 0
  %4515 = vmatpush1.bf16.msra.mxu0 0
  %4516 = vmatprep.subr.bf16.mxu0 0
  %4517 = vmatpush1.bf16.msra.mxu0 0
  %4518 = vmatprep.subr.bf16.mxu0 0
  %4519 = vmatpush1.bf16.msra.mxu0 0
  %4520 = vmatprep.subr.bf16.mxu0 0
  %4521 = vmatpush1.bf16.msra.mxu0 0
  %4522 = vmatprep.mubr.bf16.mxu0 0
  %4523 = vmatmul.mubr.bf16.gmra.mrb[0].mxu0 %v238
  %v4524 = vpop.f32.mrb[0].mxu0
  %v4525 = vadd.f32 0.0, %v4524
  %v4526 = vpop.f32.mrb[0].mxu0
  %v4527 = vpop.f32.mrb[0].mxu0
  %v4528 = vadd.f32 0.0, %v4527
  %v4529 = vpop.f32.mrb[0].mxu0
  %4530 = vmatprep.mubr.bf16.mxu0 0
  %4531 = vmatmul.mubr.bf16.gmra.mrb[0].mxu0 %v241
  %v4532 = vpop.f32.mrb[0].mxu0
  %v4533 = vadd.f32 0.0, %v4532
  %v4534 = vpop.f32.mrb[0].mxu0
  %v4535 = vpop.f32.mrb[0].mxu0
  %v4536 = vadd.f32 0.0, %v4535
  %v4537 = vpop.f32.mrb[0].mxu0
  %4538 = vmatprep.mubr.bf16.mxu0 0
  %4539 = vmatmul.mubr.bf16.gmra.mrb[0].mxu0 %v244
  %v4540 = vpop.f32.mrb[0].mxu0
  %v4541 = vadd.f32 0.0, %v4540
  %v4542 = vpop.f32.mrb[0].mxu0
  %v4543 = vpop.f32.mrb[0].mxu0
  %v4544 = vpop.f32.mrb[0].mxu0
  %4545 = vdwg.mxu0
  %v4546 = vpack.c.bf16 %v4472, %v4469
  %v4547 = vpack.c.bf16 %v4480, %v4477
  %v4548 = vpack.c.bf16 %v4485, %v4485
  %v4549 = vpack.c.bf16 %v4528, %v4525
  %v4550 = vpack.c.bf16 %v4536, %v4533
  %v4551 = vpack.c.bf16 %v4541, %v4541
  %v4553 = vsel %vm320, %v4549, 0
  %v4556 = vsel %vm320, %v4550, 0
  %v4559 = vsel %vm320, %v4551, 0
  %4561 = vmatprep.subr.bf16.mxu0 0
  %4562 = vmatpush1.bf16.msra.mxu0 %v316
  %4563 = vmatprep.subr.bf16.mxu0 0
  %4564 = vmatpush1.bf16.msra.mxu0 %v317
  %4565 = vmatprep.subr.bf16.mxu0 0
  %4566 = vmatpush1.bf16.msra.mxu0 0
  %4567 = vmatprep.subr.bf16.mxu0 0
  %4568 = vmatpush1.bf16.msra.mxu0 0
  %4569 = vmatprep.subr.bf16.mxu0 0
  %4570 = vmatpush1.bf16.msra.mxu0 0
  %4571 = vmatprep.subr.bf16.mxu0 0
  %4572 = vmatpush1.bf16.msra.mxu0 0
  %4573 = vmatprep.subr.bf16.mxu0 0
  %4574 = vmatpush1.bf16.msra.mxu0 0
  %4575 = vmatprep.subr.bf16.mxu0 0
  %4576 = vmatpush1.bf16.msra.mxu0 0
  %4577 = vmatprep.subr.bf16.mxu0 0
  %4578 = vmatpush1.bf16.msra.mxu0 0
  %4579 = vmatprep.subr.bf16.mxu0 0
  %4580 = vmatpush1.bf16.msra.mxu0 0
  %4581 = vmatprep.subr.bf16.mxu0 0
  %4582 = vmatpush1.bf16.msra.mxu0 0
  %4583 = vmatprep.subr.bf16.mxu0 0
  %4584 = vmatpush1.bf16.msra.mxu0 0
  %4585 = vmatprep.subr.bf16.mxu0 0
  %4586 = vmatpush1.bf16.msra.mxu0 0
  %4587 = vmatprep.subr.bf16.mxu0 0
  %4588 = vmatpush1.bf16.msra.mxu0 0
  %4589 = vmatprep.subr.bf16.mxu0 0
  %4590 = vmatpush1.bf16.msra.mxu0 0
  %4591 = vmatprep.subr.bf16.mxu0 0
  %4592 = vmatpush1.bf16.msra.mxu0 0
  %4593 = vmatprep.mubr.bf16.mxu0 0
  %4594 = vmatmul.mubr.bf16.gmra.mrb[0].mxu0 %v4553
  %v4595 = vpop.f32.mrb[0].mxu0
  %v4596 = vadd.f32 0.0, %v4595
  %v4597 = vpop.f32.mrb[0].mxu0
  %v4598 = vpop.f32.mrb[0].mxu0
  %v4599 = vadd.f32 0.0, %v4598
  %v4600 = vpop.f32.mrb[0].mxu0
  %4601 = vmatprep.mubr.bf16.mxu0 0
  %4602 = vmatmul.mubr.bf16.gmra.mrb[0].mxu0 %v4556
  %v4603 = vpop.f32.mrb[0].mxu0
  %v4604 = vadd.f32 0.0, %v4603
  %v4605 = vpop.f32.mrb[0].mxu0
  %v4606 = vpop.f32.mrb[0].mxu0
  %v4607 = vadd.f32 0.0, %v4606
  %v4608 = vpop.f32.mrb[0].mxu0
  %4609 = vmatprep.mubr.bf16.mxu0 0
  %4610 = vmatmul.mubr.bf16.gmra.mrb[0].mxu0 %v4559
  %v4611 = vpop.f32.mrb[0].mxu0
  %v4612 = vadd.f32 0.0, %v4611
  %v4613 = vpop.f32.mrb[0].mxu0
  %v4614 = vpop.f32.mrb[0].mxu0
  %v4615 = vpop.f32.mrb[0].mxu0
  %4616 = vdwg.mxu0
  %v4618 = vsel %vm320, %v4546, 0
  %v4621 = vsel %vm320, %v4547, 0
  %v4624 = vsel %vm320, %v4548, 0
  %4626 = vmatprep.subr.bf16.mxu0 0
  %4627 = vmatpush1.bf16.msra.mxu0 %v394
  %4628 = vmatprep.subr.bf16.mxu0 0
  %4629 = vmatpush1.bf16.msra.mxu0 %v395
  %4630 = vmatprep.subr.bf16.mxu0 0
  %4631 = vmatpush1.bf16.msra.mxu0 0
  %4632 = vmatprep.subr.bf16.mxu0 0
  %4633 = vmatpush1.bf16.msra.mxu0 0
  %4634 = vmatprep.subr.bf16.mxu0 0
  %4635 = vmatpush1.bf16.msra.mxu0 0
  %4636 = vmatprep.subr.bf16.mxu0 0
  %4637 = vmatpush1.bf16.msra.mxu0 0
  %4638 = vmatprep.subr.bf16.mxu0 0
  %4639 = vmatpush1.bf16.msra.mxu0 0
  %4640 = vmatprep.subr.bf16.mxu0 0
  %4641 = vmatpush1.bf16.msra.mxu0 0
  %4642 = vmatprep.subr.bf16.mxu0 0
  %4643 = vmatpush1.bf16.msra.mxu0 0
  %4644 = vmatprep.subr.bf16.mxu0 0
  %4645 = vmatpush1.bf16.msra.mxu0 0
  %4646 = vmatprep.subr.bf16.mxu0 0
  %4647 = vmatpush1.bf16.msra.mxu0 0
  %4648 = vmatprep.subr.bf16.mxu0 0
  %4649 = vmatpush1.bf16.msra.mxu0 0
  %4650 = vmatprep.subr.bf16.mxu0 0
  %4651 = vmatpush1.bf16.msra.mxu0 0
  %4652 = vmatprep.subr.bf16.mxu0 0
  %4653 = vmatpush1.bf16.msra.mxu0 0
  %4654 = vmatprep.subr.bf16.mxu0 0
  %4655 = vmatpush1.bf16.msra.mxu0 0
  %4656 = vmatprep.subr.bf16.mxu0 0
  %4657 = vmatpush1.bf16.msra.mxu0 0
  %4658 = vmatprep.mubr.bf16.mxu0 0
  %4659 = vmatmul.mubr.bf16.gmra.mrb[0].mxu0 %v4618
  %v4660 = vpop.f32.mrb[0].mxu0
  %v4661 = vadd.f32 %v4596, %v4660
  %v4662 = vpop.f32.mrb[0].mxu0
  %v4663 = vpop.f32.mrb[0].mxu0
  %v4664 = vadd.f32 %v4599, %v4663
  %v4665 = vpop.f32.mrb[0].mxu0
  %4666 = vmatprep.mubr.bf16.mxu0 0
  %4667 = vmatmul.mubr.bf16.gmra.mrb[0].mxu0 %v4621
  %v4668 = vpop.f32.mrb[0].mxu0
  %v4669 = vadd.f32 %v4604, %v4668
  %v4670 = vpop.f32.mrb[0].mxu0
  %v4671 = vpop.f32.mrb[0].mxu0
  %v4672 = vadd.f32 %v4607, %v4671
  %v4673 = vpop.f32.mrb[0].mxu0
  %4674 = vmatprep.mubr.bf16.mxu0 0
  %4675 = vmatmul.mubr.bf16.gmra.mrb[0].mxu0 %v4624
  %v4676 = vpop.f32.mrb[0].mxu0
  %v4677 = vadd.f32 %v4612, %v4676
  %v4678 = vpop.f32.mrb[0].mxu0
  %v4679 = vpop.f32.mrb[0].mxu0
  %v4680 = vpop.f32.mrb[0].mxu0
  %4681 = vdwg.mxu0
  %v4682 = vadd.f32 %v4661, %v467
  %v4683 = vadd.f32 %v4664, %v467
  %v4684 = vadd.f32 %v4669, %v467
  %v4685 = vadd.f32 %v4672, %v467
  %v4686 = vadd.f32 %v4677, %v467
  %v4687 = vtanh.pop %v4682
  %v4688 = vtanh.pop %v4683
  %v4689 = vtanh.pop %v4684
  %v4690 = vtanh.pop %v4685
  %v4691 = vtanh.pop %v4686
  %v4692 = vpack.c.bf16 %v4688, %v4687
  %v4693 = vpack.c.bf16 %v4690, %v4689
  %v4694 = vpack.c.bf16 %v4691, %v4691
  %v4696 = vsel %vm524, %v4692, 0
  %v4699 = vsel %vm524, %v4693, 0
  %v4702 = vsel %vm524, %v4694, 0
  %4704 = vmatprep.subr.bf16.mxu0 0
  %4705 = vmatpush1.bf16.msra.mxu0 %v512
  %4706 = vmatprep.subr.bf16.mxu0 0
  %4707 = vmatpush1.bf16.msra.mxu0 %v513
  %4708 = vmatprep.subr.bf16.mxu0 0
  %4709 = vmatpush1.bf16.msra.mxu0 %v514
  %4710 = vmatprep.subr.bf16.mxu0 0
  %4711 = vmatpush1.bf16.msra.mxu0 %v515
  %4712 = vmatprep.subr.bf16.mxu0 0
  %4713 = vmatpush1.bf16.msra.mxu0 %v516
  %4714 = vmatprep.subr.bf16.mxu0 0
  %4715 = vmatpush1.bf16.msra.mxu0 %v517
  %4716 = vmatprep.subr.bf16.mxu0 0
  %4717 = vmatpush1.bf16.msra.mxu0 0
  %4718 = vmatprep.subr.bf16.mxu0 0
  %4719 = vmatpush1.bf16.msra.mxu0 0
  %4720 = vmatprep.subr.bf16.mxu0 0
  %4721 = vmatpush1.bf16.msra.mxu0 0
  %4722 = vmatprep.subr.bf16.mxu0 0
  %4723 = vmatpush1.bf16.msra.mxu0 0
  %4724 = vmatprep.subr.bf16.mxu0 0
  %4725 = vmatpush1.bf16.msra.mxu0 0
  %4726 = vmatprep.subr.bf16.mxu0 0
  %4727 = vmatpush1.bf16.msra.mxu0 0
  %4728 = vmatprep.subr.bf16.mxu0 0
  %4729 = vmatpush1.bf16.msra.mxu0 0
  %4730 = vmatprep.subr.bf16.mxu0 0
  %4731 = vmatpush1.bf16.msra.mxu0 0
  %4732 = vmatprep.subr.bf16.mxu0 0
  %4733 = vmatpush1.bf16.msra.mxu0 0
  %4734 = vmatprep.subr.bf16.mxu0 0
  %4735 = vmatpush1.bf16.msra.mxu0 0
  %4736 = vmatprep.mubr.bf16.mxu0 0
  %4737 = vmatmul.mubr.bf16.gmra.mrb[0].mxu0 %v4696
  %v4738 = vpop.f32.mrb[0].mxu0
  %v4739 = vadd.f32 %v486, %v4738
  %v4740 = vpop.f32.mrb[0].mxu0
  %v4741 = vpop.f32.mrb[0].mxu0
  %v4742 = vadd.f32 %v486, %v4741
  %v4743 = vpop.f32.mrb[0].mxu0
  %4744 = vmatprep.mubr.bf16.mxu0 0
  %4745 = vmatmul.mubr.bf16.gmra.mrb[0].mxu0 %v4699
  %v4746 = vpop.f32.mrb[0].mxu0
  %v4747 = vadd.f32 %v486, %v4746
  %v4748 = vpop.f32.mrb[0].mxu0
  %v4749 = vpop.f32.mrb[0].mxu0
  %v4750 = vadd.f32 %v486, %v4749
  %v4751 = vpop.f32.mrb[0].mxu0
  %4752 = vmatprep.mubr.bf16.mxu0 0
  %4753 = vmatmul.mubr.bf16.gmra.mrb[0].mxu0 %v4702
  %v4754 = vpop.f32.mrb[0].mxu0
  %v4755 = vadd.f32 %v486, %v4754
  %v4756 = vpop.f32.mrb[0].mxu0
  %v4757 = vpop.f32.mrb[0].mxu0
  %v4758 = vpop.f32.mrb[0].mxu0
  %4759 = vdwg.mxu0
  %v4760 = vtanh.pop %v4739
  %v4761 = vtanh.pop %v4742
  %v4762 = vtanh.pop %v4747
  %v4763 = vtanh.pop %v4750
  %v4764 = vtanh.pop %v4755
  %v4765 = vpack.c.bf16 %v4761, %v4760
  %v4766 = vpack.c.bf16 %v4763, %v4762
  %v4767 = vpack.c.bf16 %v4764, %v4764
  %v4769 = vsel %vm607, %v4767, 0
  %4771 = vmatprep.subr.bf16.mxu0 0
  %4772 = vmatpush1.bf16.msra.mxu0 %v4765
  %4773 = vmatprep.subr.bf16.mxu0 0
  %4774 = vmatpush1.bf16.msra.mxu0 %v4766
  %4775 = vmatprep.subr.bf16.mxu0 0
  %4776 = vmatpush1.bf16.msra.mxu0 %v4769
  %4777 = vmatprep.subr.bf16.mxu0 0
  %4778 = vmatpush1.bf16.msra.mxu0 0
  %4779 = vmatprep.subr.bf16.mxu0 0
  %4780 = vmatpush1.bf16.msra.mxu0 0
  %4781 = vmatprep.subr.bf16.mxu0 0
  %4782 = vmatpush1.bf16.msra.mxu0 0
  %4783 = vmatprep.subr.bf16.mxu0 0
  %4784 = vmatpush1.bf16.msra.mxu0 0
  %4785 = vmatprep.subr.bf16.mxu0 0
  %4786 = vmatpush1.bf16.msra.mxu0 0
  %4787 = vmatprep.subr.bf16.mxu0 0
  %4788 = vmatpush1.bf16.msra.mxu0 0
  %4789 = vmatprep.subr.bf16.mxu0 0
  %4790 = vmatpush1.bf16.msra.mxu0 0
  %4791 = vmatprep.subr.bf16.mxu0 0
  %4792 = vmatpush1.bf16.msra.mxu0 0
  %4793 = vmatprep.subr.bf16.mxu0 0
  %4794 = vmatpush1.bf16.msra.mxu0 0
  %4795 = vmatprep.subr.bf16.mxu0 0
  %4796 = vmatpush1.bf16.msra.mxu0 0
  %4797 = vmatprep.subr.bf16.mxu0 0
  %4798 = vmatpush1.bf16.msra.mxu0 0
  %4799 = vmatprep.subr.bf16.mxu0 0
  %4800 = vmatpush1.bf16.msra.mxu0 0
  %4801 = vmatprep.subr.bf16.mxu0 0
  %4802 = vmatpush1.bf16.msra.mxu0 0
  %4803 = vmatprep.mubr.bf16.mxu0 0
  %4804 = vmatmul.mubr.bf16.gmra.mrb[0].mxu0 %v605
  %v4805 = vpop.f32.mrb[0].mxu0
  %v4806 = vadd.f32 0.0, %v4805
  %v4807 = vpop.f32.mrb[0].mxu0
  %v4808 = vpop.f32.mrb[0].mxu0
  %v4809 = vadd.f32 0.0, %v4808
  %v4810 = vpop.f32.mrb[0].mxu0
  %4811 = vdwg.mxu0
  %v4812 = vpack.c.bf16 %v4809, %v4806
  %v4814 = vsel %vm524, %v4812, 0
  %4816 = vmatprep.subr.bf16.mxu0 0
  %4817 = vmatpush1.bf16.msra.mxu0 %v677
  %4818 = vmatprep.subr.bf16.mxu0 0
  %4819 = vmatpush1.bf16.msra.mxu0 %v678
  %4820 = vmatprep.subr.bf16.mxu0 0
  %4821 = vmatpush1.bf16.msra.mxu0 %v679
  %4822 = vmatprep.subr.bf16.mxu0 0
  %4823 = vmatpush1.bf16.msra.mxu0 %v680
  %4824 = vmatprep.subr.bf16.mxu0 0
  %4825 = vmatpush1.bf16.msra.mxu0 %v681
  %4826 = vmatprep.subr.bf16.mxu0 0
  %4827 = vmatpush1.bf16.msra.mxu0 %v682
  %4828 = vmatprep.subr.bf16.mxu0 0
  %4829 = vmatpush1.bf16.msra.mxu0 0
  %4830 = vmatprep.subr.bf16.mxu0 0
  %4831 = vmatpush1.bf16.msra.mxu0 0
  %4832 = vmatprep.subr.bf16.mxu0 0
  %4833 = vmatpush1.bf16.msra.mxu0 0
  %4834 = vmatprep.subr.bf16.mxu0 0
  %4835 = vmatpush1.bf16.msra.mxu0 0
  %4836 = vmatprep.subr.bf16.mxu0 0
  %4837 = vmatpush1.bf16.msra.mxu0 0
  %4838 = vmatprep.subr.bf16.mxu0 0
  %4839 = vmatpush1.bf16.msra.mxu0 0
  %4840 = vmatprep.subr.bf16.mxu0 0
  %4841 = vmatpush1.bf16.msra.mxu0 0
  %4842 = vmatprep.subr.bf16.mxu0 0
  %4843 = vmatpush1.bf16.msra.mxu0 0
  %4844 = vmatprep.subr.bf16.mxu0 0
  %4845 = vmatpush1.bf16.msra.mxu0 0
  %4846 = vmatprep.subr.bf16.mxu0 0
  %4847 = vmatpush1.bf16.msra.mxu0 0
  %4848 = vmatprep.mubr.bf16.mxu0 0
  %4849 = vmatmul.mubr.bf16.gmra.mrb[0].mxu0 %v4814
  %v4850 = vpop.f32.mrb[0].mxu0
  %v4851 = vadd.f32 0.0, %v4850
  %v4852 = vpop.f32.mrb[0].mxu0
  %v4853 = vpop.f32.mrb[0].mxu0
  %v4854 = vadd.f32 0.0, %v4853
  %v4855 = vpop.f32.mrb[0].mxu0
  %4856 = vdwg.mxu0
  %4857 = vmatprep.subr.bf16.mxu0 0
  %4858 = vmatpush1.bf16.msra.mxu0 %v771
  %4859 = vmatprep.subr.bf16.mxu0 0
  %4860 = vmatpush1.bf16.msra.mxu0 %v772
  %4861 = vmatprep.subr.bf16.mxu0 0
  %4862 = vmatpush1.bf16.msra.mxu0 %v773
  %4863 = vmatprep.subr.bf16.mxu0 0
  %4864 = vmatpush1.bf16.msra.mxu0 %v774
  %4865 = vmatprep.subr.bf16.mxu0 0
  %4866 = vmatpush1.bf16.msra.mxu0 %v775
  %4867 = vmatprep.subr.bf16.mxu0 0
  %4868 = vmatpush1.bf16.msra.mxu0 %v776
  %4869 = vmatprep.subr.bf16.mxu0 0
  %4870 = vmatpush1.bf16.msra.mxu0 %v777
  %4871 = vmatprep.subr.bf16.mxu0 0
  %4872 = vmatpush1.bf16.msra.mxu0 %v778
  %4873 = vmatprep.subr.bf16.mxu0 0
  %4874 = vmatpush1.bf16.msra.mxu0 0
  %4875 = vmatprep.subr.bf16.mxu0 0
  %4876 = vmatpush1.bf16.msra.mxu0 0
  %4877 = vmatprep.subr.bf16.mxu0 0
  %4878 = vmatpush1.bf16.msra.mxu0 0
  %4879 = vmatprep.subr.bf16.mxu0 0
  %4880 = vmatpush1.bf16.msra.mxu0 0
  %4881 = vmatprep.subr.bf16.mxu0 0
  %4882 = vmatpush1.bf16.msra.mxu0 0
  %4883 = vmatprep.subr.bf16.mxu0 0
  %4884 = vmatpush1.bf16.msra.mxu0 0
  %4885 = vmatprep.subr.bf16.mxu0 0
  %4886 = vmatpush1.bf16.msra.mxu0 0
  %4887 = vmatprep.subr.bf16.mxu0 0
  %4888 = vmatpush1.bf16.msra.mxu0 0
  %4889 = vmatprep.mubr.bf16.mxu0 0
  %4890 = vmatmul.mubr.bf16.gmra.mrb[0].mxu0 %v4431
  %v4891 = vpop.f32.mrb[0].mxu0
  %v4892 = vadd.f32 %v737, %v4891
  %v4893 = vpop.f32.mrb[0].mxu0
  %v4894 = vpop.f32.mrb[0].mxu0
  %v4895 = vadd.f32 %v737, %v4894
  %v4896 = vpop.f32.mrb[0].mxu0
  %4897 = vdwg.mxu0
  %v4898 = vadd.f32 %v4892, %v4851
  %v4899 = vadd.f32 %v4895, %v4854
  %v4900 = vxor.u32 %v4898, 2147483648
  %v4901 = vxor.u32 %v4899, 2147483648
  %v4902 = vmul.f32 %v4900, 1.442695
  %v4903 = vpow.pop %v4902
  %v4904 = vmul.f32 %v4901, 1.442695
  %v4905 = vpow.pop %v4904
  %v4906 = vadd.f32 %v4903, 1.0
  %v4907 = vadd.f32 %v4905, 1.0
  %v4908 = vrcp.pop %v4906
  %v4909 = vmul.f32 1.0, %v4908
  %v4910 = vrcp.pop %v4907
  %v4911 = vmul.f32 1.0, %v4910
  %4914 = vrot.lane.b32.xlu0 %v4851, 64
  %v4915 = vpop.permute.xlu0 %4914
  %4916 = vrot.lane.b32.xlu0 %v4854, 64
  %v4917 = vpop.permute.xlu0 %4916
  %v4920 = vmul.f32 %v4909, %v4915
  %v4921 = vmul.f32 %v4911, %v4917
  %4924 = vrot.lane.b32.xlu0 %v4920, 64
  %v4925 = vpop.permute.xlu0 %4924
  %4926 = vrot.lane.b32.xlu0 %v4921, 64
  %v4927 = vpop.permute.xlu0 %4926
  %v4930 = vadd.f32 %v4892, %v4925
  %v4931 = vadd.f32 %v4895, %v4927
  %v4932 = vtanh.pop %v4930
  %v4933 = vtanh.pop %v4931
  %v4934 = vsub.f32 1.0, %v4909
  %v4935 = vsub.f32 1.0, %v4911
  %4938 = vrot.lane.b32.xlu0 %v4932, 96
  %v4939 = vpop.permute.xlu0 %4938
  %4940 = vrot.lane.b32.xlu0 %v4933, 96
  %v4941 = vpop.permute.xlu0 %4940
  %v4944 = vmul.f32 %v4934, %v4939
  %v4945 = vmul.f32 %v4935, %v4941
  %v4946 = vmul.f32 %v4909, %v4280
  %v4947 = vmul.f32 %v4911, %v4281
  %v4948 = vadd.f32 %v4944, %v4946
  %v4949 = vadd.f32 %v4945, %v4947
  %v4950 = vpack.c.bf16 %v4949, %v4948
  %4952 = vrot.lane.b32.xlu0 %v4950, 96
  %v4953 = vpop.permute.xlu0 %4952
  %v4955 = vsel %vm320, %v4953, 0
  %4957 = vmatprep.subr.bf16.mxu0 0
  %4958 = vmatpush1.bf16.msra.mxu0 %v898
  %4959 = vmatprep.subr.bf16.mxu0 0
  %4960 = vmatpush1.bf16.msra.mxu0 %v899
  %4961 = vmatprep.subr.bf16.mxu0 0
  %4962 = vmatpush1.bf16.msra.mxu0 0
  %4963 = vmatprep.subr.bf16.mxu0 0
  %4964 = vmatpush1.bf16.msra.mxu0 0
  %4965 = vmatprep.subr.bf16.mxu0 0
  %4966 = vmatpush1.bf16.msra.mxu0 0
  %4967 = vmatprep.subr.bf16.mxu0 0
  %4968 = vmatpush1.bf16.msra.mxu0 0
  %4969 = vmatprep.subr.bf16.mxu0 0
  %4970 = vmatpush1.bf16.msra.mxu0 0
  %4971 = vmatprep.subr.bf16.mxu0 0
  %4972 = vmatpush1.bf16.msra.mxu0 0
  %4973 = vmatprep.subr.bf16.mxu0 0
  %4974 = vmatpush1.bf16.msra.mxu0 0
  %4975 = vmatprep.subr.bf16.mxu0 0
  %4976 = vmatpush1.bf16.msra.mxu0 0
  %4977 = vmatprep.subr.bf16.mxu0 0
  %4978 = vmatpush1.bf16.msra.mxu0 0
  %4979 = vmatprep.subr.bf16.mxu0 0
  %4980 = vmatpush1.bf16.msra.mxu0 0
  %4981 = vmatprep.subr.bf16.mxu0 0
  %4982 = vmatpush1.bf16.msra.mxu0 0
  %4983 = vmatprep.subr.bf16.mxu0 0
  %4984 = vmatpush1.bf16.msra.mxu0 0
  %4985 = vmatprep.subr.bf16.mxu0 0
  %4986 = vmatpush1.bf16.msra.mxu0 0
  %4987 = vmatprep.subr.bf16.mxu0 0
  %4988 = vmatpush1.bf16.msra.mxu0 0
  %4989 = vmatprep.mubr.bf16.mxu0 0
  %4990 = vmatmul.mubr.bf16.gmra.mrb[0].mxu0 %v4955
  %v4991 = vpop.f32.mrb[0].mxu0
  %v4992 = vadd.f32 %v885, %v4991
  %v4993 = vpop.f32.mrb[0].mxu0
  %v4994 = vpop.f32.mrb[0].mxu0
  %v4995 = vadd.f32 %v885, %v4994
  %v4996 = vpop.f32.mrb[0].mxu0
  %4997 = vdwg.mxu0
  %v4998 = vmax.f32 %v4992, 0.0
  %v4999 = vmax.f32 %v4995, 0.0
  %v5000 = vpack.c.bf16 %v4999, %v4998
  %v5002 = vsel %vm320, %v5000, 0
  %5004 = vmatprep.subr.bf16.mxu0 0
  %5005 = vmatpush1.bf16.msra.mxu0 %v963
  %5006 = vmatprep.subr.bf16.mxu0 0
  %5007 = vmatpush1.bf16.msra.mxu0 %v964
  %5008 = vmatprep.subr.bf16.mxu0 0
  %5009 = vmatpush1.bf16.msra.mxu0 0
  %5010 = vmatprep.subr.bf16.mxu0 0
  %5011 = vmatpush1.bf16.msra.mxu0 0
  %5012 = vmatprep.subr.bf16.mxu0 0
  %5013 = vmatpush1.bf16.msra.mxu0 0
  %5014 = vmatprep.subr.bf16.mxu0 0
  %5015 = vmatpush1.bf16.msra.mxu0 0
  %5016 = vmatprep.subr.bf16.mxu0 0
  %5017 = vmatpush1.bf16.msra.mxu0 0
  %5018 = vmatprep.subr.bf16.mxu0 0
  %5019 = vmatpush1.bf16.msra.mxu0 0
  %5020 = vmatprep.subr.bf16.mxu0 0
  %5021 = vmatpush1.bf16.msra.mxu0 0
  %5022 = vmatprep.subr.bf16.mxu0 0
  %5023 = vmatpush1.bf16.msra.mxu0 0
  %5024 = vmatprep.subr.bf16.mxu0 0
  %5025 = vmatpush1.bf16.msra.mxu0 0
  %5026 = vmatprep.subr.bf16.mxu0 0
  %5027 = vmatpush1.bf16.msra.mxu0 0
  %5028 = vmatprep.subr.bf16.mxu0 0
  %5029 = vmatpush1.bf16.msra.mxu0 0
  %5030 = vmatprep.subr.bf16.mxu0 0
  %5031 = vmatpush1.bf16.msra.mxu0 0
  %5032 = vmatprep.subr.bf16.mxu0 0
  %5033 = vmatpush1.bf16.msra.mxu0 0
  %5034 = vmatprep.subr.bf16.mxu0 0
  %5035 = vmatpush1.bf16.msra.mxu0 0
  %5036 = vmatprep.mubr.bf16.mxu0 0
  %5037 = vmatmul.mubr.bf16.gmra.mrb[0].mxu0 %v5002
  %v5038 = vpop.f32.mrb[0].mxu0
  %v5039 = vadd.f32 %v953, %v5038
  %v5040 = vpop.f32.mrb[0].mxu0
  %v5041 = vpop.f32.mrb[0].mxu0
  %v5042 = vadd.f32 %v953, %v5041
  %v5043 = vpop.f32.mrb[0].mxu0
  %5044 = vdwg.mxu0
  %v5045 = vmax.f32 %v5039, 0.0
  %v5046 = vmax.f32 %v5042, 0.0
  %v5047 = vpack.c.bf16 %v5046, %v5045
  %v5049 = vsel %vm320, %v5047, 0
  %5051 = vmatprep.subr.bf16.mxu0 0
  %5052 = vmatpush1.bf16.msra.mxu0 %v1028
  %5053 = vmatprep.subr.bf16.mxu0 0
  %5054 = vmatpush1.bf16.msra.mxu0 %v1029
  %5055 = vmatprep.subr.bf16.mxu0 0
  %5056 = vmatpush1.bf16.msra.mxu0 0
  %5057 = vmatprep.subr.bf16.mxu0 0
  %5058 = vmatpush1.bf16.msra.mxu0 0
  %5059 = vmatprep.subr.bf16.mxu0 0
  %5060 = vmatpush1.bf16.msra.mxu0 0
  %5061 = vmatprep.subr.bf16.mxu0 0
  %5062 = vmatpush1.bf16.msra.mxu0 0
  %5063 = vmatprep.subr.bf16.mxu0 0
  %5064 = vmatpush1.bf16.msra.mxu0 0
  %5065 = vmatprep.subr.bf16.mxu0 0
  %5066 = vmatpush1.bf16.msra.mxu0 0
  %5067 = vmatprep.subr.bf16.mxu0 0
  %5068 = vmatpush1.bf16.msra.mxu0 0
  %5069 = vmatprep.subr.bf16.mxu0 0
  %5070 = vmatpush1.bf16.msra.mxu0 0
  %5071 = vmatprep.subr.bf16.mxu0 0
  %5072 = vmatpush1.bf16.msra.mxu0 0
  %5073 = vmatprep.subr.bf16.mxu0 0
  %5074 = vmatpush1.bf16.msra.mxu0 0
  %5075 = vmatprep.subr.bf16.mxu0 0
  %5076 = vmatpush1.bf16.msra.mxu0 0
  %5077 = vmatprep.subr.bf16.mxu0 0
  %5078 = vmatpush1.bf16.msra.mxu0 0
  %5079 = vmatprep.subr.bf16.mxu0 0
  %5080 = vmatpush1.bf16.msra.mxu0 0
  %5081 = vmatprep.subr.bf16.mxu0 0
  %5082 = vmatpush1.bf16.msra.mxu0 0
  %5083 = vmatprep.mubr.bf16.mxu0 0
  %5084 = vmatmul.mubr.bf16.gmra.mrb[0].mxu0 %v5049
  %v5085 = vpop.f32.mrb[0].mxu0
  %v5086 = vadd.f32 %v1018, %v5085
  %v5087 = vpop.f32.mrb[0].mxu0
  %v5088 = vpop.f32.mrb[0].mxu0
  %v5089 = vadd.f32 %v1018, %v5088
  %v5090 = vpop.f32.mrb[0].mxu0
  %5091 = vdwg.mxu0
  %v5092 = vmax.f32 %v5086, 0.0
  %v5093 = vmax.f32 %v5089, 0.0
  %v5094 = vadd.f32 %v4426, %v5092
  %v5095 = vadd.f32 %v4427, %v5093
  %s5096 = scalar_lea.vmem %s18, 96
  %5097 = vst [vmem:[%s5096] sm:$0xff] %v5094
  %5098 = vst [vmem:[%s5096 + $0x8] sm:$0x3] %v5095
  %v5099 = vpack.c.bf16 %v5095, %v5094
  %v5100 = vsel %vm164, %v4953, 0
  %5102 = vmatprep.subr.bf16.mxu0 0
  %5103 = vmatpush1.bf16.msra.mxu0 %v5100
  %5104 = vmatprep.subr.bf16.mxu0 0
  %5105 = vmatpush1.bf16.msra.mxu0 0
  %5106 = vmatprep.subr.bf16.mxu0 0
  %5107 = vmatpush1.bf16.msra.mxu0 0
  %5108 = vmatprep.subr.bf16.mxu0 0
  %5109 = vmatpush1.bf16.msra.mxu0 0
  %5110 = vmatprep.subr.bf16.mxu0 0
  %5111 = vmatpush1.bf16.msra.mxu0 0
  %5112 = vmatprep.subr.bf16.mxu0 0
  %5113 = vmatpush1.bf16.msra.mxu0 0
  %5114 = vmatprep.subr.bf16.mxu0 0
  %5115 = vmatpush1.bf16.msra.mxu0 0
  %5116 = vmatprep.subr.bf16.mxu0 0
  %5117 = vmatpush1.bf16.msra.mxu0 0
  %5118 = vmatprep.subr.bf16.mxu0 0
  %5119 = vmatpush1.bf16.msra.mxu0 0
  %5120 = vmatprep.subr.bf16.mxu0 0
  %5121 = vmatpush1.bf16.msra.mxu0 0
  %5122 = vmatprep.subr.bf16.mxu0 0
  %5123 = vmatpush1.bf16.msra.mxu0 0
  %5124 = vmatprep.subr.bf16.mxu0 0
  %5125 = vmatpush1.bf16.msra.mxu0 0
  %5126 = vmatprep.subr.bf16.mxu0 0
  %5127 = vmatpush1.bf16.msra.mxu0 0
  %5128 = vmatprep.subr.bf16.mxu0 0
  %5129 = vmatpush1.bf16.msra.mxu0 0
  %5130 = vmatprep.subr.bf16.mxu0 0
  %5131 = vmatpush1.bf16.msra.mxu0 0
  %5132 = vmatprep.subr.bf16.mxu0 0
  %5133 = vmatpush1.bf16.msra.mxu0 0
  %5134 = vmatprep.mubr.bf16.mxu0 0
  %5135 = vmatmul.mubr.bf16.gmra.mrb[0].mxu0 %v156
  %v5136 = vpop.f32.mrb[0].mxu0
  %v5137 = vadd.f32 0.0, %v5136
  %v5138 = vpop.f32.mrb[0].mxu0
  %v5139 = vpop.f32.mrb[0].mxu0
  %v5140 = vadd.f32 0.0, %v5139
  %v5141 = vpop.f32.mrb[0].mxu0
  %5142 = vmatprep.mubr.bf16.mxu0 0
  %5143 = vmatmul.mubr.bf16.gmra.mrb[0].mxu0 %v159
  %v5144 = vpop.f32.mrb[0].mxu0
  %v5145 = vadd.f32 0.0, %v5144
  %v5146 = vpop.f32.mrb[0].mxu0
  %v5147 = vpop.f32.mrb[0].mxu0
  %v5148 = vadd.f32 0.0, %v5147
  %v5149 = vpop.f32.mrb[0].mxu0
  %5150 = vmatprep.mubr.bf16.mxu0 0
  %5151 = vmatmul.mubr.bf16.gmra.mrb[0].mxu0 %v162
  %v5152 = vpop.f32.mrb[0].mxu0
  %v5153 = vadd.f32 0.0, %v5152
  %v5154 = vpop.f32.mrb[0].mxu0
  %v5155 = vpop.f32.mrb[0].mxu0
  %v5156 = vpop.f32.mrb[0].mxu0
  %5157 = vdwg.mxu0
  %5158 = vmatprep.subr.bf16.mxu0 0
  %5159 = vmatpush1.bf16.msra.mxu0 %v5100
  %5160 = vmatprep.subr.bf16.mxu0 0
  %5161 = vmatpush1.bf16.msra.mxu0 0
  %5162 = vmatprep.subr.bf16.mxu0 0
  %5163 = vmatpush1.bf16.msra.mxu0 0
  %5164 = vmatprep.subr.bf16.mxu0 0
  %5165 = vmatpush1.bf16.msra.mxu0 0
  %5166 = vmatprep.subr.bf16.mxu0 0
  %5167 = vmatpush1.bf16.msra.mxu0 0
  %5168 = vmatprep.subr.bf16.mxu0 0
  %5169 = vmatpush1.bf16.msra.mxu0 0
  %5170 = vmatprep.subr.bf16.mxu0 0
  %5171 = vmatpush1.bf16.msra.mxu0 0
  %5172 = vmatprep.subr.bf16.mxu0 0
  %5173 = vmatpush1.bf16.msra.mxu0 0
  %5174 = vmatprep.subr.bf16.mxu0 0
  %5175 = vmatpush1.bf16.msra.mxu0 0
  %5176 = vmatprep.subr.bf16.mxu0 0
  %5177 = vmatpush1.bf16.msra.mxu0 0
  %5178 = vmatprep.subr.bf16.mxu0 0
  %5179 = vmatpush1.bf16.msra.mxu0 0
  %5180 = vmatprep.subr.bf16.mxu0 0
  %5181 = vmatpush1.bf16.msra.mxu0 0
  %5182 = vmatprep.subr.bf16.mxu0 0
  %5183 = vmatpush1.bf16.msra.mxu0 0
  %5184 = vmatprep.subr.bf16.mxu0 0
  %5185 = vmatpush1.bf16.msra.mxu0 0
  %5186 = vmatprep.subr.bf16.mxu0 0
  %5187 = vmatpush1.bf16.msra.mxu0 0
  %5188 = vmatprep.subr.bf16.mxu0 0
  %5189 = vmatpush1.bf16.msra.mxu0 0
  %5190 = vmatprep.mubr.bf16.mxu0 0
  %5191 = vmatmul.mubr.bf16.gmra.mrb[0].mxu0 %v238
  %v5192 = vpop.f32.mrb[0].mxu0
  %v5193 = vadd.f32 0.0, %v5192
  %v5194 = vpop.f32.mrb[0].mxu0
  %v5195 = vpop.f32.mrb[0].mxu0
  %v5196 = vadd.f32 0.0, %v5195
  %v5197 = vpop.f32.mrb[0].mxu0
  %5198 = vmatprep.mubr.bf16.mxu0 0
  %5199 = vmatmul.mubr.bf16.gmra.mrb[0].mxu0 %v241
  %v5200 = vpop.f32.mrb[0].mxu0
  %v5201 = vadd.f32 0.0, %v5200
  %v5202 = vpop.f32.mrb[0].mxu0
  %v5203 = vpop.f32.mrb[0].mxu0
  %v5204 = vadd.f32 0.0, %v5203
  %v5205 = vpop.f32.mrb[0].mxu0
  %5206 = vmatprep.mubr.bf16.mxu0 0
  %5207 = vmatmul.mubr.bf16.gmra.mrb[0].mxu0 %v244
  %v5208 = vpop.f32.mrb[0].mxu0
  %v5209 = vadd.f32 0.0, %v5208
  %v5210 = vpop.f32.mrb[0].mxu0
  %v5211 = vpop.f32.mrb[0].mxu0
  %v5212 = vpop.f32.mrb[0].mxu0
  %5213 = vdwg.mxu0
  %v5214 = vpack.c.bf16 %v5140, %v5137
  %v5215 = vpack.c.bf16 %v5148, %v5145
  %v5216 = vpack.c.bf16 %v5153, %v5153
  %v5217 = vpack.c.bf16 %v5196, %v5193
  %v5218 = vpack.c.bf16 %v5204, %v5201
  %v5219 = vpack.c.bf16 %v5209, %v5209
  %v5221 = vsel %vm320, %v5217, 0
  %v5224 = vsel %vm320, %v5218, 0
  %v5227 = vsel %vm320, %v5219, 0
  %5229 = vmatprep.subr.bf16.mxu0 0
  %5230 = vmatpush1.bf16.msra.mxu0 %v316
  %5231 = vmatprep.subr.bf16.mxu0 0
  %5232 = vmatpush1.bf16.msra.mxu0 %v317
  %5233 = vmatprep.subr.bf16.mxu0 0
  %5234 = vmatpush1.bf16.msra.mxu0 0
  %5235 = vmatprep.subr.bf16.mxu0 0
  %5236 = vmatpush1.bf16.msra.mxu0 0
  %5237 = vmatprep.subr.bf16.mxu0 0
  %5238 = vmatpush1.bf16.msra.mxu0 0
  %5239 = vmatprep.subr.bf16.mxu0 0
  %5240 = vmatpush1.bf16.msra.mxu0 0
  %5241 = vmatprep.subr.bf16.mxu0 0
  %5242 = vmatpush1.bf16.msra.mxu0 0
  %5243 = vmatprep.subr.bf16.mxu0 0
  %5244 = vmatpush1.bf16.msra.mxu0 0
  %5245 = vmatprep.subr.bf16.mxu0 0
  %5246 = vmatpush1.bf16.msra.mxu0 0
  %5247 = vmatprep.subr.bf16.mxu0 0
  %5248 = vmatpush1.bf16.msra.mxu0 0
  %5249 = vmatprep.subr.bf16.mxu0 0
  %5250 = vmatpush1.bf16.msra.mxu0 0
  %5251 = vmatprep.subr.bf16.mxu0 0
  %5252 = vmatpush1.bf16.msra.mxu0 0
  %5253 = vmatprep.subr.bf16.mxu0 0
  %5254 = vmatpush1.bf16.msra.mxu0 0
  %5255 = vmatprep.subr.bf16.mxu0 0
  %5256 = vmatpush1.bf16.msra.mxu0 0
  %5257 = vmatprep.subr.bf16.mxu0 0
  %5258 = vmatpush1.bf16.msra.mxu0 0
  %5259 = vmatprep.subr.bf16.mxu0 0
  %5260 = vmatpush1.bf16.msra.mxu0 0
  %5261 = vmatprep.mubr.bf16.mxu0 0
  %5262 = vmatmul.mubr.bf16.gmra.mrb[0].mxu0 %v5221
  %v5263 = vpop.f32.mrb[0].mxu0
  %v5264 = vadd.f32 0.0, %v5263
  %v5265 = vpop.f32.mrb[0].mxu0
  %v5266 = vpop.f32.mrb[0].mxu0
  %v5267 = vadd.f32 0.0, %v5266
  %v5268 = vpop.f32.mrb[0].mxu0
  %5269 = vmatprep.mubr.bf16.mxu0 0
  %5270 = vmatmul.mubr.bf16.gmra.mrb[0].mxu0 %v5224
  %v5271 = vpop.f32.mrb[0].mxu0
  %v5272 = vadd.f32 0.0, %v5271
  %v5273 = vpop.f32.mrb[0].mxu0
  %v5274 = vpop.f32.mrb[0].mxu0
  %v5275 = vadd.f32 0.0, %v5274
  %v5276 = vpop.f32.mrb[0].mxu0
  %5277 = vmatprep.mubr.bf16.mxu0 0
  %5278 = vmatmul.mubr.bf16.gmra.mrb[0].mxu0 %v5227
  %v5279 = vpop.f32.mrb[0].mxu0
  %v5280 = vadd.f32 0.0, %v5279
  %v5281 = vpop.f32.mrb[0].mxu0
  %v5282 = vpop.f32.mrb[0].mxu0
  %v5283 = vpop.f32.mrb[0].mxu0
  %5284 = vdwg.mxu0
  %v5286 = vsel %vm320, %v5214, 0
  %v5289 = vsel %vm320, %v5215, 0
  %v5292 = vsel %vm320, %v5216, 0
  %5294 = vmatprep.subr.bf16.mxu0 0
  %5295 = vmatpush1.bf16.msra.mxu0 %v394
  %5296 = vmatprep.subr.bf16.mxu0 0
  %5297 = vmatpush1.bf16.msra.mxu0 %v395
  %5298 = vmatprep.subr.bf16.mxu0 0
  %5299 = vmatpush1.bf16.msra.mxu0 0
  %5300 = vmatprep.subr.bf16.mxu0 0
  %5301 = vmatpush1.bf16.msra.mxu0 0
  %5302 = vmatprep.subr.bf16.mxu0 0
  %5303 = vmatpush1.bf16.msra.mxu0 0
  %5304 = vmatprep.subr.bf16.mxu0 0
  %5305 = vmatpush1.bf16.msra.mxu0 0
  %5306 = vmatprep.subr.bf16.mxu0 0
  %5307 = vmatpush1.bf16.msra.mxu0 0
  %5308 = vmatprep.subr.bf16.mxu0 0
  %5309 = vmatpush1.bf16.msra.mxu0 0
  %5310 = vmatprep.subr.bf16.mxu0 0
  %5311 = vmatpush1.bf16.msra.mxu0 0
  %5312 = vmatprep.subr.bf16.mxu0 0
  %5313 = vmatpush1.bf16.msra.mxu0 0
  %5314 = vmatprep.subr.bf16.mxu0 0
  %5315 = vmatpush1.bf16.msra.mxu0 0
  %5316 = vmatprep.subr.bf16.mxu0 0
  %5317 = vmatpush1.bf16.msra.mxu0 0
  %5318 = vmatprep.subr.bf16.mxu0 0
  %5319 = vmatpush1.bf16.msra.mxu0 0
  %5320 = vmatprep.subr.bf16.mxu0 0
  %5321 = vmatpush1.bf16.msra.mxu0 0
  %5322 = vmatprep.subr.bf16.mxu0 0
  %5323 = vmatpush1.bf16.msra.mxu0 0
  %5324 = vmatprep.subr.bf16.mxu0 0
  %5325 = vmatpush1.bf16.msra.mxu0 0
  %5326 = vmatprep.mubr.bf16.mxu0 0
  %5327 = vmatmul.mubr.bf16.gmra.mrb[0].mxu0 %v5286
  %v5328 = vpop.f32.mrb[0].mxu0
  %v5329 = vadd.f32 %v5264, %v5328
  %v5330 = vpop.f32.mrb[0].mxu0
  %v5331 = vpop.f32.mrb[0].mxu0
  %v5332 = vadd.f32 %v5267, %v5331
  %v5333 = vpop.f32.mrb[0].mxu0
  %5334 = vmatprep.mubr.bf16.mxu0 0
  %5335 = vmatmul.mubr.bf16.gmra.mrb[0].mxu0 %v5289
  %v5336 = vpop.f32.mrb[0].mxu0
  %v5337 = vadd.f32 %v5272, %v5336
  %v5338 = vpop.f32.mrb[0].mxu0
  %v5339 = vpop.f32.mrb[0].mxu0
  %v5340 = vadd.f32 %v5275, %v5339
  %v5341 = vpop.f32.mrb[0].mxu0
  %5342 = vmatprep.mubr.bf16.mxu0 0
  %5343 = vmatmul.mubr.bf16.gmra.mrb[0].mxu0 %v5292
  %v5344 = vpop.f32.mrb[0].mxu0
  %v5345 = vadd.f32 %v5280, %v5344
  %v5346 = vpop.f32.mrb[0].mxu0
  %v5347 = vpop.f32.mrb[0].mxu0
  %v5348 = vpop.f32.mrb[0].mxu0
  %5349 = vdwg.mxu0
  %v5350 = vadd.f32 %v5329, %v467
  %v5351 = vadd.f32 %v5332, %v467
  %v5352 = vadd.f32 %v5337, %v467
  %v5353 = vadd.f32 %v5340, %v467
  %v5354 = vadd.f32 %v5345, %v467
  %v5355 = vtanh.pop %v5350
  %v5356 = vtanh.pop %v5351
  %v5357 = vtanh.pop %v5352
  %v5358 = vtanh.pop %v5353
  %v5359 = vtanh.pop %v5354
  %v5360 = vpack.c.bf16 %v5356, %v5355
  %v5361 = vpack.c.bf16 %v5358, %v5357
  %v5362 = vpack.c.bf16 %v5359, %v5359
  %v5364 = vsel %vm524, %v5360, 0
  %v5367 = vsel %vm524, %v5361, 0
  %v5370 = vsel %vm524, %v5362, 0
  %5372 = vmatprep.subr.bf16.mxu0 0
  %5373 = vmatpush1.bf16.msra.mxu0 %v512
  %5374 = vmatprep.subr.bf16.mxu0 0
  %5375 = vmatpush1.bf16.msra.mxu0 %v513
  %5376 = vmatprep.subr.bf16.mxu0 0
  %5377 = vmatpush1.bf16.msra.mxu0 %v514
  %5378 = vmatprep.subr.bf16.mxu0 0
  %5379 = vmatpush1.bf16.msra.mxu0 %v515
  %5380 = vmatprep.subr.bf16.mxu0 0
  %5381 = vmatpush1.bf16.msra.mxu0 %v516
  %5382 = vmatprep.subr.bf16.mxu0 0
  %5383 = vmatpush1.bf16.msra.mxu0 %v517
  %5384 = vmatprep.subr.bf16.mxu0 0
  %5385 = vmatpush1.bf16.msra.mxu0 0
  %5386 = vmatprep.subr.bf16.mxu0 0
  %5387 = vmatpush1.bf16.msra.mxu0 0
  %5388 = vmatprep.subr.bf16.mxu0 0
  %5389 = vmatpush1.bf16.msra.mxu0 0
  %5390 = vmatprep.subr.bf16.mxu0 0
  %5391 = vmatpush1.bf16.msra.mxu0 0
  %5392 = vmatprep.subr.bf16.mxu0 0
  %5393 = vmatpush1.bf16.msra.mxu0 0
  %5394 = vmatprep.subr.bf16.mxu0 0
  %5395 = vmatpush1.bf16.msra.mxu0 0
  %5396 = vmatprep.subr.bf16.mxu0 0
  %5397 = vmatpush1.bf16.msra.mxu0 0
  %5398 = vmatprep.subr.bf16.mxu0 0
  %5399 = vmatpush1.bf16.msra.mxu0 0
  %5400 = vmatprep.subr.bf16.mxu0 0
  %5401 = vmatpush1.bf16.msra.mxu0 0
  %5402 = vmatprep.subr.bf16.mxu0 0
  %5403 = vmatpush1.bf16.msra.mxu0 0
  %5404 = vmatprep.mubr.bf16.mxu0 0
  %5405 = vmatmul.mubr.bf16.gmra.mrb[0].mxu0 %v5364
  %v5406 = vpop.f32.mrb[0].mxu0
  %v5407 = vadd.f32 %v486, %v5406
  %v5408 = vpop.f32.mrb[0].mxu0
  %v5409 = vpop.f32.mrb[0].mxu0
  %v5410 = vadd.f32 %v486, %v5409
  %v5411 = vpop.f32.mrb[0].mxu0
  %5412 = vmatprep.mubr.bf16.mxu0 0
  %5413 = vmatmul.mubr.bf16.gmra.mrb[0].mxu0 %v5367
  %v5414 = vpop.f32.mrb[0].mxu0
  %v5415 = vadd.f32 %v486, %v5414
  %v5416 = vpop.f32.mrb[0].mxu0
  %v5417 = vpop.f32.mrb[0].mxu0
  %v5418 = vadd.f32 %v486, %v5417
  %v5419 = vpop.f32.mrb[0].mxu0
  %5420 = vmatprep.mubr.bf16.mxu0 0
  %5421 = vmatmul.mubr.bf16.gmra.mrb[0].mxu0 %v5370
  %v5422 = vpop.f32.mrb[0].mxu0
  %v5423 = vadd.f32 %v486, %v5422
  %v5424 = vpop.f32.mrb[0].mxu0
  %v5425 = vpop.f32.mrb[0].mxu0
  %v5426 = vpop.f32.mrb[0].mxu0
  %5427 = vdwg.mxu0
  %v5428 = vtanh.pop %v5407
  %v5429 = vtanh.pop %v5410
  %v5430 = vtanh.pop %v5415
  %v5431 = vtanh.pop %v5418
  %v5432 = vtanh.pop %v5423
  %v5433 = vpack.c.bf16 %v5429, %v5428
  %v5434 = vpack.c.bf16 %v5431, %v5430
  %v5435 = vpack.c.bf16 %v5432, %v5432
  %v5437 = vsel %vm607, %v5435, 0
  %5439 = vmatprep.subr.bf16.mxu0 0
  %5440 = vmatpush1.bf16.msra.mxu0 %v5433
  %5441 = vmatprep.subr.bf16.mxu0 0
  %5442 = vmatpush1.bf16.msra.mxu0 %v5434
  %5443 = vmatprep.subr.bf16.mxu0 0
  %5444 = vmatpush1.bf16.msra.mxu0 %v5437
  %5445 = vmatprep.subr.bf16.mxu0 0
  %5446 = vmatpush1.bf16.msra.mxu0 0
  %5447 = vmatprep.subr.bf16.mxu0 0
  %5448 = vmatpush1.bf16.msra.mxu0 0
  %5449 = vmatprep.subr.bf16.mxu0 0
  %5450 = vmatpush1.bf16.msra.mxu0 0
  %5451 = vmatprep.subr.bf16.mxu0 0
  %5452 = vmatpush1.bf16.msra.mxu0 0
  %5453 = vmatprep.subr.bf16.mxu0 0
  %5454 = vmatpush1.bf16.msra.mxu0 0
  %5455 = vmatprep.subr.bf16.mxu0 0
  %5456 = vmatpush1.bf16.msra.mxu0 0
  %5457 = vmatprep.subr.bf16.mxu0 0
  %5458 = vmatpush1.bf16.msra.mxu0 0
  %5459 = vmatprep.subr.bf16.mxu0 0
  %5460 = vmatpush1.bf16.msra.mxu0 0
  %5461 = vmatprep.subr.bf16.mxu0 0
  %5462 = vmatpush1.bf16.msra.mxu0 0
  %5463 = vmatprep.subr.bf16.mxu0 0
  %5464 = vmatpush1.bf16.msra.mxu0 0
  %5465 = vmatprep.subr.bf16.mxu0 0
  %5466 = vmatpush1.bf16.msra.mxu0 0
  %5467 = vmatprep.subr.bf16.mxu0 0
  %5468 = vmatpush1.bf16.msra.mxu0 0
  %5469 = vmatprep.subr.bf16.mxu0 0
  %5470 = vmatpush1.bf16.msra.mxu0 0
  %5471 = vmatprep.mubr.bf16.mxu0 0
  %5472 = vmatmul.mubr.bf16.gmra.mrb[0].mxu0 %v605
  %v5473 = vpop.f32.mrb[0].mxu0
  %v5474 = vadd.f32 0.0, %v5473
  %v5475 = vpop.f32.mrb[0].mxu0
  %v5476 = vpop.f32.mrb[0].mxu0
  %v5477 = vadd.f32 0.0, %v5476
  %v5478 = vpop.f32.mrb[0].mxu0
  %5479 = vdwg.mxu0
  %v5480 = vpack.c.bf16 %v5477, %v5474
  %v5482 = vsel %vm524, %v5480, 0
  %5484 = vmatprep.subr.bf16.mxu0 0
  %5485 = vmatpush1.bf16.msra.mxu0 %v677
  %5486 = vmatprep.subr.bf16.mxu0 0
  %5487 = vmatpush1.bf16.msra.mxu0 %v678
  %5488 = vmatprep.subr.bf16.mxu0 0
  %5489 = vmatpush1.bf16.msra.mxu0 %v679
  %5490 = vmatprep.subr.bf16.mxu0 0
  %5491 = vmatpush1.bf16.msra.mxu0 %v680
  %5492 = vmatprep.subr.bf16.mxu0 0
  %5493 = vmatpush1.bf16.msra.mxu0 %v681
  %5494 = vmatprep.subr.bf16.mxu0 0
  %5495 = vmatpush1.bf16.msra.mxu0 %v682
  %5496 = vmatprep.subr.bf16.mxu0 0
  %5497 = vmatpush1.bf16.msra.mxu0 0
  %5498 = vmatprep.subr.bf16.mxu0 0
  %5499 = vmatpush1.bf16.msra.mxu0 0
  %5500 = vmatprep.subr.bf16.mxu0 0
  %5501 = vmatpush1.bf16.msra.mxu0 0
  %5502 = vmatprep.subr.bf16.mxu0 0
  %5503 = vmatpush1.bf16.msra.mxu0 0
  %5504 = vmatprep.subr.bf16.mxu0 0
  %5505 = vmatpush1.bf16.msra.mxu0 0
  %5506 = vmatprep.subr.bf16.mxu0 0
  %5507 = vmatpush1.bf16.msra.mxu0 0
  %5508 = vmatprep.subr.bf16.mxu0 0
  %5509 = vmatpush1.bf16.msra.mxu0 0
  %5510 = vmatprep.subr.bf16.mxu0 0
  %5511 = vmatpush1.bf16.msra.mxu0 0
  %5512 = vmatprep.subr.bf16.mxu0 0
  %5513 = vmatpush1.bf16.msra.mxu0 0
  %5514 = vmatprep.subr.bf16.mxu0 0
  %5515 = vmatpush1.bf16.msra.mxu0 0
  %5516 = vmatprep.mubr.bf16.mxu0 0
  %5517 = vmatmul.mubr.bf16.gmra.mrb[0].mxu0 %v5482
  %v5518 = vpop.f32.mrb[0].mxu0
  %v5519 = vadd.f32 0.0, %v5518
  %v5520 = vpop.f32.mrb[0].mxu0
  %v5521 = vpop.f32.mrb[0].mxu0
  %v5522 = vadd.f32 0.0, %v5521
  %v5523 = vpop.f32.mrb[0].mxu0
  %5524 = vdwg.mxu0
  %5525 = vmatprep.subr.bf16.mxu0 0
  %5526 = vmatpush1.bf16.msra.mxu0 %v771
  %5527 = vmatprep.subr.bf16.mxu0 0
  %5528 = vmatpush1.bf16.msra.mxu0 %v772
  %5529 = vmatprep.subr.bf16.mxu0 0
  %5530 = vmatpush1.bf16.msra.mxu0 %v773
  %5531 = vmatprep.subr.bf16.mxu0 0
  %5532 = vmatpush1.bf16.msra.mxu0 %v774
  %5533 = vmatprep.subr.bf16.mxu0 0
  %5534 = vmatpush1.bf16.msra.mxu0 %v775
  %5535 = vmatprep.subr.bf16.mxu0 0
  %5536 = vmatpush1.bf16.msra.mxu0 %v776
  %5537 = vmatprep.subr.bf16.mxu0 0
  %5538 = vmatpush1.bf16.msra.mxu0 %v777
  %5539 = vmatprep.subr.bf16.mxu0 0
  %5540 = vmatpush1.bf16.msra.mxu0 %v778
  %5541 = vmatprep.subr.bf16.mxu0 0
  %5542 = vmatpush1.bf16.msra.mxu0 0
  %5543 = vmatprep.subr.bf16.mxu0 0
  %5544 = vmatpush1.bf16.msra.mxu0 0
  %5545 = vmatprep.subr.bf16.mxu0 0
  %5546 = vmatpush1.bf16.msra.mxu0 0
  %5547 = vmatprep.subr.bf16.mxu0 0
  %5548 = vmatpush1.bf16.msra.mxu0 0
  %5549 = vmatprep.subr.bf16.mxu0 0
  %5550 = vmatpush1.bf16.msra.mxu0 0
  %5551 = vmatprep.subr.bf16.mxu0 0
  %5552 = vmatpush1.bf16.msra.mxu0 0
  %5553 = vmatprep.subr.bf16.mxu0 0
  %5554 = vmatpush1.bf16.msra.mxu0 0
  %5555 = vmatprep.subr.bf16.mxu0 0
  %5556 = vmatpush1.bf16.msra.mxu0 0
  %5557 = vmatprep.mubr.bf16.mxu0 0
  %5558 = vmatmul.mubr.bf16.gmra.mrb[0].mxu0 %v5099
  %v5559 = vpop.f32.mrb[0].mxu0
  %v5560 = vadd.f32 %v737, %v5559
  %v5561 = vpop.f32.mrb[0].mxu0
  %v5562 = vpop.f32.mrb[0].mxu0
  %v5563 = vadd.f32 %v737, %v5562
  %v5564 = vpop.f32.mrb[0].mxu0
  %5565 = vdwg.mxu0
  %v5566 = vadd.f32 %v5560, %v5519
  %v5567 = vadd.f32 %v5563, %v5522
  %v5568 = vxor.u32 %v5566, 2147483648
  %v5569 = vxor.u32 %v5567, 2147483648
  %v5570 = vmul.f32 %v5568, 1.442695
  %v5571 = vpow.pop %v5570
  %v5572 = vmul.f32 %v5569, 1.442695
  %v5573 = vpow.pop %v5572
  %v5574 = vadd.f32 %v5571, 1.0
  %v5575 = vadd.f32 %v5573, 1.0
  %v5576 = vrcp.pop %v5574
  %v5577 = vmul.f32 1.0, %v5576
  %v5578 = vrcp.pop %v5575
  %v5579 = vmul.f32 1.0, %v5578
  %5582 = vrot.lane.b32.xlu0 %v5519, 64
  %v5583 = vpop.permute.xlu0 %5582
  %5584 = vrot.lane.b32.xlu0 %v5522, 64
  %v5585 = vpop.permute.xlu0 %5584
  %v5588 = vmul.f32 %v5577, %v5583
  %v5589 = vmul.f32 %v5579, %v5585
  %5592 = vrot.lane.b32.xlu0 %v5588, 64
  %v5593 = vpop.permute.xlu0 %5592
  %5594 = vrot.lane.b32.xlu0 %v5589, 64
  %v5595 = vpop.permute.xlu0 %5594
  %v5598 = vadd.f32 %v5560, %v5593
  %v5599 = vadd.f32 %v5563, %v5595
  %v5600 = vtanh.pop %v5598
  %v5601 = vtanh.pop %v5599
  %v5602 = vsub.f32 1.0, %v5577
  %v5603 = vsub.f32 1.0, %v5579
  %5606 = vrot.lane.b32.xlu0 %v5600, 96
  %v5607 = vpop.permute.xlu0 %5606
  %5608 = vrot.lane.b32.xlu0 %v5601, 96
  %v5609 = vpop.permute.xlu0 %5608
  %v5612 = vmul.f32 %v5602, %v5607
  %v5613 = vmul.f32 %v5603, %v5609
  %v5614 = vmul.f32 %v5577, %v4948
  %v5615 = vmul.f32 %v5579, %v4949
  %v5616 = vadd.f32 %v5612, %v5614
  %v5617 = vadd.f32 %v5613, %v5615
  %v5618 = vpack.c.bf16 %v5617, %v5616
  %5620 = vrot.lane.b32.xlu0 %v5618, 96
  %v5621 = vpop.permute.xlu0 %5620
  %v5623 = vsel %vm320, %v5621, 0
  %5625 = vmatprep.subr.bf16.mxu0 0
  %5626 = vmatpush1.bf16.msra.mxu0 %v898
  %5627 = vmatprep.subr.bf16.mxu0 0
  %5628 = vmatpush1.bf16.msra.mxu0 %v899
  %5629 = vmatprep.subr.bf16.mxu0 0
  %5630 = vmatpush1.bf16.msra.mxu0 0
  %5631 = vmatprep.subr.bf16.mxu0 0
  %5632 = vmatpush1.bf16.msra.mxu0 0
  %5633 = vmatprep.subr.bf16.mxu0 0
  %5634 = vmatpush1.bf16.msra.mxu0 0
  %5635 = vmatprep.subr.bf16.mxu0 0
  %5636 = vmatpush1.bf16.msra.mxu0 0
  %5637 = vmatprep.subr.bf16.mxu0 0
  %5638 = vmatpush1.bf16.msra.mxu0 0
  %5639 = vmatprep.subr.bf16.mxu0 0
  %5640 = vmatpush1.bf16.msra.mxu0 0
  %5641 = vmatprep.subr.bf16.mxu0 0
  %5642 = vmatpush1.bf16.msra.mxu0 0
  %5643 = vmatprep.subr.bf16.mxu0 0
  %5644 = vmatpush1.bf16.msra.mxu0 0
  %5645 = vmatprep.subr.bf16.mxu0 0
  %5646 = vmatpush1.bf16.msra.mxu0 0
  %5647 = vmatprep.subr.bf16.mxu0 0
  %5648 = vmatpush1.bf16.msra.mxu0 0
  %5649 = vmatprep.subr.bf16.mxu0 0
  %5650 = vmatpush1.bf16.msra.mxu0 0
  %5651 = vmatprep.subr.bf16.mxu0 0
  %5652 = vmatpush1.bf16.msra.mxu0 0
  %5653 = vmatprep.subr.bf16.mxu0 0
  %5654 = vmatpush1.bf16.msra.mxu0 0
  %5655 = vmatprep.subr.bf16.mxu0 0
  %5656 = vmatpush1.bf16.msra.mxu0 0
  %5657 = vmatprep.mubr.bf16.mxu0 0
  %5658 = vmatmul.mubr.bf16.gmra.mrb[0].mxu0 %v5623
  %v5659 = vpop.f32.mrb[0].mxu0
  %v5660 = vadd.f32 %v885, %v5659
  %v5661 = vpop.f32.mrb[0].mxu0
  %v5662 = vpop.f32.mrb[0].mxu0
  %v5663 = vadd.f32 %v885, %v5662
  %v5664 = vpop.f32.mrb[0].mxu0
  %5665 = vdwg.mxu0
  %v5666 = vmax.f32 %v5660, 0.0
  %v5667 = vmax.f32 %v5663, 0.0
  %v5668 = vpack.c.bf16 %v5667, %v5666
  %v5670 = vsel %vm320, %v5668, 0
  %5672 = vmatprep.subr.bf16.mxu0 0
  %5673 = vmatpush1.bf16.msra.mxu0 %v963
  %5674 = vmatprep.subr.bf16.mxu0 0
  %5675 = vmatpush1.bf16.msra.mxu0 %v964
  %5676 = vmatprep.subr.bf16.mxu0 0
  %5677 = vmatpush1.bf16.msra.mxu0 0
  %5678 = vmatprep.subr.bf16.mxu0 0
  %5679 = vmatpush1.bf16.msra.mxu0 0
  %5680 = vmatprep.subr.bf16.mxu0 0
  %5681 = vmatpush1.bf16.msra.mxu0 0
  %5682 = vmatprep.subr.bf16.mxu0 0
  %5683 = vmatpush1.bf16.msra.mxu0 0
  %5684 = vmatprep.subr.bf16.mxu0 0
  %5685 = vmatpush1.bf16.msra.mxu0 0
  %5686 = vmatprep.subr.bf16.mxu0 0
  %5687 = vmatpush1.bf16.msra.mxu0 0
  %5688 = vmatprep.subr.bf16.mxu0 0
  %5689 = vmatpush1.bf16.msra.mxu0 0
  %5690 = vmatprep.subr.bf16.mxu0 0
  %5691 = vmatpush1.bf16.msra.mxu0 0
  %5692 = vmatprep.subr.bf16.mxu0 0
  %5693 = vmatpush1.bf16.msra.mxu0 0
  %5694 = vmatprep.subr.bf16.mxu0 0
  %5695 = vmatpush1.bf16.msra.mxu0 0
  %5696 = vmatprep.subr.bf16.mxu0 0
  %5697 = vmatpush1.bf16.msra.mxu0 0
  %5698 = vmatprep.subr.bf16.mxu0 0
  %5699 = vmatpush1.bf16.msra.mxu0 0
  %5700 = vmatprep.subr.bf16.mxu0 0
  %5701 = vmatpush1.bf16.msra.mxu0 0
  %5702 = vmatprep.subr.bf16.mxu0 0
  %5703 = vmatpush1.bf16.msra.mxu0 0
  %5704 = vmatprep.mubr.bf16.mxu0 0
  %5705 = vmatmul.mubr.bf16.gmra.mrb[0].mxu0 %v5670
  %v5706 = vpop.f32.mrb[0].mxu0
  %v5707 = vadd.f32 %v953, %v5706
  %v5708 = vpop.f32.mrb[0].mxu0
  %v5709 = vpop.f32.mrb[0].mxu0
  %v5710 = vadd.f32 %v953, %v5709
  %v5711 = vpop.f32.mrb[0].mxu0
  %5712 = vdwg.mxu0
  %v5713 = vmax.f32 %v5707, 0.0
  %v5714 = vmax.f32 %v5710, 0.0
  %v5715 = vpack.c.bf16 %v5714, %v5713
  %v5717 = vsel %vm320, %v5715, 0
  %5719 = vmatprep.subr.bf16.mxu0 0
  %5720 = vmatpush1.bf16.msra.mxu0 %v1028
  %5721 = vmatprep.subr.bf16.mxu0 0
  %5722 = vmatpush1.bf16.msra.mxu0 %v1029
  %5723 = vmatprep.subr.bf16.mxu0 0
  %5724 = vmatpush1.bf16.msra.mxu0 0
  %5725 = vmatprep.subr.bf16.mxu0 0
  %5726 = vmatpush1.bf16.msra.mxu0 0
  %5727 = vmatprep.subr.bf16.mxu0 0
  %5728 = vmatpush1.bf16.msra.mxu0 0
  %5729 = vmatprep.subr.bf16.mxu0 0
  %5730 = vmatpush1.bf16.msra.mxu0 0
  %5731 = vmatprep.subr.bf16.mxu0 0
  %5732 = vmatpush1.bf16.msra.mxu0 0
  %5733 = vmatprep.subr.bf16.mxu0 0
  %5734 = vmatpush1.bf16.msra.mxu0 0
  %5735 = vmatprep.subr.bf16.mxu0 0
  %5736 = vmatpush1.bf16.msra.mxu0 0
  %5737 = vmatprep.subr.bf16.mxu0 0
  %5738 = vmatpush1.bf16.msra.mxu0 0
  %5739 = vmatprep.subr.bf16.mxu0 0
  %5740 = vmatpush1.bf16.msra.mxu0 0
  %5741 = vmatprep.subr.bf16.mxu0 0
  %5742 = vmatpush1.bf16.msra.mxu0 0
  %5743 = vmatprep.subr.bf16.mxu0 0
  %5744 = vmatpush1.bf16.msra.mxu0 0
  %5745 = vmatprep.subr.bf16.mxu0 0
  %5746 = vmatpush1.bf16.msra.mxu0 0
  %5747 = vmatprep.subr.bf16.mxu0 0
  %5748 = vmatpush1.bf16.msra.mxu0 0
  %5749 = vmatprep.subr.bf16.mxu0 0
  %5750 = vmatpush1.bf16.msra.mxu0 0
  %5751 = vmatprep.mubr.bf16.mxu0 0
  %5752 = vmatmul.mubr.bf16.gmra.mrb[0].mxu0 %v5717
  %v5753 = vpop.f32.mrb[0].mxu0
  %v5754 = vadd.f32 %v1018, %v5753
  %v5755 = vpop.f32.mrb[0].mxu0
  %v5756 = vpop.f32.mrb[0].mxu0
  %v5757 = vadd.f32 %v1018, %v5756
  %v5758 = vpop.f32.mrb[0].mxu0
  %5759 = vdwg.mxu0
  %v5760 = vmax.f32 %v5754, 0.0
  %v5761 = vmax.f32 %v5757, 0.0
  %v5762 = vadd.f32 %v5094, %v5760
  %v5763 = vadd.f32 %v5095, %v5761
  %s5764 = scalar_lea.vmem %s18, 112
  %5765 = vst [vmem:[%s5764] sm:$0xff] %v5762
  %5766 = vst [vmem:[%s5764 + $0x8] sm:$0x3] %v5763
  // Predicated region
  $region74: #{tpu_custom_call.1} parent=0 // pred_check
    _
  $region75: #{tpu_custom_call.1} parent=0 // pred_check_branch
    %5768 = sbr.rel (0) target = $region77
  $region76: #{tpu_custom_call.1} parent=0 // pred_region
    _
  $region77: #{tpu_custom_call.1} parent=0 // pred_fallthru
    _
  // Predicated region
  $region78: #{tpu_custom_call.1} parent=0 // pred_check
    _
  $region79: #{tpu_custom_call.1} parent=0 // pred_check_branch
    %5770 = sbr.rel (0) target = $region81
  $region80: #{tpu_custom_call.1} parent=0 // pred_region
    _
  $region81: #{tpu_custom_call.1} parent=0 // pred_fallthru
    _

</llo_original>
